<compile_context>
chip_gen: v5e
topology: v5e:2x2
jax: 0.10.0
libtpu: 0.0.40
codegen_flags: <defaults>
</compile_context>

<pallas_src>
import functools

import jax
import jax.numpy as jnp
from jax.experimental import pallas as pl
from jax.experimental.pallas import tpu as pltpu

EPS = 1e-5   # torch.nn.LayerNorm default
LANE = 128


def _round_up(v, m):
    return (v + m - 1) // m * m


def _vmem_limit_bytes():
    """75% of physical VMEM, capped at 100 MiB (v7x: ~48 MiB, v5e/v6e: 96 MiB)."""
    try:
        info = pltpu.get_tpu_info()
        cap = getattr(info, "vmem_capacity_bytes", None)
        if cap is None:
            cap = getattr(info, "vmem_size_bytes", 64 * 1024 * 1024)
        return int(min(cap * 3 // 4, 100 * 1024 * 1024))
    except Exception:
        return 48 * 1024 * 1024


def _masked_layernorm(y, gamma, beta, f_real):
    """Two-pass LayerNorm over the first `f_real` features of a lane-padded block.

    Padded columns of y, gamma, beta are exactly zero; the (y - mu) deviations in
    padded columns are masked to zero so the variance uses only real features.
    """
    fp = y.shape[-1]
    inv_f = 1.0 / float(f_real)
    lane_mask = jax.lax.broadcasted_iota(jnp.int32, (1, fp), 1) < f_real
    mu = jnp.sum(y, axis=-1, keepdims=True) * inv_f
    d = jnp.where(lane_mask, y - mu, 0.0)
    var = jnp.sum(d * d, axis=-1, keepdims=True) * inv_f
    return d * jax.lax.rsqrt(var + EPS) * gamma + beta


# --------------------------- edge update + scatter ---------------------------
def _edge_kernel(f_real,
                 e_ref, snd_ref, rcv_ref, rcvrow_ref,
                 xs_ref, xr_ref,
                 w1e_ref, b1_ref, w2_ref, b2_ref, w3_ref, b3_ref, g_ref, be_ref,
                 new_e_ref, agg_ref):
    i = pl.program_id(1)                                  # inner (reduction) axis

    e_f32 = e_ref[...]                                    # [TE, Fp] f32 (original)
    e_bf = e_f32.astype(jnp.bfloat16)
    te = e_f32.shape[0]
    np_ = xs_ref.shape[0]

    # ---- scatter-add of ORIGINAL edge_attr by receiver -------------------------
    # Transposed one-hot built directly ([Np, TE]) -> no in-kernel transpose.
    node_iota_t = jax.lax.broadcasted_iota(jnp.int32, (np_, te), 0)
    oh_rt = (rcvrow_ref[...] == node_iota_t).astype(jnp.bfloat16)   # [Np, TE]
    part = jnp.dot(oh_rt, e_bf, preferred_element_type=jnp.float32)  # [Np, Fp]

    @pl.when(i == 0)
    def _():
        agg_ref[...] = jnp.zeros_like(agg_ref)
    agg_ref[...] += part[None, :, :]

    # ---- edge MLP first layer via hoisted projections --------------------------
    # h1 = x[snd] @ w1_snd + x[rcv] @ w1_rcv + e @ w1_e + b1, with the node
    # projections precomputed once as xs = x @ w1_snd, xr = x @ w1_rcv.
    node_iota = jax.lax.broadcasted_iota(jnp.int32, (te, np_), 1)
    oh_s = (snd_ref[...] == node_iota).astype(jnp.bfloat16)          # [TE, Np]
    oh_r = (rcv_ref[...] == node_iota).astype(jnp.bfloat16)          # [TE, Np]

    h = (jnp.dot(oh_s, xs_ref[...], preferred_element_type=jnp.float32)
         + jnp.dot(oh_r, xr_ref[...], preferred_element_type=jnp.float32)
         + jnp.dot(e_bf, w1e_ref[...], preferred_element_type=jnp.float32)
         + b1_ref[...])
    h = jnp.maximum(h, 0.0).astype(jnp.bfloat16)
    h = jnp.maximum(
        jnp.dot(h, w2_ref[...], preferred_element_type=jnp.float32) + b2_ref[...],
        0.0).astype(jnp.bfloat16)
    y = jnp.dot(h, w3_ref[...], preferred_element_type=jnp.float32) + b3_ref[...]
    y = _masked_layernorm(y, g_ref[...], be_ref[...], f_real)
    new_e_ref[...] = y + e_f32


# --------------------------------- node update --------------------------------
def _node_kernel(f_real,
                 x_ref, agg_ref,
                 w1x_ref, w1a_ref, b1_ref,
                 w2_ref, b2_ref, w3_ref, b3_ref, g_ref, be_ref,
                 new_x_ref):
    x_f32 = x_ref[...]                                    # [TN, Fp] f32
    xb = x_f32.astype(jnp.bfloat16)
    # Sum per-core partial aggregates: [C, TN, Fp] -> [TN, Fp].
    ab = jnp.sum(agg_ref[...], axis=0).astype(jnp.bfloat16)

    h = (jnp.dot(xb, w1x_ref[...], preferred_element_type=jnp.float32)
         + jnp.dot(ab, w1a_ref[...], preferred_element_type=jnp.float32)
         + b1_ref[...])
    h = jnp.maximum(h, 0.0).astype(jnp.bfloat16)
    h = jnp.maximum(
        jnp.dot(h, w2_ref[...], preferred_element_type=jnp.float32) + b2_ref[...],
        0.0).astype(jnp.bfloat16)
    y = jnp.dot(h, w3_ref[...], preferred_element_type=jnp.float32) + b3_ref[...]
    y = _masked_layernorm(y, g_ref[...], be_ref[...], f_real)
    new_x_ref[...] = y + x_f32


# ------------------------------ parameter prep --------------------------------
def prepare_params(params):
    """One-time padding / splitting / casting of the MLP weights.

    Hoisted out of graph_net_block so a multi-step rollout pays this once.
    """
    (w1e_full, b1e, w2e, b2e, w3e, b3e, ge, be,
     w1n_full, b1n, w2n, b2n, w3n, b3n, gn, bn) = params

    H, F = w3e.shape[0], w3e.shape[1]
    Fp = _round_up(F, LANE)
    Hp = _round_up(H, LANE)
    bf16 = jnp.bfloat16

    def pad2(a, rows, cols, dtype=None):
        a = jnp.asarray(a, jnp.float32)
        out = jnp.pad(a, ((0, rows - a.shape[0]), (0, cols - a.shape[1])))
        return out if dtype is None else out.astype(dtype)

    # Edge MLP: w1 split into sender / receiver / edge input blocks.
    w1s = pad2(w1e_full[:F, :], Fp, Hp, bf16)
    w1r = pad2(w1e_full[F:2 * F, :], Fp, Hp, bf16)
    w1ee = pad2(w1e_full[2 * F:, :], Fp, Hp, bf16)
    edge = (w1s, w1r, w1ee,
            pad2(b1e, 1, Hp), pad2(w2e, Hp, Hp, bf16), pad2(b2e, 1, Hp),
            pad2(w3e, Hp, Fp, bf16), pad2(b3e, 1, Fp),
            pad2(ge, 1, Fp), pad2(be, 1, Fp))

    # Node MLP: w1 split into node / aggregated-edge input blocks.
    w1x = pad2(w1n_full[:F, :], Fp, Hp, bf16)
    w1a = pad2(w1n_full[F:2 * F, :], Fp, Hp, bf16)
    node = (w1x, w1a,
            pad2(b1n, 1, Hp), pad2(w2n, Hp, Hp, bf16), pad2(b2n, 1, Hp),
            pad2(w3n, Hp, Fp, bf16), pad2(b3n, 1, Fp),
            pad2(gn, 1, Fp), pad2(bn, 1, Fp))
    return {"edge": edge, "node": node}


# ----------------------------------- wrapper ----------------------------------
@functools.partial(jax.jit,
                   static_argnames=("edge_tile", "node_tile", "core_splits"))
def graph_net_block(x, edge_attr, senders, receivers, prepared,
                    *, edge_tile=512, node_tile=256, core_splits=2):
    """Returns (new_node_features, new_edge_features, edge_attr_out)."""
    N, F = x.shape
    E = edge_attr.shape[0]

    (w1s, w1r, w1ee, b1e_p, w2e_p, b2e_p, w3e_p, b3e_p, ge_p, be_p) = prepared["edge"]
    (w1x, w1a, b1n_p, w2n_p, b2n_p, w3n_p, b3n_p, gn_p, bn_p) = prepared["node"]
    Fp, Hp = w1ee.shape

    Np = _round_up(N, max(node_tile, LANE))
    Ep = _round_up(E, edge_tile * core_splits)
    tiles_per_core = Ep // (edge_tile * core_splits)

    bf16 = jnp.bfloat16

    def pad2(a, rows, cols):
        a = a.astype(jnp.float32)
        return jnp.pad(a, ((0, rows - a.shape[0]), (0, cols - a.shape[1])))

    # ---- pad activations / indices --------------------------------------------
    x_f32 = pad2(x, Np, Fp)
    x_bf = x_f32.astype(bf16)
    e_pad = pad2(edge_attr, Ep, Fp)
    snd = jnp.pad(senders.astype(jnp.int32), (0, Ep - E)).reshape(Ep, 1)
    rcv = jnp.pad(receivers.astype(jnp.int32), (0, Ep - E)).reshape(Ep, 1)
    rcv_row = rcv.reshape(1, Ep)

    # ---- hoisted first-layer node projections (once per call, VMEM-resident) --
    xs_bf = jnp.dot(x_bf, w1s, preferred_element_type=jnp.float32).astype(bf16)
    xr_bf = jnp.dot(x_bf, w1r, preferred_element_type=jnp.float32).astype(bf16)

    def resident(a):
        zeros = (0,) * a.ndim
        return pl.BlockSpec(a.shape, lambda *_: zeros)

    vmem_limit = _vmem_limit_bytes()
    tpc = tiles_per_core

    # ---- pass 1: edge update + per-core partial scatter-add over edge tiles ---
    edge_weights = (w1ee, b1e_p, w2e_p, b2e_p, w3e_p, b3e_p, ge_p, be_p)
    edge_in_specs = [
        pl.BlockSpec((edge_tile, Fp), lambda c, i: (c * tpc + i, 0)),  # edge tile
        pl.BlockSpec((edge_tile, 1), lambda c, i: (c * tpc + i, 0)),   # senders
        pl.BlockSpec((edge_tile, 1), lambda c, i: (c * tpc + i, 0)),   # receivers
        pl.BlockSpec((1, edge_tile), lambda c, i: (0, c * tpc + i)),   # receivers (row)
        resident(xs_bf), resident(xr_bf),
    ] + [resident(w) for w in edge_weights]

    new_e_pad, agg = pl.pallas_call(
        functools.partial(_edge_kernel, F),
        grid=(core_splits, tiles_per_core),
        in_specs=edge_in_specs,
        out_specs=(
            pl.BlockSpec((edge_tile, Fp), lambda c, i: (c * tpc + i, 0)),  # new edges
            pl.BlockSpec((1, Np, Fp), lambda c, i: (c, 0, 0)),             # partial agg
        ),
        out_shape=(jax.ShapeDtypeStruct((Ep, Fp), jnp.float32),
                   jax.ShapeDtypeStruct((core_splits, Np, Fp), jnp.float32)),
        compiler_params=pltpu.CompilerParams(
            # leading axis splits edge tiles across TensorCores (v7x); inner axis
            # is the scatter-add reduction.
            dimension_semantics=("parallel", "arbitrary"),
            vmem_limit_bytes=vmem_limit),
    )(e_pad, snd, rcv, rcv_row, xs_bf, xr_bf, *edge_weights)

    # ---- pass 2: node update over node tiles (fully parallel) -----------------
    node_weights = (w1x, w1a, b1n_p, w2n_p, b2n_p, w3n_p, b3n_p, gn_p, bn_p)
    node_in_specs = [
        pl.BlockSpec((node_tile, Fp), lambda j: (j, 0)),                 # x tile
        pl.BlockSpec((core_splits, node_tile, Fp), lambda j: (0, j, 0)),  # agg partials
    ] + [resident(w) for w in node_weights]

    new_x_pad = pl.pallas_call(
        functools.partial(_node_kernel, F),
        grid=(Np // node_tile,),
        in_specs=node_in_specs,
        out_specs=pl.BlockSpec((node_tile, Fp), lambda j: (j, 0)),
        out_shape=jax.ShapeDtypeStruct((Np, Fp), jnp.float32),
        compiler_params=pltpu.CompilerParams(
            dimension_semantics=("parallel",),
            vmem_limit_bytes=vmem_limit),
    )(x_f32, agg, *node_weights)

    return new_x_pad[:N, :F], new_e_pad[:E, :F], edge_attr


# -------------------- pure-JAX reference for verification --------------------
def reference(x, edge_attr, senders, receivers, params):
    (w1e, b1e, w2e, b2e, w3e, b3e, ge, be,
     w1n, b1n, w2n, b2n, w3n, b3n, gn, bn) = params

    def mlp_ln(inp, w1, b1, w2, b2, w3, b3, g, b):
        h = jax.nn.relu(inp @ w1 + b1)
        h = jax.nn.relu(h @ w2 + b2)
        y = h @ w3 + b3
        mu = jnp.mean(y, -1, keepdims=True)
        var = jnp.mean((y - mu) ** 2, -1, keepdims=True)
        return (y - mu) / jnp.sqrt(var + EPS) * g + b

    sf = x[senders]
    rf = x[receivers]
    edge_in = jnp.concatenate([sf, rf, edge_attr], axis=-1)
    new_e = mlp_ln(edge_in, w1e, b1e, w2e, b2e, w3e, b3e, ge, be) + edge_attr

    num_nodes = x.shape[0]
    agg = jax.ops.segment_sum(edge_attr, receivers, num_segments=num_nodes)
    node_in = jnp.concatenate([x, agg], axis=-1)
    new_x = mlp_ln(node_in, w1n, b1n, w2n, b2n, w3n, b3n, gn, bn) + x
    return new_x, new_e, edge_attr


if __name__ == "__main__":
    # Small but non-trivial sizes: multiple edge tiles (after core split) + ragged padding.
    N, E, F, H = 200, 500, 32, 32   # nodes, edges, output_size, hidden

    key = jax.random.PRNGKey(0)
    ks = jax.random.split(key, 24)

    x = jax.random.normal(ks[0], (N, F), jnp.float32)
    edge_attr = jax.random.normal(ks[1], (E, F), jnp.float32)
    senders = jax.random.randint(ks[2], (E,), 0, N, jnp.int32)
    receivers = jax.random.randint(ks[3], (E,), 0, N, jnp.int32)

    def lin(k, fan_in, fan_out):
        return 0.1 * jax.random.normal(k, (fan_in, fan_out), jnp.float32)

    params = (
        # edge model: in = 3F
        lin(ks[4], 3 * F, H), 0.05 * jax.random.normal(ks[5], (1, H)),
        lin(ks[6], H, H),     0.05 * jax.random.normal(ks[7], (1, H)),
        lin(ks[8], H, F),     0.05 * jax.random.normal(ks[9], (1, F)),
        1.0 + 0.1 * jax.random.normal(ks[10], (1, F)),
        0.1 * jax.random.normal(ks[11], (1, F)),
        # node model: in = 2F
        lin(ks[12], 2 * F, H), 0.05 * jax.random.normal(ks[13], (1, H)),
        lin(ks[14], H, H),     0.05 * jax.random.normal(ks[15], (1, H)),
        lin(ks[16], H, F),     0.05 * jax.random.normal(ks[17], (1, F)),
        1.0 + 0.1 * jax.random.normal(ks[18], (1, F)),
        0.1 * jax.random.normal(ks[19], (1, F)),
    )
    params = tuple(p.astype(jnp.float32) for p in params)

    prepared = prepare_params(params)   # one-time weight pad/split/cast

    new_x, new_e, e_out = graph_net_block(x, edge_attr, senders, receivers, prepared)
    jax.block_until_ready((new_x, new_e, e_out))

    ref_x, ref_e, _ = reference(x, edge_attr, senders, receivers, params)
    assert new_x.shape == (N, F) and new_e.shape == (E, F)
    # bf16 matmul operands (f32 accumulation) => looser tolerance than pure f32.
    assert jnp.allclose(new_x, ref_x, atol=5e-2, rtol=5e-2), "node features mismatch"
    assert jnp.allclose(new_e, ref_e, atol=5e-2, rtol=5e-2), "edge features mismatch"
    assert jnp.array_equal(e_out, edge_attr)

    print("KERNEL_OK")
</pallas_src>

<mosaic_0001>
module attributes {stable_mosaic.version = 11 : i64} {
  func.func @_edge_kernel(%arg0: i32, %arg1: i32, %arg2: memref<512x128xf32, #tpu.memory_space<vmem>>, %arg3: memref<512x1xi32, #tpu.memory_space<vmem>>, %arg4: memref<512x1xi32, #tpu.memory_space<vmem>>, %arg5: memref<1x512xi32, #tpu.memory_space<vmem>>, %arg6: memref<256x128xbf16, #tpu.memory_space<vmem>>, %arg7: memref<256x128xbf16, #tpu.memory_space<vmem>>, %arg8: memref<128x128xbf16, #tpu.memory_space<vmem>>, %arg9: memref<1x128xf32, #tpu.memory_space<vmem>>, %arg10: memref<128x128xbf16, #tpu.memory_space<vmem>>, %arg11: memref<1x128xf32, #tpu.memory_space<vmem>>, %arg12: memref<128x128xbf16, #tpu.memory_space<vmem>>, %arg13: memref<1x128xf32, #tpu.memory_space<vmem>>, %arg14: memref<1x128xf32, #tpu.memory_space<vmem>>, %arg15: memref<1x128xf32, #tpu.memory_space<vmem>>, %arg16: memref<512x128xf32, #tpu.memory_space<vmem>>, %arg17: memref<1x256x128xf32, #tpu.memory_space<vmem>>) attributes {dimension_semantics = [#tpu.dimension_semantics<parallel>, #tpu.dimension_semantics<arbitrary>], iteration_bounds = array<i64: 2, 1>, scalar_prefetch = 0 : i64, scratch_operands = 0 : i64, tpu.core_type = #tpu.core_type<tc>, window_params = [{transform_indices = @transform_0, window_bounds = array<i64: 512, 128>}, {transform_indices = @transform_1, window_bounds = array<i64: 512, 1>}, {transform_indices = @transform_2, window_bounds = array<i64: 512, 1>}, {transform_indices = @transform_3, window_bounds = array<i64: 1, 512>}, {pipeline_mode = #tpu.pipeline_mode<synchronous>, transform_indices = @transform_4, window_bounds = array<i64: 256, 128>}, {pipeline_mode = #tpu.pipeline_mode<synchronous>, transform_indices = @transform_5, window_bounds = array<i64: 256, 128>}, {pipeline_mode = #tpu.pipeline_mode<synchronous>, transform_indices = @transform_6, window_bounds = array<i64: 128, 128>}, {pipeline_mode = #tpu.pipeline_mode<synchronous>, transform_indices = @transform_7, window_bounds = array<i64: 1, 128>}, {pipeline_mode = #tpu.pipeline_mode<synchronous>, transform_indices = @transform_8, window_bounds = array<i64: 128, 128>}, {pipeline_mode = #tpu.pipeline_mode<synchronous>, transform_indices = @transform_9, window_bounds = array<i64: 1, 128>}, {pipeline_mode = #tpu.pipeline_mode<synchronous>, transform_indices = @transform_10, window_bounds = array<i64: 128, 128>}, {pipeline_mode = #tpu.pipeline_mode<synchronous>, transform_indices = @transform_11, window_bounds = array<i64: 1, 128>}, {pipeline_mode = #tpu.pipeline_mode<synchronous>, transform_indices = @transform_12, window_bounds = array<i64: 1, 128>}, {pipeline_mode = #tpu.pipeline_mode<synchronous>, transform_indices = @transform_13, window_bounds = array<i64: 1, 128>}, {transform_indices = @transform_14, window_bounds = array<i64: 512, 128>}, {transform_indices = @transform_15, window_bounds = array<i64: 1, 256, 128>}]} {
    %c0 = arith.constant 0 : index
    %c0_0 = arith.constant 0 : index
    %0 = vector.load %arg2[%c0, %c0_0] : memref<512x128xf32, #tpu.memory_space<vmem>>, vector<512x128xf32>
    %1 = arith.truncf %0 : vector<512x128xf32> to vector<512x128xbf16>
    %2 = tpu.iota {dimensions = array<i32: 0>} : vector<256x512xi32>
    %c0_1 = arith.constant 0 : index
    %c0_2 = arith.constant 0 : index
    %3 = vector.load %arg5[%c0_1, %c0_2] : memref<1x512xi32, #tpu.memory_space<vmem>>, vector<1x512xi32>
    %4 = vector.broadcast %3 : vector<1x512xi32> to vector<256x512xi32>
    %5 = arith.cmpi eq, %4, %2 : vector<256x512xi32>
    %6 = arith.extui %5 : vector<256x512xi1> to vector<256x512xi32>
    %7 = arith.sitofp %6 : vector<256x512xi32> to vector<256x512xf32>
    %8 = arith.truncf %7 : vector<256x512xf32> to vector<256x512xbf16>
    %cst = arith.constant dense<0.000000e+00> : vector<256x128xf32>
    %9 = tpu.matmul %8, %1, %cst {dimension_numbers = #tpu.dot_dimension_numbers<[1], [0], [0], [1], [0, 0, 1, 1], [], []>} : vector<256x512xbf16>, vector<512x128xbf16>, vector<256x128xf32> -> vector<256x128xf32>
    %c0_i32 = arith.constant 0 : i32
    %10 = arith.cmpi eq, %arg1, %c0_i32 : i32
    %11 = arith.extui %10 : i1 to i32
    %c0_i32_3 = arith.constant 0 : i32
    %12 = arith.cmpi ne, %11, %c0_i32_3 : i32
    scf.if %12 {
      %cst_49 = arith.constant 0.000000e+00 : f32
      %88 = vector.broadcast %cst_49 : f32 to vector<1x256x128xf32>
      %c0_50 = arith.constant 0 : index
      %c0_51 = arith.constant 0 : index
      %c0_52 = arith.constant 0 : index
      %89 = vector.load %arg17[%c0_50, %c0_51, %c0_52] : memref<1x256x128xf32, #tpu.memory_space<vmem>>, vector<1x256x128xf32>
      tpu.vector_store %arg17[%c0_50, %c0_51, %c0_52], %88 {strides = array<i32>} : memref<1x256x128xf32, #tpu.memory_space<vmem>>, vector<1x256x128xf32>,
    } else {
    }
    %c0_4 = arith.constant 0 : index
    %c0_5 = arith.constant 0 : index
    %c0_6 = arith.constant 0 : index
    %13 = vector.load %arg17[%c0_4, %c0_5, %c0_6] : memref<1x256x128xf32, #tpu.memory_space<vmem>>, vector<1x256x128xf32>
    %14 = vector.shape_cast %9 : vector<256x128xf32> to vector<1x256x128xf32>
    %15 = arith.addf %13, %14 : vector<1x256x128xf32>
    %c0_7 = arith.constant 0 : index
    %c0_8 = arith.constant 0 : index
    %c0_9 = arith.constant 0 : index
    %16 = vector.load %arg17[%c0_7, %c0_8, %c0_9] : memref<1x256x128xf32, #tpu.memory_space<vmem>>, vector<1x256x128xf32>
    tpu.vector_store %arg17[%c0_7, %c0_8, %c0_9], %15 {strides = array<i32>} : memref<1x256x128xf32, #tpu.memory_space<vmem>>, vector<1x256x128xf32>,
    %17 = tpu.iota {dimensions = array<i32: 1>} : vector<512x256xi32>
    %c0_10 = arith.constant 0 : index
    %c0_11 = arith.constant 0 : index
    %18 = vector.load %arg3[%c0_10, %c0_11] : memref<512x1xi32, #tpu.memory_space<vmem>>, vector<512x1xi32>
    %19 = vector.broadcast %18 : vector<512x1xi32> to vector<512x256xi32>
    %20 = arith.cmpi eq, %19, %17 : vector<512x256xi32>
    %21 = arith.extui %20 : vector<512x256xi1> to vector<512x256xi32>
    %22 = arith.sitofp %21 : vector<512x256xi32> to vector<512x256xf32>
    %23 = arith.truncf %22 : vector<512x256xf32> to vector<512x256xbf16>
    %c0_12 = arith.constant 0 : index
    %c0_13 = arith.constant 0 : index
    %24 = vector.load %arg4[%c0_12, %c0_13] : memref<512x1xi32, #tpu.memory_space<vmem>>, vector<512x1xi32>
    %25 = vector.broadcast %24 : vector<512x1xi32> to vector<512x256xi32>
    %26 = arith.cmpi eq, %25, %17 : vector<512x256xi32>
    %27 = arith.extui %26 : vector<512x256xi1> to vector<512x256xi32>
    %28 = arith.sitofp %27 : vector<512x256xi32> to vector<512x256xf32>
    %29 = arith.truncf %28 : vector<512x256xf32> to vector<512x256xbf16>
    %c0_14 = arith.constant 0 : index
    %c0_15 = arith.constant 0 : index
    %30 = vector.load %arg6[%c0_14, %c0_15] : memref<256x128xbf16, #tpu.memory_space<vmem>>, vector<256x128xbf16>
    %cst_16 = arith.constant dense<0.000000e+00> : vector<512x128xf32>
    %31 = tpu.matmul %23, %30, %cst_16 {dimension_numbers = #tpu.dot_dimension_numbers<[1], [0], [0], [1], [0, 0, 1, 1], [], []>} : vector<512x256xbf16>, vector<256x128xbf16>, vector<512x128xf32> -> vector<512x128xf32>
    %c0_17 = arith.constant 0 : index
    %c0_18 = arith.constant 0 : index
    %32 = vector.load %arg7[%c0_17, %c0_18] : memref<256x128xbf16, #tpu.memory_space<vmem>>, vector<256x128xbf16>
    %cst_19 = arith.constant dense<0.000000e+00> : vector<512x128xf32>
    %33 = tpu.matmul %29, %32, %cst_19 {dimension_numbers = #tpu.dot_dimension_numbers<[1], [0], [0], [1], [0, 0, 1, 1], [], []>} : vector<512x256xbf16>, vector<256x128xbf16>, vector<512x128xf32> -> vector<512x128xf32>
    %34 = arith.addf %31, %33 : vector<512x128xf32>
    %c0_20 = arith.constant 0 : index
    %c0_21 = arith.constant 0 : index
    %35 = vector.load %arg8[%c0_20, %c0_21] : memref<128x128xbf16, #tpu.memory_space<vmem>>, vector<128x128xbf16>
    %cst_22 = arith.constant dense<0.000000e+00> : vector<512x128xf32>
    %36 = tpu.matmul %1, %35, %cst_22 {dimension_numbers = #tpu.dot_dimension_numbers<[1], [0], [0], [1], [0, 0, 1, 1], [], []>} : vector<512x128xbf16>, vector<128x128xbf16>, vector<512x128xf32> -> vector<512x128xf32>
    %37 = arith.addf %34, %36 : vector<512x128xf32>
    %c0_23 = arith.constant 0 : index
    %c0_24 = arith.constant 0 : index
    %38 = vector.load %arg9[%c0_23, %c0_24] : memref<1x128xf32, #tpu.memory_space<vmem>>, vector<1x128xf32>
    %39 = vector.broadcast %38 : vector<1x128xf32> to vector<512x128xf32>
    %40 = arith.addf %37, %39 : vector<512x128xf32>
    %cst_25 = arith.constant 0.000000e+00 : f32
    %41 = vector.broadcast %cst_25 : f32 to vector<512x128xf32>
    %42 = arith.maximumf %40, %41 : vector<512x128xf32>
    %43 = arith.truncf %42 : vector<512x128xf32> to vector<512x128xbf16>
    %c0_26 = arith.constant 0 : index
    %c0_27 = arith.constant 0 : index
    %44 = vector.load %arg10[%c0_26, %c0_27] : memref<128x128xbf16, #tpu.memory_space<vmem>>, vector<128x128xbf16>
    %cst_28 = arith.constant dense<0.000000e+00> : vector<512x128xf32>
    %45 = tpu.matmul %43, %44, %cst_28 {dimension_numbers = #tpu.dot_dimension_numbers<[1], [0], [0], [1], [0, 0, 1, 1], [], []>} : vector<512x128xbf16>, vector<128x128xbf16>, vector<512x128xf32> -> vector<512x128xf32>
    %c0_29 = arith.constant 0 : index
    %c0_30 = arith.constant 0 : index
    %46 = vector.load %arg11[%c0_29, %c0_30] : memref<1x128xf32, #tpu.memory_space<vmem>>, vector<1x128xf32>
    %47 = vector.broadcast %46 : vector<1x128xf32> to vector<512x128xf32>
    %48 = arith.addf %45, %47 : vector<512x128xf32>
    %cst_31 = arith.constant 0.000000e+00 : f32
    %49 = vector.broadcast %cst_31 : f32 to vector<512x128xf32>
    %50 = arith.maximumf %48, %49 : vector<512x128xf32>
    %51 = arith.truncf %50 : vector<512x128xf32> to vector<512x128xbf16>
    %c0_32 = arith.constant 0 : index
    %c0_33 = arith.constant 0 : index
    %52 = vector.load %arg12[%c0_32, %c0_33] : memref<128x128xbf16, #tpu.memory_space<vmem>>, vector<128x128xbf16>
    %cst_34 = arith.constant dense<0.000000e+00> : vector<512x128xf32>
    %53 = tpu.matmul %51, %52, %cst_34 {dimension_numbers = #tpu.dot_dimension_numbers<[1], [0], [0], [1], [0, 0, 1, 1], [], []>} : vector<512x128xbf16>, vector<128x128xbf16>, vector<512x128xf32> -> vector<512x128xf32>
    %c0_35 = arith.constant 0 : index
    %c0_36 = arith.constant 0 : index
    %54 = vector.load %arg13[%c0_35, %c0_36] : memref<1x128xf32, #tpu.memory_space<vmem>>, vector<1x128xf32>
    %55 = vector.broadcast %54 : vector<1x128xf32> to vector<512x128xf32>
    %56 = arith.addf %53, %55 : vector<512x128xf32>
    %c0_37 = arith.constant 0 : index
    %c0_38 = arith.constant 0 : index
    %57 = vector.load %arg14[%c0_37, %c0_38] : memref<1x128xf32, #tpu.memory_space<vmem>>, vector<1x128xf32>
    %c0_39 = arith.constant 0 : index
    %c0_40 = arith.constant 0 : index
    %58 = vector.load %arg15[%c0_39, %c0_40] : memref<1x128xf32, #tpu.memory_space<vmem>>, vector<1x128xf32>
    %59 = tpu.iota {dimensions = array<i32: 1>} : vector<1x128xi32>
    %c32_i32 = arith.constant 32 : i32
    %60 = vector.broadcast %c32_i32 : i32 to vector<1x128xi32>
    %61 = arith.cmpi slt, %59, %60 : vector<1x128xi32>
    %cst_41 = arith.constant dense<0.000000e+00> : vector<512xf32>
    %62 = vector.multi_reduction <add>, %56, %cst_41 [1] : vector<512x128xf32> to vector<512xf32>
    %63 = vector.shape_cast %62 : vector<512xf32> to vector<512x1xf32>
    %cst_42 = arith.constant 3.125000e-02 : f32
    %64 = vector.broadcast %cst_42 : f32 to vector<512x1xf32>
    %65 = arith.mulf %63, %64 : vector<512x1xf32>
    %66 = vector.broadcast %65 : vector<512x1xf32> to vector<512x128xf32>
    %67 = arith.subf %56, %66 : vector<512x128xf32>
    %cst_43 = arith.constant 0.000000e+00 : f32
    %68 = vector.shape_cast %61 : vector<1x128xi1> to vector<1x128xi1>
    %69 = vector.broadcast %68 : vector<1x128xi1> to vector<512x128xi1>
    %70 = vector.broadcast %cst_43 : f32 to vector<512x128xf32>
    %71 = arith.select %69, %67, %70 : vector<512x128xi1>, vector<512x128xf32>
    %72 = arith.mulf %71, %71 : vector<512x128xf32>
    %cst_44 = arith.constant dense<0.000000e+00> : vector<512xf32>
    %73 = vector.multi_reduction <add>, %72, %cst_44 [1] : vector<512x128xf32> to vector<512xf32>
    %74 = vector.shape_cast %73 : vector<512xf32> to vector<512x1xf32>
    %cst_45 = arith.constant 3.125000e-02 : f32
    %75 = vector.broadcast %cst_45 : f32 to vector<512x1xf32>
    %76 = arith.mulf %74, %75 : vector<512x1xf32>
    %cst_46 = arith.constant 9.99999974E-6 : f32
    %77 = vector.broadcast %cst_46 : f32 to vector<512x1xf32>
    %78 = arith.addf %76, %77 : vector<512x1xf32>
    %79 = math.rsqrt %78 : vector<512x1xf32>
    %80 = vector.broadcast %79 : vector<512x1xf32> to vector<512x128xf32>
    %81 = arith.mulf %71, %80 : vector<512x128xf32>
    %82 = vector.broadcast %57 : vector<1x128xf32> to vector<512x128xf32>
    %83 = arith.mulf %81, %82 : vector<512x128xf32>
    %84 = vector.broadcast %58 : vector<1x128xf32> to vector<512x128xf32>
    %85 = arith.addf %83, %84 : vector<512x128xf32>
    %86 = arith.addf %85, %0 : vector<512x128xf32>
    %c0_47 = arith.constant 0 : index
    %c0_48 = arith.constant 0 : index
    %87 = vector.load %arg16[%c0_47, %c0_48] : memref<512x128xf32, #tpu.memory_space<vmem>>, vector<512x128xf32>
    tpu.vector_store %arg16[%c0_47, %c0_48], %86 {strides = array<i32>} : memref<512x128xf32, #tpu.memory_space<vmem>>, vector<512x128xf32>,
    return
  }
  func.func @transform_0(%arg0: i32, %arg1: i32) -> (i32, i32) {
    %c1_i32 = arith.constant 1 : i32
    %0 = arith.muli %arg0, %c1_i32 : i32
    %1 = arith.addi %0, %arg1 : i32
    %c0_i32 = arith.constant 0 : i32
    %c0_i32_0 = arith.constant 0 : i32
    return %1, %c0_i32 : i32, i32
  }
  func.func @transform_1(%arg0: i32, %arg1: i32) -> (i32, i32) {
    %c1_i32 = arith.constant 1 : i32
    %0 = arith.muli %arg0, %c1_i32 : i32
    %1 = arith.addi %0, %arg1 : i32
    %c0_i32 = arith.constant 0 : i32
    %c0_i32_0 = arith.constant 0 : i32
    return %1, %c0_i32 : i32, i32
  }
  func.func @transform_2(%arg0: i32, %arg1: i32) -> (i32, i32) {
    %c1_i32 = arith.constant 1 : i32
    %0 = arith.muli %arg0, %c1_i32 : i32
    %1 = arith.addi %0, %arg1 : i32
    %c0_i32 = arith.constant 0 : i32
    %c0_i32_0 = arith.constant 0 : i32
    return %1, %c0_i32 : i32, i32
  }
  func.func @transform_3(%arg0: i32, %arg1: i32) -> (i32, i32) {
    %c1_i32 = arith.constant 1 : i32
    %0 = arith.muli %arg0, %c1_i32 : i32
    %1 = arith.addi %0, %arg1 : i32
    %c0_i32 = arith.constant 0 : i32
    %c0_i32_0 = arith.constant 0 : i32
    return %c0_i32, %1 : i32, i32
  }
  func.func @transform_4(%arg0: i32, %arg1: i32) -> (i32, i32) {
    %c0_i32 = arith.constant 0 : i32
    %c0_i32_0 = arith.constant 0 : i32
    %c0_i32_1 = arith.constant 0 : i32
    return %c0_i32, %c0_i32_0 : i32, i32
  }
  func.func @transform_5(%arg0: i32, %arg1: i32) -> (i32, i32) {
    %c0_i32 = arith.constant 0 : i32
    %c0_i32_0 = arith.constant 0 : i32
    %c0_i32_1 = arith.constant 0 : i32
    return %c0_i32, %c0_i32_0 : i32, i32
  }
  func.func @transform_6(%arg0: i32, %arg1: i32) -> (i32, i32) {
    %c0_i32 = arith.constant 0 : i32
    %c0_i32_0 = arith.constant 0 : i32
    %c0_i32_1 = arith.constant 0 : i32
    return %c0_i32, %c0_i32_0 : i32, i32
  }
  func.func @transform_7(%arg0: i32, %arg1: i32) -> (i32, i32) {
    %c0_i32 = arith.constant 0 : i32
    %c0_i32_0 = arith.constant 0 : i32
    %c0_i32_1 = arith.constant 0 : i32
    return %c0_i32, %c0_i32_0 : i32, i32
  }
  func.func @transform_8(%arg0: i32, %arg1: i32) -> (i32, i32) {
    %c0_i32 = arith.constant 0 : i32
    %c0_i32_0 = arith.constant 0 : i32
    %c0_i32_1 = arith.constant 0 : i32
    return %c0_i32, %c0_i32_0 : i32, i32
  }
  func.func @transform_9(%arg0: i32, %arg1: i32) -> (i32, i32) {
    %c0_i32 = arith.constant 0 : i32
    %c0_i32_0 = arith.constant 0 : i32
    %c0_i32_1 = arith.constant 0 : i32
    return %c0_i32, %c0_i32_0 : i32, i32
  }
  func.func @transform_10(%arg0: i32, %arg1: i32) -> (i32, i32) {
    %c0_i32 = arith.constant 0 : i32
    %c0_i32_0 = arith.constant 0 : i32
    %c0_i32_1 = arith.constant 0 : i32
    return %c0_i32, %c0_i32_0 : i32, i32
  }
  func.func @transform_11(%arg0: i32, %arg1: i32) -> (i32, i32) {
    %c0_i32 = arith.constant 0 : i32
    %c0_i32_0 = arith.constant 0 : i32
    %c0_i32_1 = arith.constant 0 : i32
    return %c0_i32, %c0_i32_0 : i32, i32
  }
  func.func @transform_12(%arg0: i32, %arg1: i32) -> (i32, i32) {
    %c0_i32 = arith.constant 0 : i32
    %c0_i32_0 = arith.constant 0 : i32
    %c0_i32_1 = arith.constant 0 : i32
    return %c0_i32, %c0_i32_0 : i32, i32
  }
  func.func @transform_13(%arg0: i32, %arg1: i32) -> (i32, i32) {
    %c0_i32 = arith.constant 0 : i32
    %c0_i32_0 = arith.constant 0 : i32
    %c0_i32_1 = arith.constant 0 : i32
    return %c0_i32, %c0_i32_0 : i32, i32
  }
  func.func @transform_14(%arg0: i32, %arg1: i32) -> (i32, i32) {
    %c1_i32 = arith.constant 1 : i32
    %0 = arith.muli %arg0, %c1_i32 : i32
    %1 = arith.addi %0, %arg1 : i32
    %c0_i32 = arith.constant 0 : i32
    %c0_i32_0 = arith.constant 0 : i32
    return %1, %c0_i32 : i32, i32
  }
  func.func @transform_15(%arg0: i32, %arg1: i32) -> (i32, i32, i32) {
    %c0_i32 = arith.constant 0 : i32
    %c0_i32_0 = arith.constant 0 : i32
    %c0_i32_1 = arith.constant 0 : i32
    return %arg0, %c0_i32, %c0_i32_0 : i32, i32, i32
  }
}

module attributes {stable_mosaic.version = 11 : i64} {
  func.func @_node_kernel(%arg0: i32, %arg1: memref<256x128xf32, #tpu.memory_space<vmem>>, %arg2: memref<2x256x128xf32, #tpu.memory_space<vmem>>, %arg3: memref<128x128xbf16, #tpu.memory_space<vmem>>, %arg4: memref<128x128xbf16, #tpu.memory_space<vmem>>, %arg5: memref<1x128xf32, #tpu.memory_space<vmem>>, %arg6: memref<128x128xbf16, #tpu.memory_space<vmem>>, %arg7: memref<1x128xf32, #tpu.memory_space<vmem>>, %arg8: memref<128x128xbf16, #tpu.memory_space<vmem>>, %arg9: memref<1x128xf32, #tpu.memory_space<vmem>>, %arg10: memref<1x128xf32, #tpu.memory_space<vmem>>, %arg11: memref<1x128xf32, #tpu.memory_space<vmem>>, %arg12: memref<256x128xf32, #tpu.memory_space<vmem>>) attributes {dimension_semantics = [#tpu.dimension_semantics<parallel>], iteration_bounds = array<i64: 1>, scalar_prefetch = 0 : i64, scratch_operands = 0 : i64, tpu.core_type = #tpu.core_type<tc>, window_params = [{transform_indices = @transform_0, window_bounds = array<i64: 256, 128>}, {transform_indices = @transform_1, window_bounds = array<i64: 2, 256, 128>}, {pipeline_mode = #tpu.pipeline_mode<synchronous>, transform_indices = @transform_2, window_bounds = array<i64: 128, 128>}, {pipeline_mode = #tpu.pipeline_mode<synchronous>, transform_indices = @transform_3, window_bounds = array<i64: 128, 128>}, {pipeline_mode = #tpu.pipeline_mode<synchronous>, transform_indices = @transform_4, window_bounds = array<i64: 1, 128>}, {pipeline_mode = #tpu.pipeline_mode<synchronous>, transform_indices = @transform_5, window_bounds = array<i64: 128, 128>}, {pipeline_mode = #tpu.pipeline_mode<synchronous>, transform_indices = @transform_6, window_bounds = array<i64: 1, 128>}, {pipeline_mode = #tpu.pipeline_mode<synchronous>, transform_indices = @transform_7, window_bounds = array<i64: 128, 128>}, {pipeline_mode = #tpu.pipeline_mode<synchronous>, transform_indices = @transform_8, window_bounds = array<i64: 1, 128>}, {pipeline_mode = #tpu.pipeline_mode<synchronous>, transform_indices = @transform_9, window_bounds = array<i64: 1, 128>}, {pipeline_mode = #tpu.pipeline_mode<synchronous>, transform_indices = @transform_10, window_bounds = array<i64: 1, 128>}, {transform_indices = @transform_11, window_bounds = array<i64: 256, 128>}]} {
    %c0 = arith.constant 0 : index
    %c0_0 = arith.constant 0 : index
    %0 = vector.load %arg1[%c0, %c0_0] : memref<256x128xf32, #tpu.memory_space<vmem>>, vector<256x128xf32>
    %1 = arith.truncf %0 : vector<256x128xf32> to vector<256x128xbf16>
    %c0_1 = arith.constant 0 : index
    %c0_2 = arith.constant 0 : index
    %c0_3 = arith.constant 0 : index
    %2 = vector.load %arg2[%c0_1, %c0_2, %c0_3] : memref<2x256x128xf32, #tpu.memory_space<vmem>>, vector<2x256x128xf32>
    %cst = arith.constant dense<0.000000e+00> : vector<256x128xf32>
    %3 = vector.multi_reduction <add>, %2, %cst [0] : vector<2x256x128xf32> to vector<256x128xf32>
    %4 = arith.truncf %3 : vector<256x128xf32> to vector<256x128xbf16>
    %c0_4 = arith.constant 0 : index
    %c0_5 = arith.constant 0 : index
    %5 = vector.load %arg3[%c0_4, %c0_5] : memref<128x128xbf16, #tpu.memory_space<vmem>>, vector<128x128xbf16>
    %cst_6 = arith.constant dense<0.000000e+00> : vector<256x128xf32>
    %6 = tpu.matmul %1, %5, %cst_6 {dimension_numbers = #tpu.dot_dimension_numbers<[1], [0], [0], [1], [0, 0, 1, 1], [], []>} : vector<256x128xbf16>, vector<128x128xbf16>, vector<256x128xf32> -> vector<256x128xf32>
    %c0_7 = arith.constant 0 : index
    %c0_8 = arith.constant 0 : index
    %7 = vector.load %arg4[%c0_7, %c0_8] : memref<128x128xbf16, #tpu.memory_space<vmem>>, vector<128x128xbf16>
    %cst_9 = arith.constant dense<0.000000e+00> : vector<256x128xf32>
    %8 = tpu.matmul %4, %7, %cst_9 {dimension_numbers = #tpu.dot_dimension_numbers<[1], [0], [0], [1], [0, 0, 1, 1], [], []>} : vector<256x128xbf16>, vector<128x128xbf16>, vector<256x128xf32> -> vector<256x128xf32>
    %9 = arith.addf %6, %8 : vector<256x128xf32>
    %c0_10 = arith.constant 0 : index
    %c0_11 = arith.constant 0 : index
    %10 = vector.load %arg5[%c0_10, %c0_11] : memref<1x128xf32, #tpu.memory_space<vmem>>, vector<1x128xf32>
    %11 = vector.broadcast %10 : vector<1x128xf32> to vector<256x128xf32>
    %12 = arith.addf %9, %11 : vector<256x128xf32>
    %cst_12 = arith.constant 0.000000e+00 : f32
    %13 = vector.broadcast %cst_12 : f32 to vector<256x128xf32>
    %14 = arith.maximumf %12, %13 : vector<256x128xf32>
    %15 = arith.truncf %14 : vector<256x128xf32> to vector<256x128xbf16>
    %c0_13 = arith.constant 0 : index
    %c0_14 = arith.constant 0 : index
    %16 = vector.load %arg6[%c0_13, %c0_14] : memref<128x128xbf16, #tpu.memory_space<vmem>>, vector<128x128xbf16>
    %cst_15 = arith.constant dense<0.000000e+00> : vector<256x128xf32>
    %17 = tpu.matmul %15, %16, %cst_15 {dimension_numbers = #tpu.dot_dimension_numbers<[1], [0], [0], [1], [0, 0, 1, 1], [], []>} : vector<256x128xbf16>, vector<128x128xbf16>, vector<256x128xf32> -> vector<256x128xf32>
    %c0_16 = arith.constant 0 : index
    %c0_17 = arith.constant 0 : index
    %18 = vector.load %arg7[%c0_16, %c0_17] : memref<1x128xf32, #tpu.memory_space<vmem>>, vector<1x128xf32>
    %19 = vector.broadcast %18 : vector<1x128xf32> to vector<256x128xf32>
    %20 = arith.addf %17, %19 : vector<256x128xf32>
    %cst_18 = arith.constant 0.000000e+00 : f32
    %21 = vector.broadcast %cst_18 : f32 to vector<256x128xf32>
    %22 = arith.maximumf %20, %21 : vector<256x128xf32>
    %23 = arith.truncf %22 : vector<256x128xf32> to vector<256x128xbf16>
    %c0_19 = arith.constant 0 : index
    %c0_20 = arith.constant 0 : index
    %24 = vector.load %arg8[%c0_19, %c0_20] : memref<128x128xbf16, #tpu.memory_space<vmem>>, vector<128x128xbf16>
    %cst_21 = arith.constant dense<0.000000e+00> : vector<256x128xf32>
    %25 = tpu.matmul %23, %24, %cst_21 {dimension_numbers = #tpu.dot_dimension_numbers<[1], [0], [0], [1], [0, 0, 1, 1], [], []>} : vector<256x128xbf16>, vector<128x128xbf16>, vector<256x128xf32> -> vector<256x128xf32>
    %c0_22 = arith.constant 0 : index
    %c0_23 = arith.constant 0 : index
    %26 = vector.load %arg9[%c0_22, %c0_23] : memref<1x128xf32, #tpu.memory_space<vmem>>, vector<1x128xf32>
    %27 = vector.broadcast %26 : vector<1x128xf32> to vector<256x128xf32>
    %28 = arith.addf %25, %27 : vector<256x128xf32>
    %c0_24 = arith.constant 0 : index
    %c0_25 = arith.constant 0 : index
    %29 = vector.load %arg10[%c0_24, %c0_25] : memref<1x128xf32, #tpu.memory_space<vmem>>, vector<1x128xf32>
    %c0_26 = arith.constant 0 : index
    %c0_27 = arith.constant 0 : index
    %30 = vector.load %arg11[%c0_26, %c0_27] : memref<1x128xf32, #tpu.memory_space<vmem>>, vector<1x128xf32>
    %31 = tpu.iota {dimensions = array<i32: 1>} : vector<1x128xi32>
    %c32_i32 = arith.constant 32 : i32
    %32 = vector.broadcast %c32_i32 : i32 to vector<1x128xi32>
    %33 = arith.cmpi slt, %31, %32 : vector<1x128xi32>
    %cst_28 = arith.constant dense<0.000000e+00> : vector<256xf32>
    %34 = vector.multi_reduction <add>, %28, %cst_28 [1] : vector<256x128xf32> to vector<256xf32>
    %35 = vector.shape_cast %34 : vector<256xf32> to vector<256x1xf32>
    %cst_29 = arith.constant 3.125000e-02 : f32
    %36 = vector.broadcast %cst_29 : f32 to vector<256x1xf32>
    %37 = arith.mulf %35, %36 : vector<256x1xf32>
    %38 = vector.broadcast %37 : vector<256x1xf32> to vector<256x128xf32>
    %39 = arith.subf %28, %38 : vector<256x128xf32>
    %cst_30 = arith.constant 0.000000e+00 : f32
    %40 = vector.shape_cast %33 : vector<1x128xi1> to vector<1x128xi1>
    %41 = vector.broadcast %40 : vector<1x128xi1> to vector<256x128xi1>
    %42 = vector.broadcast %cst_30 : f32 to vector<256x128xf32>
    %43 = arith.select %41, %39, %42 : vector<256x128xi1>, vector<256x128xf32>
    %44 = arith.mulf %43, %43 : vector<256x128xf32>
    %cst_31 = arith.constant dense<0.000000e+00> : vector<256xf32>
    %45 = vector.multi_reduction <add>, %44, %cst_31 [1] : vector<256x128xf32> to vector<256xf32>
    %46 = vector.shape_cast %45 : vector<256xf32> to vector<256x1xf32>
    %cst_32 = arith.constant 3.125000e-02 : f32
    %47 = vector.broadcast %cst_32 : f32 to vector<256x1xf32>
    %48 = arith.mulf %46, %47 : vector<256x1xf32>
    %cst_33 = arith.constant 9.99999974E-6 : f32
    %49 = vector.broadcast %cst_33 : f32 to vector<256x1xf32>
    %50 = arith.addf %48, %49 : vector<256x1xf32>
    %51 = math.rsqrt %50 : vector<256x1xf32>
    %52 = vector.broadcast %51 : vector<256x1xf32> to vector<256x128xf32>
    %53 = arith.mulf %43, %52 : vector<256x128xf32>
    %54 = vector.broadcast %29 : vector<1x128xf32> to vector<256x128xf32>
    %55 = arith.mulf %53, %54 : vector<256x128xf32>
    %56 = vector.broadcast %30 : vector<1x128xf32> to vector<256x128xf32>
    %57 = arith.addf %55, %56 : vector<256x128xf32>
    %58 = arith.addf %57, %0 : vector<256x128xf32>
    %c0_34 = arith.constant 0 : index
    %c0_35 = arith.constant 0 : index
    %59 = vector.load %arg12[%c0_34, %c0_35] : memref<256x128xf32, #tpu.memory_space<vmem>>, vector<256x128xf32>
    tpu.vector_store %arg12[%c0_34, %c0_35], %58 {strides = array<i32>} : memref<256x128xf32, #tpu.memory_space<vmem>>, vector<256x128xf32>,
    return
  }
  func.func @transform_0(%arg0: i32) -> (i32, i32) {
    %c0_i32 = arith.constant 0 : i32
    %c0_i32_0 = arith.constant 0 : i32
    return %arg0, %c0_i32 : i32, i32
  }
  func.func @transform_1(%arg0: i32) -> (i32, i32, i32) {
    %c0_i32 = arith.constant 0 : i32
    %c0_i32_0 = arith.constant 0 : i32
    %c0_i32_1 = arith.constant 0 : i32
    return %c0_i32, %arg0, %c0_i32_0 : i32, i32, i32
  }
  func.func @transform_2(%arg0: i32) -> (i32, i32) {
    %c0_i32 = arith.constant 0 : i32
    %c0_i32_0 = arith.constant 0 : i32
    %c0_i32_1 = arith.constant 0 : i32
    return %c0_i32, %c0_i32_0 : i32, i32
  }
  func.func @transform_3(%arg0: i32) -> (i32, i32) {
    %c0_i32 = arith.constant 0 : i32
    %c0_i32_0 = arith.constant 0 : i32
    %c0_i32_1 = arith.constant 0 : i32
    return %c0_i32, %c0_i32_0 : i32, i32
  }
  func.func @transform_4(%arg0: i32) -> (i32, i32) {
    %c0_i32 = arith.constant 0 : i32
    %c0_i32_0 = arith.constant 0 : i32
    %c0_i32_1 = arith.constant 0 : i32
    return %c0_i32, %c0_i32_0 : i32, i32
  }
  func.func @transform_5(%arg0: i32) -> (i32, i32) {
    %c0_i32 = arith.constant 0 : i32
    %c0_i32_0 = arith.constant 0 : i32
    %c0_i32_1 = arith.constant 0 : i32
    return %c0_i32, %c0_i32_0 : i32, i32
  }
  func.func @transform_6(%arg0: i32) -> (i32, i32) {
    %c0_i32 = arith.constant 0 : i32
    %c0_i32_0 = arith.constant 0 : i32
    %c0_i32_1 = arith.constant 0 : i32
    return %c0_i32, %c0_i32_0 : i32, i32
  }
  func.func @transform_7(%arg0: i32) -> (i32, i32) {
    %c0_i32 = arith.constant 0 : i32
    %c0_i32_0 = arith.constant 0 : i32
    %c0_i32_1 = arith.constant 0 : i32
    return %c0_i32, %c0_i32_0 : i32, i32
  }
  func.func @transform_8(%arg0: i32) -> (i32, i32) {
    %c0_i32 = arith.constant 0 : i32
    %c0_i32_0 = arith.constant 0 : i32
    %c0_i32_1 = arith.constant 0 : i32
    return %c0_i32, %c0_i32_0 : i32, i32
  }
  func.func @transform_9(%arg0: i32) -> (i32, i32) {
    %c0_i32 = arith.constant 0 : i32
    %c0_i32_0 = arith.constant 0 : i32
    %c0_i32_1 = arith.constant 0 : i32
    return %c0_i32, %c0_i32_0 : i32, i32
  }
  func.func @transform_10(%arg0: i32) -> (i32, i32) {
    %c0_i32 = arith.constant 0 : i32
    %c0_i32_0 = arith.constant 0 : i32
    %c0_i32_1 = arith.constant 0 : i32
    return %c0_i32, %c0_i32_0 : i32, i32
  }
  func.func @transform_11(%arg0: i32) -> (i32, i32) {
    %c0_i32 = arith.constant 0 : i32
    %c0_i32_0 = arith.constant 0 : i32
    return %arg0, %c0_i32 : i32, i32
  }
}

</mosaic_0001>

<llo_original>
// kernel: graph_net_block.3
$region0: #{graph_net_block.3}
  #allocation0 [shape = 'u32[]', space=smem, size = 0x4, offset = 0x4, fixed_abs, tag = 'smem constant byte address 0x4 - core index']
  #allocation1 [shape = 'u32[72,128]{1,0:T(1,128)}', space=vmem, size = 0x9000, scoped, tag = 'internal scratch']
  %s0 = inlined_call_operand.vmem [shape: f32[256,128], index: 0, kind: input, shape index: {}]
  %s1 = inlined_call_operand.vmem [shape: f32[2,256,128], index: 1, kind: input, shape index: {}]
  %s2 = inlined_call_operand.vmem [shape: bf16[128,128], index: 2, kind: input, shape index: {}]
  %s3 = inlined_call_operand.vmem [shape: bf16[128,128], index: 3, kind: input, shape index: {}]
  %s4 = inlined_call_operand.vmem [shape: f32[1,128], index: 4, kind: input, shape index: {}]
  %s5 = inlined_call_operand.vmem [shape: bf16[128,128], index: 5, kind: input, shape index: {}]
  %s6 = inlined_call_operand.vmem [shape: f32[1,128], index: 6, kind: input, shape index: {}]
  %s7 = inlined_call_operand.vmem [shape: bf16[128,128], index: 7, kind: input, shape index: {}]
  %s8 = inlined_call_operand.vmem [shape: f32[1,128], index: 8, kind: input, shape index: {}]
  %s9 = inlined_call_operand.vmem [shape: f32[1,128], index: 9, kind: input, shape index: {}]
  %s10 = inlined_call_operand.vmem [shape: f32[1,128], index: 10, kind: input, shape index: {}]
  %s11 = inlined_call_operand.vmem [shape: f32[256,128], index: 11, kind: output, shape index: {}]
  %s12 = sld [smem:[#allocation0]]
  $region54: #{graph_net_block.3} parent=0
    _
  %s14 = ssub.s32 1, %s12
  %s15 = scalar_select 0, %s14, %s12
  // Predicated region
  $region2: #{graph_net_block.3} parent=0 // pred_check
    _
  $region3: #{graph_net_block.3} parent=0 // pred_check_branch
    %17 = sbr.rel (0) target = $region5
  $region4: #{graph_net_block.3} parent=0 // pred_region
    _
  $region5: #{graph_net_block.3} parent=0 // pred_fallthru
    _
  // Predicated region
  $region6: #{graph_net_block.3} parent=0 // pred_check
    _
  $region7: #{graph_net_block.3} parent=0 // pred_check_branch
    %19 = sbr.rel (0) target = $region9
  $region8: #{graph_net_block.3} parent=0 // pred_region
    _
  $region9: #{graph_net_block.3} parent=0 // pred_fallthru
    _
  // Predicated region
  $region10: #{graph_net_block.3} parent=0 // pred_check
    _
  $region11: #{graph_net_block.3} parent=0 // pred_check_branch
    %21 = sbr.rel (0) target = $region13
  $region12: #{graph_net_block.3} parent=0 // pred_region
    _
  $region13: #{graph_net_block.3} parent=0 // pred_fallthru
    _
  // Predicated region
  $region14: #{graph_net_block.3} parent=0 // pred_check
    _
  $region15: #{graph_net_block.3} parent=0 // pred_check_branch
    %23 = sbr.rel (0) target = $region17
  $region16: #{graph_net_block.3} parent=0 // pred_region
    _
  $region17: #{graph_net_block.3} parent=0 // pred_fallthru
    _
  // Predicated region
  $region18: #{graph_net_block.3} parent=0 // pred_check
    _
  $region19: #{graph_net_block.3} parent=0 // pred_check_branch
    %25 = sbr.rel (0) target = $region21
  $region20: #{graph_net_block.3} parent=0 // pred_region
    _
  $region21: #{graph_net_block.3} parent=0 // pred_fallthru
    _
  // Predicated region
  $region22: #{graph_net_block.3} parent=0 // pred_check
    _
  $region23: #{graph_net_block.3} parent=0 // pred_check_branch
    %27 = sbr.rel (0) target = $region25
  $region24: #{graph_net_block.3} parent=0 // pred_region
    _
  $region25: #{graph_net_block.3} parent=0 // pred_fallthru
    _
  // Predicated region
  $region26: #{graph_net_block.3} parent=0 // pred_check
    _
  $region27: #{graph_net_block.3} parent=0 // pred_check_branch
    %29 = sbr.rel (0) target = $region29
  $region28: #{graph_net_block.3} parent=0 // pred_region
    _
  $region29: #{graph_net_block.3} parent=0 // pred_fallthru
    _
  // Predicated region
  $region30: #{graph_net_block.3} parent=0 // pred_check
    _
  $region31: #{graph_net_block.3} parent=0 // pred_check_branch
    %31 = sbr.rel (0) target = $region33
  $region32: #{graph_net_block.3} parent=0 // pred_region
    _
  $region33: #{graph_net_block.3} parent=0 // pred_fallthru
    _
  // Predicated region
  $region34: #{graph_net_block.3} parent=0 // pred_check
    _
  $region35: #{graph_net_block.3} parent=0 // pred_check_branch
    %33 = sbr.rel (0) target = $region37
  $region36: #{graph_net_block.3} parent=0 // pred_region
    _
  $region37: #{graph_net_block.3} parent=0 // pred_fallthru
    _
  // Predicated region
  $region38: #{graph_net_block.3} parent=0 // pred_check
    _
  $region39: #{graph_net_block.3} parent=0 // pred_check_branch
    %35 = sbr.rel (0) target = $region41
  $region40: #{graph_net_block.3} parent=0 // pred_region
    _
  $region41: #{graph_net_block.3} parent=0 // pred_fallthru
    _
  // Predicated region
  $region42: #{graph_net_block.3} parent=0 // pred_check
    _
  $region43: #{graph_net_block.3} parent=0 // pred_check_branch
    %37 = sbr.rel (0) target = $region45
  $region44: #{graph_net_block.3} parent=0 // pred_region
    _
  $region45: #{graph_net_block.3} parent=0 // pred_fallthru
    _
  %v38 = vld [vmem:[%s0] sm:$0xff]
  %v39 = vld [vmem:[%s0 + $0x8] sm:$0xff]
  %v40 = vld [vmem:[%s0 + $0x10] sm:$0xff]
  %v41 = vld [vmem:[%s0 + $0x18] sm:$0xff]
  %v42 = vld [vmem:[%s0 + $0x20] sm:$0xff]
  %v43 = vld [vmem:[%s0 + $0x28] sm:$0xff]
  %v44 = vld [vmem:[%s0 + $0x30] sm:$0xff]
  %v45 = vld [vmem:[%s0 + $0x38] sm:$0xff]
  %v46 = vld [vmem:[%s0 + $0x40] sm:$0xff]
  %v47 = vld [vmem:[%s0 + $0x48] sm:$0xff]
  %v48 = vld [vmem:[%s0 + $0x50] sm:$0xff]
  %v49 = vld [vmem:[%s0 + $0x58] sm:$0xff]
  %v50 = vld [vmem:[%s0 + $0x60] sm:$0xff]
  %v51 = vld [vmem:[%s0 + $0x68] sm:$0xff]
  %v52 = vld [vmem:[%s0 + $0x70] sm:$0xff]
  %v53 = vld [vmem:[%s0 + $0x78] sm:$0xff]
  %v54 = vld [vmem:[%s0 + $0x80] sm:$0xff]
  %v55 = vld [vmem:[%s0 + $0x88] sm:$0xff]
  %v56 = vld [vmem:[%s0 + $0x90] sm:$0xff]
  %v57 = vld [vmem:[%s0 + $0x98] sm:$0xff]
  %v58 = vld [vmem:[%s0 + $0xa0] sm:$0xff]
  %v59 = vld [vmem:[%s0 + $0xa8] sm:$0xff]
  %v60 = vld [vmem:[%s0 + $0xb0] sm:$0xff]
  %v61 = vld [vmem:[%s0 + $0xb8] sm:$0xff]
  %v62 = vld [vmem:[%s0 + $0xc0] sm:$0xff]
  %v63 = vld [vmem:[%s0 + $0xc8] sm:$0xff]
  %v64 = vld [vmem:[%s0 + $0xd0] sm:$0xff]
  %v65 = vld [vmem:[%s0 + $0xd8] sm:$0xff]
  %v66 = vld [vmem:[%s0 + $0xe0] sm:$0xff]
  %v67 = vld [vmem:[%s0 + $0xe8] sm:$0xff]
  %v68 = vld [vmem:[%s0 + $0xf0] sm:$0xff]
  %v69 = vld [vmem:[%s0 + $0xf8] sm:$0xff]
  %v70 = vpack.c.bf16 %v39, %v38
  %v71 = vpack.c.bf16 %v41, %v40
  %v72 = vpack.c.bf16 %v43, %v42
  %v73 = vpack.c.bf16 %v45, %v44
  %v74 = vpack.c.bf16 %v47, %v46
  %v75 = vpack.c.bf16 %v49, %v48
  %v76 = vpack.c.bf16 %v51, %v50
  %v77 = vpack.c.bf16 %v53, %v52
  %v78 = vpack.c.bf16 %v55, %v54
  %v79 = vpack.c.bf16 %v57, %v56
  %v80 = vpack.c.bf16 %v59, %v58
  %v81 = vpack.c.bf16 %v61, %v60
  %v82 = vpack.c.bf16 %v63, %v62
  %v83 = vpack.c.bf16 %v65, %v64
  %v84 = vpack.c.bf16 %v67, %v66
  %v85 = vpack.c.bf16 %v69, %v68
  %v86 = vld [vmem:[%s1] sm:$0xff]
  %v87 = vld [vmem:[%s1 + $0x8] sm:$0xff]
  %v88 = vld [vmem:[%s1 + $0x10] sm:$0xff]
  %v89 = vld [vmem:[%s1 + $0x18] sm:$0xff]
  %v90 = vld [vmem:[%s1 + $0x20] sm:$0xff]
  %v91 = vld [vmem:[%s1 + $0x28] sm:$0xff]
  %v92 = vld [vmem:[%s1 + $0x30] sm:$0xff]
  %v93 = vld [vmem:[%s1 + $0x38] sm:$0xff]
  %v94 = vld [vmem:[%s1 + $0x40] sm:$0xff]
  %v95 = vld [vmem:[%s1 + $0x48] sm:$0xff]
  %v96 = vld [vmem:[%s1 + $0x50] sm:$0xff]
  %v97 = vld [vmem:[%s1 + $0x58] sm:$0xff]
  %v98 = vld [vmem:[%s1 + $0x60] sm:$0xff]
  %v99 = vld [vmem:[%s1 + $0x68] sm:$0xff]
  %v100 = vld [vmem:[%s1 + $0x70] sm:$0xff]
  %v101 = vld [vmem:[%s1 + $0x78] sm:$0xff]
  %v102 = vld [vmem:[%s1 + $0x80] sm:$0xff]
  %v103 = vld [vmem:[%s1 + $0x88] sm:$0xff]
  %v104 = vld [vmem:[%s1 + $0x90] sm:$0xff]
  %v105 = vld [vmem:[%s1 + $0x98] sm:$0xff]
  %v106 = vld [vmem:[%s1 + $0xa0] sm:$0xff]
  %v107 = vld [vmem:[%s1 + $0xa8] sm:$0xff]
  %v108 = vld [vmem:[%s1 + $0xb0] sm:$0xff]
  %v109 = vld [vmem:[%s1 + $0xb8] sm:$0xff]
  %v110 = vld [vmem:[%s1 + $0xc0] sm:$0xff]
  %v111 = vld [vmem:[%s1 + $0xc8] sm:$0xff]
  %v112 = vld [vmem:[%s1 + $0xd0] sm:$0xff]
  %v113 = vld [vmem:[%s1 + $0xd8] sm:$0xff]
  %v114 = vld [vmem:[%s1 + $0xe0] sm:$0xff]
  %v115 = vld [vmem:[%s1 + $0xe8] sm:$0xff]
  %v116 = vld [vmem:[%s1 + $0xf0] sm:$0xff]
  %v117 = vld [vmem:[%s1 + $0xf8] sm:$0xff]
  %v118 = vld [vmem:[%s1 + $0x100] sm:$0xff]
  %v119 = vld [vmem:[%s1 + $0x108] sm:$0xff]
  %v120 = vld [vmem:[%s1 + $0x110] sm:$0xff]
  %v121 = vld [vmem:[%s1 + $0x118] sm:$0xff]
  %v122 = vld [vmem:[%s1 + $0x120] sm:$0xff]
  %v123 = vld [vmem:[%s1 + $0x128] sm:$0xff]
  %v124 = vld [vmem:[%s1 + $0x130] sm:$0xff]
  %v125 = vld [vmem:[%s1 + $0x138] sm:$0xff]
  %v126 = vld [vmem:[%s1 + $0x140] sm:$0xff]
  %v127 = vld [vmem:[%s1 + $0x148] sm:$0xff]
  %v128 = vld [vmem:[%s1 + $0x150] sm:$0xff]
  %v129 = vld [vmem:[%s1 + $0x158] sm:$0xff]
  %v130 = vld [vmem:[%s1 + $0x160] sm:$0xff]
  %v131 = vld [vmem:[%s1 + $0x168] sm:$0xff]
  %v132 = vld [vmem:[%s1 + $0x170] sm:$0xff]
  %v133 = vld [vmem:[%s1 + $0x178] sm:$0xff]
  %v134 = vld [vmem:[%s1 + $0x180] sm:$0xff]
  %v135 = vld [vmem:[%s1 + $0x188] sm:$0xff]
  %v136 = vld [vmem:[%s1 + $0x190] sm:$0xff]
  %v137 = vld [vmem:[%s1 + $0x198] sm:$0xff]
  %v138 = vld [vmem:[%s1 + $0x1a0] sm:$0xff]
  %v139 = vld [vmem:[%s1 + $0x1a8] sm:$0xff]
  %v140 = vld [vmem:[%s1 + $0x1b0] sm:$0xff]
  %v141 = vld [vmem:[%s1 + $0x1b8] sm:$0xff]
  %v142 = vld [vmem:[%s1 + $0x1c0] sm:$0xff]
  %v143 = vld [vmem:[%s1 + $0x1c8] sm:$0xff]
  %v144 = vld [vmem:[%s1 + $0x1d0] sm:$0xff]
  %v145 = vld [vmem:[%s1 + $0x1d8] sm:$0xff]
  %v146 = vld [vmem:[%s1 + $0x1e0] sm:$0xff]
  %v147 = vld [vmem:[%s1 + $0x1e8] sm:$0xff]
  %v148 = vld [vmem:[%s1 + $0x1f0] sm:$0xff]
  %v149 = vld [vmem:[%s1 + $0x1f8] sm:$0xff]
  %v150 = vadd.f32 %v86, %v118
  %v151 = vadd.f32 %v87, %v119
  %v152 = vadd.f32 %v88, %v120
  %v153 = vadd.f32 %v89, %v121
  %v154 = vadd.f32 %v90, %v122
  %v155 = vadd.f32 %v91, %v123
  %v156 = vadd.f32 %v92, %v124
  %v157 = vadd.f32 %v93, %v125
  %v158 = vadd.f32 %v94, %v126
  %v159 = vadd.f32 %v95, %v127
  %v160 = vadd.f32 %v96, %v128
  %v161 = vadd.f32 %v97, %v129
  %v162 = vadd.f32 %v98, %v130
  %v163 = vadd.f32 %v99, %v131
  %v164 = vadd.f32 %v100, %v132
  %v165 = vadd.f32 %v101, %v133
  %v166 = vadd.f32 %v102, %v134
  %v167 = vadd.f32 %v103, %v135
  %v168 = vadd.f32 %v104, %v136
  %v169 = vadd.f32 %v105, %v137
  %v170 = vadd.f32 %v106, %v138
  %v171 = vadd.f32 %v107, %v139
  %v172 = vadd.f32 %v108, %v140
  %v173 = vadd.f32 %v109, %v141
  %v174 = vadd.f32 %v110, %v142
  %v175 = vadd.f32 %v111, %v143
  %v176 = vadd.f32 %v112, %v144
  %v177 = vadd.f32 %v113, %v145
  %v178 = vadd.f32 %v114, %v146
  %v179 = vadd.f32 %v115, %v147
  %v180 = vadd.f32 %v116, %v148
  %v181 = vadd.f32 %v117, %v149
  %v182 = vpack.c.bf16 %v151, %v150
  %v183 = vpack.c.bf16 %v153, %v152
  %v184 = vpack.c.bf16 %v155, %v154
  %v185 = vpack.c.bf16 %v157, %v156
  %v186 = vpack.c.bf16 %v159, %v158
  %v187 = vpack.c.bf16 %v161, %v160
  %v188 = vpack.c.bf16 %v163, %v162
  %v189 = vpack.c.bf16 %v165, %v164
  %v190 = vpack.c.bf16 %v167, %v166
  %v191 = vpack.c.bf16 %v169, %v168
  %v192 = vpack.c.bf16 %v171, %v170
  %v193 = vpack.c.bf16 %v173, %v172
  %v194 = vpack.c.bf16 %v175, %v174
  %v195 = vpack.c.bf16 %v177, %v176
  %v196 = vpack.c.bf16 %v179, %v178
  %v197 = vpack.c.bf16 %v181, %v180
  %v198 = vld [vmem:[%s2] sm:$0xf]
  %v199 = vld [vmem:[%s2 + $0x4] sm:$0xf]
  %v200 = vld [vmem:[%s2 + $0x8] sm:$0xf]
  %v201 = vld [vmem:[%s2 + $0xc] sm:$0xf]
  %v202 = vld [vmem:[%s2 + $0x10] sm:$0xf]
  %v203 = vld [vmem:[%s2 + $0x14] sm:$0xf]
  %v204 = vld [vmem:[%s2 + $0x18] sm:$0xf]
  %v205 = vld [vmem:[%s2 + $0x1c] sm:$0xf]
  %v206 = vld [vmem:[%s2 + $0x20] sm:$0xf]
  %v207 = vld [vmem:[%s2 + $0x24] sm:$0xf]
  %v208 = vld [vmem:[%s2 + $0x28] sm:$0xf]
  %v209 = vld [vmem:[%s2 + $0x2c] sm:$0xf]
  %v210 = vld [vmem:[%s2 + $0x30] sm:$0xf]
  %v211 = vld [vmem:[%s2 + $0x34] sm:$0xf]
  %v212 = vld [vmem:[%s2 + $0x38] sm:$0xf]
  %v213 = vld [vmem:[%s2 + $0x3c] sm:$0xf]
  %v214 = vld [vmem:[%s3] sm:$0xf]
  %v215 = vld [vmem:[%s3 + $0x4] sm:$0xf]
  %v216 = vld [vmem:[%s3 + $0x8] sm:$0xf]
  %v217 = vld [vmem:[%s3 + $0xc] sm:$0xf]
  %v218 = vld [vmem:[%s3 + $0x10] sm:$0xf]
  %v219 = vld [vmem:[%s3 + $0x14] sm:$0xf]
  %v220 = vld [vmem:[%s3 + $0x18] sm:$0xf]
  %v221 = vld [vmem:[%s3 + $0x1c] sm:$0xf]
  %v222 = vld [vmem:[%s3 + $0x20] sm:$0xf]
  %v223 = vld [vmem:[%s3 + $0x24] sm:$0xf]
  %v224 = vld [vmem:[%s3 + $0x28] sm:$0xf]
  %v225 = vld [vmem:[%s3 + $0x2c] sm:$0xf]
  %v226 = vld [vmem:[%s3 + $0x30] sm:$0xf]
  %v227 = vld [vmem:[%s3 + $0x34] sm:$0xf]
  %v228 = vld [vmem:[%s3 + $0x38] sm:$0xf]
  %v229 = vld [vmem:[%s3 + $0x3c] sm:$0xf]
  %v246 = vunpack.c.l.b16 %v214
  %v247 = vunpack.c.l.b16 %v215
  %v248 = vunpack.c.l.b16 %v216
  %v249 = vunpack.c.l.b16 %v217
  %v250 = vunpack.c.l.b16 %v218
  %v251 = vunpack.c.l.b16 %v219
  %v252 = vunpack.c.l.b16 %v220
  %v253 = vunpack.c.l.b16 %v221
  %v254 = vunpack.c.l.b16 %v222
  %v255 = vunpack.c.l.b16 %v223
  %v256 = vunpack.c.l.b16 %v224
  %v257 = vunpack.c.l.b16 %v225
  %v258 = vunpack.c.l.b16 %v226
  %v259 = vunpack.c.l.b16 %v227
  %v260 = vunpack.c.l.b16 %v228
  %v261 = vunpack.c.l.b16 %v229
  %v262 = vpack.c.b16 %v247, %v246
  %v263 = vpack.c.b16 %v249, %v248
  %v264 = vpack.c.b16 %v251, %v250
  %v265 = vpack.c.b16 %v253, %v252
  %v266 = vpack.c.b16 %v255, %v254
  %v267 = vpack.c.b16 %v257, %v256
  %v268 = vpack.c.b16 %v259, %v258
  %v269 = vpack.c.b16 %v261, %v260
  %278 = vmatpush.bf16.msra.mxu0 %v269
  %279 = vmatpush.bf16.msra.mxu0 %v268
  %280 = vmatpush.bf16.msra.mxu0 %v267
  %281 = vmatpush.bf16.msra.mxu0 %v266
  %282 = vmatpush.bf16.msra.mxu0 %v265
  %283 = vmatpush.bf16.msra.mxu0 %v264
  %284 = vmatpush.bf16.msra.mxu0 %v263
  %285 = vmatpush.bf16.msra.mxu0 %v262
  %286 = vmatmul.bf16.gmra.mxu0 %v182
  %v287 = vpop.f32.mrf.mxu0
  %v288 = vadd.f32 0.0, %v287
  %v289 = vpop.f32.mrf.mxu0
  %v290 = vadd.f32 0.0, %v289
  %291 = vmatmul.bf16.gmra.mxu0 %v183
  %v292 = vpop.f32.mrf.mxu0
  %v293 = vadd.f32 0.0, %v292
  %v294 = vpop.f32.mrf.mxu0
  %v295 = vadd.f32 0.0, %v294
  %296 = vmatmul.bf16.gmra.mxu0 %v184
  %v297 = vpop.f32.mrf.mxu0
  %v298 = vadd.f32 0.0, %v297
  %v299 = vpop.f32.mrf.mxu0
  %v300 = vadd.f32 0.0, %v299
  %301 = vmatmul.bf16.gmra.mxu0 %v185
  %v302 = vpop.f32.mrf.mxu0
  %v303 = vadd.f32 0.0, %v302
  %v304 = vpop.f32.mrf.mxu0
  %v305 = vadd.f32 0.0, %v304
  %306 = vmatmul.bf16.gmra.mxu0 %v186
  %v307 = vpop.f32.mrf.mxu0
  %v308 = vadd.f32 0.0, %v307
  %v309 = vpop.f32.mrf.mxu0
  %v310 = vadd.f32 0.0, %v309
  %311 = vmatmul.bf16.gmra.mxu0 %v187
  %v312 = vpop.f32.mrf.mxu0
  %v313 = vadd.f32 0.0, %v312
  %v314 = vpop.f32.mrf.mxu0
  %v315 = vadd.f32 0.0, %v314
  %316 = vmatmul.bf16.gmra.mxu0 %v188
  %v317 = vpop.f32.mrf.mxu0
  %v318 = vadd.f32 0.0, %v317
  %v319 = vpop.f32.mrf.mxu0
  %v320 = vadd.f32 0.0, %v319
  %321 = vmatmul.bf16.gmra.mxu0 %v189
  %v322 = vpop.f32.mrf.mxu0
  %v323 = vadd.f32 0.0, %v322
  %v324 = vpop.f32.mrf.mxu0
  %v325 = vadd.f32 0.0, %v324
  %326 = vmatmul.bf16.gmra.mxu0 %v190
  %v327 = vpop.f32.mrf.mxu0
  %v328 = vadd.f32 0.0, %v327
  %v329 = vpop.f32.mrf.mxu0
  %v330 = vadd.f32 0.0, %v329
  %331 = vmatmul.bf16.gmra.mxu0 %v191
  %v332 = vpop.f32.mrf.mxu0
  %v333 = vadd.f32 0.0, %v332
  %v334 = vpop.f32.mrf.mxu0
  %v335 = vadd.f32 0.0, %v334
  %336 = vmatmul.bf16.gmra.mxu0 %v192
  %v337 = vpop.f32.mrf.mxu0
  %v338 = vadd.f32 0.0, %v337
  %v339 = vpop.f32.mrf.mxu0
  %v340 = vadd.f32 0.0, %v339
  %341 = vmatmul.bf16.gmra.mxu0 %v193
  %v342 = vpop.f32.mrf.mxu0
  %v343 = vadd.f32 0.0, %v342
  %v344 = vpop.f32.mrf.mxu0
  %v345 = vadd.f32 0.0, %v344
  %346 = vmatmul.bf16.gmra.mxu0 %v194
  %v347 = vpop.f32.mrf.mxu0
  %v348 = vadd.f32 0.0, %v347
  %v349 = vpop.f32.mrf.mxu0
  %v350 = vadd.f32 0.0, %v349
  %351 = vmatmul.bf16.gmra.mxu0 %v195
  %v352 = vpop.f32.mrf.mxu0
  %v353 = vadd.f32 0.0, %v352
  %v354 = vpop.f32.mrf.mxu0
  %v355 = vadd.f32 0.0, %v354
  %356 = vmatmul.bf16.gmra.mxu0 %v196
  %v357 = vpop.f32.mrf.mxu0
  %v358 = vadd.f32 0.0, %v357
  %v359 = vpop.f32.mrf.mxu0
  %v360 = vadd.f32 0.0, %v359
  %361 = vmatmul.bf16.gmra.mxu0 %v197
  %v362 = vpop.f32.mrf.mxu0
  %v363 = vadd.f32 0.0, %v362
  %v364 = vpop.f32.mrf.mxu0
  %v365 = vadd.f32 0.0, %v364
  %366 = vdwg.mxu0
  %v383 = vunpack.c.l.b16 %v198
  %v384 = vunpack.c.l.b16 %v199
  %v385 = vunpack.c.l.b16 %v200
  %v386 = vunpack.c.l.b16 %v201
  %v387 = vunpack.c.l.b16 %v202
  %v388 = vunpack.c.l.b16 %v203
  %v389 = vunpack.c.l.b16 %v204
  %v390 = vunpack.c.l.b16 %v205
  %v391 = vunpack.c.l.b16 %v206
  %v392 = vunpack.c.l.b16 %v207
  %v393 = vunpack.c.l.b16 %v208
  %v394 = vunpack.c.l.b16 %v209
  %v395 = vunpack.c.l.b16 %v210
  %v396 = vunpack.c.l.b16 %v211
  %v397 = vunpack.c.l.b16 %v212
  %v398 = vunpack.c.l.b16 %v213
  %v399 = vpack.c.b16 %v384, %v383
  %v400 = vpack.c.b16 %v386, %v385
  %v401 = vpack.c.b16 %v388, %v387
  %v402 = vpack.c.b16 %v390, %v389
  %v403 = vpack.c.b16 %v392, %v391
  %v404 = vpack.c.b16 %v394, %v393
  %v405 = vpack.c.b16 %v396, %v395
  %v406 = vpack.c.b16 %v398, %v397
  %415 = vmatpush.bf16.msra.mxu0 %v406
  %416 = vmatpush.bf16.msra.mxu0 %v405
  %417 = vmatpush.bf16.msra.mxu0 %v404
  %418 = vmatpush.bf16.msra.mxu0 %v403
  %419 = vmatpush.bf16.msra.mxu0 %v402
  %420 = vmatpush.bf16.msra.mxu0 %v401
  %421 = vmatpush.bf16.msra.mxu0 %v400
  %422 = vmatpush.bf16.msra.mxu0 %v399
  %423 = vmatmul.bf16.gmra.mxu0 %v70
  %v424 = vpop.f32.mrf.mxu0
  %v425 = vadd.f32 %v288, %v424
  %v426 = vpop.f32.mrf.mxu0
  %v427 = vadd.f32 %v290, %v426
  %428 = vmatmul.bf16.gmra.mxu0 %v71
  %v429 = vpop.f32.mrf.mxu0
  %v430 = vadd.f32 %v293, %v429
  %v431 = vpop.f32.mrf.mxu0
  %v432 = vadd.f32 %v295, %v431
  %433 = vmatmul.bf16.gmra.mxu0 %v72
  %v434 = vpop.f32.mrf.mxu0
  %v435 = vadd.f32 %v298, %v434
  %v436 = vpop.f32.mrf.mxu0
  %v437 = vadd.f32 %v300, %v436
  %438 = vmatmul.bf16.gmra.mxu0 %v73
  %v439 = vpop.f32.mrf.mxu0
  %v440 = vadd.f32 %v303, %v439
  %v441 = vpop.f32.mrf.mxu0
  %v442 = vadd.f32 %v305, %v441
  %443 = vmatmul.bf16.gmra.mxu0 %v74
  %v444 = vpop.f32.mrf.mxu0
  %v445 = vadd.f32 %v308, %v444
  %v446 = vpop.f32.mrf.mxu0
  %v447 = vadd.f32 %v310, %v446
  %448 = vmatmul.bf16.gmra.mxu0 %v75
  %v449 = vpop.f32.mrf.mxu0
  %v450 = vadd.f32 %v313, %v449
  %v451 = vpop.f32.mrf.mxu0
  %v452 = vadd.f32 %v315, %v451
  %453 = vmatmul.bf16.gmra.mxu0 %v76
  %v454 = vpop.f32.mrf.mxu0
  %v455 = vadd.f32 %v318, %v454
  %v456 = vpop.f32.mrf.mxu0
  %v457 = vadd.f32 %v320, %v456
  %458 = vmatmul.bf16.gmra.mxu0 %v77
  %v459 = vpop.f32.mrf.mxu0
  %v460 = vadd.f32 %v323, %v459
  %v461 = vpop.f32.mrf.mxu0
  %v462 = vadd.f32 %v325, %v461
  %463 = vmatmul.bf16.gmra.mxu0 %v78
  %v464 = vpop.f32.mrf.mxu0
  %v465 = vadd.f32 %v328, %v464
  %v466 = vpop.f32.mrf.mxu0
  %v467 = vadd.f32 %v330, %v466
  %468 = vmatmul.bf16.gmra.mxu0 %v79
  %v469 = vpop.f32.mrf.mxu0
  %v470 = vadd.f32 %v333, %v469
  %v471 = vpop.f32.mrf.mxu0
  %v472 = vadd.f32 %v335, %v471
  %473 = vmatmul.bf16.gmra.mxu0 %v80
  %v474 = vpop.f32.mrf.mxu0
  %v475 = vadd.f32 %v338, %v474
  %v476 = vpop.f32.mrf.mxu0
  %v477 = vadd.f32 %v340, %v476
  %478 = vmatmul.bf16.gmra.mxu0 %v81
  %v479 = vpop.f32.mrf.mxu0
  %v480 = vadd.f32 %v343, %v479
  %v481 = vpop.f32.mrf.mxu0
  %v482 = vadd.f32 %v345, %v481
  %483 = vmatmul.bf16.gmra.mxu0 %v82
  %v484 = vpop.f32.mrf.mxu0
  %v485 = vadd.f32 %v348, %v484
  %v486 = vpop.f32.mrf.mxu0
  %v487 = vadd.f32 %v350, %v486
  %488 = vmatmul.bf16.gmra.mxu0 %v83
  %v489 = vpop.f32.mrf.mxu0
  %v490 = vadd.f32 %v353, %v489
  %v491 = vpop.f32.mrf.mxu0
  %v492 = vadd.f32 %v355, %v491
  %493 = vmatmul.bf16.gmra.mxu0 %v84
  %v494 = vpop.f32.mrf.mxu0
  %v495 = vadd.f32 %v358, %v494
  %v496 = vpop.f32.mrf.mxu0
  %v497 = vadd.f32 %v360, %v496
  %498 = vmatmul.bf16.gmra.mxu0 %v85
  %v499 = vpop.f32.mrf.mxu0
  %v500 = vadd.f32 %v363, %v499
  %v501 = vpop.f32.mrf.mxu0
  %v502 = vadd.f32 %v365, %v501
  %503 = vdwg.mxu0
  %v504 = vld [vmem:[%s4] sm:$0x1]
  %v506 = vperm.slane %v504, 0
  %v508 = vadd.f32 %v425, %v506
  %v509 = vadd.f32 %v427, %v506
  %v510 = vadd.f32 %v430, %v506
  %v511 = vadd.f32 %v432, %v506
  %v512 = vadd.f32 %v435, %v506
  %v513 = vadd.f32 %v437, %v506
  %v514 = vadd.f32 %v440, %v506
  %v515 = vadd.f32 %v442, %v506
  %v516 = vadd.f32 %v445, %v506
  %v517 = vadd.f32 %v447, %v506
  %v518 = vadd.f32 %v450, %v506
  %v519 = vadd.f32 %v452, %v506
  %v520 = vadd.f32 %v455, %v506
  %v521 = vadd.f32 %v457, %v506
  %v522 = vadd.f32 %v460, %v506
  %v523 = vadd.f32 %v462, %v506
  %v524 = vadd.f32 %v465, %v506
  %v525 = vadd.f32 %v467, %v506
  %v526 = vadd.f32 %v470, %v506
  %v527 = vadd.f32 %v472, %v506
  %v528 = vadd.f32 %v475, %v506
  %v529 = vadd.f32 %v477, %v506
  %v530 = vadd.f32 %v480, %v506
  %v531 = vadd.f32 %v482, %v506
  %v532 = vadd.f32 %v485, %v506
  %v533 = vadd.f32 %v487, %v506
  %v534 = vadd.f32 %v490, %v506
  %v535 = vadd.f32 %v492, %v506
  %v536 = vadd.f32 %v495, %v506
  %v537 = vadd.f32 %v497, %v506
  %v538 = vadd.f32 %v500, %v506
  %v539 = vadd.f32 %v502, %v506
  %v540 = vmax.f32 %v508, 0.0
  %v541 = vmax.f32 %v509, 0.0
  %v542 = vmax.f32 %v510, 0.0
  %v543 = vmax.f32 %v511, 0.0
  %v544 = vmax.f32 %v512, 0.0
  %v545 = vmax.f32 %v513, 0.0
  %v546 = vmax.f32 %v514, 0.0
  %v547 = vmax.f32 %v515, 0.0
  %v548 = vmax.f32 %v516, 0.0
  %v549 = vmax.f32 %v517, 0.0
  %v550 = vmax.f32 %v518, 0.0
  %v551 = vmax.f32 %v519, 0.0
  %v552 = vmax.f32 %v520, 0.0
  %v553 = vmax.f32 %v521, 0.0
  %v554 = vmax.f32 %v522, 0.0
  %v555 = vmax.f32 %v523, 0.0
  %v556 = vmax.f32 %v524, 0.0
  %v557 = vmax.f32 %v525, 0.0
  %v558 = vmax.f32 %v526, 0.0
  %v559 = vmax.f32 %v527, 0.0
  %v560 = vmax.f32 %v528, 0.0
  %v561 = vmax.f32 %v529, 0.0
  %v562 = vmax.f32 %v530, 0.0
  %v563 = vmax.f32 %v531, 0.0
  %v564 = vmax.f32 %v532, 0.0
  %v565 = vmax.f32 %v533, 0.0
  %v566 = vmax.f32 %v534, 0.0
  %v567 = vmax.f32 %v535, 0.0
  %v568 = vmax.f32 %v536, 0.0
  %v569 = vmax.f32 %v537, 0.0
  %v570 = vmax.f32 %v538, 0.0
  %v571 = vmax.f32 %v539, 0.0
  %v572 = vpack.c.bf16 %v541, %v540
  %v573 = vpack.c.bf16 %v543, %v542
  %v574 = vpack.c.bf16 %v545, %v544
  %v575 = vpack.c.bf16 %v547, %v546
  %v576 = vpack.c.bf16 %v549, %v548
  %v577 = vpack.c.bf16 %v551, %v550
  %v578 = vpack.c.bf16 %v553, %v552
  %v579 = vpack.c.bf16 %v555, %v554
  %v580 = vpack.c.bf16 %v557, %v556
  %v581 = vpack.c.bf16 %v559, %v558
  %v582 = vpack.c.bf16 %v561, %v560
  %v583 = vpack.c.bf16 %v563, %v562
  %v584 = vpack.c.bf16 %v565, %v564
  %v585 = vpack.c.bf16 %v567, %v566
  %v586 = vpack.c.bf16 %v569, %v568
  %v587 = vpack.c.bf16 %v571, %v570
  %v588 = vld [vmem:[%s5] sm:$0xf]
  %v589 = vld [vmem:[%s5 + $0x4] sm:$0xf]
  %v590 = vld [vmem:[%s5 + $0x8] sm:$0xf]
  %v591 = vld [vmem:[%s5 + $0xc] sm:$0xf]
  %v592 = vld [vmem:[%s5 + $0x10] sm:$0xf]
  %v593 = vld [vmem:[%s5 + $0x14] sm:$0xf]
  %v594 = vld [vmem:[%s5 + $0x18] sm:$0xf]
  %v595 = vld [vmem:[%s5 + $0x1c] sm:$0xf]
  %v596 = vld [vmem:[%s5 + $0x20] sm:$0xf]
  %v597 = vld [vmem:[%s5 + $0x24] sm:$0xf]
  %v598 = vld [vmem:[%s5 + $0x28] sm:$0xf]
  %v599 = vld [vmem:[%s5 + $0x2c] sm:$0xf]
  %v600 = vld [vmem:[%s5 + $0x30] sm:$0xf]
  %v601 = vld [vmem:[%s5 + $0x34] sm:$0xf]
  %v602 = vld [vmem:[%s5 + $0x38] sm:$0xf]
  %v603 = vld [vmem:[%s5 + $0x3c] sm:$0xf]
  %v604 = vld [vmem:[%s6] sm:$0x1]
  %v606 = vperm.slane %v604, 0
  %v624 = vunpack.c.l.b16 %v588
  %v625 = vunpack.c.l.b16 %v589
  %v626 = vunpack.c.l.b16 %v590
  %v627 = vunpack.c.l.b16 %v591
  %v628 = vunpack.c.l.b16 %v592
  %v629 = vunpack.c.l.b16 %v593
  %v630 = vunpack.c.l.b16 %v594
  %v631 = vunpack.c.l.b16 %v595
  %v632 = vunpack.c.l.b16 %v596
  %v633 = vunpack.c.l.b16 %v597
  %v634 = vunpack.c.l.b16 %v598
  %v635 = vunpack.c.l.b16 %v599
  %v636 = vunpack.c.l.b16 %v600
  %v637 = vunpack.c.l.b16 %v601
  %v638 = vunpack.c.l.b16 %v602
  %v639 = vunpack.c.l.b16 %v603
  %v640 = vpack.c.b16 %v625, %v624
  %v641 = vpack.c.b16 %v627, %v626
  %v642 = vpack.c.b16 %v629, %v628
  %v643 = vpack.c.b16 %v631, %v630
  %v644 = vpack.c.b16 %v633, %v632
  %v645 = vpack.c.b16 %v635, %v634
  %v646 = vpack.c.b16 %v637, %v636
  %v647 = vpack.c.b16 %v639, %v638
  %656 = vmatpush.bf16.msra.mxu0 %v647
  %657 = vmatpush.bf16.msra.mxu0 %v646
  %658 = vmatpush.bf16.msra.mxu0 %v645
  %659 = vmatpush.bf16.msra.mxu0 %v644
  %660 = vmatpush.bf16.msra.mxu0 %v643
  %661 = vmatpush.bf16.msra.mxu0 %v642
  %662 = vmatpush.bf16.msra.mxu0 %v641
  %663 = vmatpush.bf16.msra.mxu0 %v640
  %664 = vmatmul.bf16.gmra.mxu0 %v572
  %v665 = vpop.f32.mrf.mxu0
  %v666 = vadd.f32 %v606, %v665
  %v667 = vpop.f32.mrf.mxu0
  %v668 = vadd.f32 %v606, %v667
  %669 = vmatmul.bf16.gmra.mxu0 %v573
  %v670 = vpop.f32.mrf.mxu0
  %v671 = vadd.f32 %v606, %v670
  %v672 = vpop.f32.mrf.mxu0
  %v673 = vadd.f32 %v606, %v672
  %674 = vmatmul.bf16.gmra.mxu0 %v574
  %v675 = vpop.f32.mrf.mxu0
  %v676 = vadd.f32 %v606, %v675
  %v677 = vpop.f32.mrf.mxu0
  %v678 = vadd.f32 %v606, %v677
  %679 = vmatmul.bf16.gmra.mxu0 %v575
  %v680 = vpop.f32.mrf.mxu0
  %v681 = vadd.f32 %v606, %v680
  %v682 = vpop.f32.mrf.mxu0
  %v683 = vadd.f32 %v606, %v682
  %684 = vmatmul.bf16.gmra.mxu0 %v576
  %v685 = vpop.f32.mrf.mxu0
  %v686 = vadd.f32 %v606, %v685
  %v687 = vpop.f32.mrf.mxu0
  %v688 = vadd.f32 %v606, %v687
  %689 = vmatmul.bf16.gmra.mxu0 %v577
  %v690 = vpop.f32.mrf.mxu0
  %v691 = vadd.f32 %v606, %v690
  %v692 = vpop.f32.mrf.mxu0
  %v693 = vadd.f32 %v606, %v692
  %694 = vmatmul.bf16.gmra.mxu0 %v578
  %v695 = vpop.f32.mrf.mxu0
  %v696 = vadd.f32 %v606, %v695
  %v697 = vpop.f32.mrf.mxu0
  %v698 = vadd.f32 %v606, %v697
  %699 = vmatmul.bf16.gmra.mxu0 %v579
  %v700 = vpop.f32.mrf.mxu0
  %v701 = vadd.f32 %v606, %v700
  %v702 = vpop.f32.mrf.mxu0
  %v703 = vadd.f32 %v606, %v702
  %704 = vmatmul.bf16.gmra.mxu0 %v580
  %v705 = vpop.f32.mrf.mxu0
  %v706 = vadd.f32 %v606, %v705
  %v707 = vpop.f32.mrf.mxu0
  %v708 = vadd.f32 %v606, %v707
  %709 = vmatmul.bf16.gmra.mxu0 %v581
  %v710 = vpop.f32.mrf.mxu0
  %v711 = vadd.f32 %v606, %v710
  %v712 = vpop.f32.mrf.mxu0
  %v713 = vadd.f32 %v606, %v712
  %714 = vmatmul.bf16.gmra.mxu0 %v582
  %v715 = vpop.f32.mrf.mxu0
  %v716 = vadd.f32 %v606, %v715
  %v717 = vpop.f32.mrf.mxu0
  %v718 = vadd.f32 %v606, %v717
  %719 = vmatmul.bf16.gmra.mxu0 %v583
  %v720 = vpop.f32.mrf.mxu0
  %v721 = vadd.f32 %v606, %v720
  %v722 = vpop.f32.mrf.mxu0
  %v723 = vadd.f32 %v606, %v722
  %724 = vmatmul.bf16.gmra.mxu0 %v584
  %v725 = vpop.f32.mrf.mxu0
  %v726 = vadd.f32 %v606, %v725
  %v727 = vpop.f32.mrf.mxu0
  %v728 = vadd.f32 %v606, %v727
  %729 = vmatmul.bf16.gmra.mxu0 %v585
  %v730 = vpop.f32.mrf.mxu0
  %v731 = vadd.f32 %v606, %v730
  %v732 = vpop.f32.mrf.mxu0
  %v733 = vadd.f32 %v606, %v732
  %734 = vmatmul.bf16.gmra.mxu0 %v586
  %v735 = vpop.f32.mrf.mxu0
  %v736 = vadd.f32 %v606, %v735
  %v737 = vpop.f32.mrf.mxu0
  %v738 = vadd.f32 %v606, %v737
  %739 = vmatmul.bf16.gmra.mxu0 %v587
  %v740 = vpop.f32.mrf.mxu0
  %v741 = vadd.f32 %v606, %v740
  %v742 = vpop.f32.mrf.mxu0
  %v743 = vadd.f32 %v606, %v742
  %744 = vdwg.mxu0
  %v745 = vmax.f32 %v666, 0.0
  %v746 = vmax.f32 %v668, 0.0
  %v747 = vmax.f32 %v671, 0.0
  %v748 = vmax.f32 %v673, 0.0
  %v749 = vmax.f32 %v676, 0.0
  %v750 = vmax.f32 %v678, 0.0
  %v751 = vmax.f32 %v681, 0.0
  %v752 = vmax.f32 %v683, 0.0
  %v753 = vmax.f32 %v686, 0.0
  %v754 = vmax.f32 %v688, 0.0
  %v755 = vmax.f32 %v691, 0.0
  %v756 = vmax.f32 %v693, 0.0
  %v757 = vmax.f32 %v696, 0.0
  %v758 = vmax.f32 %v698, 0.0
  %v759 = vmax.f32 %v701, 0.0
  %v760 = vmax.f32 %v703, 0.0
  %v761 = vmax.f32 %v706, 0.0
  %v762 = vmax.f32 %v708, 0.0
  %v763 = vmax.f32 %v711, 0.0
  %v764 = vmax.f32 %v713, 0.0
  %v765 = vmax.f32 %v716, 0.0
  %v766 = vmax.f32 %v718, 0.0
  %v767 = vmax.f32 %v721, 0.0
  %v768 = vmax.f32 %v723, 0.0
  %v769 = vmax.f32 %v726, 0.0
  %v770 = vmax.f32 %v728, 0.0
  %v771 = vmax.f32 %v731, 0.0
  %v772 = vmax.f32 %v733, 0.0
  %v773 = vmax.f32 %v736, 0.0
  %v774 = vmax.f32 %v738, 0.0
  %v775 = vmax.f32 %v741, 0.0
  %v776 = vmax.f32 %v743, 0.0
  %v777 = vpack.c.bf16 %v746, %v745
  %v778 = vpack.c.bf16 %v748, %v747
  %v779 = vpack.c.bf16 %v750, %v749
  %v780 = vpack.c.bf16 %v752, %v751
  %v781 = vpack.c.bf16 %v754, %v753
  %v782 = vpack.c.bf16 %v756, %v755
  %v783 = vpack.c.bf16 %v758, %v757
  %v784 = vpack.c.bf16 %v760, %v759
  %v785 = vpack.c.bf16 %v762, %v761
  %v786 = vpack.c.bf16 %v764, %v763
  %v787 = vpack.c.bf16 %v766, %v765
  %v788 = vpack.c.bf16 %v768, %v767
  %v789 = vpack.c.bf16 %v770, %v769
  %v790 = vpack.c.bf16 %v772, %v771
  %v791 = vpack.c.bf16 %v774, %v773
  %v792 = vpack.c.bf16 %v776, %v775
  %v793 = vld [vmem:[%s7] sm:$0xf]
  %v794 = vld [vmem:[%s7 + $0x4] sm:$0xf]
  %v795 = vld [vmem:[%s7 + $0x8] sm:$0xf]
  %v796 = vld [vmem:[%s7 + $0xc] sm:$0xf]
  %v797 = vld [vmem:[%s7 + $0x10] sm:$0xf]
  %v798 = vld [vmem:[%s7 + $0x14] sm:$0xf]
  %v799 = vld [vmem:[%s7 + $0x18] sm:$0xf]
  %v800 = vld [vmem:[%s7 + $0x1c] sm:$0xf]
  %v801 = vld [vmem:[%s7 + $0x20] sm:$0xf]
  %v802 = vld [vmem:[%s7 + $0x24] sm:$0xf]
  %v803 = vld [vmem:[%s7 + $0x28] sm:$0xf]
  %v804 = vld [vmem:[%s7 + $0x2c] sm:$0xf]
  %v805 = vld [vmem:[%s7 + $0x30] sm:$0xf]
  %v806 = vld [vmem:[%s7 + $0x34] sm:$0xf]
  %v807 = vld [vmem:[%s7 + $0x38] sm:$0xf]
  %v808 = vld [vmem:[%s7 + $0x3c] sm:$0xf]
  %v809 = vld [vmem:[%s8] sm:$0x1]
  %v811 = vperm.slane %v809, 0
  %v829 = vunpack.c.l.b16 %v793
  %v830 = vunpack.c.l.b16 %v794
  %v831 = vunpack.c.l.b16 %v795
  %v832 = vunpack.c.l.b16 %v796
  %v833 = vunpack.c.l.b16 %v797
  %v834 = vunpack.c.l.b16 %v798
  %v835 = vunpack.c.l.b16 %v799
  %v836 = vunpack.c.l.b16 %v800
  %v837 = vunpack.c.l.b16 %v801
  %v838 = vunpack.c.l.b16 %v802
  %v839 = vunpack.c.l.b16 %v803
  %v840 = vunpack.c.l.b16 %v804
  %v841 = vunpack.c.l.b16 %v805
  %v842 = vunpack.c.l.b16 %v806
  %v843 = vunpack.c.l.b16 %v807
  %v844 = vunpack.c.l.b16 %v808
  %v845 = vpack.c.b16 %v830, %v829
  %v846 = vpack.c.b16 %v832, %v831
  %v847 = vpack.c.b16 %v834, %v833
  %v848 = vpack.c.b16 %v836, %v835
  %v849 = vpack.c.b16 %v838, %v837
  %v850 = vpack.c.b16 %v840, %v839
  %v851 = vpack.c.b16 %v842, %v841
  %v852 = vpack.c.b16 %v844, %v843
  %861 = vmatpush.bf16.msra.mxu0 %v852
  %862 = vmatpush.bf16.msra.mxu0 %v851
  %863 = vmatpush.bf16.msra.mxu0 %v850
  %864 = vmatpush.bf16.msra.mxu0 %v849
  %865 = vmatpush.bf16.msra.mxu0 %v848
  %866 = vmatpush.bf16.msra.mxu0 %v847
  %867 = vmatpush.bf16.msra.mxu0 %v846
  %868 = vmatpush.bf16.msra.mxu0 %v845
  %869 = vmatmul.bf16.gmra.mxu0 %v777
  %v870 = vpop.f32.mrf.mxu0
  %v871 = vadd.f32 %v811, %v870
  %v872 = vpop.f32.mrf.mxu0
  %v873 = vadd.f32 %v811, %v872
  %874 = vmatmul.bf16.gmra.mxu0 %v778
  %v875 = vpop.f32.mrf.mxu0
  %v876 = vadd.f32 %v811, %v875
  %v877 = vpop.f32.mrf.mxu0
  %v878 = vadd.f32 %v811, %v877
  %879 = vmatmul.bf16.gmra.mxu0 %v779
  %v880 = vpop.f32.mrf.mxu0
  %v881 = vadd.f32 %v811, %v880
  %v882 = vpop.f32.mrf.mxu0
  %v883 = vadd.f32 %v811, %v882
  %884 = vmatmul.bf16.gmra.mxu0 %v780
  %v885 = vpop.f32.mrf.mxu0
  %v886 = vadd.f32 %v811, %v885
  %v887 = vpop.f32.mrf.mxu0
  %v888 = vadd.f32 %v811, %v887
  %889 = vmatmul.bf16.gmra.mxu0 %v781
  %v890 = vpop.f32.mrf.mxu0
  %v891 = vadd.f32 %v811, %v890
  %v892 = vpop.f32.mrf.mxu0
  %v893 = vadd.f32 %v811, %v892
  %894 = vmatmul.bf16.gmra.mxu0 %v782
  %v895 = vpop.f32.mrf.mxu0
  %v896 = vadd.f32 %v811, %v895
  %v897 = vpop.f32.mrf.mxu0
  %v898 = vadd.f32 %v811, %v897
  %899 = vmatmul.bf16.gmra.mxu0 %v783
  %v900 = vpop.f32.mrf.mxu0
  %v901 = vadd.f32 %v811, %v900
  %v902 = vpop.f32.mrf.mxu0
  %v903 = vadd.f32 %v811, %v902
  %904 = vmatmul.bf16.gmra.mxu0 %v784
  %v905 = vpop.f32.mrf.mxu0
  %v906 = vadd.f32 %v811, %v905
  %v907 = vpop.f32.mrf.mxu0
  %v908 = vadd.f32 %v811, %v907
  %909 = vmatmul.bf16.gmra.mxu0 %v785
  %v910 = vpop.f32.mrf.mxu0
  %v911 = vadd.f32 %v811, %v910
  %v912 = vpop.f32.mrf.mxu0
  %v913 = vadd.f32 %v811, %v912
  %914 = vmatmul.bf16.gmra.mxu0 %v786
  %v915 = vpop.f32.mrf.mxu0
  %v916 = vadd.f32 %v811, %v915
  %v917 = vpop.f32.mrf.mxu0
  %v918 = vadd.f32 %v811, %v917
  %919 = vmatmul.bf16.gmra.mxu0 %v787
  %v920 = vpop.f32.mrf.mxu0
  %v921 = vadd.f32 %v811, %v920
  %v922 = vpop.f32.mrf.mxu0
  %v923 = vadd.f32 %v811, %v922
  %924 = vmatmul.bf16.gmra.mxu0 %v788
  %v925 = vpop.f32.mrf.mxu0
  %v926 = vadd.f32 %v811, %v925
  %v927 = vpop.f32.mrf.mxu0
  %v928 = vadd.f32 %v811, %v927
  %929 = vmatmul.bf16.gmra.mxu0 %v789
  %v930 = vpop.f32.mrf.mxu0
  %v931 = vadd.f32 %v811, %v930
  %v932 = vpop.f32.mrf.mxu0
  %v933 = vadd.f32 %v811, %v932
  %934 = vmatmul.bf16.gmra.mxu0 %v790
  %v935 = vpop.f32.mrf.mxu0
  %v936 = vadd.f32 %v811, %v935
  %v937 = vpop.f32.mrf.mxu0
  %v938 = vadd.f32 %v811, %v937
  %939 = vmatmul.bf16.gmra.mxu0 %v791
  %v940 = vpop.f32.mrf.mxu0
  %v941 = vadd.f32 %v811, %v940
  %v942 = vpop.f32.mrf.mxu0
  %v943 = vadd.f32 %v811, %v942
  %944 = vmatmul.bf16.gmra.mxu0 %v792
  %v945 = vpop.f32.mrf.mxu0
  %v946 = vadd.f32 %v811, %v945
  %v947 = vpop.f32.mrf.mxu0
  %v948 = vadd.f32 %v811, %v947
  %949 = vdwg.mxu0
  %v950 = vld [vmem:[%s9] sm:$0x1]
  %v951 = vld [vmem:[%s10] sm:$0x1]
  %v952 = vlaneseq
  %v953 = vand.u32 %v952, 127
  %vm954 = vcmp.lt.s32.totalorder %v953, 32
  %955 = vadd.xlane.f32.xlu0 %v871
  %v956 = vpop.xlane.xlu0 %955
  %957 = vadd.xlane.f32.xlu0 %v873
  %v958 = vpop.xlane.xlu0 %957
  %959 = vadd.xlane.f32.xlu0 %v876
  %v960 = vpop.xlane.xlu0 %959
  %961 = vadd.xlane.f32.xlu0 %v878
  %v962 = vpop.xlane.xlu0 %961
  %963 = vadd.xlane.f32.xlu0 %v881
  %v964 = vpop.xlane.xlu0 %963
  %965 = vadd.xlane.f32.xlu0 %v883
  %v966 = vpop.xlane.xlu0 %965
  %967 = vadd.xlane.f32.xlu0 %v886
  %v968 = vpop.xlane.xlu0 %967
  %969 = vadd.xlane.f32.xlu0 %v888
  %v970 = vpop.xlane.xlu0 %969
  %971 = vadd.xlane.f32.xlu0 %v891
  %v972 = vpop.xlane.xlu0 %971
  %973 = vadd.xlane.f32.xlu0 %v893
  %v974 = vpop.xlane.xlu0 %973
  %975 = vadd.xlane.f32.xlu0 %v896
  %v976 = vpop.xlane.xlu0 %975
  %977 = vadd.xlane.f32.xlu0 %v898
  %v978 = vpop.xlane.xlu0 %977
  %979 = vadd.xlane.f32.xlu0 %v901
  %v980 = vpop.xlane.xlu0 %979
  %981 = vadd.xlane.f32.xlu0 %v903
  %v982 = vpop.xlane.xlu0 %981
  %983 = vadd.xlane.f32.xlu0 %v906
  %v984 = vpop.xlane.xlu0 %983
  %985 = vadd.xlane.f32.xlu0 %v908
  %v986 = vpop.xlane.xlu0 %985
  %987 = vadd.xlane.f32.xlu0 %v911
  %v988 = vpop.xlane.xlu0 %987
  %989 = vadd.xlane.f32.xlu0 %v913
  %v990 = vpop.xlane.xlu0 %989
  %991 = vadd.xlane.f32.xlu0 %v916
  %v992 = vpop.xlane.xlu0 %991
  %993 = vadd.xlane.f32.xlu0 %v918
  %v994 = vpop.xlane.xlu0 %993
  %995 = vadd.xlane.f32.xlu0 %v921
  %v996 = vpop.xlane.xlu0 %995
  %997 = vadd.xlane.f32.xlu0 %v923
  %v998 = vpop.xlane.xlu0 %997
  %999 = vadd.xlane.f32.xlu0 %v926
  %v1000 = vpop.xlane.xlu0 %999
  %1001 = vadd.xlane.f32.xlu0 %v928
  %v1002 = vpop.xlane.xlu0 %1001
  %1003 = vadd.xlane.f32.xlu0 %v931
  %v1004 = vpop.xlane.xlu0 %1003
  %1005 = vadd.xlane.f32.xlu0 %v933
  %v1006 = vpop.xlane.xlu0 %1005
  %1007 = vadd.xlane.f32.xlu0 %v936
  %v1008 = vpop.xlane.xlu0 %1007
  %1009 = vadd.xlane.f32.xlu0 %v938
  %v1010 = vpop.xlane.xlu0 %1009
  %1011 = vadd.xlane.f32.xlu0 %v941
  %v1012 = vpop.xlane.xlu0 %1011
  %1013 = vadd.xlane.f32.xlu0 %v943
  %v1014 = vpop.xlane.xlu0 %1013
  %1015 = vadd.xlane.f32.xlu0 %v946
  %v1016 = vpop.xlane.xlu0 %1015
  %1017 = vadd.xlane.f32.xlu0 %v948
  %v1018 = vpop.xlane.xlu0 %1017
  %v1019 = vmul.f32 %v956, 0.03125
  %v1020 = vmul.f32 %v958, 0.03125
  %v1021 = vmul.f32 %v960, 0.03125
  %v1022 = vmul.f32 %v962, 0.03125
  %v1023 = vmul.f32 %v964, 0.03125
  %v1024 = vmul.f32 %v966, 0.03125
  %v1025 = vmul.f32 %v968, 0.03125
  %v1026 = vmul.f32 %v970, 0.03125
  %v1027 = vmul.f32 %v972, 0.03125
  %v1028 = vmul.f32 %v974, 0.03125
  %v1029 = vmul.f32 %v976, 0.03125
  %v1030 = vmul.f32 %v978, 0.03125
  %v1031 = vmul.f32 %v980, 0.03125
  %v1032 = vmul.f32 %v982, 0.03125
  %v1033 = vmul.f32 %v984, 0.03125
  %v1034 = vmul.f32 %v986, 0.03125
  %v1035 = vmul.f32 %v988, 0.03125
  %v1036 = vmul.f32 %v990, 0.03125
  %v1037 = vmul.f32 %v992, 0.03125
  %v1038 = vmul.f32 %v994, 0.03125
  %v1039 = vmul.f32 %v996, 0.03125
  %v1040 = vmul.f32 %v998, 0.03125
  %v1041 = vmul.f32 %v1000, 0.03125
  %v1042 = vmul.f32 %v1002, 0.03125
  %v1043 = vmul.f32 %v1004, 0.03125
  %v1044 = vmul.f32 %v1006, 0.03125
  %v1045 = vmul.f32 %v1008, 0.03125
  %v1046 = vmul.f32 %v1010, 0.03125
  %v1047 = vmul.f32 %v1012, 0.03125
  %v1048 = vmul.f32 %v1014, 0.03125
  %v1049 = vmul.f32 %v1016, 0.03125
  %v1050 = vmul.f32 %v1018, 0.03125
  %v1051 = vsub.f32 %v871, %v1019
  %v1052 = vsub.f32 %v873, %v1020
  %v1053 = vsub.f32 %v876, %v1021
  %v1054 = vsub.f32 %v878, %v1022
  %v1055 = vsub.f32 %v881, %v1023
  %v1056 = vsub.f32 %v883, %v1024
  %v1057 = vsub.f32 %v886, %v1025
  %v1058 = vsub.f32 %v888, %v1026
  %v1059 = vsub.f32 %v891, %v1027
  %v1060 = vsub.f32 %v893, %v1028
  %v1061 = vsub.f32 %v896, %v1029
  %v1062 = vsub.f32 %v898, %v1030
  %v1063 = vsub.f32 %v901, %v1031
  %v1064 = vsub.f32 %v903, %v1032
  %v1065 = vsub.f32 %v906, %v1033
  %v1066 = vsub.f32 %v908, %v1034
  %v1067 = vsub.f32 %v911, %v1035
  %v1068 = vsub.f32 %v913, %v1036
  %v1069 = vsub.f32 %v916, %v1037
  %v1070 = vsub.f32 %v918, %v1038
  %v1071 = vsub.f32 %v921, %v1039
  %v1072 = vsub.f32 %v923, %v1040
  %v1073 = vsub.f32 %v926, %v1041
  %v1074 = vsub.f32 %v928, %v1042
  %v1075 = vsub.f32 %v931, %v1043
  %v1076 = vsub.f32 %v933, %v1044
  %v1077 = vsub.f32 %v936, %v1045
  %v1078 = vsub.f32 %v938, %v1046
  %v1079 = vsub.f32 %v941, %v1047
  %v1080 = vsub.f32 %v943, %v1048
  %v1081 = vsub.f32 %v946, %v1049
  %v1082 = vsub.f32 %v948, %v1050
  %v1083 = vsel %vm954, 1, 0
  %vm1084 = vcmp.eq.s32.totalorder %v1083, 1
  %v1085 = vsel %vm1084, %v1051, 0.0
  %v1086 = vsel %vm1084, %v1052, 0.0
  %v1087 = vsel %vm1084, %v1053, 0.0
  %v1088 = vsel %vm1084, %v1054, 0.0
  %v1089 = vsel %vm1084, %v1055, 0.0
  %v1090 = vsel %vm1084, %v1056, 0.0
  %v1091 = vsel %vm1084, %v1057, 0.0
  %v1092 = vsel %vm1084, %v1058, 0.0
  %v1093 = vsel %vm1084, %v1059, 0.0
  %v1094 = vsel %vm1084, %v1060, 0.0
  %v1095 = vsel %vm1084, %v1061, 0.0
  %v1096 = vsel %vm1084, %v1062, 0.0
  %v1097 = vsel %vm1084, %v1063, 0.0
  %v1098 = vsel %vm1084, %v1064, 0.0
  %v1099 = vsel %vm1084, %v1065, 0.0
  %v1100 = vsel %vm1084, %v1066, 0.0
  %v1101 = vsel %vm1084, %v1067, 0.0
  %v1102 = vsel %vm1084, %v1068, 0.0
  %v1103 = vsel %vm1084, %v1069, 0.0
  %v1104 = vsel %vm1084, %v1070, 0.0
  %v1105 = vsel %vm1084, %v1071, 0.0
  %v1106 = vsel %vm1084, %v1072, 0.0
  %v1107 = vsel %vm1084, %v1073, 0.0
  %v1108 = vsel %vm1084, %v1074, 0.0
  %v1109 = vsel %vm1084, %v1075, 0.0
  %v1110 = vsel %vm1084, %v1076, 0.0
  %v1111 = vsel %vm1084, %v1077, 0.0
  %v1112 = vsel %vm1084, %v1078, 0.0
  %v1113 = vsel %vm1084, %v1079, 0.0
  %v1114 = vsel %vm1084, %v1080, 0.0
  %v1115 = vsel %vm1084, %v1081, 0.0
  %v1116 = vsel %vm1084, %v1082, 0.0
  %v1117 = vmul.f32 %v1085, %v1085
  %v1118 = vmul.f32 %v1086, %v1086
  %v1119 = vmul.f32 %v1087, %v1087
  %v1120 = vmul.f32 %v1088, %v1088
  %v1121 = vmul.f32 %v1089, %v1089
  %v1122 = vmul.f32 %v1090, %v1090
  %v1123 = vmul.f32 %v1091, %v1091
  %v1124 = vmul.f32 %v1092, %v1092
  %v1125 = vmul.f32 %v1093, %v1093
  %v1126 = vmul.f32 %v1094, %v1094
  %v1127 = vmul.f32 %v1095, %v1095
  %v1128 = vmul.f32 %v1096, %v1096
  %v1129 = vmul.f32 %v1097, %v1097
  %v1130 = vmul.f32 %v1098, %v1098
  %v1131 = vmul.f32 %v1099, %v1099
  %v1132 = vmul.f32 %v1100, %v1100
  %v1133 = vmul.f32 %v1101, %v1101
  %v1134 = vmul.f32 %v1102, %v1102
  %v1135 = vmul.f32 %v1103, %v1103
  %v1136 = vmul.f32 %v1104, %v1104
  %v1137 = vmul.f32 %v1105, %v1105
  %v1138 = vmul.f32 %v1106, %v1106
  %v1139 = vmul.f32 %v1107, %v1107
  %v1140 = vmul.f32 %v1108, %v1108
  %v1141 = vmul.f32 %v1109, %v1109
  %v1142 = vmul.f32 %v1110, %v1110
  %v1143 = vmul.f32 %v1111, %v1111
  %v1144 = vmul.f32 %v1112, %v1112
  %v1145 = vmul.f32 %v1113, %v1113
  %v1146 = vmul.f32 %v1114, %v1114
  %v1147 = vmul.f32 %v1115, %v1115
  %v1148 = vmul.f32 %v1116, %v1116
  %1149 = vadd.xlane.f32.xlu0 %v1117
  %v1150 = vpop.xlane.xlu0 %1149
  %1151 = vadd.xlane.f32.xlu0 %v1118
  %v1152 = vpop.xlane.xlu0 %1151
  %1153 = vadd.xlane.f32.xlu0 %v1119
  %v1154 = vpop.xlane.xlu0 %1153
  %1155 = vadd.xlane.f32.xlu0 %v1120
  %v1156 = vpop.xlane.xlu0 %1155
  %1157 = vadd.xlane.f32.xlu0 %v1121
  %v1158 = vpop.xlane.xlu0 %1157
  %1159 = vadd.xlane.f32.xlu0 %v1122
  %v1160 = vpop.xlane.xlu0 %1159
  %1161 = vadd.xlane.f32.xlu0 %v1123
  %v1162 = vpop.xlane.xlu0 %1161
  %1163 = vadd.xlane.f32.xlu0 %v1124
  %v1164 = vpop.xlane.xlu0 %1163
  %1165 = vadd.xlane.f32.xlu0 %v1125
  %v1166 = vpop.xlane.xlu0 %1165
  %1167 = vadd.xlane.f32.xlu0 %v1126
  %v1168 = vpop.xlane.xlu0 %1167
  %1169 = vadd.xlane.f32.xlu0 %v1127
  %v1170 = vpop.xlane.xlu0 %1169
  %1171 = vadd.xlane.f32.xlu0 %v1128
  %v1172 = vpop.xlane.xlu0 %1171
  %1173 = vadd.xlane.f32.xlu0 %v1129
  %v1174 = vpop.xlane.xlu0 %1173
  %1175 = vadd.xlane.f32.xlu0 %v1130
  %v1176 = vpop.xlane.xlu0 %1175
  %1177 = vadd.xlane.f32.xlu0 %v1131
  %v1178 = vpop.xlane.xlu0 %1177
  %1179 = vadd.xlane.f32.xlu0 %v1132
  %v1180 = vpop.xlane.xlu0 %1179
  %1181 = vadd.xlane.f32.xlu0 %v1133
  %v1182 = vpop.xlane.xlu0 %1181
  %1183 = vadd.xlane.f32.xlu0 %v1134
  %v1184 = vpop.xlane.xlu0 %1183
  %1185 = vadd.xlane.f32.xlu0 %v1135
  %v1186 = vpop.xlane.xlu0 %1185
  %1187 = vadd.xlane.f32.xlu0 %v1136
  %v1188 = vpop.xlane.xlu0 %1187
  %1189 = vadd.xlane.f32.xlu0 %v1137
  %v1190 = vpop.xlane.xlu0 %1189
  %1191 = vadd.xlane.f32.xlu0 %v1138
  %v1192 = vpop.xlane.xlu0 %1191
  %1193 = vadd.xlane.f32.xlu0 %v1139
  %v1194 = vpop.xlane.xlu0 %1193
  %1195 = vadd.xlane.f32.xlu0 %v1140
  %v1196 = vpop.xlane.xlu0 %1195
  %1197 = vadd.xlane.f32.xlu0 %v1141
  %v1198 = vpop.xlane.xlu0 %1197
  %1199 = vadd.xlane.f32.xlu0 %v1142
  %v1200 = vpop.xlane.xlu0 %1199
  %1201 = vadd.xlane.f32.xlu0 %v1143
  %v1202 = vpop.xlane.xlu0 %1201
  %1203 = vadd.xlane.f32.xlu0 %v1144
  %v1204 = vpop.xlane.xlu0 %1203
  %1205 = vadd.xlane.f32.xlu0 %v1145
  %v1206 = vpop.xlane.xlu0 %1205
  %1207 = vadd.xlane.f32.xlu0 %v1146
  %v1208 = vpop.xlane.xlu0 %1207
  %1209 = vadd.xlane.f32.xlu0 %v1147
  %v1210 = vpop.xlane.xlu0 %1209
  %1211 = vadd.xlane.f32.xlu0 %v1148
  %v1212 = vpop.xlane.xlu0 %1211
  %v1213 = vmul.f32 %v1150, 0.03125
  %v1214 = vmul.f32 %v1152, 0.03125
  %v1215 = vmul.f32 %v1154, 0.03125
  %v1216 = vmul.f32 %v1156, 0.03125
  %v1217 = vmul.f32 %v1158, 0.03125
  %v1218 = vmul.f32 %v1160, 0.03125
  %v1219 = vmul.f32 %v1162, 0.03125
  %v1220 = vmul.f32 %v1164, 0.03125
  %v1221 = vmul.f32 %v1166, 0.03125
  %v1222 = vmul.f32 %v1168, 0.03125
  %v1223 = vmul.f32 %v1170, 0.03125
  %v1224 = vmul.f32 %v1172, 0.03125
  %v1225 = vmul.f32 %v1174, 0.03125
  %v1226 = vmul.f32 %v1176, 0.03125
  %v1227 = vmul.f32 %v1178, 0.03125
  %v1228 = vmul.f32 %v1180, 0.03125
  %v1229 = vmul.f32 %v1182, 0.03125
  %v1230 = vmul.f32 %v1184, 0.03125
  %v1231 = vmul.f32 %v1186, 0.03125
  %v1232 = vmul.f32 %v1188, 0.03125
  %v1233 = vmul.f32 %v1190, 0.03125
  %v1234 = vmul.f32 %v1192, 0.03125
  %v1235 = vmul.f32 %v1194, 0.03125
  %v1236 = vmul.f32 %v1196, 0.03125
  %v1237 = vmul.f32 %v1198, 0.03125
  %v1238 = vmul.f32 %v1200, 0.03125
  %v1239 = vmul.f32 %v1202, 0.03125
  %v1240 = vmul.f32 %v1204, 0.03125
  %v1241 = vmul.f32 %v1206, 0.03125
  %v1242 = vmul.f32 %v1208, 0.03125
  %v1243 = vmul.f32 %v1210, 0.03125
  %v1244 = vmul.f32 %v1212, 0.03125
  %v1245 = vadd.f32 %v1213, 1e-05
  %v1246 = vadd.f32 %v1214, 1e-05
  %v1247 = vadd.f32 %v1215, 1e-05
  %v1248 = vadd.f32 %v1216, 1e-05
  %v1249 = vadd.f32 %v1217, 1e-05
  %v1250 = vadd.f32 %v1218, 1e-05
  %v1251 = vadd.f32 %v1219, 1e-05
  %v1252 = vadd.f32 %v1220, 1e-05
  %v1253 = vadd.f32 %v1221, 1e-05
  %v1254 = vadd.f32 %v1222, 1e-05
  %v1255 = vadd.f32 %v1223, 1e-05
  %v1256 = vadd.f32 %v1224, 1e-05
  %v1257 = vadd.f32 %v1225, 1e-05
  %v1258 = vadd.f32 %v1226, 1e-05
  %v1259 = vadd.f32 %v1227, 1e-05
  %v1260 = vadd.f32 %v1228, 1e-05
  %v1261 = vadd.f32 %v1229, 1e-05
  %v1262 = vadd.f32 %v1230, 1e-05
  %v1263 = vadd.f32 %v1231, 1e-05
  %v1264 = vadd.f32 %v1232, 1e-05
  %v1265 = vadd.f32 %v1233, 1e-05
  %v1266 = vadd.f32 %v1234, 1e-05
  %v1267 = vadd.f32 %v1235, 1e-05
  %v1268 = vadd.f32 %v1236, 1e-05
  %v1269 = vadd.f32 %v1237, 1e-05
  %v1270 = vadd.f32 %v1238, 1e-05
  %v1271 = vadd.f32 %v1239, 1e-05
  %v1272 = vadd.f32 %v1240, 1e-05
  %v1273 = vadd.f32 %v1241, 1e-05
  %v1274 = vadd.f32 %v1242, 1e-05
  %v1275 = vadd.f32 %v1243, 1e-05
  %v1276 = vadd.f32 %v1244, 1e-05
  %v1277 = vrsqrt.pop %v1245
  %v1278 = vmul.f32 %v1277, %v1245
  %v1279 = vmul.f32 %v1278, %v1277
  %v1280 = vmul.f32 0.5, %v1279
  %v1281 = vsub.f32 1.5, %v1280
  %v1282 = vmul.f32 %v1277, %v1281
  %vm1283 = vweird.f32 %v1245
  %vm1284 = vweird.f32 %v1277
  %vm1285 = vmor %vm1283, %vm1284
  %v1286 = vsel %vm1285, %v1277, %v1282
  %v1287 = vrsqrt.pop %v1246
  %v1288 = vmul.f32 %v1287, %v1246
  %v1289 = vmul.f32 %v1288, %v1287
  %v1290 = vmul.f32 0.5, %v1289
  %v1291 = vsub.f32 1.5, %v1290
  %v1292 = vmul.f32 %v1287, %v1291
  %vm1293 = vweird.f32 %v1246
  %vm1294 = vweird.f32 %v1287
  %vm1295 = vmor %vm1293, %vm1294
  %v1296 = vsel %vm1295, %v1287, %v1292
  %v1297 = vrsqrt.pop %v1247
  %v1298 = vmul.f32 %v1297, %v1247
  %v1299 = vmul.f32 %v1298, %v1297
  %v1300 = vmul.f32 0.5, %v1299
  %v1301 = vsub.f32 1.5, %v1300
  %v1302 = vmul.f32 %v1297, %v1301
  %vm1303 = vweird.f32 %v1247
  %vm1304 = vweird.f32 %v1297
  %vm1305 = vmor %vm1303, %vm1304
  %v1306 = vsel %vm1305, %v1297, %v1302
  %v1307 = vrsqrt.pop %v1248
  %v1308 = vmul.f32 %v1307, %v1248
  %v1309 = vmul.f32 %v1308, %v1307
  %v1310 = vmul.f32 0.5, %v1309
  %v1311 = vsub.f32 1.5, %v1310
  %v1312 = vmul.f32 %v1307, %v1311
  %vm1313 = vweird.f32 %v1248
  %vm1314 = vweird.f32 %v1307
  %vm1315 = vmor %vm1313, %vm1314
  %v1316 = vsel %vm1315, %v1307, %v1312
  %v1317 = vrsqrt.pop %v1249
  %v1318 = vmul.f32 %v1317, %v1249
  %v1319 = vmul.f32 %v1318, %v1317
  %v1320 = vmul.f32 0.5, %v1319
  %v1321 = vsub.f32 1.5, %v1320
  %v1322 = vmul.f32 %v1317, %v1321
  %vm1323 = vweird.f32 %v1249
  %vm1324 = vweird.f32 %v1317
  %vm1325 = vmor %vm1323, %vm1324
  %v1326 = vsel %vm1325, %v1317, %v1322
  %v1327 = vrsqrt.pop %v1250
  %v1328 = vmul.f32 %v1327, %v1250
  %v1329 = vmul.f32 %v1328, %v1327
  %v1330 = vmul.f32 0.5, %v1329
  %v1331 = vsub.f32 1.5, %v1330
  %v1332 = vmul.f32 %v1327, %v1331
  %vm1333 = vweird.f32 %v1250
  %vm1334 = vweird.f32 %v1327
  %vm1335 = vmor %vm1333, %vm1334
  %v1336 = vsel %vm1335, %v1327, %v1332
  %v1337 = vrsqrt.pop %v1251
  %v1338 = vmul.f32 %v1337, %v1251
  %v1339 = vmul.f32 %v1338, %v1337
  %v1340 = vmul.f32 0.5, %v1339
  %v1341 = vsub.f32 1.5, %v1340
  %v1342 = vmul.f32 %v1337, %v1341
  %vm1343 = vweird.f32 %v1251
  %vm1344 = vweird.f32 %v1337
  %vm1345 = vmor %vm1343, %vm1344
  %v1346 = vsel %vm1345, %v1337, %v1342
  %v1347 = vrsqrt.pop %v1252
  %v1348 = vmul.f32 %v1347, %v1252
  %v1349 = vmul.f32 %v1348, %v1347
  %v1350 = vmul.f32 0.5, %v1349
  %v1351 = vsub.f32 1.5, %v1350
  %v1352 = vmul.f32 %v1347, %v1351
  %vm1353 = vweird.f32 %v1252
  %vm1354 = vweird.f32 %v1347
  %vm1355 = vmor %vm1353, %vm1354
  %v1356 = vsel %vm1355, %v1347, %v1352
  %v1357 = vrsqrt.pop %v1253
  %v1358 = vmul.f32 %v1357, %v1253
  %v1359 = vmul.f32 %v1358, %v1357
  %v1360 = vmul.f32 0.5, %v1359
  %v1361 = vsub.f32 1.5, %v1360
  %v1362 = vmul.f32 %v1357, %v1361
  %vm1363 = vweird.f32 %v1253
  %vm1364 = vweird.f32 %v1357
  %vm1365 = vmor %vm1363, %vm1364
  %v1366 = vsel %vm1365, %v1357, %v1362
  %v1367 = vrsqrt.pop %v1254
  %v1368 = vmul.f32 %v1367, %v1254
  %v1369 = vmul.f32 %v1368, %v1367
  %v1370 = vmul.f32 0.5, %v1369
  %v1371 = vsub.f32 1.5, %v1370
  %v1372 = vmul.f32 %v1367, %v1371
  %vm1373 = vweird.f32 %v1254
  %vm1374 = vweird.f32 %v1367
  %vm1375 = vmor %vm1373, %vm1374
  %v1376 = vsel %vm1375, %v1367, %v1372
  %v1377 = vrsqrt.pop %v1255
  %v1378 = vmul.f32 %v1377, %v1255
  %v1379 = vmul.f32 %v1378, %v1377
  %v1380 = vmul.f32 0.5, %v1379
  %v1381 = vsub.f32 1.5, %v1380
  %v1382 = vmul.f32 %v1377, %v1381
  %vm1383 = vweird.f32 %v1255
  %vm1384 = vweird.f32 %v1377
  %vm1385 = vmor %vm1383, %vm1384
  %v1386 = vsel %vm1385, %v1377, %v1382
  %v1387 = vrsqrt.pop %v1256
  %v1388 = vmul.f32 %v1387, %v1256
  %v1389 = vmul.f32 %v1388, %v1387
  %v1390 = vmul.f32 0.5, %v1389
  %v1391 = vsub.f32 1.5, %v1390
  %v1392 = vmul.f32 %v1387, %v1391
  %vm1393 = vweird.f32 %v1256
  %vm1394 = vweird.f32 %v1387
  %vm1395 = vmor %vm1393, %vm1394
  %v1396 = vsel %vm1395, %v1387, %v1392
  %v1397 = vrsqrt.pop %v1257
  %v1398 = vmul.f32 %v1397, %v1257
  %v1399 = vmul.f32 %v1398, %v1397
  %v1400 = vmul.f32 0.5, %v1399
  %v1401 = vsub.f32 1.5, %v1400
  %v1402 = vmul.f32 %v1397, %v1401
  %vm1403 = vweird.f32 %v1257
  %vm1404 = vweird.f32 %v1397
  %vm1405 = vmor %vm1403, %vm1404
  %v1406 = vsel %vm1405, %v1397, %v1402
  %v1407 = vrsqrt.pop %v1258
  %v1408 = vmul.f32 %v1407, %v1258
  %v1409 = vmul.f32 %v1408, %v1407
  %v1410 = vmul.f32 0.5, %v1409
  %v1411 = vsub.f32 1.5, %v1410
  %v1412 = vmul.f32 %v1407, %v1411
  %vm1413 = vweird.f32 %v1258
  %vm1414 = vweird.f32 %v1407
  %vm1415 = vmor %vm1413, %vm1414
  %v1416 = vsel %vm1415, %v1407, %v1412
  %v1417 = vrsqrt.pop %v1259
  %v1418 = vmul.f32 %v1417, %v1259
  %v1419 = vmul.f32 %v1418, %v1417
  %v1420 = vmul.f32 0.5, %v1419
  %v1421 = vsub.f32 1.5, %v1420
  %v1422 = vmul.f32 %v1417, %v1421
  %vm1423 = vweird.f32 %v1259
  %vm1424 = vweird.f32 %v1417
  %vm1425 = vmor %vm1423, %vm1424
  %v1426 = vsel %vm1425, %v1417, %v1422
  %v1427 = vrsqrt.pop %v1260
  %v1428 = vmul.f32 %v1427, %v1260
  %v1429 = vmul.f32 %v1428, %v1427
  %v1430 = vmul.f32 0.5, %v1429
  %v1431 = vsub.f32 1.5, %v1430
  %v1432 = vmul.f32 %v1427, %v1431
  %vm1433 = vweird.f32 %v1260
  %vm1434 = vweird.f32 %v1427
  %vm1435 = vmor %vm1433, %vm1434
  %v1436 = vsel %vm1435, %v1427, %v1432
  %v1437 = vrsqrt.pop %v1261
  %v1438 = vmul.f32 %v1437, %v1261
  %v1439 = vmul.f32 %v1438, %v1437
  %v1440 = vmul.f32 0.5, %v1439
  %v1441 = vsub.f32 1.5, %v1440
  %v1442 = vmul.f32 %v1437, %v1441
  %vm1443 = vweird.f32 %v1261
  %vm1444 = vweird.f32 %v1437
  %vm1445 = vmor %vm1443, %vm1444
  %v1446 = vsel %vm1445, %v1437, %v1442
  %v1447 = vrsqrt.pop %v1262
  %v1448 = vmul.f32 %v1447, %v1262
  %v1449 = vmul.f32 %v1448, %v1447
  %v1450 = vmul.f32 0.5, %v1449
  %v1451 = vsub.f32 1.5, %v1450
  %v1452 = vmul.f32 %v1447, %v1451
  %vm1453 = vweird.f32 %v1262
  %vm1454 = vweird.f32 %v1447
  %vm1455 = vmor %vm1453, %vm1454
  %v1456 = vsel %vm1455, %v1447, %v1452
  %v1457 = vrsqrt.pop %v1263
  %v1458 = vmul.f32 %v1457, %v1263
  %v1459 = vmul.f32 %v1458, %v1457
  %v1460 = vmul.f32 0.5, %v1459
  %v1461 = vsub.f32 1.5, %v1460
  %v1462 = vmul.f32 %v1457, %v1461
  %vm1463 = vweird.f32 %v1263
  %vm1464 = vweird.f32 %v1457
  %vm1465 = vmor %vm1463, %vm1464
  %v1466 = vsel %vm1465, %v1457, %v1462
  %v1467 = vrsqrt.pop %v1264
  %v1468 = vmul.f32 %v1467, %v1264
  %v1469 = vmul.f32 %v1468, %v1467
  %v1470 = vmul.f32 0.5, %v1469
  %v1471 = vsub.f32 1.5, %v1470
  %v1472 = vmul.f32 %v1467, %v1471
  %vm1473 = vweird.f32 %v1264
  %vm1474 = vweird.f32 %v1467
  %vm1475 = vmor %vm1473, %vm1474
  %v1476 = vsel %vm1475, %v1467, %v1472
  %v1477 = vrsqrt.pop %v1265
  %v1478 = vmul.f32 %v1477, %v1265
  %v1479 = vmul.f32 %v1478, %v1477
  %v1480 = vmul.f32 0.5, %v1479
  %v1481 = vsub.f32 1.5, %v1480
  %v1482 = vmul.f32 %v1477, %v1481
  %vm1483 = vweird.f32 %v1265
  %vm1484 = vweird.f32 %v1477
  %vm1485 = vmor %vm1483, %vm1484
  %v1486 = vsel %vm1485, %v1477, %v1482
  %v1487 = vrsqrt.pop %v1266
  %v1488 = vmul.f32 %v1487, %v1266
  %v1489 = vmul.f32 %v1488, %v1487
  %v1490 = vmul.f32 0.5, %v1489
  %v1491 = vsub.f32 1.5, %v1490
  %v1492 = vmul.f32 %v1487, %v1491
  %vm1493 = vweird.f32 %v1266
  %vm1494 = vweird.f32 %v1487
  %vm1495 = vmor %vm1493, %vm1494
  %v1496 = vsel %vm1495, %v1487, %v1492
  %v1497 = vrsqrt.pop %v1267
  %v1498 = vmul.f32 %v1497, %v1267
  %v1499 = vmul.f32 %v1498, %v1497
  %v1500 = vmul.f32 0.5, %v1499
  %v1501 = vsub.f32 1.5, %v1500
  %v1502 = vmul.f32 %v1497, %v1501
  %vm1503 = vweird.f32 %v1267
  %vm1504 = vweird.f32 %v1497
  %vm1505 = vmor %vm1503, %vm1504
  %v1506 = vsel %vm1505, %v1497, %v1502
  %v1507 = vrsqrt.pop %v1268
  %v1508 = vmul.f32 %v1507, %v1268
  %v1509 = vmul.f32 %v1508, %v1507
  %v1510 = vmul.f32 0.5, %v1509
  %v1511 = vsub.f32 1.5, %v1510
  %v1512 = vmul.f32 %v1507, %v1511
  %vm1513 = vweird.f32 %v1268
  %vm1514 = vweird.f32 %v1507
  %vm1515 = vmor %vm1513, %vm1514
  %v1516 = vsel %vm1515, %v1507, %v1512
  %v1517 = vrsqrt.pop %v1269
  %v1518 = vmul.f32 %v1517, %v1269
  %v1519 = vmul.f32 %v1518, %v1517
  %v1520 = vmul.f32 0.5, %v1519
  %v1521 = vsub.f32 1.5, %v1520
  %v1522 = vmul.f32 %v1517, %v1521
  %vm1523 = vweird.f32 %v1269
  %vm1524 = vweird.f32 %v1517
  %vm1525 = vmor %vm1523, %vm1524
  %v1526 = vsel %vm1525, %v1517, %v1522
  %v1527 = vrsqrt.pop %v1270
  %v1528 = vmul.f32 %v1527, %v1270
  %v1529 = vmul.f32 %v1528, %v1527
  %v1530 = vmul.f32 0.5, %v1529
  %v1531 = vsub.f32 1.5, %v1530
  %v1532 = vmul.f32 %v1527, %v1531
  %vm1533 = vweird.f32 %v1270
  %vm1534 = vweird.f32 %v1527
  %vm1535 = vmor %vm1533, %vm1534
  %v1536 = vsel %vm1535, %v1527, %v1532
  %v1537 = vrsqrt.pop %v1271
  %v1538 = vmul.f32 %v1537, %v1271
  %v1539 = vmul.f32 %v1538, %v1537
  %v1540 = vmul.f32 0.5, %v1539
  %v1541 = vsub.f32 1.5, %v1540
  %v1542 = vmul.f32 %v1537, %v1541
  %vm1543 = vweird.f32 %v1271
  %vm1544 = vweird.f32 %v1537
  %vm1545 = vmor %vm1543, %vm1544
  %v1546 = vsel %vm1545, %v1537, %v1542
  %v1547 = vrsqrt.pop %v1272
  %v1548 = vmul.f32 %v1547, %v1272
  %v1549 = vmul.f32 %v1548, %v1547
  %v1550 = vmul.f32 0.5, %v1549
  %v1551 = vsub.f32 1.5, %v1550
  %v1552 = vmul.f32 %v1547, %v1551
  %vm1553 = vweird.f32 %v1272
  %vm1554 = vweird.f32 %v1547
  %vm1555 = vmor %vm1553, %vm1554
  %v1556 = vsel %vm1555, %v1547, %v1552
  %v1557 = vrsqrt.pop %v1273
  %v1558 = vmul.f32 %v1557, %v1273
  %v1559 = vmul.f32 %v1558, %v1557
  %v1560 = vmul.f32 0.5, %v1559
  %v1561 = vsub.f32 1.5, %v1560
  %v1562 = vmul.f32 %v1557, %v1561
  %vm1563 = vweird.f32 %v1273
  %vm1564 = vweird.f32 %v1557
  %vm1565 = vmor %vm1563, %vm1564
  %v1566 = vsel %vm1565, %v1557, %v1562
  %v1567 = vrsqrt.pop %v1274
  %v1568 = vmul.f32 %v1567, %v1274
  %v1569 = vmul.f32 %v1568, %v1567
  %v1570 = vmul.f32 0.5, %v1569
  %v1571 = vsub.f32 1.5, %v1570
  %v1572 = vmul.f32 %v1567, %v1571
  %vm1573 = vweird.f32 %v1274
  %vm1574 = vweird.f32 %v1567
  %vm1575 = vmor %vm1573, %vm1574
  %v1576 = vsel %vm1575, %v1567, %v1572
  %v1577 = vrsqrt.pop %v1275
  %v1578 = vmul.f32 %v1577, %v1275
  %v1579 = vmul.f32 %v1578, %v1577
  %v1580 = vmul.f32 0.5, %v1579
  %v1581 = vsub.f32 1.5, %v1580
  %v1582 = vmul.f32 %v1577, %v1581
  %vm1583 = vweird.f32 %v1275
  %vm1584 = vweird.f32 %v1577
  %vm1585 = vmor %vm1583, %vm1584
  %v1586 = vsel %vm1585, %v1577, %v1582
  %v1587 = vrsqrt.pop %v1276
  %v1588 = vmul.f32 %v1587, %v1276
  %v1589 = vmul.f32 %v1588, %v1587
  %v1590 = vmul.f32 0.5, %v1589
  %v1591 = vsub.f32 1.5, %v1590
  %v1592 = vmul.f32 %v1587, %v1591
  %vm1593 = vweird.f32 %v1276
  %vm1594 = vweird.f32 %v1587
  %vm1595 = vmor %vm1593, %vm1594
  %v1596 = vsel %vm1595, %v1587, %v1592
  %v1597 = vmul.f32 %v1085, %v1286
  %v1598 = vmul.f32 %v1086, %v1296
  %v1599 = vmul.f32 %v1087, %v1306
  %v1600 = vmul.f32 %v1088, %v1316
  %v1601 = vmul.f32 %v1089, %v1326
  %v1602 = vmul.f32 %v1090, %v1336
  %v1603 = vmul.f32 %v1091, %v1346
  %v1604 = vmul.f32 %v1092, %v1356
  %v1605 = vmul.f32 %v1093, %v1366
  %v1606 = vmul.f32 %v1094, %v1376
  %v1607 = vmul.f32 %v1095, %v1386
  %v1608 = vmul.f32 %v1096, %v1396
  %v1609 = vmul.f32 %v1097, %v1406
  %v1610 = vmul.f32 %v1098, %v1416
  %v1611 = vmul.f32 %v1099, %v1426
  %v1612 = vmul.f32 %v1100, %v1436
  %v1613 = vmul.f32 %v1101, %v1446
  %v1614 = vmul.f32 %v1102, %v1456
  %v1615 = vmul.f32 %v1103, %v1466
  %v1616 = vmul.f32 %v1104, %v1476
  %v1617 = vmul.f32 %v1105, %v1486
  %v1618 = vmul.f32 %v1106, %v1496
  %v1619 = vmul.f32 %v1107, %v1506
  %v1620 = vmul.f32 %v1108, %v1516
  %v1621 = vmul.f32 %v1109, %v1526
  %v1622 = vmul.f32 %v1110, %v1536
  %v1623 = vmul.f32 %v1111, %v1546
  %v1624 = vmul.f32 %v1112, %v1556
  %v1625 = vmul.f32 %v1113, %v1566
  %v1626 = vmul.f32 %v1114, %v1576
  %v1627 = vmul.f32 %v1115, %v1586
  %v1628 = vmul.f32 %v1116, %v1596
  %v1630 = vperm.slane %v950, 0
  %v1632 = vmul.f32 %v1597, %v1630
  %v1633 = vmul.f32 %v1598, %v1630
  %v1634 = vmul.f32 %v1599, %v1630
  %v1635 = vmul.f32 %v1600, %v1630
  %v1636 = vmul.f32 %v1601, %v1630
  %v1637 = vmul.f32 %v1602, %v1630
  %v1638 = vmul.f32 %v1603, %v1630
  %v1639 = vmul.f32 %v1604, %v1630
  %v1640 = vmul.f32 %v1605, %v1630
  %v1641 = vmul.f32 %v1606, %v1630
  %v1642 = vmul.f32 %v1607, %v1630
  %v1643 = vmul.f32 %v1608, %v1630
  %v1644 = vmul.f32 %v1609, %v1630
  %v1645 = vmul.f32 %v1610, %v1630
  %v1646 = vmul.f32 %v1611, %v1630
  %v1647 = vmul.f32 %v1612, %v1630
  %v1648 = vmul.f32 %v1613, %v1630
  %v1649 = vmul.f32 %v1614, %v1630
  %v1650 = vmul.f32 %v1615, %v1630
  %v1651 = vmul.f32 %v1616, %v1630
  %v1652 = vmul.f32 %v1617, %v1630
  %v1653 = vmul.f32 %v1618, %v1630
  %v1654 = vmul.f32 %v1619, %v1630
  %v1655 = vmul.f32 %v1620, %v1630
  %v1656 = vmul.f32 %v1621, %v1630
  %v1657 = vmul.f32 %v1622, %v1630
  %v1658 = vmul.f32 %v1623, %v1630
  %v1659 = vmul.f32 %v1624, %v1630
  %v1660 = vmul.f32 %v1625, %v1630
  %v1661 = vmul.f32 %v1626, %v1630
  %v1662 = vmul.f32 %v1627, %v1630
  %v1663 = vmul.f32 %v1628, %v1630
  %v1665 = vperm.slane %v951, 0
  %v1667 = vadd.f32 %v1632, %v1665
  %v1668 = vadd.f32 %v1633, %v1665
  %v1669 = vadd.f32 %v1634, %v1665
  %v1670 = vadd.f32 %v1635, %v1665
  %v1671 = vadd.f32 %v1636, %v1665
  %v1672 = vadd.f32 %v1637, %v1665
  %v1673 = vadd.f32 %v1638, %v1665
  %v1674 = vadd.f32 %v1639, %v1665
  %v1675 = vadd.f32 %v1640, %v1665
  %v1676 = vadd.f32 %v1641, %v1665
  %v1677 = vadd.f32 %v1642, %v1665
  %v1678 = vadd.f32 %v1643, %v1665
  %v1679 = vadd.f32 %v1644, %v1665
  %v1680 = vadd.f32 %v1645, %v1665
  %v1681 = vadd.f32 %v1646, %v1665
  %v1682 = vadd.f32 %v1647, %v1665
  %v1683 = vadd.f32 %v1648, %v1665
  %v1684 = vadd.f32 %v1649, %v1665
  %v1685 = vadd.f32 %v1650, %v1665
  %v1686 = vadd.f32 %v1651, %v1665
  %v1687 = vadd.f32 %v1652, %v1665
  %v1688 = vadd.f32 %v1653, %v1665
  %v1689 = vadd.f32 %v1654, %v1665
  %v1690 = vadd.f32 %v1655, %v1665
  %v1691 = vadd.f32 %v1656, %v1665
  %v1692 = vadd.f32 %v1657, %v1665
  %v1693 = vadd.f32 %v1658, %v1665
  %v1694 = vadd.f32 %v1659, %v1665
  %v1695 = vadd.f32 %v1660, %v1665
  %v1696 = vadd.f32 %v1661, %v1665
  %v1697 = vadd.f32 %v1662, %v1665
  %v1698 = vadd.f32 %v1663, %v1665
  %v1699 = vadd.f32 %v1667, %v38
  %v1700 = vadd.f32 %v1668, %v39
  %v1701 = vadd.f32 %v1669, %v40
  %v1702 = vadd.f32 %v1670, %v41
  %v1703 = vadd.f32 %v1671, %v42
  %v1704 = vadd.f32 %v1672, %v43
  %v1705 = vadd.f32 %v1673, %v44
  %v1706 = vadd.f32 %v1674, %v45
  %v1707 = vadd.f32 %v1675, %v46
  %v1708 = vadd.f32 %v1676, %v47
  %v1709 = vadd.f32 %v1677, %v48
  %v1710 = vadd.f32 %v1678, %v49
  %v1711 = vadd.f32 %v1679, %v50
  %v1712 = vadd.f32 %v1680, %v51
  %v1713 = vadd.f32 %v1681, %v52
  %v1714 = vadd.f32 %v1682, %v53
  %v1715 = vadd.f32 %v1683, %v54
  %v1716 = vadd.f32 %v1684, %v55
  %v1717 = vadd.f32 %v1685, %v56
  %v1718 = vadd.f32 %v1686, %v57
  %v1719 = vadd.f32 %v1687, %v58
  %v1720 = vadd.f32 %v1688, %v59
  %v1721 = vadd.f32 %v1689, %v60
  %v1722 = vadd.f32 %v1690, %v61
  %v1723 = vadd.f32 %v1691, %v62
  %v1724 = vadd.f32 %v1692, %v63
  %v1725 = vadd.f32 %v1693, %v64
  %v1726 = vadd.f32 %v1694, %v65
  %v1727 = vadd.f32 %v1695, %v66
  %v1728 = vadd.f32 %v1696, %v67
  %v1729 = vadd.f32 %v1697, %v68
  %v1730 = vadd.f32 %v1698, %v69
  %1731 = vst [vmem:[%s11] sm:$0xff] %v1699
  %1732 = vst [vmem:[%s11 + $0x8] sm:$0xff] %v1700
  %1733 = vst [vmem:[%s11 + $0x10] sm:$0xff] %v1701
  %1734 = vst [vmem:[%s11 + $0x18] sm:$0xff] %v1702
  %1735 = vst [vmem:[%s11 + $0x20] sm:$0xff] %v1703
  %1736 = vst [vmem:[%s11 + $0x28] sm:$0xff] %v1704
  %1737 = vst [vmem:[%s11 + $0x30] sm:$0xff] %v1705
  %1738 = vst [vmem:[%s11 + $0x38] sm:$0xff] %v1706
  %1739 = vst [vmem:[%s11 + $0x40] sm:$0xff] %v1707
  %1740 = vst [vmem:[%s11 + $0x48] sm:$0xff] %v1708
  %1741 = vst [vmem:[%s11 + $0x50] sm:$0xff] %v1709
  %1742 = vst [vmem:[%s11 + $0x58] sm:$0xff] %v1710
  %1743 = vst [vmem:[%s11 + $0x60] sm:$0xff] %v1711
  %1744 = vst [vmem:[%s11 + $0x68] sm:$0xff] %v1712
  %1745 = vst [vmem:[%s11 + $0x70] sm:$0xff] %v1713
  %1746 = vst [vmem:[%s11 + $0x78] sm:$0xff] %v1714
  %1747 = vst [vmem:[%s11 + $0x80] sm:$0xff] %v1715
  %1748 = vst [vmem:[%s11 + $0x88] sm:$0xff] %v1716
  %1749 = vst [vmem:[%s11 + $0x90] sm:$0xff] %v1717
  %1750 = vst [vmem:[%s11 + $0x98] sm:$0xff] %v1718
  %1751 = vst [vmem:[%s11 + $0xa0] sm:$0xff] %v1719
  %1752 = vst [vmem:[%s11 + $0xa8] sm:$0xff] %v1720
  %1753 = vst [vmem:[%s11 + $0xb0] sm:$0xff] %v1721
  %1754 = vst [vmem:[%s11 + $0xb8] sm:$0xff] %v1722
  %1755 = vst [vmem:[%s11 + $0xc0] sm:$0xff] %v1723
  %1756 = vst [vmem:[%s11 + $0xc8] sm:$0xff] %v1724
  %1757 = vst [vmem:[%s11 + $0xd0] sm:$0xff] %v1725
  %1758 = vst [vmem:[%s11 + $0xd8] sm:$0xff] %v1726
  %1759 = vst [vmem:[%s11 + $0xe0] sm:$0xff] %v1727
  %1760 = vst [vmem:[%s11 + $0xe8] sm:$0xff] %v1728
  %1761 = vst [vmem:[%s11 + $0xf0] sm:$0xff] %v1729
  %1762 = vst [vmem:[%s11 + $0xf8] sm:$0xff] %v1730
  // Predicated region
  $region46: #{graph_net_block.3} parent=0 // pred_check
    _
  $region47: #{graph_net_block.3} parent=0 // pred_check_branch
    %1764 = sbr.rel (0) target = $region49
  $region48: #{graph_net_block.3} parent=0 // pred_region
    _
  $region49: #{graph_net_block.3} parent=0 // pred_fallthru
    _
  // Predicated region
  $region50: #{graph_net_block.3} parent=0 // pred_check
    _
  $region51: #{graph_net_block.3} parent=0 // pred_check_branch
    %1766 = sbr.rel (0) target = $region53
  $region52: #{graph_net_block.3} parent=0 // pred_region
    _
  $region53: #{graph_net_block.3} parent=0 // pred_fallthru
    _

// kernel: graph_net_block.2
$region0: #{graph_net_block.2}
  #allocation0 [shape = 'u32[]', space=smem, size = 0x4, offset = 0x4, fixed_abs, tag = 'smem constant byte address 0x4 - core index']
  #allocation1 [shape = 'u32[72,128]{1,0:T(1,128)}', space=vmem, size = 0x9000, scoped, tag = 'internal scratch']
  %s0 = inlined_call_operand.vmem [shape: f32[1024,128], index: 0, kind: input, shape index: {}]
  %s1 = inlined_call_operand.vmem [shape: s32[1024,1], index: 1, kind: input, shape index: {}]
  %s2 = inlined_call_operand.vmem [shape: s32[1024,1], index: 2, kind: input, shape index: {}]
  %s3 = inlined_call_operand.vmem [shape: s32[1,1024], index: 3, kind: input, shape index: {}]
  %s4 = inlined_call_operand.vmem [shape: bf16[256,128], index: 4, kind: input, shape index: {}]
  %s5 = inlined_call_operand.vmem [shape: bf16[256,128], index: 5, kind: input, shape index: {}]
  %s6 = inlined_call_operand.vmem [shape: bf16[128,128], index: 6, kind: input, shape index: {}]
  %s7 = inlined_call_operand.vmem [shape: f32[1,128], index: 7, kind: input, shape index: {}]
  %s8 = inlined_call_operand.vmem [shape: bf16[128,128], index: 8, kind: input, shape index: {}]
  %s9 = inlined_call_operand.vmem [shape: f32[1,128], index: 9, kind: input, shape index: {}]
  %s10 = inlined_call_operand.vmem [shape: bf16[128,128], index: 10, kind: input, shape index: {}]
  %s11 = inlined_call_operand.vmem [shape: f32[1,128], index: 11, kind: input, shape index: {}]
  %s12 = inlined_call_operand.vmem [shape: f32[1,128], index: 12, kind: input, shape index: {}]
  %s13 = inlined_call_operand.vmem [shape: f32[1,128], index: 13, kind: input, shape index: {}]
  %s14 = inlined_call_operand.vmem [shape: f32[1024,128], index: 14, kind: output, shape index: {0}]
  %s15 = inlined_call_operand.vmem [shape: f32[2,256,128], index: 15, kind: output, shape index: {1}]
  %16 = xla_tuple %s14, %s15
  %s17 = sld [smem:[#allocation0]]
  $region101: #{graph_net_block.2} parent=0
    _
  %s19 = ssub.s32 1, %s17
  %s20 = scalar_select 0, %s19, %s17
  loop: start=0, step=1, limit=4
  $region2: #{graph_net_block.2} parent=0 // loop_pre_header
    _
  $region3: #{graph_net_block.2} parent=0 // loop_header
    %s22 = sphi 0, %s26
    %p23 = scmp.ge.s32.totalorder %s22, 4
    %s29 = sphi 0, %s41
    %s30 = sphi 0, %s37
    %s31 = sphi 0, %s29
    %s32 = sphi 0, %s30
    %s33 = sphi 0, %s31
    %s34 = sphi 0, %s32
    %s46 = sphi 0, %s48
    %s49 = sphi 0, %s46
    %s50 = sphi 0, %s49
    %s66 = sphi 0, %s50
    %s74 = sphi 0, %s76
    %s77 = sphi 0, %s74
    %s78 = sphi 0, %s77
    %s94 = sphi 0, %s78
    %s102 = sphi 0, %s104
    %s105 = sphi 0, %s102
    %s106 = sphi 0, %s105
    %s122 = sphi 0, %s106
    %s130 = sphi 0, %s132
    %s133 = sphi 0, %s130
    %s134 = sphi 0, %s133
    %s150 = sphi 0, %s134
    %s154 = sphi 0, %s154
    %s156 = sphi 0, %s154
    %s157 = sphi 0, %s156
    %s171 = sphi 0, %s157
    %s175 = sphi 0, %s175
    %s177 = sphi 0, %s175
    %s178 = sphi 0, %s177
    %s192 = sphi 0, %s178
    %s196 = sphi 0, %s196
    %s198 = sphi 0, %s196
    %s199 = sphi 0, %s198
    %s213 = sphi 0, %s199
    %s217 = sphi 0, %s217
    %s219 = sphi 0, %s217
    %s220 = sphi 0, %s219
    %s234 = sphi 0, %s220
    %s238 = sphi 0, %s238
    %s240 = sphi 0, %s238
    %s241 = sphi 0, %s240
    %s255 = sphi 0, %s241
    %s259 = sphi 0, %s259
    %s261 = sphi 0, %s259
    %s262 = sphi 0, %s261
    %s276 = sphi 0, %s262
    %s280 = sphi 0, %s280
    %s282 = sphi 0, %s280
    %s283 = sphi 0, %s282
    %s297 = sphi 0, %s283
    %s301 = sphi 0, %s301
    %s303 = sphi 0, %s301
    %s304 = sphi 0, %s303
    %s318 = sphi 0, %s304
    %s322 = sphi 0, %s322
    %s324 = sphi 0, %s322
    %s325 = sphi 0, %s324
    %s339 = sphi 0, %s325
    %s343 = sphi 0, %s343
    %s345 = sphi 0, %s343
    %s346 = sphi 0, %s345
    %s360 = sphi 0, %s346
    %s368 = sphi 0, %s370
    %s371 = sphi 0, %s368
    %s372 = sphi 0, %s371
    %s388 = sphi 0, %s372
    %s394 = sphi 0, %s396
    %s397 = sphi 0, %s394
    %s398 = sphi 0, %s397
    %s414 = sphi 0, %s398
  $region4: #{graph_net_block.2} parent=0 // loop_header_branch
    %25 = sbr.rel (%p23) target = $region8
  $region5: #{graph_net_block.2} parent=0 // loop_body
    %s27 = ssub.s32 %s22, 1
    %s28 = ssub.s32 %s22, 2
    %s35 = sadd.s32 1, %s30
    %p36 = scmp.ge.s32.totalorder %s35, 1
    %s37 = scalar_select %p36, 0, %s35
    %s38 = sadd.s32 1, %s29
    %s39 = scalar_select %p36, %s38, %s29
    %p40 = scmp.ge.s32.totalorder %s39, 2
    %s41 = scalar_select %p40, 0, %s39
    %s42 = sadd.s32 %s29, %s30
    %s43 = sadd.s32 %s41, %s37
    %s44 = ssub.s32 %s42, %s43
    %p45 = scmp.eq.s32.totalorder %s44, 0
    %s47 = sadd.s32 %s46, 1
    %s48 = scalar_select %p45, %s46, %s47
    %p51 = pneg %p45
    %p52 = scmp.eq.s32.totalorder %s22, 1
    %p53 = por %p51, %p52
    %p54 = scmp.ne.s32.totalorder %s46, %s49
    %p55 = scmp.eq.s32.totalorder %s22, 0
    %p56 = por %p54, %p55
    %p57 = scmp.ne.s32.totalorder %s46, %s49
    %p58 = scmp.eq.s32.totalorder %s27, 1
    %p59 = por %p57, %p58
    %p60 = scmp.ne.s32.totalorder %s49, %s50
    %p61 = scmp.eq.s32.totalorder %s27, 0
    %p62 = por %p60, %p61
    %p63 = scmp.ne.s32.totalorder %s49, %s50
    %p64 = scmp.eq.s32.totalorder %s28, 1
    %p65 = por %p63, %p64
    %p67 = scmp.ne.s32.totalorder %s50, %s66
    %p68 = scmp.eq.s32.totalorder %s28, 0
    %p69 = por %p67, %p68
    %s70 = sadd.s32 %s29, %s30
    %s71 = sadd.s32 %s41, %s37
    %s72 = ssub.s32 %s70, %s71
    %p73 = scmp.eq.s32.totalorder %s72, 0
    %s75 = sadd.s32 %s74, 1
    %s76 = scalar_select %p73, %s74, %s75
    %p79 = pneg %p73
    %p80 = scmp.eq.s32.totalorder %s22, 1
    %p81 = por %p79, %p80
    %p82 = scmp.ne.s32.totalorder %s74, %s77
    %p83 = scmp.eq.s32.totalorder %s22, 0
    %p84 = por %p82, %p83
    %p85 = scmp.ne.s32.totalorder %s74, %s77
    %p86 = scmp.eq.s32.totalorder %s27, 1
    %p87 = por %p85, %p86
    %p88 = scmp.ne.s32.totalorder %s77, %s78
    %p89 = scmp.eq.s32.totalorder %s27, 0
    %p90 = por %p88, %p89
    %p91 = scmp.ne.s32.totalorder %s77, %s78
    %p92 = scmp.eq.s32.totalorder %s28, 1
    %p93 = por %p91, %p92
    %p95 = scmp.ne.s32.totalorder %s78, %s94
    %p96 = scmp.eq.s32.totalorder %s28, 0
    %p97 = por %p95, %p96
    %s98 = sadd.s32 %s29, %s30
    %s99 = sadd.s32 %s41, %s37
    %s100 = ssub.s32 %s98, %s99
    %p101 = scmp.eq.s32.totalorder %s100, 0
    %s103 = sadd.s32 %s102, 1
    %s104 = scalar_select %p101, %s102, %s103
    %p107 = pneg %p101
    %p108 = scmp.eq.s32.totalorder %s22, 1
    %p109 = por %p107, %p108
    %p110 = scmp.ne.s32.totalorder %s102, %s105
    %p111 = scmp.eq.s32.totalorder %s22, 0
    %p112 = por %p110, %p111
    %p113 = scmp.ne.s32.totalorder %s102, %s105
    %p114 = scmp.eq.s32.totalorder %s27, 1
    %p115 = por %p113, %p114
    %p116 = scmp.ne.s32.totalorder %s105, %s106
    %p117 = scmp.eq.s32.totalorder %s27, 0
    %p118 = por %p116, %p117
    %p119 = scmp.ne.s32.totalorder %s105, %s106
    %p120 = scmp.eq.s32.totalorder %s28, 1
    %p121 = por %p119, %p120
    %p123 = scmp.ne.s32.totalorder %s106, %s122
    %p124 = scmp.eq.s32.totalorder %s28, 0
    %p125 = por %p123, %p124
    %s126 = sadd.s32 %s29, %s30
    %s127 = sadd.s32 %s41, %s37
    %s128 = ssub.s32 %s126, %s127
    %p129 = scmp.eq.s32.totalorder %s128, 0
    %s131 = sadd.s32 %s130, 1
    %s132 = scalar_select %p129, %s130, %s131
    %p135 = pneg %p129
    %p136 = scmp.eq.s32.totalorder %s22, 1
    %p137 = por %p135, %p136
    %p138 = scmp.ne.s32.totalorder %s130, %s133
    %p139 = scmp.eq.s32.totalorder %s22, 0
    %p140 = por %p138, %p139
    %p141 = scmp.ne.s32.totalorder %s130, %s133
    %p142 = scmp.eq.s32.totalorder %s27, 1
    %p143 = por %p141, %p142
    %p144 = scmp.ne.s32.totalorder %s133, %s134
    %p145 = scmp.eq.s32.totalorder %s27, 0
    %p146 = por %p144, %p145
    %p147 = scmp.ne.s32.totalorder %s133, %s134
    %p148 = scmp.eq.s32.totalorder %s28, 1
    %p149 = por %p147, %p148
    %p151 = scmp.ne.s32.totalorder %s134, %s150
    %p152 = scmp.eq.s32.totalorder %s28, 0
    %p153 = por %p151, %p152
    %s155 = sadd.s32 %s154, 1
    %p158 = scmp.eq.s32.totalorder %s22, 1
    %p159 = scmp.ne.s32.totalorder %s154, %s156
    %p160 = scmp.eq.s32.totalorder %s22, 0
    %p161 = por %p159, %p160
    %p162 = scmp.ne.s32.totalorder %s154, %s156
    %p163 = scmp.eq.s32.totalorder %s27, 1
    %p164 = por %p162, %p163
    %p165 = scmp.ne.s32.totalorder %s156, %s157
    %p166 = scmp.eq.s32.totalorder %s27, 0
    %p167 = por %p165, %p166
    %p168 = scmp.ne.s32.totalorder %s156, %s157
    %p169 = scmp.eq.s32.totalorder %s28, 1
    %p170 = por %p168, %p169
    %p172 = scmp.ne.s32.totalorder %s157, %s171
    %p173 = scmp.eq.s32.totalorder %s28, 0
    %p174 = por %p172, %p173
    %s176 = sadd.s32 %s175, 1
    %p179 = scmp.eq.s32.totalorder %s22, 1
    %p180 = scmp.ne.s32.totalorder %s175, %s177
    %p181 = scmp.eq.s32.totalorder %s22, 0
    %p182 = por %p180, %p181
    %p183 = scmp.ne.s32.totalorder %s175, %s177
    %p184 = scmp.eq.s32.totalorder %s27, 1
    %p185 = por %p183, %p184
    %p186 = scmp.ne.s32.totalorder %s177, %s178
    %p187 = scmp.eq.s32.totalorder %s27, 0
    %p188 = por %p186, %p187
    %p189 = scmp.ne.s32.totalorder %s177, %s178
    %p190 = scmp.eq.s32.totalorder %s28, 1
    %p191 = por %p189, %p190
    %p193 = scmp.ne.s32.totalorder %s178, %s192
    %p194 = scmp.eq.s32.totalorder %s28, 0
    %p195 = por %p193, %p194
    %s197 = sadd.s32 %s196, 1
    %p200 = scmp.eq.s32.totalorder %s22, 1
    %p201 = scmp.ne.s32.totalorder %s196, %s198
    %p202 = scmp.eq.s32.totalorder %s22, 0
    %p203 = por %p201, %p202
    %p204 = scmp.ne.s32.totalorder %s196, %s198
    %p205 = scmp.eq.s32.totalorder %s27, 1
    %p206 = por %p204, %p205
    %p207 = scmp.ne.s32.totalorder %s198, %s199
    %p208 = scmp.eq.s32.totalorder %s27, 0
    %p209 = por %p207, %p208
    %p210 = scmp.ne.s32.totalorder %s198, %s199
    %p211 = scmp.eq.s32.totalorder %s28, 1
    %p212 = por %p210, %p211
    %p214 = scmp.ne.s32.totalorder %s199, %s213
    %p215 = scmp.eq.s32.totalorder %s28, 0
    %p216 = por %p214, %p215
    %s218 = sadd.s32 %s217, 1
    %p221 = scmp.eq.s32.totalorder %s22, 1
    %p222 = scmp.ne.s32.totalorder %s217, %s219
    %p223 = scmp.eq.s32.totalorder %s22, 0
    %p224 = por %p222, %p223
    %p225 = scmp.ne.s32.totalorder %s217, %s219
    %p226 = scmp.eq.s32.totalorder %s27, 1
    %p227 = por %p225, %p226
    %p228 = scmp.ne.s32.totalorder %s219, %s220
    %p229 = scmp.eq.s32.totalorder %s27, 0
    %p230 = por %p228, %p229
    %p231 = scmp.ne.s32.totalorder %s219, %s220
    %p232 = scmp.eq.s32.totalorder %s28, 1
    %p233 = por %p231, %p232
    %p235 = scmp.ne.s32.totalorder %s220, %s234
    %p236 = scmp.eq.s32.totalorder %s28, 0
    %p237 = por %p235, %p236
    %s239 = sadd.s32 %s238, 1
    %p242 = scmp.eq.s32.totalorder %s22, 1
    %p243 = scmp.ne.s32.totalorder %s238, %s240
    %p244 = scmp.eq.s32.totalorder %s22, 0
    %p245 = por %p243, %p244
    %p246 = scmp.ne.s32.totalorder %s238, %s240
    %p247 = scmp.eq.s32.totalorder %s27, 1
    %p248 = por %p246, %p247
    %p249 = scmp.ne.s32.totalorder %s240, %s241
    %p250 = scmp.eq.s32.totalorder %s27, 0
    %p251 = por %p249, %p250
    %p252 = scmp.ne.s32.totalorder %s240, %s241
    %p253 = scmp.eq.s32.totalorder %s28, 1
    %p254 = por %p252, %p253
    %p256 = scmp.ne.s32.totalorder %s241, %s255
    %p257 = scmp.eq.s32.totalorder %s28, 0
    %p258 = por %p256, %p257
    %s260 = sadd.s32 %s259, 1
    %p263 = scmp.eq.s32.totalorder %s22, 1
    %p264 = scmp.ne.s32.totalorder %s259, %s261
    %p265 = scmp.eq.s32.totalorder %s22, 0
    %p266 = por %p264, %p265
    %p267 = scmp.ne.s32.totalorder %s259, %s261
    %p268 = scmp.eq.s32.totalorder %s27, 1
    %p269 = por %p267, %p268
    %p270 = scmp.ne.s32.totalorder %s261, %s262
    %p271 = scmp.eq.s32.totalorder %s27, 0
    %p272 = por %p270, %p271
    %p273 = scmp.ne.s32.totalorder %s261, %s262
    %p274 = scmp.eq.s32.totalorder %s28, 1
    %p275 = por %p273, %p274
    %p277 = scmp.ne.s32.totalorder %s262, %s276
    %p278 = scmp.eq.s32.totalorder %s28, 0
    %p279 = por %p277, %p278
    %s281 = sadd.s32 %s280, 1
    %p284 = scmp.eq.s32.totalorder %s22, 1
    %p285 = scmp.ne.s32.totalorder %s280, %s282
    %p286 = scmp.eq.s32.totalorder %s22, 0
    %p287 = por %p285, %p286
    %p288 = scmp.ne.s32.totalorder %s280, %s282
    %p289 = scmp.eq.s32.totalorder %s27, 1
    %p290 = por %p288, %p289
    %p291 = scmp.ne.s32.totalorder %s282, %s283
    %p292 = scmp.eq.s32.totalorder %s27, 0
    %p293 = por %p291, %p292
    %p294 = scmp.ne.s32.totalorder %s282, %s283
    %p295 = scmp.eq.s32.totalorder %s28, 1
    %p296 = por %p294, %p295
    %p298 = scmp.ne.s32.totalorder %s283, %s297
    %p299 = scmp.eq.s32.totalorder %s28, 0
    %p300 = por %p298, %p299
    %s302 = sadd.s32 %s301, 1
    %p305 = scmp.eq.s32.totalorder %s22, 1
    %p306 = scmp.ne.s32.totalorder %s301, %s303
    %p307 = scmp.eq.s32.totalorder %s22, 0
    %p308 = por %p306, %p307
    %p309 = scmp.ne.s32.totalorder %s301, %s303
    %p310 = scmp.eq.s32.totalorder %s27, 1
    %p311 = por %p309, %p310
    %p312 = scmp.ne.s32.totalorder %s303, %s304
    %p313 = scmp.eq.s32.totalorder %s27, 0
    %p314 = por %p312, %p313
    %p315 = scmp.ne.s32.totalorder %s303, %s304
    %p316 = scmp.eq.s32.totalorder %s28, 1
    %p317 = por %p315, %p316
    %p319 = scmp.ne.s32.totalorder %s304, %s318
    %p320 = scmp.eq.s32.totalorder %s28, 0
    %p321 = por %p319, %p320
    %s323 = sadd.s32 %s322, 1
    %p326 = scmp.eq.s32.totalorder %s22, 1
    %p327 = scmp.ne.s32.totalorder %s322, %s324
    %p328 = scmp.eq.s32.totalorder %s22, 0
    %p329 = por %p327, %p328
    %p330 = scmp.ne.s32.totalorder %s322, %s324
    %p331 = scmp.eq.s32.totalorder %s27, 1
    %p332 = por %p330, %p331
    %p333 = scmp.ne.s32.totalorder %s324, %s325
    %p334 = scmp.eq.s32.totalorder %s27, 0
    %p335 = por %p333, %p334
    %p336 = scmp.ne.s32.totalorder %s324, %s325
    %p337 = scmp.eq.s32.totalorder %s28, 1
    %p338 = por %p336, %p337
    %p340 = scmp.ne.s32.totalorder %s325, %s339
    %p341 = scmp.eq.s32.totalorder %s28, 0
    %p342 = por %p340, %p341
    %s344 = sadd.s32 %s343, 1
    %p347 = scmp.eq.s32.totalorder %s22, 1
    %p348 = scmp.ne.s32.totalorder %s343, %s345
    %p349 = scmp.eq.s32.totalorder %s22, 0
    %p350 = por %p348, %p349
    %p351 = scmp.ne.s32.totalorder %s343, %s345
    %p352 = scmp.eq.s32.totalorder %s27, 1
    %p353 = por %p351, %p352
    %p354 = scmp.ne.s32.totalorder %s345, %s346
    %p355 = scmp.eq.s32.totalorder %s27, 0
    %p356 = por %p354, %p355
    %p357 = scmp.ne.s32.totalorder %s345, %s346
    %p358 = scmp.eq.s32.totalorder %s28, 1
    %p359 = por %p357, %p358
    %p361 = scmp.ne.s32.totalorder %s346, %s360
    %p362 = scmp.eq.s32.totalorder %s28, 0
    %p363 = por %p361, %p362
    %s364 = sadd.s32 %s29, %s30
    %s365 = sadd.s32 %s41, %s37
    %s366 = ssub.s32 %s364, %s365
    %p367 = scmp.eq.s32.totalorder %s366, 0
    %s369 = sadd.s32 %s368, 1
    %s370 = scalar_select %p367, %s368, %s369
    %p373 = pneg %p367
    %p374 = scmp.eq.s32.totalorder %s22, 1
    %p375 = por %p373, %p374
    %p376 = scmp.ne.s32.totalorder %s368, %s371
    %p377 = scmp.eq.s32.totalorder %s22, 0
    %p378 = por %p376, %p377
    %p379 = scmp.ne.s32.totalorder %s368, %s371
    %p380 = scmp.eq.s32.totalorder %s27, 1
    %p381 = por %p379, %p380
    %p382 = scmp.ne.s32.totalorder %s371, %s372
    %p383 = scmp.eq.s32.totalorder %s27, 0
    %p384 = por %p382, %p383
    %p385 = scmp.ne.s32.totalorder %s371, %s372
    %p386 = scmp.eq.s32.totalorder %s28, 1
    %p387 = por %p385, %p386
    %p389 = scmp.ne.s32.totalorder %s372, %s388
    %p390 = scmp.eq.s32.totalorder %s28, 0
    %p391 = por %p389, %p390
    %s392 = ssub.s32 %s29, %s41
    %p393 = scmp.eq.s32.totalorder %s392, 0
    %s395 = sadd.s32 %s394, 1
    %s396 = scalar_select %p393, %s394, %s395
    %p399 = pneg %p393
    %p400 = scmp.eq.s32.totalorder %s22, 1
    %p401 = por %p399, %p400
    %p402 = scmp.ne.s32.totalorder %s394, %s397
    %p403 = scmp.eq.s32.totalorder %s22, 0
    %p404 = por %p402, %p403
    %p405 = scmp.ne.s32.totalorder %s394, %s397
    %p406 = scmp.eq.s32.totalorder %s27, 1
    %p407 = por %p405, %p406
    %p408 = scmp.ne.s32.totalorder %s397, %s398
    %p409 = scmp.eq.s32.totalorder %s27, 0
    %p410 = por %p408, %p409
    %p411 = scmp.ne.s32.totalorder %s397, %s398
    %p412 = scmp.eq.s32.totalorder %s28, 1
    %p413 = por %p411, %p412
    %p415 = scmp.ne.s32.totalorder %s398, %s414
    %p416 = scmp.eq.s32.totalorder %s28, 0
    %p417 = por %p415, %p416
    %p418 = scmp.le.s32.totalorder 1, %s22
    %p419 = scmp.lt.s32.totalorder %s22, 3
    %p420 = pnand %p418, %p419
    %p421 = pneg %p420
    // Predicated region
    $region9: #{graph_net_block.2} parent=5 // pred_check
      _
    $region10: #{graph_net_block.2} parent=5 // pred_check_branch
      %423 = sbr.rel (%p420) target = $region12
    $region11: #{graph_net_block.2} parent=5 // pred_region
      %s424 = ssub.s32 %s22, 1
      // Predicated region
      $region13: #{graph_net_block.2} parent=11 // pred_check
        %p425 = pneg %p167
      $region14: #{graph_net_block.2} parent=11 // pred_check_branch
        %427 = sbr.rel (%p425) target = $region16
      $region15: #{graph_net_block.2} parent=11 // pred_region
        _
      $region16: #{graph_net_block.2} parent=11 // pred_fallthru
        _
      // Predicated region
      $region17: #{graph_net_block.2} parent=11 // pred_check
        %p428 = pneg %p188
      $region18: #{graph_net_block.2} parent=11 // pred_check_branch
        %430 = sbr.rel (%p428) target = $region20
      $region19: #{graph_net_block.2} parent=11 // pred_region
        _
      $region20: #{graph_net_block.2} parent=11 // pred_fallthru
        _
      // Predicated region
      $region21: #{graph_net_block.2} parent=11 // pred_check
        %p431 = pneg %p209
      $region22: #{graph_net_block.2} parent=11 // pred_check_branch
        %433 = sbr.rel (%p431) target = $region24
      $region23: #{graph_net_block.2} parent=11 // pred_region
        _
      $region24: #{graph_net_block.2} parent=11 // pred_fallthru
        _
      // Predicated region
      $region25: #{graph_net_block.2} parent=11 // pred_check
        %p434 = pneg %p230
      $region26: #{graph_net_block.2} parent=11 // pred_check_branch
        %436 = sbr.rel (%p434) target = $region28
      $region27: #{graph_net_block.2} parent=11 // pred_region
        _
      $region28: #{graph_net_block.2} parent=11 // pred_fallthru
        _
      // Predicated region
      $region29: #{graph_net_block.2} parent=11 // pred_check
        %p437 = pneg %p251
      $region30: #{graph_net_block.2} parent=11 // pred_check_branch
        %439 = sbr.rel (%p437) target = $region32
      $region31: #{graph_net_block.2} parent=11 // pred_region
        _
      $region32: #{graph_net_block.2} parent=11 // pred_fallthru
        _
      // Predicated region
      $region33: #{graph_net_block.2} parent=11 // pred_check
        %p440 = pneg %p272
      $region34: #{graph_net_block.2} parent=11 // pred_check_branch
        %442 = sbr.rel (%p440) target = $region36
      $region35: #{graph_net_block.2} parent=11 // pred_region
        _
      $region36: #{graph_net_block.2} parent=11 // pred_fallthru
        _
      // Predicated region
      $region37: #{graph_net_block.2} parent=11 // pred_check
        %p443 = pneg %p293
      $region38: #{graph_net_block.2} parent=11 // pred_check_branch
        %445 = sbr.rel (%p443) target = $region40
      $region39: #{graph_net_block.2} parent=11 // pred_region
        _
      $region40: #{graph_net_block.2} parent=11 // pred_fallthru
        _
      // Predicated region
      $region41: #{graph_net_block.2} parent=11 // pred_check
        %p446 = pneg %p314
      $region42: #{graph_net_block.2} parent=11 // pred_check_branch
        %448 = sbr.rel (%p446) target = $region44
      $region43: #{graph_net_block.2} parent=11 // pred_region
        _
      $region44: #{graph_net_block.2} parent=11 // pred_fallthru
        _
      // Predicated region
      $region45: #{graph_net_block.2} parent=11 // pred_check
        %p449 = pneg %p335
      $region46: #{graph_net_block.2} parent=11 // pred_check_branch
        %451 = sbr.rel (%p449) target = $region48
      $region47: #{graph_net_block.2} parent=11 // pred_region
        _
      $region48: #{graph_net_block.2} parent=11 // pred_fallthru
        _
      // Predicated region
      $region49: #{graph_net_block.2} parent=11 // pred_check
        %p452 = pneg %p356
      $region50: #{graph_net_block.2} parent=11 // pred_check_branch
        %454 = sbr.rel (%p452) target = $region52
      $region51: #{graph_net_block.2} parent=11 // pred_region
        _
      $region52: #{graph_net_block.2} parent=11 // pred_fallthru
        _
    $region12: #{graph_net_block.2} parent=5 // pred_fallthru
      _
    %p455 = scmp.lt.s32.totalorder %s22, 2
    // Predicated region
    $region53: #{graph_net_block.2} parent=5 // pred_check
      %p456 = pneg %p455
    $region54: #{graph_net_block.2} parent=5 // pred_check_branch
      %458 = sbr.rel (%p456) target = $region56
    $region55: #{graph_net_block.2} parent=5 // pred_region
      // Predicated region
      $region57: #{graph_net_block.2} parent=55 // pred_check
        %p459 = pneg %p56
      $region58: #{graph_net_block.2} parent=55 // pred_check_branch
        %461 = sbr.rel (%p459) target = $region60
      $region59: #{graph_net_block.2} parent=55 // pred_region
        %s462 = sadd.s32 %s29, %s30
        %s463 = smul.u32 64, %s462
        %p464 = scmp.lt.s32.totalorder %s463, 127
        %s465 = scalar_select %p464, %s463, 127
        %s466 = smul.addr %s465, 8
        %s467 = scalar_lea.vmem %s0, %s466
        %s468 = sadd.s32 %s29, %s30
        %s469 = smul.u32 64, %s468
      $region60: #{graph_net_block.2} parent=55 // pred_fallthru
        _
      // Predicated region
      $region61: #{graph_net_block.2} parent=55 // pred_check
        %p470 = pneg %p84
      $region62: #{graph_net_block.2} parent=55 // pred_check_branch
        %472 = sbr.rel (%p470) target = $region64
      $region63: #{graph_net_block.2} parent=55 // pred_region
        %s473 = sadd.s32 %s29, %s30
        %s474 = smul.u32 64, %s473
        %p475 = scmp.lt.s32.totalorder %s474, 127
        %s476 = scalar_select %p475, %s474, 127
        %s477 = smul.addr %s476, 8
        %s478 = scalar_lea.vmem %s1, %s477
        %s479 = sadd.s32 %s29, %s30
        %s480 = smul.u32 64, %s479
      $region64: #{graph_net_block.2} parent=55 // pred_fallthru
        _
      // Predicated region
      $region65: #{graph_net_block.2} parent=55 // pred_check
        %p481 = pneg %p112
      $region66: #{graph_net_block.2} parent=55 // pred_check_branch
        %483 = sbr.rel (%p481) target = $region68
      $region67: #{graph_net_block.2} parent=55 // pred_region
        %s484 = sadd.s32 %s29, %s30
        %s485 = smul.u32 64, %s484
        %p486 = scmp.lt.s32.totalorder %s485, 127
        %s487 = scalar_select %p486, %s485, 127
        %s488 = smul.addr %s487, 8
        %s489 = scalar_lea.vmem %s2, %s488
        %s490 = sadd.s32 %s29, %s30
        %s491 = smul.u32 64, %s490
      $region68: #{graph_net_block.2} parent=55 // pred_fallthru
        _
      // Predicated region
      $region69: #{graph_net_block.2} parent=55 // pred_check
        %p492 = pneg %p140
      $region70: #{graph_net_block.2} parent=55 // pred_check_branch
        %494 = sbr.rel (%p492) target = $region72
      $region71: #{graph_net_block.2} parent=55 // pred_region
        %s495 = sadd.s32 %s29, %s30
        %s496 = smul.u32 4, %s495
        %p497 = scmp.lt.s32.totalorder %s496, 7
        %s498 = scalar_select %p497, %s496, 7
        %s499 = scalar_lea.vmem %s3, %s498
        %s500 = sadd.s32 %s29, %s30
        %s501 = smul.u32 4, %s500
      $region72: #{graph_net_block.2} parent=55 // pred_fallthru
        _
    $region56: #{graph_net_block.2} parent=5 // pred_fallthru
      _
    %p502 = scmp.le.s32.totalorder 1, %s22
    %p503 = scmp.lt.s32.totalorder %s22, 3
    %p504 = pnand %p502, %p503
    %p505 = pneg %p504
    // Predicated region
    $region73: #{graph_net_block.2} parent=5 // pred_check
      _
    $region74: #{graph_net_block.2} parent=5 // pred_check_branch
      %507 = sbr.rel (%p504) target = $region76
    $region75: #{graph_net_block.2} parent=5 // pred_region
      %s508 = ssub.s32 %s22, 1
      %s509 = sadd.s32 %s31, %s32
      %s510 = smul.u32 64, %s509
      %p511 = scmp.lt.s32.totalorder %s510, 127
      %s512 = scalar_select %p511, %s510, 127
      %s513 = smul.addr %s512, 8
      %s514 = scalar_lea.vmem %s0, %s513
      %p515 = pneg %p62
      %p516 = pneg %p59
      %s517 = sadd.s32 %s31, %s32
      %s518 = smul.u32 64, %s517
      %p519 = scmp.lt.s32.totalorder %s518, 127
      %s520 = scalar_select %p519, %s518, 127
      %s521 = smul.addr %s520, 8
      %s522 = scalar_lea.vmem %s1, %s521
      %p523 = pneg %p90
      %p524 = pneg %p87
      %s525 = sadd.s32 %s31, %s32
      %s526 = smul.u32 64, %s525
      %p527 = scmp.lt.s32.totalorder %s526, 127
      %s528 = scalar_select %p527, %s526, 127
      %s529 = smul.addr %s528, 8
      %s530 = scalar_lea.vmem %s2, %s529
      %p531 = pneg %p118
      %p532 = pneg %p115
      %s533 = sadd.s32 %s31, %s32
      %s534 = smul.u32 4, %s533
      %p535 = scmp.lt.s32.totalorder %s534, 7
      %s536 = scalar_select %p535, %s534, 7
      %s537 = scalar_lea.vmem %s3, %s536
      %p538 = pneg %p146
      %p539 = pneg %p143
      %p540 = pneg %p167
      %p541 = pneg %p164
      %p542 = pneg %p188
      %p543 = pneg %p185
      %p544 = pneg %p209
      %p545 = pneg %p206
      %p546 = pneg %p230
      %p547 = pneg %p227
      %p548 = pneg %p251
      %p549 = pneg %p248
      %p550 = pneg %p272
      %p551 = pneg %p269
      %p552 = pneg %p293
      %p553 = pneg %p290
      %p554 = pneg %p314
      %p555 = pneg %p311
      %p556 = pneg %p335
      %p557 = pneg %p332
      %p558 = pneg %p356
      %p559 = pneg %p353
      %p560 = pneg %p384
      %p561 = pneg %p381
      %s562 = sadd.s32 %s31, %s32
      %s563 = smul.u32 64, %s562
      %p564 = scmp.lt.s32.totalorder %s563, 127
      %s565 = scalar_select %p564, %s563, 127
      %s566 = smul.addr %s565, 8
      %s567 = scalar_lea.vmem %s14, %s566
      %p568 = pneg %p410
      %p569 = pneg %p407
      %p570 = scmp.lt.s32.totalorder %s31, 1
      %s571 = scalar_select %p570, %s31, 1
      %s572 = smul.addr %s571, 32
      %s573 = smul.addr %s572, 8
      %s574 = scalar_lea.vmem %s15, %s573
      %s575 = sadd.s32 %s31, %s32
      %s576 = smul.u32 64, %s575
      %p577 = scmp.lt.s32.totalorder %s576, 127
      %s578 = scalar_select %p577, %s576, 127
      %s579 = smul.addr %s578, 8
      %s580 = scalar_lea.vmem %s0, %s579
      %s581 = sadd.s32 %s31, %s32
      %s582 = smul.u32 64, %s581
      %s583 = sadd.s32 %s31, %s32
      %s584 = smul.u32 64, %s583
      %p585 = scmp.lt.s32.totalorder %s584, 127
      %s586 = scalar_select %p585, %s584, 127
      %s587 = smul.addr %s586, 8
      %s588 = scalar_lea.vmem %s1, %s587
      %s589 = sadd.s32 %s31, %s32
      %s590 = smul.u32 64, %s589
      %s591 = sadd.s32 %s31, %s32
      %s592 = smul.u32 64, %s591
      %p593 = scmp.lt.s32.totalorder %s592, 127
      %s594 = scalar_select %p593, %s592, 127
      %s595 = smul.addr %s594, 8
      %s596 = scalar_lea.vmem %s2, %s595
      %s597 = sadd.s32 %s31, %s32
      %s598 = smul.u32 64, %s597
      %s599 = sadd.s32 %s31, %s32
      %s600 = smul.u32 4, %s599
      %p601 = scmp.lt.s32.totalorder %s600, 7
      %s602 = scalar_select %p601, %s600, 7
      %s603 = scalar_lea.vmem %s3, %s602
      %s604 = sadd.s32 %s31, %s32
      %s605 = smul.u32 4, %s604
      %s606 = sadd.s32 %s31, %s32
      %s607 = smul.u32 64, %s606
      %p608 = scmp.lt.s32.totalorder %s607, 127
      %s609 = scalar_select %p608, %s607, 127
      %s610 = smul.addr %s609, 8
      %s611 = scalar_lea.vmem %s14, %s610
      %s612 = sadd.s32 %s31, %s32
      %s613 = smul.u32 64, %s612
      %p614 = scmp.lt.s32.totalorder %s31, 1
      %s615 = scalar_select %p614, %s31, 1
      %s616 = smul.addr %s615, 32
      %s617 = smul.addr %s616, 8
      %s618 = scalar_lea.vmem %s15, %s617
      %v619 = vld [vmem:[%s580] sm:$0xff]
      %v620 = vld [vmem:[%s580 + $0x8] sm:$0xff]
      %v621 = vld [vmem:[%s580 + $0x10] sm:$0xff]
      %v622 = vld [vmem:[%s580 + $0x18] sm:$0xff]
      %v623 = vld [vmem:[%s580 + $0x20] sm:$0xff]
      %v624 = vld [vmem:[%s580 + $0x28] sm:$0xff]
      %v625 = vld [vmem:[%s580 + $0x30] sm:$0xff]
      %v626 = vld [vmem:[%s580 + $0x38] sm:$0xff]
      %v627 = vld [vmem:[%s580 + $0x40] sm:$0xff]
      %v628 = vld [vmem:[%s580 + $0x48] sm:$0xff]
      %v629 = vld [vmem:[%s580 + $0x50] sm:$0xff]
      %v630 = vld [vmem:[%s580 + $0x58] sm:$0xff]
      %v631 = vld [vmem:[%s580 + $0x60] sm:$0xff]
      %v632 = vld [vmem:[%s580 + $0x68] sm:$0xff]
      %v633 = vld [vmem:[%s580 + $0x70] sm:$0xff]
      %v634 = vld [vmem:[%s580 + $0x78] sm:$0xff]
      %v635 = vld [vmem:[%s580 + $0x80] sm:$0xff]
      %v636 = vld [vmem:[%s580 + $0x88] sm:$0xff]
      %v637 = vld [vmem:[%s580 + $0x90] sm:$0xff]
      %v638 = vld [vmem:[%s580 + $0x98] sm:$0xff]
      %v639 = vld [vmem:[%s580 + $0xa0] sm:$0xff]
      %v640 = vld [vmem:[%s580 + $0xa8] sm:$0xff]
      %v641 = vld [vmem:[%s580 + $0xb0] sm:$0xff]
      %v642 = vld [vmem:[%s580 + $0xb8] sm:$0xff]
      %v643 = vld [vmem:[%s580 + $0xc0] sm:$0xff]
      %v644 = vld [vmem:[%s580 + $0xc8] sm:$0xff]
      %v645 = vld [vmem:[%s580 + $0xd0] sm:$0xff]
      %v646 = vld [vmem:[%s580 + $0xd8] sm:$0xff]
      %v647 = vld [vmem:[%s580 + $0xe0] sm:$0xff]
      %v648 = vld [vmem:[%s580 + $0xe8] sm:$0xff]
      %v649 = vld [vmem:[%s580 + $0xf0] sm:$0xff]
      %v650 = vld [vmem:[%s580 + $0xf8] sm:$0xff]
      %v651 = vld [vmem:[%s580 + $0x100] sm:$0xff]
      %v652 = vld [vmem:[%s580 + $0x108] sm:$0xff]
      %v653 = vld [vmem:[%s580 + $0x110] sm:$0xff]
      %v654 = vld [vmem:[%s580 + $0x118] sm:$0xff]
      %v655 = vld [vmem:[%s580 + $0x120] sm:$0xff]
      %v656 = vld [vmem:[%s580 + $0x128] sm:$0xff]
      %v657 = vld [vmem:[%s580 + $0x130] sm:$0xff]
      %v658 = vld [vmem:[%s580 + $0x138] sm:$0xff]
      %v659 = vld [vmem:[%s580 + $0x140] sm:$0xff]
      %v660 = vld [vmem:[%s580 + $0x148] sm:$0xff]
      %v661 = vld [vmem:[%s580 + $0x150] sm:$0xff]
      %v662 = vld [vmem:[%s580 + $0x158] sm:$0xff]
      %v663 = vld [vmem:[%s580 + $0x160] sm:$0xff]
      %v664 = vld [vmem:[%s580 + $0x168] sm:$0xff]
      %v665 = vld [vmem:[%s580 + $0x170] sm:$0xff]
      %v666 = vld [vmem:[%s580 + $0x178] sm:$0xff]
      %v667 = vld [vmem:[%s580 + $0x180] sm:$0xff]
      %v668 = vld [vmem:[%s580 + $0x188] sm:$0xff]
      %v669 = vld [vmem:[%s580 + $0x190] sm:$0xff]
      %v670 = vld [vmem:[%s580 + $0x198] sm:$0xff]
      %v671 = vld [vmem:[%s580 + $0x1a0] sm:$0xff]
      %v672 = vld [vmem:[%s580 + $0x1a8] sm:$0xff]
      %v673 = vld [vmem:[%s580 + $0x1b0] sm:$0xff]
      %v674 = vld [vmem:[%s580 + $0x1b8] sm:$0xff]
      %v675 = vld [vmem:[%s580 + $0x1c0] sm:$0xff]
      %v676 = vld [vmem:[%s580 + $0x1c8] sm:$0xff]
      %v677 = vld [vmem:[%s580 + $0x1d0] sm:$0xff]
      %v678 = vld [vmem:[%s580 + $0x1d8] sm:$0xff]
      %v679 = vld [vmem:[%s580 + $0x1e0] sm:$0xff]
      %v680 = vld [vmem:[%s580 + $0x1e8] sm:$0xff]
      %v681 = vld [vmem:[%s580 + $0x1f0] sm:$0xff]
      %v682 = vld [vmem:[%s580 + $0x1f8] sm:$0xff]
      %v683 = vpack.c.bf16 %v620, %v619
      %v684 = vpack.c.bf16 %v622, %v621
      %v685 = vpack.c.bf16 %v624, %v623
      %v686 = vpack.c.bf16 %v626, %v625
      %v687 = vpack.c.bf16 %v628, %v627
      %v688 = vpack.c.bf16 %v630, %v629
      %v689 = vpack.c.bf16 %v632, %v631
      %v690 = vpack.c.bf16 %v634, %v633
      %v691 = vpack.c.bf16 %v636, %v635
      %v692 = vpack.c.bf16 %v638, %v637
      %v693 = vpack.c.bf16 %v640, %v639
      %v694 = vpack.c.bf16 %v642, %v641
      %v695 = vpack.c.bf16 %v644, %v643
      %v696 = vpack.c.bf16 %v646, %v645
      %v697 = vpack.c.bf16 %v648, %v647
      %v698 = vpack.c.bf16 %v650, %v649
      %v699 = vpack.c.bf16 %v652, %v651
      %v700 = vpack.c.bf16 %v654, %v653
      %v701 = vpack.c.bf16 %v656, %v655
      %v702 = vpack.c.bf16 %v658, %v657
      %v703 = vpack.c.bf16 %v660, %v659
      %v704 = vpack.c.bf16 %v662, %v661
      %v705 = vpack.c.bf16 %v664, %v663
      %v706 = vpack.c.bf16 %v666, %v665
      %v707 = vpack.c.bf16 %v668, %v667
      %v708 = vpack.c.bf16 %v670, %v669
      %v709 = vpack.c.bf16 %v672, %v671
      %v710 = vpack.c.bf16 %v674, %v673
      %v711 = vpack.c.bf16 %v676, %v675
      %v712 = vpack.c.bf16 %v678, %v677
      %v713 = vpack.c.bf16 %v680, %v679
      %v714 = vpack.c.bf16 %v682, %v681
      %v715 = vlaneseq
      %v716 = vshrl.u32 %v715, 7
      %v717 = vadd.s32 %v716, 8
      %v718 = vadd.s32 %v716, 16
      %v719 = vadd.s32 %v716, 24
      %v720 = vadd.s32 %v716, 32
      %v721 = vadd.s32 %v716, 40
      %v722 = vadd.s32 %v716, 48
      %v723 = vadd.s32 %v716, 56
      %v724 = vadd.s32 %v716, 64
      %v725 = vadd.s32 %v716, 72
      %v726 = vadd.s32 %v716, 80
      %v727 = vadd.s32 %v716, 88
      %v728 = vadd.s32 %v716, 96
      %v729 = vadd.s32 %v716, 104
      %v730 = vadd.s32 %v716, 112
      %v731 = vadd.s32 %v716, 120
      %v732 = vadd.s32 %v716, 128
      %v733 = vadd.s32 %v716, 136
      %v734 = vadd.s32 %v716, 144
      %v735 = vadd.s32 %v716, 152
      %v736 = vadd.s32 %v716, 160
      %v737 = vadd.s32 %v716, 168
      %v738 = vadd.s32 %v716, 176
      %v739 = vadd.s32 %v716, 184
      %v740 = vadd.s32 %v716, 192
      %v741 = vadd.s32 %v716, 200
      %v742 = vadd.s32 %v716, 208
      %v743 = vadd.s32 %v716, 216
      %v744 = vadd.s32 %v716, 224
      %v745 = vadd.s32 %v716, 232
      %v746 = vadd.s32 %v716, 240
      %v747 = vadd.s32 %v716, 248
      %v748 = vld [vmem:[%s603] sm:$0xf]
      %v749 = vperm.slane %v748, 0
      %v750 = vperm.slane %v748, 1
      %v751 = vperm.slane %v748, 2
      %v752 = vperm.slane %v748, 3
      %vm753 = vcmp.eq.s32.totalorder %v749, %v716
      %vm754 = vcmp.eq.s32.totalorder %v750, %v716
      %vm755 = vcmp.eq.s32.totalorder %v751, %v716
      %vm756 = vcmp.eq.s32.totalorder %v752, %v716
      %vm757 = vcmp.eq.s32.totalorder %v749, %v717
      %vm758 = vcmp.eq.s32.totalorder %v750, %v717
      %vm759 = vcmp.eq.s32.totalorder %v751, %v717
      %vm760 = vcmp.eq.s32.totalorder %v752, %v717
      %vm761 = vcmp.eq.s32.totalorder %v749, %v718
      %vm762 = vcmp.eq.s32.totalorder %v750, %v718
      %vm763 = vcmp.eq.s32.totalorder %v751, %v718
      %vm764 = vcmp.eq.s32.totalorder %v752, %v718
      %vm765 = vcmp.eq.s32.totalorder %v749, %v719
      %vm766 = vcmp.eq.s32.totalorder %v750, %v719
      %vm767 = vcmp.eq.s32.totalorder %v751, %v719
      %vm768 = vcmp.eq.s32.totalorder %v752, %v719
      %vm769 = vcmp.eq.s32.totalorder %v749, %v720
      %vm770 = vcmp.eq.s32.totalorder %v750, %v720
      %vm771 = vcmp.eq.s32.totalorder %v751, %v720
      %vm772 = vcmp.eq.s32.totalorder %v752, %v720
      %vm773 = vcmp.eq.s32.totalorder %v749, %v721
      %vm774 = vcmp.eq.s32.totalorder %v750, %v721
      %vm775 = vcmp.eq.s32.totalorder %v751, %v721
      %vm776 = vcmp.eq.s32.totalorder %v752, %v721
      %vm777 = vcmp.eq.s32.totalorder %v749, %v722
      %vm778 = vcmp.eq.s32.totalorder %v750, %v722
      %vm779 = vcmp.eq.s32.totalorder %v751, %v722
      %vm780 = vcmp.eq.s32.totalorder %v752, %v722
      %vm781 = vcmp.eq.s32.totalorder %v749, %v723
      %vm782 = vcmp.eq.s32.totalorder %v750, %v723
      %vm783 = vcmp.eq.s32.totalorder %v751, %v723
      %vm784 = vcmp.eq.s32.totalorder %v752, %v723
      %vm785 = vcmp.eq.s32.totalorder %v749, %v724
      %vm786 = vcmp.eq.s32.totalorder %v750, %v724
      %vm787 = vcmp.eq.s32.totalorder %v751, %v724
      %vm788 = vcmp.eq.s32.totalorder %v752, %v724
      %vm789 = vcmp.eq.s32.totalorder %v749, %v725
      %vm790 = vcmp.eq.s32.totalorder %v750, %v725
      %vm791 = vcmp.eq.s32.totalorder %v751, %v725
      %vm792 = vcmp.eq.s32.totalorder %v752, %v725
      %vm793 = vcmp.eq.s32.totalorder %v749, %v726
      %vm794 = vcmp.eq.s32.totalorder %v750, %v726
      %vm795 = vcmp.eq.s32.totalorder %v751, %v726
      %vm796 = vcmp.eq.s32.totalorder %v752, %v726
      %vm797 = vcmp.eq.s32.totalorder %v749, %v727
      %vm798 = vcmp.eq.s32.totalorder %v750, %v727
      %vm799 = vcmp.eq.s32.totalorder %v751, %v727
      %vm800 = vcmp.eq.s32.totalorder %v752, %v727
      %vm801 = vcmp.eq.s32.totalorder %v749, %v728
      %vm802 = vcmp.eq.s32.totalorder %v750, %v728
      %vm803 = vcmp.eq.s32.totalorder %v751, %v728
      %vm804 = vcmp.eq.s32.totalorder %v752, %v728
      %vm805 = vcmp.eq.s32.totalorder %v749, %v729
      %vm806 = vcmp.eq.s32.totalorder %v750, %v729
      %vm807 = vcmp.eq.s32.totalorder %v751, %v729
      %vm808 = vcmp.eq.s32.totalorder %v752, %v729
      %vm809 = vcmp.eq.s32.totalorder %v749, %v730
      %vm810 = vcmp.eq.s32.totalorder %v750, %v730
      %vm811 = vcmp.eq.s32.totalorder %v751, %v730
      %vm812 = vcmp.eq.s32.totalorder %v752, %v730
      %vm813 = vcmp.eq.s32.totalorder %v749, %v731
      %vm814 = vcmp.eq.s32.totalorder %v750, %v731
      %vm815 = vcmp.eq.s32.totalorder %v751, %v731
      %vm816 = vcmp.eq.s32.totalorder %v752, %v731
      %vm817 = vcmp.eq.s32.totalorder %v749, %v732
      %vm818 = vcmp.eq.s32.totalorder %v750, %v732
      %vm819 = vcmp.eq.s32.totalorder %v751, %v732
      %vm820 = vcmp.eq.s32.totalorder %v752, %v732
      %vm821 = vcmp.eq.s32.totalorder %v749, %v733
      %vm822 = vcmp.eq.s32.totalorder %v750, %v733
      %vm823 = vcmp.eq.s32.totalorder %v751, %v733
      %vm824 = vcmp.eq.s32.totalorder %v752, %v733
      %vm825 = vcmp.eq.s32.totalorder %v749, %v734
      %vm826 = vcmp.eq.s32.totalorder %v750, %v734
      %vm827 = vcmp.eq.s32.totalorder %v751, %v734
      %vm828 = vcmp.eq.s32.totalorder %v752, %v734
      %vm829 = vcmp.eq.s32.totalorder %v749, %v735
      %vm830 = vcmp.eq.s32.totalorder %v750, %v735
      %vm831 = vcmp.eq.s32.totalorder %v751, %v735
      %vm832 = vcmp.eq.s32.totalorder %v752, %v735
      %vm833 = vcmp.eq.s32.totalorder %v749, %v736
      %vm834 = vcmp.eq.s32.totalorder %v750, %v736
      %vm835 = vcmp.eq.s32.totalorder %v751, %v736
      %vm836 = vcmp.eq.s32.totalorder %v752, %v736
      %vm837 = vcmp.eq.s32.totalorder %v749, %v737
      %vm838 = vcmp.eq.s32.totalorder %v750, %v737
      %vm839 = vcmp.eq.s32.totalorder %v751, %v737
      %vm840 = vcmp.eq.s32.totalorder %v752, %v737
      %vm841 = vcmp.eq.s32.totalorder %v749, %v738
      %vm842 = vcmp.eq.s32.totalorder %v750, %v738
      %vm843 = vcmp.eq.s32.totalorder %v751, %v738
      %vm844 = vcmp.eq.s32.totalorder %v752, %v738
      %vm845 = vcmp.eq.s32.totalorder %v749, %v739
      %vm846 = vcmp.eq.s32.totalorder %v750, %v739
      %vm847 = vcmp.eq.s32.totalorder %v751, %v739
      %vm848 = vcmp.eq.s32.totalorder %v752, %v739
      %vm849 = vcmp.eq.s32.totalorder %v749, %v740
      %vm850 = vcmp.eq.s32.totalorder %v750, %v740
      %vm851 = vcmp.eq.s32.totalorder %v751, %v740
      %vm852 = vcmp.eq.s32.totalorder %v752, %v740
      %vm853 = vcmp.eq.s32.totalorder %v749, %v741
      %vm854 = vcmp.eq.s32.totalorder %v750, %v741
      %vm855 = vcmp.eq.s32.totalorder %v751, %v741
      %vm856 = vcmp.eq.s32.totalorder %v752, %v741
      %vm857 = vcmp.eq.s32.totalorder %v749, %v742
      %vm858 = vcmp.eq.s32.totalorder %v750, %v742
      %vm859 = vcmp.eq.s32.totalorder %v751, %v742
      %vm860 = vcmp.eq.s32.totalorder %v752, %v742
      %vm861 = vcmp.eq.s32.totalorder %v749, %v743
      %vm862 = vcmp.eq.s32.totalorder %v750, %v743
      %vm863 = vcmp.eq.s32.totalorder %v751, %v743
      %vm864 = vcmp.eq.s32.totalorder %v752, %v743
      %vm865 = vcmp.eq.s32.totalorder %v749, %v744
      %vm866 = vcmp.eq.s32.totalorder %v750, %v744
      %vm867 = vcmp.eq.s32.totalorder %v751, %v744
      %vm868 = vcmp.eq.s32.totalorder %v752, %v744
      %vm869 = vcmp.eq.s32.totalorder %v749, %v745
      %vm870 = vcmp.eq.s32.totalorder %v750, %v745
      %vm871 = vcmp.eq.s32.totalorder %v751, %v745
      %vm872 = vcmp.eq.s32.totalorder %v752, %v745
      %vm873 = vcmp.eq.s32.totalorder %v749, %v746
      %vm874 = vcmp.eq.s32.totalorder %v750, %v746
      %vm875 = vcmp.eq.s32.totalorder %v751, %v746
      %vm876 = vcmp.eq.s32.totalorder %v752, %v746
      %vm877 = vcmp.eq.s32.totalorder %v749, %v747
      %vm878 = vcmp.eq.s32.totalorder %v750, %v747
      %vm879 = vcmp.eq.s32.totalorder %v751, %v747
      %vm880 = vcmp.eq.s32.totalorder %v752, %v747
      %v881 = vsel %vm753, 1, 0
      %v882 = vsel %vm754, 1, 0
      %v883 = vsel %vm755, 1, 0
      %v884 = vsel %vm756, 1, 0
      %v885 = vsel %vm757, 1, 0
      %v886 = vsel %vm758, 1, 0
      %v887 = vsel %vm759, 1, 0
      %v888 = vsel %vm760, 1, 0
      %v889 = vsel %vm761, 1, 0
      %v890 = vsel %vm762, 1, 0
      %v891 = vsel %vm763, 1, 0
      %v892 = vsel %vm764, 1, 0
      %v893 = vsel %vm765, 1, 0
      %v894 = vsel %vm766, 1, 0
      %v895 = vsel %vm767, 1, 0
      %v896 = vsel %vm768, 1, 0
      %v897 = vsel %vm769, 1, 0
      %v898 = vsel %vm770, 1, 0
      %v899 = vsel %vm771, 1, 0
      %v900 = vsel %vm772, 1, 0
      %v901 = vsel %vm773, 1, 0
      %v902 = vsel %vm774, 1, 0
      %v903 = vsel %vm775, 1, 0
      %v904 = vsel %vm776, 1, 0
      %v905 = vsel %vm777, 1, 0
      %v906 = vsel %vm778, 1, 0
      %v907 = vsel %vm779, 1, 0
      %v908 = vsel %vm780, 1, 0
      %v909 = vsel %vm781, 1, 0
      %v910 = vsel %vm782, 1, 0
      %v911 = vsel %vm783, 1, 0
      %v912 = vsel %vm784, 1, 0
      %v913 = vsel %vm785, 1, 0
      %v914 = vsel %vm786, 1, 0
      %v915 = vsel %vm787, 1, 0
      %v916 = vsel %vm788, 1, 0
      %v917 = vsel %vm789, 1, 0
      %v918 = vsel %vm790, 1, 0
      %v919 = vsel %vm791, 1, 0
      %v920 = vsel %vm792, 1, 0
      %v921 = vsel %vm793, 1, 0
      %v922 = vsel %vm794, 1, 0
      %v923 = vsel %vm795, 1, 0
      %v924 = vsel %vm796, 1, 0
      %v925 = vsel %vm797, 1, 0
      %v926 = vsel %vm798, 1, 0
      %v927 = vsel %vm799, 1, 0
      %v928 = vsel %vm800, 1, 0
      %v929 = vsel %vm801, 1, 0
      %v930 = vsel %vm802, 1, 0
      %v931 = vsel %vm803, 1, 0
      %v932 = vsel %vm804, 1, 0
      %v933 = vsel %vm805, 1, 0
      %v934 = vsel %vm806, 1, 0
      %v935 = vsel %vm807, 1, 0
      %v936 = vsel %vm808, 1, 0
      %v937 = vsel %vm809, 1, 0
      %v938 = vsel %vm810, 1, 0
      %v939 = vsel %vm811, 1, 0
      %v940 = vsel %vm812, 1, 0
      %v941 = vsel %vm813, 1, 0
      %v942 = vsel %vm814, 1, 0
      %v943 = vsel %vm815, 1, 0
      %v944 = vsel %vm816, 1, 0
      %v945 = vsel %vm817, 1, 0
      %v946 = vsel %vm818, 1, 0
      %v947 = vsel %vm819, 1, 0
      %v948 = vsel %vm820, 1, 0
      %v949 = vsel %vm821, 1, 0
      %v950 = vsel %vm822, 1, 0
      %v951 = vsel %vm823, 1, 0
      %v952 = vsel %vm824, 1, 0
      %v953 = vsel %vm825, 1, 0
      %v954 = vsel %vm826, 1, 0
      %v955 = vsel %vm827, 1, 0
      %v956 = vsel %vm828, 1, 0
      %v957 = vsel %vm829, 1, 0
      %v958 = vsel %vm830, 1, 0
      %v959 = vsel %vm831, 1, 0
      %v960 = vsel %vm832, 1, 0
      %v961 = vsel %vm833, 1, 0
      %v962 = vsel %vm834, 1, 0
      %v963 = vsel %vm835, 1, 0
      %v964 = vsel %vm836, 1, 0
      %v965 = vsel %vm837, 1, 0
      %v966 = vsel %vm838, 1, 0
      %v967 = vsel %vm839, 1, 0
      %v968 = vsel %vm840, 1, 0
      %v969 = vsel %vm841, 1, 0
      %v970 = vsel %vm842, 1, 0
      %v971 = vsel %vm843, 1, 0
      %v972 = vsel %vm844, 1, 0
      %v973 = vsel %vm845, 1, 0
      %v974 = vsel %vm846, 1, 0
      %v975 = vsel %vm847, 1, 0
      %v976 = vsel %vm848, 1, 0
      %v977 = vsel %vm849, 1, 0
      %v978 = vsel %vm850, 1, 0
      %v979 = vsel %vm851, 1, 0
      %v980 = vsel %vm852, 1, 0
      %v981 = vsel %vm853, 1, 0
      %v982 = vsel %vm854, 1, 0
      %v983 = vsel %vm855, 1, 0
      %v984 = vsel %vm856, 1, 0
      %v985 = vsel %vm857, 1, 0
      %v986 = vsel %vm858, 1, 0
      %v987 = vsel %vm859, 1, 0
      %v988 = vsel %vm860, 1, 0
      %v989 = vsel %vm861, 1, 0
      %v990 = vsel %vm862, 1, 0
      %v991 = vsel %vm863, 1, 0
      %v992 = vsel %vm864, 1, 0
      %v993 = vsel %vm865, 1, 0
      %v994 = vsel %vm866, 1, 0
      %v995 = vsel %vm867, 1, 0
      %v996 = vsel %vm868, 1, 0
      %v997 = vsel %vm869, 1, 0
      %v998 = vsel %vm870, 1, 0
      %v999 = vsel %vm871, 1, 0
      %v1000 = vsel %vm872, 1, 0
      %v1001 = vsel %vm873, 1, 0
      %v1002 = vsel %vm874, 1, 0
      %v1003 = vsel %vm875, 1, 0
      %v1004 = vsel %vm876, 1, 0
      %v1005 = vsel %vm877, 1, 0
      %v1006 = vsel %vm878, 1, 0
      %v1007 = vsel %vm879, 1, 0
      %v1008 = vsel %vm880, 1, 0
      %v1009 = vcvt.s32.f32 %v881
      %v1010 = vcvt.s32.f32 %v882
      %v1011 = vcvt.s32.f32 %v883
      %v1012 = vcvt.s32.f32 %v884
      %v1013 = vcvt.s32.f32 %v885
      %v1014 = vcvt.s32.f32 %v886
      %v1015 = vcvt.s32.f32 %v887
      %v1016 = vcvt.s32.f32 %v888
      %v1017 = vcvt.s32.f32 %v889
      %v1018 = vcvt.s32.f32 %v890
      %v1019 = vcvt.s32.f32 %v891
      %v1020 = vcvt.s32.f32 %v892
      %v1021 = vcvt.s32.f32 %v893
      %v1022 = vcvt.s32.f32 %v894
      %v1023 = vcvt.s32.f32 %v895
      %v1024 = vcvt.s32.f32 %v896
      %v1025 = vcvt.s32.f32 %v897
      %v1026 = vcvt.s32.f32 %v898
      %v1027 = vcvt.s32.f32 %v899
      %v1028 = vcvt.s32.f32 %v900
      %v1029 = vcvt.s32.f32 %v901
      %v1030 = vcvt.s32.f32 %v902
      %v1031 = vcvt.s32.f32 %v903
      %v1032 = vcvt.s32.f32 %v904
      %v1033 = vcvt.s32.f32 %v905
      %v1034 = vcvt.s32.f32 %v906
      %v1035 = vcvt.s32.f32 %v907
      %v1036 = vcvt.s32.f32 %v908
      %v1037 = vcvt.s32.f32 %v909
      %v1038 = vcvt.s32.f32 %v910
      %v1039 = vcvt.s32.f32 %v911
      %v1040 = vcvt.s32.f32 %v912
      %v1041 = vcvt.s32.f32 %v913
      %v1042 = vcvt.s32.f32 %v914
      %v1043 = vcvt.s32.f32 %v915
      %v1044 = vcvt.s32.f32 %v916
      %v1045 = vcvt.s32.f32 %v917
      %v1046 = vcvt.s32.f32 %v918
      %v1047 = vcvt.s32.f32 %v919
      %v1048 = vcvt.s32.f32 %v920
      %v1049 = vcvt.s32.f32 %v921
      %v1050 = vcvt.s32.f32 %v922
      %v1051 = vcvt.s32.f32 %v923
      %v1052 = vcvt.s32.f32 %v924
      %v1053 = vcvt.s32.f32 %v925
      %v1054 = vcvt.s32.f32 %v926
      %v1055 = vcvt.s32.f32 %v927
      %v1056 = vcvt.s32.f32 %v928
      %v1057 = vcvt.s32.f32 %v929
      %v1058 = vcvt.s32.f32 %v930
      %v1059 = vcvt.s32.f32 %v931
      %v1060 = vcvt.s32.f32 %v932
      %v1061 = vcvt.s32.f32 %v933
      %v1062 = vcvt.s32.f32 %v934
      %v1063 = vcvt.s32.f32 %v935
      %v1064 = vcvt.s32.f32 %v936
      %v1065 = vcvt.s32.f32 %v937
      %v1066 = vcvt.s32.f32 %v938
      %v1067 = vcvt.s32.f32 %v939
      %v1068 = vcvt.s32.f32 %v940
      %v1069 = vcvt.s32.f32 %v941
      %v1070 = vcvt.s32.f32 %v942
      %v1071 = vcvt.s32.f32 %v943
      %v1072 = vcvt.s32.f32 %v944
      %v1073 = vcvt.s32.f32 %v945
      %v1074 = vcvt.s32.f32 %v946
      %v1075 = vcvt.s32.f32 %v947
      %v1076 = vcvt.s32.f32 %v948
      %v1077 = vcvt.s32.f32 %v949
      %v1078 = vcvt.s32.f32 %v950
      %v1079 = vcvt.s32.f32 %v951
      %v1080 = vcvt.s32.f32 %v952
      %v1081 = vcvt.s32.f32 %v953
      %v1082 = vcvt.s32.f32 %v954
      %v1083 = vcvt.s32.f32 %v955
      %v1084 = vcvt.s32.f32 %v956
      %v1085 = vcvt.s32.f32 %v957
      %v1086 = vcvt.s32.f32 %v958
      %v1087 = vcvt.s32.f32 %v959
      %v1088 = vcvt.s32.f32 %v960
      %v1089 = vcvt.s32.f32 %v961
      %v1090 = vcvt.s32.f32 %v962
      %v1091 = vcvt.s32.f32 %v963
      %v1092 = vcvt.s32.f32 %v964
      %v1093 = vcvt.s32.f32 %v965
      %v1094 = vcvt.s32.f32 %v966
      %v1095 = vcvt.s32.f32 %v967
      %v1096 = vcvt.s32.f32 %v968
      %v1097 = vcvt.s32.f32 %v969
      %v1098 = vcvt.s32.f32 %v970
      %v1099 = vcvt.s32.f32 %v971
      %v1100 = vcvt.s32.f32 %v972
      %v1101 = vcvt.s32.f32 %v973
      %v1102 = vcvt.s32.f32 %v974
      %v1103 = vcvt.s32.f32 %v975
      %v1104 = vcvt.s32.f32 %v976
      %v1105 = vcvt.s32.f32 %v977
      %v1106 = vcvt.s32.f32 %v978
      %v1107 = vcvt.s32.f32 %v979
      %v1108 = vcvt.s32.f32 %v980
      %v1109 = vcvt.s32.f32 %v981
      %v1110 = vcvt.s32.f32 %v982
      %v1111 = vcvt.s32.f32 %v983
      %v1112 = vcvt.s32.f32 %v984
      %v1113 = vcvt.s32.f32 %v985
      %v1114 = vcvt.s32.f32 %v986
      %v1115 = vcvt.s32.f32 %v987
      %v1116 = vcvt.s32.f32 %v988
      %v1117 = vcvt.s32.f32 %v989
      %v1118 = vcvt.s32.f32 %v990
      %v1119 = vcvt.s32.f32 %v991
      %v1120 = vcvt.s32.f32 %v992
      %v1121 = vcvt.s32.f32 %v993
      %v1122 = vcvt.s32.f32 %v994
      %v1123 = vcvt.s32.f32 %v995
      %v1124 = vcvt.s32.f32 %v996
      %v1125 = vcvt.s32.f32 %v997
      %v1126 = vcvt.s32.f32 %v998
      %v1127 = vcvt.s32.f32 %v999
      %v1128 = vcvt.s32.f32 %v1000
      %v1129 = vcvt.s32.f32 %v1001
      %v1130 = vcvt.s32.f32 %v1002
      %v1131 = vcvt.s32.f32 %v1003
      %v1132 = vcvt.s32.f32 %v1004
      %v1133 = vcvt.s32.f32 %v1005
      %v1134 = vcvt.s32.f32 %v1006
      %v1135 = vcvt.s32.f32 %v1007
      %v1136 = vcvt.s32.f32 %v1008
      %v1137 = vpack.c.bf16 %v1013, %v1009
      %v1138 = vpack.c.bf16 %v1014, %v1010
      %v1139 = vpack.c.bf16 %v1015, %v1011
      %v1140 = vpack.c.bf16 %v1016, %v1012
      %v1141 = vpack.c.bf16 %v1021, %v1017
      %v1142 = vpack.c.bf16 %v1022, %v1018
      %v1143 = vpack.c.bf16 %v1023, %v1019
      %v1144 = vpack.c.bf16 %v1024, %v1020
      %v1145 = vpack.c.bf16 %v1029, %v1025
      %v1146 = vpack.c.bf16 %v1030, %v1026
      %v1147 = vpack.c.bf16 %v1031, %v1027
      %v1148 = vpack.c.bf16 %v1032, %v1028
      %v1149 = vpack.c.bf16 %v1037, %v1033
      %v1150 = vpack.c.bf16 %v1038, %v1034
      %v1151 = vpack.c.bf16 %v1039, %v1035
      %v1152 = vpack.c.bf16 %v1040, %v1036
      %v1153 = vpack.c.bf16 %v1045, %v1041
      %v1154 = vpack.c.bf16 %v1046, %v1042
      %v1155 = vpack.c.bf16 %v1047, %v1043
      %v1156 = vpack.c.bf16 %v1048, %v1044
      %v1157 = vpack.c.bf16 %v1053, %v1049
      %v1158 = vpack.c.bf16 %v1054, %v1050
      %v1159 = vpack.c.bf16 %v1055, %v1051
      %v1160 = vpack.c.bf16 %v1056, %v1052
      %v1161 = vpack.c.bf16 %v1061, %v1057
      %v1162 = vpack.c.bf16 %v1062, %v1058
      %v1163 = vpack.c.bf16 %v1063, %v1059
      %v1164 = vpack.c.bf16 %v1064, %v1060
      %v1165 = vpack.c.bf16 %v1069, %v1065
      %v1166 = vpack.c.bf16 %v1070, %v1066
      %v1167 = vpack.c.bf16 %v1071, %v1067
      %v1168 = vpack.c.bf16 %v1072, %v1068
      %v1169 = vpack.c.bf16 %v1077, %v1073
      %v1170 = vpack.c.bf16 %v1078, %v1074
      %v1171 = vpack.c.bf16 %v1079, %v1075
      %v1172 = vpack.c.bf16 %v1080, %v1076
      %v1173 = vpack.c.bf16 %v1085, %v1081
      %v1174 = vpack.c.bf16 %v1086, %v1082
      %v1175 = vpack.c.bf16 %v1087, %v1083
      %v1176 = vpack.c.bf16 %v1088, %v1084
      %v1177 = vpack.c.bf16 %v1093, %v1089
      %v1178 = vpack.c.bf16 %v1094, %v1090
      %v1179 = vpack.c.bf16 %v1095, %v1091
      %v1180 = vpack.c.bf16 %v1096, %v1092
      %v1181 = vpack.c.bf16 %v1101, %v1097
      %v1182 = vpack.c.bf16 %v1102, %v1098
      %v1183 = vpack.c.bf16 %v1103, %v1099
      %v1184 = vpack.c.bf16 %v1104, %v1100
      %v1185 = vpack.c.bf16 %v1109, %v1105
      %v1186 = vpack.c.bf16 %v1110, %v1106
      %v1187 = vpack.c.bf16 %v1111, %v1107
      %v1188 = vpack.c.bf16 %v1112, %v1108
      %v1189 = vpack.c.bf16 %v1117, %v1113
      %v1190 = vpack.c.bf16 %v1118, %v1114
      %v1191 = vpack.c.bf16 %v1119, %v1115
      %v1192 = vpack.c.bf16 %v1120, %v1116
      %v1193 = vpack.c.bf16 %v1125, %v1121
      %v1194 = vpack.c.bf16 %v1126, %v1122
      %v1195 = vpack.c.bf16 %v1127, %v1123
      %v1196 = vpack.c.bf16 %v1128, %v1124
      %v1197 = vpack.c.bf16 %v1133, %v1129
      %v1198 = vpack.c.bf16 %v1134, %v1130
      %v1199 = vpack.c.bf16 %v1135, %v1131
      %v1200 = vpack.c.bf16 %v1136, %v1132
      %1201 = vmatpush.bf16.msra.mxu0 %v690
      %1202 = vmatpush.bf16.msra.mxu0 %v689
      %1203 = vmatpush.bf16.msra.mxu0 %v688
      %1204 = vmatpush.bf16.msra.mxu0 %v687
      %1205 = vmatpush.bf16.msra.mxu0 %v686
      %1206 = vmatpush.bf16.msra.mxu0 %v685
      %1207 = vmatpush.bf16.msra.mxu0 %v684
      %1208 = vmatpush.bf16.msra.mxu0 %v683
      %1209 = vmatmul.bf16.gmra.mxu0 %v1137
      %v1210 = vpop.f32.mrf.mxu0
      %v1211 = vadd.f32 0.0, %v1210
      %v1212 = vpop.f32.mrf.mxu0
      %v1213 = vadd.f32 0.0, %v1212
      %1214 = vmatmul.bf16.gmra.mxu0 %v1141
      %v1215 = vpop.f32.mrf.mxu0
      %v1216 = vadd.f32 0.0, %v1215
      %v1217 = vpop.f32.mrf.mxu0
      %v1218 = vadd.f32 0.0, %v1217
      %1219 = vmatmul.bf16.gmra.mxu0 %v1145
      %v1220 = vpop.f32.mrf.mxu0
      %v1221 = vadd.f32 0.0, %v1220
      %v1222 = vpop.f32.mrf.mxu0
      %v1223 = vadd.f32 0.0, %v1222
      %1224 = vmatmul.bf16.gmra.mxu0 %v1149
      %v1225 = vpop.f32.mrf.mxu0
      %v1226 = vadd.f32 0.0, %v1225
      %v1227 = vpop.f32.mrf.mxu0
      %v1228 = vadd.f32 0.0, %v1227
      %1229 = vmatmul.bf16.gmra.mxu0 %v1153
      %v1230 = vpop.f32.mrf.mxu0
      %v1231 = vadd.f32 0.0, %v1230
      %v1232 = vpop.f32.mrf.mxu0
      %v1233 = vadd.f32 0.0, %v1232
      %1234 = vmatmul.bf16.gmra.mxu0 %v1157
      %v1235 = vpop.f32.mrf.mxu0
      %v1236 = vadd.f32 0.0, %v1235
      %v1237 = vpop.f32.mrf.mxu0
      %v1238 = vadd.f32 0.0, %v1237
      %1239 = vmatmul.bf16.gmra.mxu0 %v1161
      %v1240 = vpop.f32.mrf.mxu0
      %v1241 = vadd.f32 0.0, %v1240
      %v1242 = vpop.f32.mrf.mxu0
      %v1243 = vadd.f32 0.0, %v1242
      %1244 = vmatmul.bf16.gmra.mxu0 %v1165
      %v1245 = vpop.f32.mrf.mxu0
      %v1246 = vadd.f32 0.0, %v1245
      %v1247 = vpop.f32.mrf.mxu0
      %v1248 = vadd.f32 0.0, %v1247
      %1249 = vmatmul.bf16.gmra.mxu0 %v1169
      %v1250 = vpop.f32.mrf.mxu0
      %v1251 = vadd.f32 0.0, %v1250
      %v1252 = vpop.f32.mrf.mxu0
      %v1253 = vadd.f32 0.0, %v1252
      %1254 = vmatmul.bf16.gmra.mxu0 %v1173
      %v1255 = vpop.f32.mrf.mxu0
      %v1256 = vadd.f32 0.0, %v1255
      %v1257 = vpop.f32.mrf.mxu0
      %v1258 = vadd.f32 0.0, %v1257
      %1259 = vmatmul.bf16.gmra.mxu0 %v1177
      %v1260 = vpop.f32.mrf.mxu0
      %v1261 = vadd.f32 0.0, %v1260
      %v1262 = vpop.f32.mrf.mxu0
      %v1263 = vadd.f32 0.0, %v1262
      %1264 = vmatmul.bf16.gmra.mxu0 %v1181
      %v1265 = vpop.f32.mrf.mxu0
      %v1266 = vadd.f32 0.0, %v1265
      %v1267 = vpop.f32.mrf.mxu0
      %v1268 = vadd.f32 0.0, %v1267
      %1269 = vmatmul.bf16.gmra.mxu0 %v1185
      %v1270 = vpop.f32.mrf.mxu0
      %v1271 = vadd.f32 0.0, %v1270
      %v1272 = vpop.f32.mrf.mxu0
      %v1273 = vadd.f32 0.0, %v1272
      %1274 = vmatmul.bf16.gmra.mxu0 %v1189
      %v1275 = vpop.f32.mrf.mxu0
      %v1276 = vadd.f32 0.0, %v1275
      %v1277 = vpop.f32.mrf.mxu0
      %v1278 = vadd.f32 0.0, %v1277
      %1279 = vmatmul.bf16.gmra.mxu0 %v1193
      %v1280 = vpop.f32.mrf.mxu0
      %v1281 = vadd.f32 0.0, %v1280
      %v1282 = vpop.f32.mrf.mxu0
      %v1283 = vadd.f32 0.0, %v1282
      %1284 = vmatmul.bf16.gmra.mxu0 %v1197
      %v1285 = vpop.f32.mrf.mxu0
      %v1286 = vadd.f32 0.0, %v1285
      %v1287 = vpop.f32.mrf.mxu0
      %v1288 = vadd.f32 0.0, %v1287
      %1289 = vdwg.mxu0
      %1290 = vmatpush.bf16.msra.mxu0 %v698
      %1291 = vmatpush.bf16.msra.mxu0 %v697
      %1292 = vmatpush.bf16.msra.mxu0 %v696
      %1293 = vmatpush.bf16.msra.mxu0 %v695
      %1294 = vmatpush.bf16.msra.mxu0 %v694
      %1295 = vmatpush.bf16.msra.mxu0 %v693
      %1296 = vmatpush.bf16.msra.mxu0 %v692
      %1297 = vmatpush.bf16.msra.mxu0 %v691
      %1298 = vmatmul.bf16.gmra.mxu0 %v1138
      %v1299 = vpop.f32.mrf.mxu0
      %v1300 = vadd.f32 %v1211, %v1299
      %v1301 = vpop.f32.mrf.mxu0
      %v1302 = vadd.f32 %v1213, %v1301
      %1303 = vmatmul.bf16.gmra.mxu0 %v1142
      %v1304 = vpop.f32.mrf.mxu0
      %v1305 = vadd.f32 %v1216, %v1304
      %v1306 = vpop.f32.mrf.mxu0
      %v1307 = vadd.f32 %v1218, %v1306
      %1308 = vmatmul.bf16.gmra.mxu0 %v1146
      %v1309 = vpop.f32.mrf.mxu0
      %v1310 = vadd.f32 %v1221, %v1309
      %v1311 = vpop.f32.mrf.mxu0
      %v1312 = vadd.f32 %v1223, %v1311
      %1313 = vmatmul.bf16.gmra.mxu0 %v1150
      %v1314 = vpop.f32.mrf.mxu0
      %v1315 = vadd.f32 %v1226, %v1314
      %v1316 = vpop.f32.mrf.mxu0
      %v1317 = vadd.f32 %v1228, %v1316
      %1318 = vmatmul.bf16.gmra.mxu0 %v1154
      %v1319 = vpop.f32.mrf.mxu0
      %v1320 = vadd.f32 %v1231, %v1319
      %v1321 = vpop.f32.mrf.mxu0
      %v1322 = vadd.f32 %v1233, %v1321
      %1323 = vmatmul.bf16.gmra.mxu0 %v1158
      %v1324 = vpop.f32.mrf.mxu0
      %v1325 = vadd.f32 %v1236, %v1324
      %v1326 = vpop.f32.mrf.mxu0
      %v1327 = vadd.f32 %v1238, %v1326
      %1328 = vmatmul.bf16.gmra.mxu0 %v1162
      %v1329 = vpop.f32.mrf.mxu0
      %v1330 = vadd.f32 %v1241, %v1329
      %v1331 = vpop.f32.mrf.mxu0
      %v1332 = vadd.f32 %v1243, %v1331
      %1333 = vmatmul.bf16.gmra.mxu0 %v1166
      %v1334 = vpop.f32.mrf.mxu0
      %v1335 = vadd.f32 %v1246, %v1334
      %v1336 = vpop.f32.mrf.mxu0
      %v1337 = vadd.f32 %v1248, %v1336
      %1338 = vmatmul.bf16.gmra.mxu0 %v1170
      %v1339 = vpop.f32.mrf.mxu0
      %v1340 = vadd.f32 %v1251, %v1339
      %v1341 = vpop.f32.mrf.mxu0
      %v1342 = vadd.f32 %v1253, %v1341
      %1343 = vmatmul.bf16.gmra.mxu0 %v1174
      %v1344 = vpop.f32.mrf.mxu0
      %v1345 = vadd.f32 %v1256, %v1344
      %v1346 = vpop.f32.mrf.mxu0
      %v1347 = vadd.f32 %v1258, %v1346
      %1348 = vmatmul.bf16.gmra.mxu0 %v1178
      %v1349 = vpop.f32.mrf.mxu0
      %v1350 = vadd.f32 %v1261, %v1349
      %v1351 = vpop.f32.mrf.mxu0
      %v1352 = vadd.f32 %v1263, %v1351
      %1353 = vmatmul.bf16.gmra.mxu0 %v1182
      %v1354 = vpop.f32.mrf.mxu0
      %v1355 = vadd.f32 %v1266, %v1354
      %v1356 = vpop.f32.mrf.mxu0
      %v1357 = vadd.f32 %v1268, %v1356
      %1358 = vmatmul.bf16.gmra.mxu0 %v1186
      %v1359 = vpop.f32.mrf.mxu0
      %v1360 = vadd.f32 %v1271, %v1359
      %v1361 = vpop.f32.mrf.mxu0
      %v1362 = vadd.f32 %v1273, %v1361
      %1363 = vmatmul.bf16.gmra.mxu0 %v1190
      %v1364 = vpop.f32.mrf.mxu0
      %v1365 = vadd.f32 %v1276, %v1364
      %v1366 = vpop.f32.mrf.mxu0
      %v1367 = vadd.f32 %v1278, %v1366
      %1368 = vmatmul.bf16.gmra.mxu0 %v1194
      %v1369 = vpop.f32.mrf.mxu0
      %v1370 = vadd.f32 %v1281, %v1369
      %v1371 = vpop.f32.mrf.mxu0
      %v1372 = vadd.f32 %v1283, %v1371
      %1373 = vmatmul.bf16.gmra.mxu0 %v1198
      %v1374 = vpop.f32.mrf.mxu0
      %v1375 = vadd.f32 %v1286, %v1374
      %v1376 = vpop.f32.mrf.mxu0
      %v1377 = vadd.f32 %v1288, %v1376
      %1378 = vdwg.mxu0
      %1379 = vmatpush.bf16.msra.mxu0 %v706
      %1380 = vmatpush.bf16.msra.mxu0 %v705
      %1381 = vmatpush.bf16.msra.mxu0 %v704
      %1382 = vmatpush.bf16.msra.mxu0 %v703
      %1383 = vmatpush.bf16.msra.mxu0 %v702
      %1384 = vmatpush.bf16.msra.mxu0 %v701
      %1385 = vmatpush.bf16.msra.mxu0 %v700
      %1386 = vmatpush.bf16.msra.mxu0 %v699
      %1387 = vmatmul.bf16.gmra.mxu0 %v1139
      %v1388 = vpop.f32.mrf.mxu0
      %v1389 = vadd.f32 %v1300, %v1388
      %v1390 = vpop.f32.mrf.mxu0
      %v1391 = vadd.f32 %v1302, %v1390
      %1392 = vmatmul.bf16.gmra.mxu0 %v1143
      %v1393 = vpop.f32.mrf.mxu0
      %v1394 = vadd.f32 %v1305, %v1393
      %v1395 = vpop.f32.mrf.mxu0
      %v1396 = vadd.f32 %v1307, %v1395
      %1397 = vmatmul.bf16.gmra.mxu0 %v1147
      %v1398 = vpop.f32.mrf.mxu0
      %v1399 = vadd.f32 %v1310, %v1398
      %v1400 = vpop.f32.mrf.mxu0
      %v1401 = vadd.f32 %v1312, %v1400
      %1402 = vmatmul.bf16.gmra.mxu0 %v1151
      %v1403 = vpop.f32.mrf.mxu0
      %v1404 = vadd.f32 %v1315, %v1403
      %v1405 = vpop.f32.mrf.mxu0
      %v1406 = vadd.f32 %v1317, %v1405
      %1407 = vmatmul.bf16.gmra.mxu0 %v1155
      %v1408 = vpop.f32.mrf.mxu0
      %v1409 = vadd.f32 %v1320, %v1408
      %v1410 = vpop.f32.mrf.mxu0
      %v1411 = vadd.f32 %v1322, %v1410
      %1412 = vmatmul.bf16.gmra.mxu0 %v1159
      %v1413 = vpop.f32.mrf.mxu0
      %v1414 = vadd.f32 %v1325, %v1413
      %v1415 = vpop.f32.mrf.mxu0
      %v1416 = vadd.f32 %v1327, %v1415
      %1417 = vmatmul.bf16.gmra.mxu0 %v1163
      %v1418 = vpop.f32.mrf.mxu0
      %v1419 = vadd.f32 %v1330, %v1418
      %v1420 = vpop.f32.mrf.mxu0
      %v1421 = vadd.f32 %v1332, %v1420
      %1422 = vmatmul.bf16.gmra.mxu0 %v1167
      %v1423 = vpop.f32.mrf.mxu0
      %v1424 = vadd.f32 %v1335, %v1423
      %v1425 = vpop.f32.mrf.mxu0
      %v1426 = vadd.f32 %v1337, %v1425
      %1427 = vmatmul.bf16.gmra.mxu0 %v1171
      %v1428 = vpop.f32.mrf.mxu0
      %v1429 = vadd.f32 %v1340, %v1428
      %v1430 = vpop.f32.mrf.mxu0
      %v1431 = vadd.f32 %v1342, %v1430
      %1432 = vmatmul.bf16.gmra.mxu0 %v1175
      %v1433 = vpop.f32.mrf.mxu0
      %v1434 = vadd.f32 %v1345, %v1433
      %v1435 = vpop.f32.mrf.mxu0
      %v1436 = vadd.f32 %v1347, %v1435
      %1437 = vmatmul.bf16.gmra.mxu0 %v1179
      %v1438 = vpop.f32.mrf.mxu0
      %v1439 = vadd.f32 %v1350, %v1438
      %v1440 = vpop.f32.mrf.mxu0
      %v1441 = vadd.f32 %v1352, %v1440
      %1442 = vmatmul.bf16.gmra.mxu0 %v1183
      %v1443 = vpop.f32.mrf.mxu0
      %v1444 = vadd.f32 %v1355, %v1443
      %v1445 = vpop.f32.mrf.mxu0
      %v1446 = vadd.f32 %v1357, %v1445
      %1447 = vmatmul.bf16.gmra.mxu0 %v1187
      %v1448 = vpop.f32.mrf.mxu0
      %v1449 = vadd.f32 %v1360, %v1448
      %v1450 = vpop.f32.mrf.mxu0
      %v1451 = vadd.f32 %v1362, %v1450
      %1452 = vmatmul.bf16.gmra.mxu0 %v1191
      %v1453 = vpop.f32.mrf.mxu0
      %v1454 = vadd.f32 %v1365, %v1453
      %v1455 = vpop.f32.mrf.mxu0
      %v1456 = vadd.f32 %v1367, %v1455
      %1457 = vmatmul.bf16.gmra.mxu0 %v1195
      %v1458 = vpop.f32.mrf.mxu0
      %v1459 = vadd.f32 %v1370, %v1458
      %v1460 = vpop.f32.mrf.mxu0
      %v1461 = vadd.f32 %v1372, %v1460
      %1462 = vmatmul.bf16.gmra.mxu0 %v1199
      %v1463 = vpop.f32.mrf.mxu0
      %v1464 = vadd.f32 %v1375, %v1463
      %v1465 = vpop.f32.mrf.mxu0
      %v1466 = vadd.f32 %v1377, %v1465
      %1467 = vdwg.mxu0
      %1468 = vmatpush.bf16.msra.mxu0 %v714
      %1469 = vmatpush.bf16.msra.mxu0 %v713
      %1470 = vmatpush.bf16.msra.mxu0 %v712
      %1471 = vmatpush.bf16.msra.mxu0 %v711
      %1472 = vmatpush.bf16.msra.mxu0 %v710
      %1473 = vmatpush.bf16.msra.mxu0 %v709
      %1474 = vmatpush.bf16.msra.mxu0 %v708
      %1475 = vmatpush.bf16.msra.mxu0 %v707
      %1476 = vmatmul.bf16.gmra.mxu0 %v1140
      %v1477 = vpop.f32.mrf.mxu0
      %v1478 = vadd.f32 %v1389, %v1477
      %v1479 = vpop.f32.mrf.mxu0
      %v1480 = vadd.f32 %v1391, %v1479
      %1481 = vmatmul.bf16.gmra.mxu0 %v1144
      %v1482 = vpop.f32.mrf.mxu0
      %v1483 = vadd.f32 %v1394, %v1482
      %v1484 = vpop.f32.mrf.mxu0
      %v1485 = vadd.f32 %v1396, %v1484
      %1486 = vmatmul.bf16.gmra.mxu0 %v1148
      %v1487 = vpop.f32.mrf.mxu0
      %v1488 = vadd.f32 %v1399, %v1487
      %v1489 = vpop.f32.mrf.mxu0
      %v1490 = vadd.f32 %v1401, %v1489
      %1491 = vmatmul.bf16.gmra.mxu0 %v1152
      %v1492 = vpop.f32.mrf.mxu0
      %v1493 = vadd.f32 %v1404, %v1492
      %v1494 = vpop.f32.mrf.mxu0
      %v1495 = vadd.f32 %v1406, %v1494
      %1496 = vmatmul.bf16.gmra.mxu0 %v1156
      %v1497 = vpop.f32.mrf.mxu0
      %v1498 = vadd.f32 %v1409, %v1497
      %v1499 = vpop.f32.mrf.mxu0
      %v1500 = vadd.f32 %v1411, %v1499
      %1501 = vmatmul.bf16.gmra.mxu0 %v1160
      %v1502 = vpop.f32.mrf.mxu0
      %v1503 = vadd.f32 %v1414, %v1502
      %v1504 = vpop.f32.mrf.mxu0
      %v1505 = vadd.f32 %v1416, %v1504
      %1506 = vmatmul.bf16.gmra.mxu0 %v1164
      %v1507 = vpop.f32.mrf.mxu0
      %v1508 = vadd.f32 %v1419, %v1507
      %v1509 = vpop.f32.mrf.mxu0
      %v1510 = vadd.f32 %v1421, %v1509
      %1511 = vmatmul.bf16.gmra.mxu0 %v1168
      %v1512 = vpop.f32.mrf.mxu0
      %v1513 = vadd.f32 %v1424, %v1512
      %v1514 = vpop.f32.mrf.mxu0
      %v1515 = vadd.f32 %v1426, %v1514
      %1516 = vmatmul.bf16.gmra.mxu0 %v1172
      %v1517 = vpop.f32.mrf.mxu0
      %v1518 = vadd.f32 %v1429, %v1517
      %v1519 = vpop.f32.mrf.mxu0
      %v1520 = vadd.f32 %v1431, %v1519
      %1521 = vmatmul.bf16.gmra.mxu0 %v1176
      %v1522 = vpop.f32.mrf.mxu0
      %v1523 = vadd.f32 %v1434, %v1522
      %v1524 = vpop.f32.mrf.mxu0
      %v1525 = vadd.f32 %v1436, %v1524
      %1526 = vmatmul.bf16.gmra.mxu0 %v1180
      %v1527 = vpop.f32.mrf.mxu0
      %v1528 = vadd.f32 %v1439, %v1527
      %v1529 = vpop.f32.mrf.mxu0
      %v1530 = vadd.f32 %v1441, %v1529
      %1531 = vmatmul.bf16.gmra.mxu0 %v1184
      %v1532 = vpop.f32.mrf.mxu0
      %v1533 = vadd.f32 %v1444, %v1532
      %v1534 = vpop.f32.mrf.mxu0
      %v1535 = vadd.f32 %v1446, %v1534
      %1536 = vmatmul.bf16.gmra.mxu0 %v1188
      %v1537 = vpop.f32.mrf.mxu0
      %v1538 = vadd.f32 %v1449, %v1537
      %v1539 = vpop.f32.mrf.mxu0
      %v1540 = vadd.f32 %v1451, %v1539
      %1541 = vmatmul.bf16.gmra.mxu0 %v1192
      %v1542 = vpop.f32.mrf.mxu0
      %v1543 = vadd.f32 %v1454, %v1542
      %v1544 = vpop.f32.mrf.mxu0
      %v1545 = vadd.f32 %v1456, %v1544
      %1546 = vmatmul.bf16.gmra.mxu0 %v1196
      %v1547 = vpop.f32.mrf.mxu0
      %v1548 = vadd.f32 %v1459, %v1547
      %v1549 = vpop.f32.mrf.mxu0
      %v1550 = vadd.f32 %v1461, %v1549
      %1551 = vmatmul.bf16.gmra.mxu0 %v1200
      %v1552 = vpop.f32.mrf.mxu0
      %v1553 = vadd.f32 %v1464, %v1552
      %v1554 = vpop.f32.mrf.mxu0
      %v1555 = vadd.f32 %v1466, %v1554
      %1556 = vdwg.mxu0
      %p1557 = scmp.eq.s32.totalorder %s32, 0
      // Predicated region
      $region77: #{graph_net_block.2} parent=75 // pred_check
        %p1558 = pneg %p1557
      $region78: #{graph_net_block.2} parent=75 // pred_check_branch
        %1560 = sbr.rel (%p1558) target = $region80
      $region79: #{graph_net_block.2} parent=75 // pred_region
        %1561 = vst [vmem:[%s618] sm:$0xff] 0.0
        %1562 = vst [vmem:[%s618 + $0x8] sm:$0xff] 0.0
        %1563 = vst [vmem:[%s618 + $0x10] sm:$0xff] 0.0
        %1564 = vst [vmem:[%s618 + $0x18] sm:$0xff] 0.0
        %1565 = vst [vmem:[%s618 + $0x20] sm:$0xff] 0.0
        %1566 = vst [vmem:[%s618 + $0x28] sm:$0xff] 0.0
        %1567 = vst [vmem:[%s618 + $0x30] sm:$0xff] 0.0
        %1568 = vst [vmem:[%s618 + $0x38] sm:$0xff] 0.0
        %1569 = vst [vmem:[%s618 + $0x40] sm:$0xff] 0.0
        %1570 = vst [vmem:[%s618 + $0x48] sm:$0xff] 0.0
        %1571 = vst [vmem:[%s618 + $0x50] sm:$0xff] 0.0
        %1572 = vst [vmem:[%s618 + $0x58] sm:$0xff] 0.0
        %1573 = vst [vmem:[%s618 + $0x60] sm:$0xff] 0.0
        %1574 = vst [vmem:[%s618 + $0x68] sm:$0xff] 0.0
        %1575 = vst [vmem:[%s618 + $0x70] sm:$0xff] 0.0
        %1576 = vst [vmem:[%s618 + $0x78] sm:$0xff] 0.0
        %1577 = vst [vmem:[%s618 + $0x80] sm:$0xff] 0.0
        %1578 = vst [vmem:[%s618 + $0x88] sm:$0xff] 0.0
        %1579 = vst [vmem:[%s618 + $0x90] sm:$0xff] 0.0
        %1580 = vst [vmem:[%s618 + $0x98] sm:$0xff] 0.0
        %1581 = vst [vmem:[%s618 + $0xa0] sm:$0xff] 0.0
        %1582 = vst [vmem:[%s618 + $0xa8] sm:$0xff] 0.0
        %1583 = vst [vmem:[%s618 + $0xb0] sm:$0xff] 0.0
        %1584 = vst [vmem:[%s618 + $0xb8] sm:$0xff] 0.0
        %1585 = vst [vmem:[%s618 + $0xc0] sm:$0xff] 0.0
        %1586 = vst [vmem:[%s618 + $0xc8] sm:$0xff] 0.0
        %1587 = vst [vmem:[%s618 + $0xd0] sm:$0xff] 0.0
        %1588 = vst [vmem:[%s618 + $0xd8] sm:$0xff] 0.0
        %1589 = vst [vmem:[%s618 + $0xe0] sm:$0xff] 0.0
        %1590 = vst [vmem:[%s618 + $0xe8] sm:$0xff] 0.0
        %1591 = vst [vmem:[%s618 + $0xf0] sm:$0xff] 0.0
        %1592 = vst [vmem:[%s618 + $0xf8] sm:$0xff] 0.0
      $region80: #{graph_net_block.2} parent=75 // pred_fallthru
        _
      %v1593 = vld [vmem:[%s618] sm:$0xff]
      %v1594 = vld [vmem:[%s618 + $0x8] sm:$0xff]
      %v1595 = vld [vmem:[%s618 + $0x10] sm:$0xff]
      %v1596 = vld [vmem:[%s618 + $0x18] sm:$0xff]
      %v1597 = vld [vmem:[%s618 + $0x20] sm:$0xff]
      %v1598 = vld [vmem:[%s618 + $0x28] sm:$0xff]
      %v1599 = vld [vmem:[%s618 + $0x30] sm:$0xff]
      %v1600 = vld [vmem:[%s618 + $0x38] sm:$0xff]
      %v1601 = vld [vmem:[%s618 + $0x40] sm:$0xff]
      %v1602 = vld [vmem:[%s618 + $0x48] sm:$0xff]
      %v1603 = vld [vmem:[%s618 + $0x50] sm:$0xff]
      %v1604 = vld [vmem:[%s618 + $0x58] sm:$0xff]
      %v1605 = vld [vmem:[%s618 + $0x60] sm:$0xff]
      %v1606 = vld [vmem:[%s618 + $0x68] sm:$0xff]
      %v1607 = vld [vmem:[%s618 + $0x70] sm:$0xff]
      %v1608 = vld [vmem:[%s618 + $0x78] sm:$0xff]
      %v1609 = vld [vmem:[%s618 + $0x80] sm:$0xff]
      %v1610 = vld [vmem:[%s618 + $0x88] sm:$0xff]
      %v1611 = vld [vmem:[%s618 + $0x90] sm:$0xff]
      %v1612 = vld [vmem:[%s618 + $0x98] sm:$0xff]
      %v1613 = vld [vmem:[%s618 + $0xa0] sm:$0xff]
      %v1614 = vld [vmem:[%s618 + $0xa8] sm:$0xff]
      %v1615 = vld [vmem:[%s618 + $0xb0] sm:$0xff]
      %v1616 = vld [vmem:[%s618 + $0xb8] sm:$0xff]
      %v1617 = vld [vmem:[%s618 + $0xc0] sm:$0xff]
      %v1618 = vld [vmem:[%s618 + $0xc8] sm:$0xff]
      %v1619 = vld [vmem:[%s618 + $0xd0] sm:$0xff]
      %v1620 = vld [vmem:[%s618 + $0xd8] sm:$0xff]
      %v1621 = vld [vmem:[%s618 + $0xe0] sm:$0xff]
      %v1622 = vld [vmem:[%s618 + $0xe8] sm:$0xff]
      %v1623 = vld [vmem:[%s618 + $0xf0] sm:$0xff]
      %v1624 = vld [vmem:[%s618 + $0xf8] sm:$0xff]
      %v1625 = vadd.f32 %v1593, %v1478
      %v1626 = vadd.f32 %v1594, %v1480
      %v1627 = vadd.f32 %v1595, %v1483
      %v1628 = vadd.f32 %v1596, %v1485
      %v1629 = vadd.f32 %v1597, %v1488
      %v1630 = vadd.f32 %v1598, %v1490
      %v1631 = vadd.f32 %v1599, %v1493
      %v1632 = vadd.f32 %v1600, %v1495
      %v1633 = vadd.f32 %v1601, %v1498
      %v1634 = vadd.f32 %v1602, %v1500
      %v1635 = vadd.f32 %v1603, %v1503
      %v1636 = vadd.f32 %v1604, %v1505
      %v1637 = vadd.f32 %v1605, %v1508
      %v1638 = vadd.f32 %v1606, %v1510
      %v1639 = vadd.f32 %v1607, %v1513
      %v1640 = vadd.f32 %v1608, %v1515
      %v1641 = vadd.f32 %v1609, %v1518
      %v1642 = vadd.f32 %v1610, %v1520
      %v1643 = vadd.f32 %v1611, %v1523
      %v1644 = vadd.f32 %v1612, %v1525
      %v1645 = vadd.f32 %v1613, %v1528
      %v1646 = vadd.f32 %v1614, %v1530
      %v1647 = vadd.f32 %v1615, %v1533
      %v1648 = vadd.f32 %v1616, %v1535
      %v1649 = vadd.f32 %v1617, %v1538
      %v1650 = vadd.f32 %v1618, %v1540
      %v1651 = vadd.f32 %v1619, %v1543
      %v1652 = vadd.f32 %v1620, %v1545
      %v1653 = vadd.f32 %v1621, %v1548
      %v1654 = vadd.f32 %v1622, %v1550
      %v1655 = vadd.f32 %v1623, %v1553
      %v1656 = vadd.f32 %v1624, %v1555
      %1657 = vst [vmem:[%s618] sm:$0xff] %v1625
      %1658 = vst [vmem:[%s618 + $0x8] sm:$0xff] %v1626
      %1659 = vst [vmem:[%s618 + $0x10] sm:$0xff] %v1627
      %1660 = vst [vmem:[%s618 + $0x18] sm:$0xff] %v1628
      %1661 = vst [vmem:[%s618 + $0x20] sm:$0xff] %v1629
      %1662 = vst [vmem:[%s618 + $0x28] sm:$0xff] %v1630
      %1663 = vst [vmem:[%s618 + $0x30] sm:$0xff] %v1631
      %1664 = vst [vmem:[%s618 + $0x38] sm:$0xff] %v1632
      %1665 = vst [vmem:[%s618 + $0x40] sm:$0xff] %v1633
      %1666 = vst [vmem:[%s618 + $0x48] sm:$0xff] %v1634
      %1667 = vst [vmem:[%s618 + $0x50] sm:$0xff] %v1635
      %1668 = vst [vmem:[%s618 + $0x58] sm:$0xff] %v1636
      %1669 = vst [vmem:[%s618 + $0x60] sm:$0xff] %v1637
      %1670 = vst [vmem:[%s618 + $0x68] sm:$0xff] %v1638
      %1671 = vst [vmem:[%s618 + $0x70] sm:$0xff] %v1639
      %1672 = vst [vmem:[%s618 + $0x78] sm:$0xff] %v1640
      %1673 = vst [vmem:[%s618 + $0x80] sm:$0xff] %v1641
      %1674 = vst [vmem:[%s618 + $0x88] sm:$0xff] %v1642
      %1675 = vst [vmem:[%s618 + $0x90] sm:$0xff] %v1643
      %1676 = vst [vmem:[%s618 + $0x98] sm:$0xff] %v1644
      %1677 = vst [vmem:[%s618 + $0xa0] sm:$0xff] %v1645
      %1678 = vst [vmem:[%s618 + $0xa8] sm:$0xff] %v1646
      %1679 = vst [vmem:[%s618 + $0xb0] sm:$0xff] %v1647
      %1680 = vst [vmem:[%s618 + $0xb8] sm:$0xff] %v1648
      %1681 = vst [vmem:[%s618 + $0xc0] sm:$0xff] %v1649
      %1682 = vst [vmem:[%s618 + $0xc8] sm:$0xff] %v1650
      %1683 = vst [vmem:[%s618 + $0xd0] sm:$0xff] %v1651
      %1684 = vst [vmem:[%s618 + $0xd8] sm:$0xff] %v1652
      %1685 = vst [vmem:[%s618 + $0xe0] sm:$0xff] %v1653
      %1686 = vst [vmem:[%s618 + $0xe8] sm:$0xff] %v1654
      %1687 = vst [vmem:[%s618 + $0xf0] sm:$0xff] %v1655
      %1688 = vst [vmem:[%s618 + $0xf8] sm:$0xff] %v1656
      %v1689 = vlaneseq
      %v1690 = vand.u32 %v1689, 127
      %v1691 = vadd.s32 %v1690, 128
      %v1692 = vld [vmem:[%s588] sm:$0xff]
      %v1693 = vld [vmem:[%s588 + $0x8] sm:$0xff]
      %v1694 = vld [vmem:[%s588 + $0x10] sm:$0xff]
      %v1695 = vld [vmem:[%s588 + $0x18] sm:$0xff]
      %v1696 = vld [vmem:[%s588 + $0x20] sm:$0xff]
      %v1697 = vld [vmem:[%s588 + $0x28] sm:$0xff]
      %v1698 = vld [vmem:[%s588 + $0x30] sm:$0xff]
      %v1699 = vld [vmem:[%s588 + $0x38] sm:$0xff]
      %v1700 = vld [vmem:[%s588 + $0x40] sm:$0xff]
      %v1701 = vld [vmem:[%s588 + $0x48] sm:$0xff]
      %v1702 = vld [vmem:[%s588 + $0x50] sm:$0xff]
      %v1703 = vld [vmem:[%s588 + $0x58] sm:$0xff]
      %v1704 = vld [vmem:[%s588 + $0x60] sm:$0xff]
      %v1705 = vld [vmem:[%s588 + $0x68] sm:$0xff]
      %v1706 = vld [vmem:[%s588 + $0x70] sm:$0xff]
      %v1707 = vld [vmem:[%s588 + $0x78] sm:$0xff]
      %v1708 = vld [vmem:[%s588 + $0x80] sm:$0xff]
      %v1709 = vld [vmem:[%s588 + $0x88] sm:$0xff]
      %v1710 = vld [vmem:[%s588 + $0x90] sm:$0xff]
      %v1711 = vld [vmem:[%s588 + $0x98] sm:$0xff]
      %v1712 = vld [vmem:[%s588 + $0xa0] sm:$0xff]
      %v1713 = vld [vmem:[%s588 + $0xa8] sm:$0xff]
      %v1714 = vld [vmem:[%s588 + $0xb0] sm:$0xff]
      %v1715 = vld [vmem:[%s588 + $0xb8] sm:$0xff]
      %v1716 = vld [vmem:[%s588 + $0xc0] sm:$0xff]
      %v1717 = vld [vmem:[%s588 + $0xc8] sm:$0xff]
      %v1718 = vld [vmem:[%s588 + $0xd0] sm:$0xff]
      %v1719 = vld [vmem:[%s588 + $0xd8] sm:$0xff]
      %v1720 = vld [vmem:[%s588 + $0xe0] sm:$0xff]
      %v1721 = vld [vmem:[%s588 + $0xe8] sm:$0xff]
      %v1722 = vld [vmem:[%s588 + $0xf0] sm:$0xff]
      %v1723 = vld [vmem:[%s588 + $0xf8] sm:$0xff]
      %v1724 = vld [vmem:[%s588 + $0x100] sm:$0xff]
      %v1725 = vld [vmem:[%s588 + $0x108] sm:$0xff]
      %v1726 = vld [vmem:[%s588 + $0x110] sm:$0xff]
      %v1727 = vld [vmem:[%s588 + $0x118] sm:$0xff]
      %v1728 = vld [vmem:[%s588 + $0x120] sm:$0xff]
      %v1729 = vld [vmem:[%s588 + $0x128] sm:$0xff]
      %v1730 = vld [vmem:[%s588 + $0x130] sm:$0xff]
      %v1731 = vld [vmem:[%s588 + $0x138] sm:$0xff]
      %v1732 = vld [vmem:[%s588 + $0x140] sm:$0xff]
      %v1733 = vld [vmem:[%s588 + $0x148] sm:$0xff]
      %v1734 = vld [vmem:[%s588 + $0x150] sm:$0xff]
      %v1735 = vld [vmem:[%s588 + $0x158] sm:$0xff]
      %v1736 = vld [vmem:[%s588 + $0x160] sm:$0xff]
      %v1737 = vld [vmem:[%s588 + $0x168] sm:$0xff]
      %v1738 = vld [vmem:[%s588 + $0x170] sm:$0xff]
      %v1739 = vld [vmem:[%s588 + $0x178] sm:$0xff]
      %v1740 = vld [vmem:[%s588 + $0x180] sm:$0xff]
      %v1741 = vld [vmem:[%s588 + $0x188] sm:$0xff]
      %v1742 = vld [vmem:[%s588 + $0x190] sm:$0xff]
      %v1743 = vld [vmem:[%s588 + $0x198] sm:$0xff]
      %v1744 = vld [vmem:[%s588 + $0x1a0] sm:$0xff]
      %v1745 = vld [vmem:[%s588 + $0x1a8] sm:$0xff]
      %v1746 = vld [vmem:[%s588 + $0x1b0] sm:$0xff]
      %v1747 = vld [vmem:[%s588 + $0x1b8] sm:$0xff]
      %v1748 = vld [vmem:[%s588 + $0x1c0] sm:$0xff]
      %v1749 = vld [vmem:[%s588 + $0x1c8] sm:$0xff]
      %v1750 = vld [vmem:[%s588 + $0x1d0] sm:$0xff]
      %v1751 = vld [vmem:[%s588 + $0x1d8] sm:$0xff]
      %v1752 = vld [vmem:[%s588 + $0x1e0] sm:$0xff]
      %v1753 = vld [vmem:[%s588 + $0x1e8] sm:$0xff]
      %v1754 = vld [vmem:[%s588 + $0x1f0] sm:$0xff]
      %v1755 = vld [vmem:[%s588 + $0x1f8] sm:$0xff]
      %1756 = vset.pattern.permute.xlu0 0
      %1757 = vperm.xlu0 %1756, %v1692
      %v1758 = vpop.permute.xlu0 %1757
      %1759 = vset.pattern.permute.xlu0 0
      %1760 = vperm.xlu0 %1759, %v1693
      %v1761 = vpop.permute.xlu0 %1760
      %1762 = vset.pattern.permute.xlu0 0
      %1763 = vperm.xlu0 %1762, %v1694
      %v1764 = vpop.permute.xlu0 %1763
      %1765 = vset.pattern.permute.xlu0 0
      %1766 = vperm.xlu0 %1765, %v1695
      %v1767 = vpop.permute.xlu0 %1766
      %1768 = vset.pattern.permute.xlu0 0
      %1769 = vperm.xlu0 %1768, %v1696
      %v1770 = vpop.permute.xlu0 %1769
      %1771 = vset.pattern.permute.xlu0 0
      %1772 = vperm.xlu0 %1771, %v1697
      %v1773 = vpop.permute.xlu0 %1772
      %1774 = vset.pattern.permute.xlu0 0
      %1775 = vperm.xlu0 %1774, %v1698
      %v1776 = vpop.permute.xlu0 %1775
      %1777 = vset.pattern.permute.xlu0 0
      %1778 = vperm.xlu0 %1777, %v1699
      %v1779 = vpop.permute.xlu0 %1778
      %1780 = vset.pattern.permute.xlu0 0
      %1781 = vperm.xlu0 %1780, %v1700
      %v1782 = vpop.permute.xlu0 %1781
      %1783 = vset.pattern.permute.xlu0 0
      %1784 = vperm.xlu0 %1783, %v1701
      %v1785 = vpop.permute.xlu0 %1784
      %1786 = vset.pattern.permute.xlu0 0
      %1787 = vperm.xlu0 %1786, %v1702
      %v1788 = vpop.permute.xlu0 %1787
      %1789 = vset.pattern.permute.xlu0 0
      %1790 = vperm.xlu0 %1789, %v1703
      %v1791 = vpop.permute.xlu0 %1790
      %1792 = vset.pattern.permute.xlu0 0
      %1793 = vperm.xlu0 %1792, %v1704
      %v1794 = vpop.permute.xlu0 %1793
      %1795 = vset.pattern.permute.xlu0 0
      %1796 = vperm.xlu0 %1795, %v1705
      %v1797 = vpop.permute.xlu0 %1796
      %1798 = vset.pattern.permute.xlu0 0
      %1799 = vperm.xlu0 %1798, %v1706
      %v1800 = vpop.permute.xlu0 %1799
      %1801 = vset.pattern.permute.xlu0 0
      %1802 = vperm.xlu0 %1801, %v1707
      %v1803 = vpop.permute.xlu0 %1802
      %1804 = vset.pattern.permute.xlu0 0
      %1805 = vperm.xlu0 %1804, %v1708
      %v1806 = vpop.permute.xlu0 %1805
      %1807 = vset.pattern.permute.xlu0 0
      %1808 = vperm.xlu0 %1807, %v1709
      %v1809 = vpop.permute.xlu0 %1808
      %1810 = vset.pattern.permute.xlu0 0
      %1811 = vperm.xlu0 %1810, %v1710
      %v1812 = vpop.permute.xlu0 %1811
      %1813 = vset.pattern.permute.xlu0 0
      %1814 = vperm.xlu0 %1813, %v1711
      %v1815 = vpop.permute.xlu0 %1814
      %1816 = vset.pattern.permute.xlu0 0
      %1817 = vperm.xlu0 %1816, %v1712
      %v1818 = vpop.permute.xlu0 %1817
      %1819 = vset.pattern.permute.xlu0 0
      %1820 = vperm.xlu0 %1819, %v1713
      %v1821 = vpop.permute.xlu0 %1820
      %1822 = vset.pattern.permute.xlu0 0
      %1823 = vperm.xlu0 %1822, %v1714
      %v1824 = vpop.permute.xlu0 %1823
      %1825 = vset.pattern.permute.xlu0 0
      %1826 = vperm.xlu0 %1825, %v1715
      %v1827 = vpop.permute.xlu0 %1826
      %1828 = vset.pattern.permute.xlu0 0
      %1829 = vperm.xlu0 %1828, %v1716
      %v1830 = vpop.permute.xlu0 %1829
      %1831 = vset.pattern.permute.xlu0 0
      %1832 = vperm.xlu0 %1831, %v1717
      %v1833 = vpop.permute.xlu0 %1832
      %1834 = vset.pattern.permute.xlu0 0
      %1835 = vperm.xlu0 %1834, %v1718
      %v1836 = vpop.permute.xlu0 %1835
      %1837 = vset.pattern.permute.xlu0 0
      %1838 = vperm.xlu0 %1837, %v1719
      %v1839 = vpop.permute.xlu0 %1838
      %1840 = vset.pattern.permute.xlu0 0
      %1841 = vperm.xlu0 %1840, %v1720
      %v1842 = vpop.permute.xlu0 %1841
      %1843 = vset.pattern.permute.xlu0 0
      %1844 = vperm.xlu0 %1843, %v1721
      %v1845 = vpop.permute.xlu0 %1844
      %1846 = vset.pattern.permute.xlu0 0
      %1847 = vperm.xlu0 %1846, %v1722
      %v1848 = vpop.permute.xlu0 %1847
      %1849 = vset.pattern.permute.xlu0 0
      %1850 = vperm.xlu0 %1849, %v1723
      %v1851 = vpop.permute.xlu0 %1850
      %1852 = vset.pattern.permute.xlu0 0
      %1853 = vperm.xlu0 %1852, %v1724
      %v1854 = vpop.permute.xlu0 %1853
      %1855 = vset.pattern.permute.xlu0 0
      %1856 = vperm.xlu0 %1855, %v1725
      %v1857 = vpop.permute.xlu0 %1856
      %1858 = vset.pattern.permute.xlu0 0
      %1859 = vperm.xlu0 %1858, %v1726
      %v1860 = vpop.permute.xlu0 %1859
      %1861 = vset.pattern.permute.xlu0 0
      %1862 = vperm.xlu0 %1861, %v1727
      %v1863 = vpop.permute.xlu0 %1862
      %1864 = vset.pattern.permute.xlu0 0
      %1865 = vperm.xlu0 %1864, %v1728
      %v1866 = vpop.permute.xlu0 %1865
      %1867 = vset.pattern.permute.xlu0 0
      %1868 = vperm.xlu0 %1867, %v1729
      %v1869 = vpop.permute.xlu0 %1868
      %1870 = vset.pattern.permute.xlu0 0
      %1871 = vperm.xlu0 %1870, %v1730
      %v1872 = vpop.permute.xlu0 %1871
      %1873 = vset.pattern.permute.xlu0 0
      %1874 = vperm.xlu0 %1873, %v1731
      %v1875 = vpop.permute.xlu0 %1874
      %1876 = vset.pattern.permute.xlu0 0
      %1877 = vperm.xlu0 %1876, %v1732
      %v1878 = vpop.permute.xlu0 %1877
      %1879 = vset.pattern.permute.xlu0 0
      %1880 = vperm.xlu0 %1879, %v1733
      %v1881 = vpop.permute.xlu0 %1880
      %1882 = vset.pattern.permute.xlu0 0
      %1883 = vperm.xlu0 %1882, %v1734
      %v1884 = vpop.permute.xlu0 %1883
      %1885 = vset.pattern.permute.xlu0 0
      %1886 = vperm.xlu0 %1885, %v1735
      %v1887 = vpop.permute.xlu0 %1886
      %1888 = vset.pattern.permute.xlu0 0
      %1889 = vperm.xlu0 %1888, %v1736
      %v1890 = vpop.permute.xlu0 %1889
      %1891 = vset.pattern.permute.xlu0 0
      %1892 = vperm.xlu0 %1891, %v1737
      %v1893 = vpop.permute.xlu0 %1892
      %1894 = vset.pattern.permute.xlu0 0
      %1895 = vperm.xlu0 %1894, %v1738
      %v1896 = vpop.permute.xlu0 %1895
      %1897 = vset.pattern.permute.xlu0 0
      %1898 = vperm.xlu0 %1897, %v1739
      %v1899 = vpop.permute.xlu0 %1898
      %1900 = vset.pattern.permute.xlu0 0
      %1901 = vperm.xlu0 %1900, %v1740
      %v1902 = vpop.permute.xlu0 %1901
      %1903 = vset.pattern.permute.xlu0 0
      %1904 = vperm.xlu0 %1903, %v1741
      %v1905 = vpop.permute.xlu0 %1904
      %1906 = vset.pattern.permute.xlu0 0
      %1907 = vperm.xlu0 %1906, %v1742
      %v1908 = vpop.permute.xlu0 %1907
      %1909 = vset.pattern.permute.xlu0 0
      %1910 = vperm.xlu0 %1909, %v1743
      %v1911 = vpop.permute.xlu0 %1910
      %1912 = vset.pattern.permute.xlu0 0
      %1913 = vperm.xlu0 %1912, %v1744
      %v1914 = vpop.permute.xlu0 %1913
      %1915 = vset.pattern.permute.xlu0 0
      %1916 = vperm.xlu0 %1915, %v1745
      %v1917 = vpop.permute.xlu0 %1916
      %1918 = vset.pattern.permute.xlu0 0
      %1919 = vperm.xlu0 %1918, %v1746
      %v1920 = vpop.permute.xlu0 %1919
      %1921 = vset.pattern.permute.xlu0 0
      %1922 = vperm.xlu0 %1921, %v1747
      %v1923 = vpop.permute.xlu0 %1922
      %1924 = vset.pattern.permute.xlu0 0
      %1925 = vperm.xlu0 %1924, %v1748
      %v1926 = vpop.permute.xlu0 %1925
      %1927 = vset.pattern.permute.xlu0 0
      %1928 = vperm.xlu0 %1927, %v1749
      %v1929 = vpop.permute.xlu0 %1928
      %1930 = vset.pattern.permute.xlu0 0
      %1931 = vperm.xlu0 %1930, %v1750
      %v1932 = vpop.permute.xlu0 %1931
      %1933 = vset.pattern.permute.xlu0 0
      %1934 = vperm.xlu0 %1933, %v1751
      %v1935 = vpop.permute.xlu0 %1934
      %1936 = vset.pattern.permute.xlu0 0
      %1937 = vperm.xlu0 %1936, %v1752
      %v1938 = vpop.permute.xlu0 %1937
      %1939 = vset.pattern.permute.xlu0 0
      %1940 = vperm.xlu0 %1939, %v1753
      %v1941 = vpop.permute.xlu0 %1940
      %1942 = vset.pattern.permute.xlu0 0
      %1943 = vperm.xlu0 %1942, %v1754
      %v1944 = vpop.permute.xlu0 %1943
      %1945 = vset.pattern.permute.xlu0 0
      %1946 = vperm.xlu0 %1945, %v1755
      %v1947 = vpop.permute.xlu0 %1946
      %vm1948 = vcmp.eq.s32.totalorder %v1758, %v1690
      %vm1949 = vcmp.eq.s32.totalorder %v1758, %v1691
      %vm1950 = vcmp.eq.s32.totalorder %v1761, %v1690
      %vm1951 = vcmp.eq.s32.totalorder %v1761, %v1691
      %vm1952 = vcmp.eq.s32.totalorder %v1764, %v1690
      %vm1953 = vcmp.eq.s32.totalorder %v1764, %v1691
      %vm1954 = vcmp.eq.s32.totalorder %v1767, %v1690
      %vm1955 = vcmp.eq.s32.totalorder %v1767, %v1691
      %vm1956 = vcmp.eq.s32.totalorder %v1770, %v1690
      %vm1957 = vcmp.eq.s32.totalorder %v1770, %v1691
      %vm1958 = vcmp.eq.s32.totalorder %v1773, %v1690
      %vm1959 = vcmp.eq.s32.totalorder %v1773, %v1691
      %vm1960 = vcmp.eq.s32.totalorder %v1776, %v1690
      %vm1961 = vcmp.eq.s32.totalorder %v1776, %v1691
      %vm1962 = vcmp.eq.s32.totalorder %v1779, %v1690
      %vm1963 = vcmp.eq.s32.totalorder %v1779, %v1691
      %vm1964 = vcmp.eq.s32.totalorder %v1782, %v1690
      %vm1965 = vcmp.eq.s32.totalorder %v1782, %v1691
      %vm1966 = vcmp.eq.s32.totalorder %v1785, %v1690
      %vm1967 = vcmp.eq.s32.totalorder %v1785, %v1691
      %vm1968 = vcmp.eq.s32.totalorder %v1788, %v1690
      %vm1969 = vcmp.eq.s32.totalorder %v1788, %v1691
      %vm1970 = vcmp.eq.s32.totalorder %v1791, %v1690
      %vm1971 = vcmp.eq.s32.totalorder %v1791, %v1691
      %vm1972 = vcmp.eq.s32.totalorder %v1794, %v1690
      %vm1973 = vcmp.eq.s32.totalorder %v1794, %v1691
      %vm1974 = vcmp.eq.s32.totalorder %v1797, %v1690
      %vm1975 = vcmp.eq.s32.totalorder %v1797, %v1691
      %vm1976 = vcmp.eq.s32.totalorder %v1800, %v1690
      %vm1977 = vcmp.eq.s32.totalorder %v1800, %v1691
      %vm1978 = vcmp.eq.s32.totalorder %v1803, %v1690
      %vm1979 = vcmp.eq.s32.totalorder %v1803, %v1691
      %vm1980 = vcmp.eq.s32.totalorder %v1806, %v1690
      %vm1981 = vcmp.eq.s32.totalorder %v1806, %v1691
      %vm1982 = vcmp.eq.s32.totalorder %v1809, %v1690
      %vm1983 = vcmp.eq.s32.totalorder %v1809, %v1691
      %vm1984 = vcmp.eq.s32.totalorder %v1812, %v1690
      %vm1985 = vcmp.eq.s32.totalorder %v1812, %v1691
      %vm1986 = vcmp.eq.s32.totalorder %v1815, %v1690
      %vm1987 = vcmp.eq.s32.totalorder %v1815, %v1691
      %vm1988 = vcmp.eq.s32.totalorder %v1818, %v1690
      %vm1989 = vcmp.eq.s32.totalorder %v1818, %v1691
      %vm1990 = vcmp.eq.s32.totalorder %v1821, %v1690
      %vm1991 = vcmp.eq.s32.totalorder %v1821, %v1691
      %vm1992 = vcmp.eq.s32.totalorder %v1824, %v1690
      %vm1993 = vcmp.eq.s32.totalorder %v1824, %v1691
      %vm1994 = vcmp.eq.s32.totalorder %v1827, %v1690
      %vm1995 = vcmp.eq.s32.totalorder %v1827, %v1691
      %vm1996 = vcmp.eq.s32.totalorder %v1830, %v1690
      %vm1997 = vcmp.eq.s32.totalorder %v1830, %v1691
      %vm1998 = vcmp.eq.s32.totalorder %v1833, %v1690
      %vm1999 = vcmp.eq.s32.totalorder %v1833, %v1691
      %vm2000 = vcmp.eq.s32.totalorder %v1836, %v1690
      %vm2001 = vcmp.eq.s32.totalorder %v1836, %v1691
      %vm2002 = vcmp.eq.s32.totalorder %v1839, %v1690
      %vm2003 = vcmp.eq.s32.totalorder %v1839, %v1691
      %vm2004 = vcmp.eq.s32.totalorder %v1842, %v1690
      %vm2005 = vcmp.eq.s32.totalorder %v1842, %v1691
      %vm2006 = vcmp.eq.s32.totalorder %v1845, %v1690
      %vm2007 = vcmp.eq.s32.totalorder %v1845, %v1691
      %vm2008 = vcmp.eq.s32.totalorder %v1848, %v1690
      %vm2009 = vcmp.eq.s32.totalorder %v1848, %v1691
      %vm2010 = vcmp.eq.s32.totalorder %v1851, %v1690
      %vm2011 = vcmp.eq.s32.totalorder %v1851, %v1691
      %vm2012 = vcmp.eq.s32.totalorder %v1854, %v1690
      %vm2013 = vcmp.eq.s32.totalorder %v1854, %v1691
      %vm2014 = vcmp.eq.s32.totalorder %v1857, %v1690
      %vm2015 = vcmp.eq.s32.totalorder %v1857, %v1691
      %vm2016 = vcmp.eq.s32.totalorder %v1860, %v1690
      %vm2017 = vcmp.eq.s32.totalorder %v1860, %v1691
      %vm2018 = vcmp.eq.s32.totalorder %v1863, %v1690
      %vm2019 = vcmp.eq.s32.totalorder %v1863, %v1691
      %vm2020 = vcmp.eq.s32.totalorder %v1866, %v1690
      %vm2021 = vcmp.eq.s32.totalorder %v1866, %v1691
      %vm2022 = vcmp.eq.s32.totalorder %v1869, %v1690
      %vm2023 = vcmp.eq.s32.totalorder %v1869, %v1691
      %vm2024 = vcmp.eq.s32.totalorder %v1872, %v1690
      %vm2025 = vcmp.eq.s32.totalorder %v1872, %v1691
      %vm2026 = vcmp.eq.s32.totalorder %v1875, %v1690
      %vm2027 = vcmp.eq.s32.totalorder %v1875, %v1691
      %vm2028 = vcmp.eq.s32.totalorder %v1878, %v1690
      %vm2029 = vcmp.eq.s32.totalorder %v1878, %v1691
      %vm2030 = vcmp.eq.s32.totalorder %v1881, %v1690
      %vm2031 = vcmp.eq.s32.totalorder %v1881, %v1691
      %vm2032 = vcmp.eq.s32.totalorder %v1884, %v1690
      %vm2033 = vcmp.eq.s32.totalorder %v1884, %v1691
      %vm2034 = vcmp.eq.s32.totalorder %v1887, %v1690
      %vm2035 = vcmp.eq.s32.totalorder %v1887, %v1691
      %vm2036 = vcmp.eq.s32.totalorder %v1890, %v1690
      %vm2037 = vcmp.eq.s32.totalorder %v1890, %v1691
      %vm2038 = vcmp.eq.s32.totalorder %v1893, %v1690
      %vm2039 = vcmp.eq.s32.totalorder %v1893, %v1691
      %vm2040 = vcmp.eq.s32.totalorder %v1896, %v1690
      %vm2041 = vcmp.eq.s32.totalorder %v1896, %v1691
      %vm2042 = vcmp.eq.s32.totalorder %v1899, %v1690
      %vm2043 = vcmp.eq.s32.totalorder %v1899, %v1691
      %vm2044 = vcmp.eq.s32.totalorder %v1902, %v1690
      %vm2045 = vcmp.eq.s32.totalorder %v1902, %v1691
      %vm2046 = vcmp.eq.s32.totalorder %v1905, %v1690
      %vm2047 = vcmp.eq.s32.totalorder %v1905, %v1691
      %vm2048 = vcmp.eq.s32.totalorder %v1908, %v1690
      %vm2049 = vcmp.eq.s32.totalorder %v1908, %v1691
      %vm2050 = vcmp.eq.s32.totalorder %v1911, %v1690
      %vm2051 = vcmp.eq.s32.totalorder %v1911, %v1691
      %vm2052 = vcmp.eq.s32.totalorder %v1914, %v1690
      %vm2053 = vcmp.eq.s32.totalorder %v1914, %v1691
      %vm2054 = vcmp.eq.s32.totalorder %v1917, %v1690
      %vm2055 = vcmp.eq.s32.totalorder %v1917, %v1691
      %vm2056 = vcmp.eq.s32.totalorder %v1920, %v1690
      %vm2057 = vcmp.eq.s32.totalorder %v1920, %v1691
      %vm2058 = vcmp.eq.s32.totalorder %v1923, %v1690
      %vm2059 = vcmp.eq.s32.totalorder %v1923, %v1691
      %vm2060 = vcmp.eq.s32.totalorder %v1926, %v1690
      %vm2061 = vcmp.eq.s32.totalorder %v1926, %v1691
      %vm2062 = vcmp.eq.s32.totalorder %v1929, %v1690
      %vm2063 = vcmp.eq.s32.totalorder %v1929, %v1691
      %vm2064 = vcmp.eq.s32.totalorder %v1932, %v1690
      %vm2065 = vcmp.eq.s32.totalorder %v1932, %v1691
      %vm2066 = vcmp.eq.s32.totalorder %v1935, %v1690
      %vm2067 = vcmp.eq.s32.totalorder %v1935, %v1691
      %vm2068 = vcmp.eq.s32.totalorder %v1938, %v1690
      %vm2069 = vcmp.eq.s32.totalorder %v1938, %v1691
      %vm2070 = vcmp.eq.s32.totalorder %v1941, %v1690
      %vm2071 = vcmp.eq.s32.totalorder %v1941, %v1691
      %vm2072 = vcmp.eq.s32.totalorder %v1944, %v1690
      %vm2073 = vcmp.eq.s32.totalorder %v1944, %v1691
      %vm2074 = vcmp.eq.s32.totalorder %v1947, %v1690
      %vm2075 = vcmp.eq.s32.totalorder %v1947, %v1691
      %v2076 = vsel %vm1948, 1, 0
      %v2077 = vsel %vm1949, 1, 0
      %v2078 = vsel %vm1950, 1, 0
      %v2079 = vsel %vm1951, 1, 0
      %v2080 = vsel %vm1952, 1, 0
      %v2081 = vsel %vm1953, 1, 0
      %v2082 = vsel %vm1954, 1, 0
      %v2083 = vsel %vm1955, 1, 0
      %v2084 = vsel %vm1956, 1, 0
      %v2085 = vsel %vm1957, 1, 0
      %v2086 = vsel %vm1958, 1, 0
      %v2087 = vsel %vm1959, 1, 0
      %v2088 = vsel %vm1960, 1, 0
      %v2089 = vsel %vm1961, 1, 0
      %v2090 = vsel %vm1962, 1, 0
      %v2091 = vsel %vm1963, 1, 0
      %v2092 = vsel %vm1964, 1, 0
      %v2093 = vsel %vm1965, 1, 0
      %v2094 = vsel %vm1966, 1, 0
      %v2095 = vsel %vm1967, 1, 0
      %v2096 = vsel %vm1968, 1, 0
      %v2097 = vsel %vm1969, 1, 0
      %v2098 = vsel %vm1970, 1, 0
      %v2099 = vsel %vm1971, 1, 0
      %v2100 = vsel %vm1972, 1, 0
      %v2101 = vsel %vm1973, 1, 0
      %v2102 = vsel %vm1974, 1, 0
      %v2103 = vsel %vm1975, 1, 0
      %v2104 = vsel %vm1976, 1, 0
      %v2105 = vsel %vm1977, 1, 0
      %v2106 = vsel %vm1978, 1, 0
      %v2107 = vsel %vm1979, 1, 0
      %v2108 = vsel %vm1980, 1, 0
      %v2109 = vsel %vm1981, 1, 0
      %v2110 = vsel %vm1982, 1, 0
      %v2111 = vsel %vm1983, 1, 0
      %v2112 = vsel %vm1984, 1, 0
      %v2113 = vsel %vm1985, 1, 0
      %v2114 = vsel %vm1986, 1, 0
      %v2115 = vsel %vm1987, 1, 0
      %v2116 = vsel %vm1988, 1, 0
      %v2117 = vsel %vm1989, 1, 0
      %v2118 = vsel %vm1990, 1, 0
      %v2119 = vsel %vm1991, 1, 0
      %v2120 = vsel %vm1992, 1, 0
      %v2121 = vsel %vm1993, 1, 0
      %v2122 = vsel %vm1994, 1, 0
      %v2123 = vsel %vm1995, 1, 0
      %v2124 = vsel %vm1996, 1, 0
      %v2125 = vsel %vm1997, 1, 0
      %v2126 = vsel %vm1998, 1, 0
      %v2127 = vsel %vm1999, 1, 0
      %v2128 = vsel %vm2000, 1, 0
      %v2129 = vsel %vm2001, 1, 0
      %v2130 = vsel %vm2002, 1, 0
      %v2131 = vsel %vm2003, 1, 0
      %v2132 = vsel %vm2004, 1, 0
      %v2133 = vsel %vm2005, 1, 0
      %v2134 = vsel %vm2006, 1, 0
      %v2135 = vsel %vm2007, 1, 0
      %v2136 = vsel %vm2008, 1, 0
      %v2137 = vsel %vm2009, 1, 0
      %v2138 = vsel %vm2010, 1, 0
      %v2139 = vsel %vm2011, 1, 0
      %v2140 = vsel %vm2012, 1, 0
      %v2141 = vsel %vm2013, 1, 0
      %v2142 = vsel %vm2014, 1, 0
      %v2143 = vsel %vm2015, 1, 0
      %v2144 = vsel %vm2016, 1, 0
      %v2145 = vsel %vm2017, 1, 0
      %v2146 = vsel %vm2018, 1, 0
      %v2147 = vsel %vm2019, 1, 0
      %v2148 = vsel %vm2020, 1, 0
      %v2149 = vsel %vm2021, 1, 0
      %v2150 = vsel %vm2022, 1, 0
      %v2151 = vsel %vm2023, 1, 0
      %v2152 = vsel %vm2024, 1, 0
      %v2153 = vsel %vm2025, 1, 0
      %v2154 = vsel %vm2026, 1, 0
      %v2155 = vsel %vm2027, 1, 0
      %v2156 = vsel %vm2028, 1, 0
      %v2157 = vsel %vm2029, 1, 0
      %v2158 = vsel %vm2030, 1, 0
      %v2159 = vsel %vm2031, 1, 0
      %v2160 = vsel %vm2032, 1, 0
      %v2161 = vsel %vm2033, 1, 0
      %v2162 = vsel %vm2034, 1, 0
      %v2163 = vsel %vm2035, 1, 0
      %v2164 = vsel %vm2036, 1, 0
      %v2165 = vsel %vm2037, 1, 0
      %v2166 = vsel %vm2038, 1, 0
      %v2167 = vsel %vm2039, 1, 0
      %v2168 = vsel %vm2040, 1, 0
      %v2169 = vsel %vm2041, 1, 0
      %v2170 = vsel %vm2042, 1, 0
      %v2171 = vsel %vm2043, 1, 0
      %v2172 = vsel %vm2044, 1, 0
      %v2173 = vsel %vm2045, 1, 0
      %v2174 = vsel %vm2046, 1, 0
      %v2175 = vsel %vm2047, 1, 0
      %v2176 = vsel %vm2048, 1, 0
      %v2177 = vsel %vm2049, 1, 0
      %v2178 = vsel %vm2050, 1, 0
      %v2179 = vsel %vm2051, 1, 0
      %v2180 = vsel %vm2052, 1, 0
      %v2181 = vsel %vm2053, 1, 0
      %v2182 = vsel %vm2054, 1, 0
      %v2183 = vsel %vm2055, 1, 0
      %v2184 = vsel %vm2056, 1, 0
      %v2185 = vsel %vm2057, 1, 0
      %v2186 = vsel %vm2058, 1, 0
      %v2187 = vsel %vm2059, 1, 0
      %v2188 = vsel %vm2060, 1, 0
      %v2189 = vsel %vm2061, 1, 0
      %v2190 = vsel %vm2062, 1, 0
      %v2191 = vsel %vm2063, 1, 0
      %v2192 = vsel %vm2064, 1, 0
      %v2193 = vsel %vm2065, 1, 0
      %v2194 = vsel %vm2066, 1, 0
      %v2195 = vsel %vm2067, 1, 0
      %v2196 = vsel %vm2068, 1, 0
      %v2197 = vsel %vm2069, 1, 0
      %v2198 = vsel %vm2070, 1, 0
      %v2199 = vsel %vm2071, 1, 0
      %v2200 = vsel %vm2072, 1, 0
      %v2201 = vsel %vm2073, 1, 0
      %v2202 = vsel %vm2074, 1, 0
      %v2203 = vsel %vm2075, 1, 0
      %v2204 = vcvt.s32.f32 %v2076
      %v2205 = vcvt.s32.f32 %v2077
      %v2206 = vcvt.s32.f32 %v2078
      %v2207 = vcvt.s32.f32 %v2079
      %v2208 = vcvt.s32.f32 %v2080
      %v2209 = vcvt.s32.f32 %v2081
      %v2210 = vcvt.s32.f32 %v2082
      %v2211 = vcvt.s32.f32 %v2083
      %v2212 = vcvt.s32.f32 %v2084
      %v2213 = vcvt.s32.f32 %v2085
      %v2214 = vcvt.s32.f32 %v2086
      %v2215 = vcvt.s32.f32 %v2087
      %v2216 = vcvt.s32.f32 %v2088
      %v2217 = vcvt.s32.f32 %v2089
      %v2218 = vcvt.s32.f32 %v2090
      %v2219 = vcvt.s32.f32 %v2091
      %v2220 = vcvt.s32.f32 %v2092
      %v2221 = vcvt.s32.f32 %v2093
      %v2222 = vcvt.s32.f32 %v2094
      %v2223 = vcvt.s32.f32 %v2095
      %v2224 = vcvt.s32.f32 %v2096
      %v2225 = vcvt.s32.f32 %v2097
      %v2226 = vcvt.s32.f32 %v2098
      %v2227 = vcvt.s32.f32 %v2099
      %v2228 = vcvt.s32.f32 %v2100
      %v2229 = vcvt.s32.f32 %v2101
      %v2230 = vcvt.s32.f32 %v2102
      %v2231 = vcvt.s32.f32 %v2103
      %v2232 = vcvt.s32.f32 %v2104
      %v2233 = vcvt.s32.f32 %v2105
      %v2234 = vcvt.s32.f32 %v2106
      %v2235 = vcvt.s32.f32 %v2107
      %v2236 = vcvt.s32.f32 %v2108
      %v2237 = vcvt.s32.f32 %v2109
      %v2238 = vcvt.s32.f32 %v2110
      %v2239 = vcvt.s32.f32 %v2111
      %v2240 = vcvt.s32.f32 %v2112
      %v2241 = vcvt.s32.f32 %v2113
      %v2242 = vcvt.s32.f32 %v2114
      %v2243 = vcvt.s32.f32 %v2115
      %v2244 = vcvt.s32.f32 %v2116
      %v2245 = vcvt.s32.f32 %v2117
      %v2246 = vcvt.s32.f32 %v2118
      %v2247 = vcvt.s32.f32 %v2119
      %v2248 = vcvt.s32.f32 %v2120
      %v2249 = vcvt.s32.f32 %v2121
      %v2250 = vcvt.s32.f32 %v2122
      %v2251 = vcvt.s32.f32 %v2123
      %v2252 = vcvt.s32.f32 %v2124
      %v2253 = vcvt.s32.f32 %v2125
      %v2254 = vcvt.s32.f32 %v2126
      %v2255 = vcvt.s32.f32 %v2127
      %v2256 = vcvt.s32.f32 %v2128
      %v2257 = vcvt.s32.f32 %v2129
      %v2258 = vcvt.s32.f32 %v2130
      %v2259 = vcvt.s32.f32 %v2131
      %v2260 = vcvt.s32.f32 %v2132
      %v2261 = vcvt.s32.f32 %v2133
      %v2262 = vcvt.s32.f32 %v2134
      %v2263 = vcvt.s32.f32 %v2135
      %v2264 = vcvt.s32.f32 %v2136
      %v2265 = vcvt.s32.f32 %v2137
      %v2266 = vcvt.s32.f32 %v2138
      %v2267 = vcvt.s32.f32 %v2139
      %v2268 = vcvt.s32.f32 %v2140
      %v2269 = vcvt.s32.f32 %v2141
      %v2270 = vcvt.s32.f32 %v2142
      %v2271 = vcvt.s32.f32 %v2143
      %v2272 = vcvt.s32.f32 %v2144
      %v2273 = vcvt.s32.f32 %v2145
      %v2274 = vcvt.s32.f32 %v2146
      %v2275 = vcvt.s32.f32 %v2147
      %v2276 = vcvt.s32.f32 %v2148
      %v2277 = vcvt.s32.f32 %v2149
      %v2278 = vcvt.s32.f32 %v2150
      %v2279 = vcvt.s32.f32 %v2151
      %v2280 = vcvt.s32.f32 %v2152
      %v2281 = vcvt.s32.f32 %v2153
      %v2282 = vcvt.s32.f32 %v2154
      %v2283 = vcvt.s32.f32 %v2155
      %v2284 = vcvt.s32.f32 %v2156
      %v2285 = vcvt.s32.f32 %v2157
      %v2286 = vcvt.s32.f32 %v2158
      %v2287 = vcvt.s32.f32 %v2159
      %v2288 = vcvt.s32.f32 %v2160
      %v2289 = vcvt.s32.f32 %v2161
      %v2290 = vcvt.s32.f32 %v2162
      %v2291 = vcvt.s32.f32 %v2163
      %v2292 = vcvt.s32.f32 %v2164
      %v2293 = vcvt.s32.f32 %v2165
      %v2294 = vcvt.s32.f32 %v2166
      %v2295 = vcvt.s32.f32 %v2167
      %v2296 = vcvt.s32.f32 %v2168
      %v2297 = vcvt.s32.f32 %v2169
      %v2298 = vcvt.s32.f32 %v2170
      %v2299 = vcvt.s32.f32 %v2171
      %v2300 = vcvt.s32.f32 %v2172
      %v2301 = vcvt.s32.f32 %v2173
      %v2302 = vcvt.s32.f32 %v2174
      %v2303 = vcvt.s32.f32 %v2175
      %v2304 = vcvt.s32.f32 %v2176
      %v2305 = vcvt.s32.f32 %v2177
      %v2306 = vcvt.s32.f32 %v2178
      %v2307 = vcvt.s32.f32 %v2179
      %v2308 = vcvt.s32.f32 %v2180
      %v2309 = vcvt.s32.f32 %v2181
      %v2310 = vcvt.s32.f32 %v2182
      %v2311 = vcvt.s32.f32 %v2183
      %v2312 = vcvt.s32.f32 %v2184
      %v2313 = vcvt.s32.f32 %v2185
      %v2314 = vcvt.s32.f32 %v2186
      %v2315 = vcvt.s32.f32 %v2187
      %v2316 = vcvt.s32.f32 %v2188
      %v2317 = vcvt.s32.f32 %v2189
      %v2318 = vcvt.s32.f32 %v2190
      %v2319 = vcvt.s32.f32 %v2191
      %v2320 = vcvt.s32.f32 %v2192
      %v2321 = vcvt.s32.f32 %v2193
      %v2322 = vcvt.s32.f32 %v2194
      %v2323 = vcvt.s32.f32 %v2195
      %v2324 = vcvt.s32.f32 %v2196
      %v2325 = vcvt.s32.f32 %v2197
      %v2326 = vcvt.s32.f32 %v2198
      %v2327 = vcvt.s32.f32 %v2199
      %v2328 = vcvt.s32.f32 %v2200
      %v2329 = vcvt.s32.f32 %v2201
      %v2330 = vcvt.s32.f32 %v2202
      %v2331 = vcvt.s32.f32 %v2203
      %v2332 = vpack.c.bf16 %v2206, %v2204
      %v2333 = vpack.c.bf16 %v2207, %v2205
      %v2334 = vpack.c.bf16 %v2210, %v2208
      %v2335 = vpack.c.bf16 %v2211, %v2209
      %v2336 = vpack.c.bf16 %v2214, %v2212
      %v2337 = vpack.c.bf16 %v2215, %v2213
      %v2338 = vpack.c.bf16 %v2218, %v2216
      %v2339 = vpack.c.bf16 %v2219, %v2217
      %v2340 = vpack.c.bf16 %v2222, %v2220
      %v2341 = vpack.c.bf16 %v2223, %v2221
      %v2342 = vpack.c.bf16 %v2226, %v2224
      %v2343 = vpack.c.bf16 %v2227, %v2225
      %v2344 = vpack.c.bf16 %v2230, %v2228
      %v2345 = vpack.c.bf16 %v2231, %v2229
      %v2346 = vpack.c.bf16 %v2234, %v2232
      %v2347 = vpack.c.bf16 %v2235, %v2233
      %v2348 = vpack.c.bf16 %v2238, %v2236
      %v2349 = vpack.c.bf16 %v2239, %v2237
      %v2350 = vpack.c.bf16 %v2242, %v2240
      %v2351 = vpack.c.bf16 %v2243, %v2241
      %v2352 = vpack.c.bf16 %v2246, %v2244
      %v2353 = vpack.c.bf16 %v2247, %v2245
      %v2354 = vpack.c.bf16 %v2250, %v2248
      %v2355 = vpack.c.bf16 %v2251, %v2249
      %v2356 = vpack.c.bf16 %v2254, %v2252
      %v2357 = vpack.c.bf16 %v2255, %v2253
      %v2358 = vpack.c.bf16 %v2258, %v2256
      %v2359 = vpack.c.bf16 %v2259, %v2257
      %v2360 = vpack.c.bf16 %v2262, %v2260
      %v2361 = vpack.c.bf16 %v2263, %v2261
      %v2362 = vpack.c.bf16 %v2266, %v2264
      %v2363 = vpack.c.bf16 %v2267, %v2265
      %v2364 = vpack.c.bf16 %v2270, %v2268
      %v2365 = vpack.c.bf16 %v2271, %v2269
      %v2366 = vpack.c.bf16 %v2274, %v2272
      %v2367 = vpack.c.bf16 %v2275, %v2273
      %v2368 = vpack.c.bf16 %v2278, %v2276
      %v2369 = vpack.c.bf16 %v2279, %v2277
      %v2370 = vpack.c.bf16 %v2282, %v2280
      %v2371 = vpack.c.bf16 %v2283, %v2281
      %v2372 = vpack.c.bf16 %v2286, %v2284
      %v2373 = vpack.c.bf16 %v2287, %v2285
      %v2374 = vpack.c.bf16 %v2290, %v2288
      %v2375 = vpack.c.bf16 %v2291, %v2289
      %v2376 = vpack.c.bf16 %v2294, %v2292
      %v2377 = vpack.c.bf16 %v2295, %v2293
      %v2378 = vpack.c.bf16 %v2298, %v2296
      %v2379 = vpack.c.bf16 %v2299, %v2297
      %v2380 = vpack.c.bf16 %v2302, %v2300
      %v2381 = vpack.c.bf16 %v2303, %v2301
      %v2382 = vpack.c.bf16 %v2306, %v2304
      %v2383 = vpack.c.bf16 %v2307, %v2305
      %v2384 = vpack.c.bf16 %v2310, %v2308
      %v2385 = vpack.c.bf16 %v2311, %v2309
      %v2386 = vpack.c.bf16 %v2314, %v2312
      %v2387 = vpack.c.bf16 %v2315, %v2313
      %v2388 = vpack.c.bf16 %v2318, %v2316
      %v2389 = vpack.c.bf16 %v2319, %v2317
      %v2390 = vpack.c.bf16 %v2322, %v2320
      %v2391 = vpack.c.bf16 %v2323, %v2321
      %v2392 = vpack.c.bf16 %v2326, %v2324
      %v2393 = vpack.c.bf16 %v2327, %v2325
      %v2394 = vpack.c.bf16 %v2330, %v2328
      %v2395 = vpack.c.bf16 %v2331, %v2329
      %v2396 = vld [vmem:[%s596] sm:$0xff]
      %v2397 = vld [vmem:[%s596 + $0x8] sm:$0xff]
      %v2398 = vld [vmem:[%s596 + $0x10] sm:$0xff]
      %v2399 = vld [vmem:[%s596 + $0x18] sm:$0xff]
      %v2400 = vld [vmem:[%s596 + $0x20] sm:$0xff]
      %v2401 = vld [vmem:[%s596 + $0x28] sm:$0xff]
      %v2402 = vld [vmem:[%s596 + $0x30] sm:$0xff]
      %v2403 = vld [vmem:[%s596 + $0x38] sm:$0xff]
      %v2404 = vld [vmem:[%s596 + $0x40] sm:$0xff]
      %v2405 = vld [vmem:[%s596 + $0x48] sm:$0xff]
      %v2406 = vld [vmem:[%s596 + $0x50] sm:$0xff]
      %v2407 = vld [vmem:[%s596 + $0x58] sm:$0xff]
      %v2408 = vld [vmem:[%s596 + $0x60] sm:$0xff]
      %v2409 = vld [vmem:[%s596 + $0x68] sm:$0xff]
      %v2410 = vld [vmem:[%s596 + $0x70] sm:$0xff]
      %v2411 = vld [vmem:[%s596 + $0x78] sm:$0xff]
      %v2412 = vld [vmem:[%s596 + $0x80] sm:$0xff]
      %v2413 = vld [vmem:[%s596 + $0x88] sm:$0xff]
      %v2414 = vld [vmem:[%s596 + $0x90] sm:$0xff]
      %v2415 = vld [vmem:[%s596 + $0x98] sm:$0xff]
      %v2416 = vld [vmem:[%s596 + $0xa0] sm:$0xff]
      %v2417 = vld [vmem:[%s596 + $0xa8] sm:$0xff]
      %v2418 = vld [vmem:[%s596 + $0xb0] sm:$0xff]
      %v2419 = vld [vmem:[%s596 + $0xb8] sm:$0xff]
      %v2420 = vld [vmem:[%s596 + $0xc0] sm:$0xff]
      %v2421 = vld [vmem:[%s596 + $0xc8] sm:$0xff]
      %v2422 = vld [vmem:[%s596 + $0xd0] sm:$0xff]
      %v2423 = vld [vmem:[%s596 + $0xd8] sm:$0xff]
      %v2424 = vld [vmem:[%s596 + $0xe0] sm:$0xff]
      %v2425 = vld [vmem:[%s596 + $0xe8] sm:$0xff]
      %v2426 = vld [vmem:[%s596 + $0xf0] sm:$0xff]
      %v2427 = vld [vmem:[%s596 + $0xf8] sm:$0xff]
      %v2428 = vld [vmem:[%s596 + $0x100] sm:$0xff]
      %v2429 = vld [vmem:[%s596 + $0x108] sm:$0xff]
      %v2430 = vld [vmem:[%s596 + $0x110] sm:$0xff]
      %v2431 = vld [vmem:[%s596 + $0x118] sm:$0xff]
      %v2432 = vld [vmem:[%s596 + $0x120] sm:$0xff]
      %v2433 = vld [vmem:[%s596 + $0x128] sm:$0xff]
      %v2434 = vld [vmem:[%s596 + $0x130] sm:$0xff]
      %v2435 = vld [vmem:[%s596 + $0x138] sm:$0xff]
      %v2436 = vld [vmem:[%s596 + $0x140] sm:$0xff]
      %v2437 = vld [vmem:[%s596 + $0x148] sm:$0xff]
      %v2438 = vld [vmem:[%s596 + $0x150] sm:$0xff]
      %v2439 = vld [vmem:[%s596 + $0x158] sm:$0xff]
      %v2440 = vld [vmem:[%s596 + $0x160] sm:$0xff]
      %v2441 = vld [vmem:[%s596 + $0x168] sm:$0xff]
      %v2442 = vld [vmem:[%s596 + $0x170] sm:$0xff]
      %v2443 = vld [vmem:[%s596 + $0x178] sm:$0xff]
      %v2444 = vld [vmem:[%s596 + $0x180] sm:$0xff]
      %v2445 = vld [vmem:[%s596 + $0x188] sm:$0xff]
      %v2446 = vld [vmem:[%s596 + $0x190] sm:$0xff]
      %v2447 = vld [vmem:[%s596 + $0x198] sm:$0xff]
      %v2448 = vld [vmem:[%s596 + $0x1a0] sm:$0xff]
      %v2449 = vld [vmem:[%s596 + $0x1a8] sm:$0xff]
      %v2450 = vld [vmem:[%s596 + $0x1b0] sm:$0xff]
      %v2451 = vld [vmem:[%s596 + $0x1b8] sm:$0xff]
      %v2452 = vld [vmem:[%s596 + $0x1c0] sm:$0xff]
      %v2453 = vld [vmem:[%s596 + $0x1c8] sm:$0xff]
      %v2454 = vld [vmem:[%s596 + $0x1d0] sm:$0xff]
      %v2455 = vld [vmem:[%s596 + $0x1d8] sm:$0xff]
      %v2456 = vld [vmem:[%s596 + $0x1e0] sm:$0xff]
      %v2457 = vld [vmem:[%s596 + $0x1e8] sm:$0xff]
      %v2458 = vld [vmem:[%s596 + $0x1f0] sm:$0xff]
      %v2459 = vld [vmem:[%s596 + $0x1f8] sm:$0xff]
      %2460 = vset.pattern.permute.xlu0 0
      %2461 = vperm.xlu0 %2460, %v2396
      %v2462 = vpop.permute.xlu0 %2461
      %2463 = vset.pattern.permute.xlu0 0
      %2464 = vperm.xlu0 %2463, %v2397
      %v2465 = vpop.permute.xlu0 %2464
      %2466 = vset.pattern.permute.xlu0 0
      %2467 = vperm.xlu0 %2466, %v2398
      %v2468 = vpop.permute.xlu0 %2467
      %2469 = vset.pattern.permute.xlu0 0
      %2470 = vperm.xlu0 %2469, %v2399
      %v2471 = vpop.permute.xlu0 %2470
      %2472 = vset.pattern.permute.xlu0 0
      %2473 = vperm.xlu0 %2472, %v2400
      %v2474 = vpop.permute.xlu0 %2473
      %2475 = vset.pattern.permute.xlu0 0
      %2476 = vperm.xlu0 %2475, %v2401
      %v2477 = vpop.permute.xlu0 %2476
      %2478 = vset.pattern.permute.xlu0 0
      %2479 = vperm.xlu0 %2478, %v2402
      %v2480 = vpop.permute.xlu0 %2479
      %2481 = vset.pattern.permute.xlu0 0
      %2482 = vperm.xlu0 %2481, %v2403
      %v2483 = vpop.permute.xlu0 %2482
      %2484 = vset.pattern.permute.xlu0 0
      %2485 = vperm.xlu0 %2484, %v2404
      %v2486 = vpop.permute.xlu0 %2485
      %2487 = vset.pattern.permute.xlu0 0
      %2488 = vperm.xlu0 %2487, %v2405
      %v2489 = vpop.permute.xlu0 %2488
      %2490 = vset.pattern.permute.xlu0 0
      %2491 = vperm.xlu0 %2490, %v2406
      %v2492 = vpop.permute.xlu0 %2491
      %2493 = vset.pattern.permute.xlu0 0
      %2494 = vperm.xlu0 %2493, %v2407
      %v2495 = vpop.permute.xlu0 %2494
      %2496 = vset.pattern.permute.xlu0 0
      %2497 = vperm.xlu0 %2496, %v2408
      %v2498 = vpop.permute.xlu0 %2497
      %2499 = vset.pattern.permute.xlu0 0
      %2500 = vperm.xlu0 %2499, %v2409
      %v2501 = vpop.permute.xlu0 %2500
      %2502 = vset.pattern.permute.xlu0 0
      %2503 = vperm.xlu0 %2502, %v2410
      %v2504 = vpop.permute.xlu0 %2503
      %2505 = vset.pattern.permute.xlu0 0
      %2506 = vperm.xlu0 %2505, %v2411
      %v2507 = vpop.permute.xlu0 %2506
      %2508 = vset.pattern.permute.xlu0 0
      %2509 = vperm.xlu0 %2508, %v2412
      %v2510 = vpop.permute.xlu0 %2509
      %2511 = vset.pattern.permute.xlu0 0
      %2512 = vperm.xlu0 %2511, %v2413
      %v2513 = vpop.permute.xlu0 %2512
      %2514 = vset.pattern.permute.xlu0 0
      %2515 = vperm.xlu0 %2514, %v2414
      %v2516 = vpop.permute.xlu0 %2515
      %2517 = vset.pattern.permute.xlu0 0
      %2518 = vperm.xlu0 %2517, %v2415
      %v2519 = vpop.permute.xlu0 %2518
      %2520 = vset.pattern.permute.xlu0 0
      %2521 = vperm.xlu0 %2520, %v2416
      %v2522 = vpop.permute.xlu0 %2521
      %2523 = vset.pattern.permute.xlu0 0
      %2524 = vperm.xlu0 %2523, %v2417
      %v2525 = vpop.permute.xlu0 %2524
      %2526 = vset.pattern.permute.xlu0 0
      %2527 = vperm.xlu0 %2526, %v2418
      %v2528 = vpop.permute.xlu0 %2527
      %2529 = vset.pattern.permute.xlu0 0
      %2530 = vperm.xlu0 %2529, %v2419
      %v2531 = vpop.permute.xlu0 %2530
      %2532 = vset.pattern.permute.xlu0 0
      %2533 = vperm.xlu0 %2532, %v2420
      %v2534 = vpop.permute.xlu0 %2533
      %2535 = vset.pattern.permute.xlu0 0
      %2536 = vperm.xlu0 %2535, %v2421
      %v2537 = vpop.permute.xlu0 %2536
      %2538 = vset.pattern.permute.xlu0 0
      %2539 = vperm.xlu0 %2538, %v2422
      %v2540 = vpop.permute.xlu0 %2539
      %2541 = vset.pattern.permute.xlu0 0
      %2542 = vperm.xlu0 %2541, %v2423
      %v2543 = vpop.permute.xlu0 %2542
      %2544 = vset.pattern.permute.xlu0 0
      %2545 = vperm.xlu0 %2544, %v2424
      %v2546 = vpop.permute.xlu0 %2545
      %2547 = vset.pattern.permute.xlu0 0
      %2548 = vperm.xlu0 %2547, %v2425
      %v2549 = vpop.permute.xlu0 %2548
      %2550 = vset.pattern.permute.xlu0 0
      %2551 = vperm.xlu0 %2550, %v2426
      %v2552 = vpop.permute.xlu0 %2551
      %2553 = vset.pattern.permute.xlu0 0
      %2554 = vperm.xlu0 %2553, %v2427
      %v2555 = vpop.permute.xlu0 %2554
      %2556 = vset.pattern.permute.xlu0 0
      %2557 = vperm.xlu0 %2556, %v2428
      %v2558 = vpop.permute.xlu0 %2557
      %2559 = vset.pattern.permute.xlu0 0
      %2560 = vperm.xlu0 %2559, %v2429
      %v2561 = vpop.permute.xlu0 %2560
      %2562 = vset.pattern.permute.xlu0 0
      %2563 = vperm.xlu0 %2562, %v2430
      %v2564 = vpop.permute.xlu0 %2563
      %2565 = vset.pattern.permute.xlu0 0
      %2566 = vperm.xlu0 %2565, %v2431
      %v2567 = vpop.permute.xlu0 %2566
      %2568 = vset.pattern.permute.xlu0 0
      %2569 = vperm.xlu0 %2568, %v2432
      %v2570 = vpop.permute.xlu0 %2569
      %2571 = vset.pattern.permute.xlu0 0
      %2572 = vperm.xlu0 %2571, %v2433
      %v2573 = vpop.permute.xlu0 %2572
      %2574 = vset.pattern.permute.xlu0 0
      %2575 = vperm.xlu0 %2574, %v2434
      %v2576 = vpop.permute.xlu0 %2575
      %2577 = vset.pattern.permute.xlu0 0
      %2578 = vperm.xlu0 %2577, %v2435
      %v2579 = vpop.permute.xlu0 %2578
      %2580 = vset.pattern.permute.xlu0 0
      %2581 = vperm.xlu0 %2580, %v2436
      %v2582 = vpop.permute.xlu0 %2581
      %2583 = vset.pattern.permute.xlu0 0
      %2584 = vperm.xlu0 %2583, %v2437
      %v2585 = vpop.permute.xlu0 %2584
      %2586 = vset.pattern.permute.xlu0 0
      %2587 = vperm.xlu0 %2586, %v2438
      %v2588 = vpop.permute.xlu0 %2587
      %2589 = vset.pattern.permute.xlu0 0
      %2590 = vperm.xlu0 %2589, %v2439
      %v2591 = vpop.permute.xlu0 %2590
      %2592 = vset.pattern.permute.xlu0 0
      %2593 = vperm.xlu0 %2592, %v2440
      %v2594 = vpop.permute.xlu0 %2593
      %2595 = vset.pattern.permute.xlu0 0
      %2596 = vperm.xlu0 %2595, %v2441
      %v2597 = vpop.permute.xlu0 %2596
      %2598 = vset.pattern.permute.xlu0 0
      %2599 = vperm.xlu0 %2598, %v2442
      %v2600 = vpop.permute.xlu0 %2599
      %2601 = vset.pattern.permute.xlu0 0
      %2602 = vperm.xlu0 %2601, %v2443
      %v2603 = vpop.permute.xlu0 %2602
      %2604 = vset.pattern.permute.xlu0 0
      %2605 = vperm.xlu0 %2604, %v2444
      %v2606 = vpop.permute.xlu0 %2605
      %2607 = vset.pattern.permute.xlu0 0
      %2608 = vperm.xlu0 %2607, %v2445
      %v2609 = vpop.permute.xlu0 %2608
      %2610 = vset.pattern.permute.xlu0 0
      %2611 = vperm.xlu0 %2610, %v2446
      %v2612 = vpop.permute.xlu0 %2611
      %2613 = vset.pattern.permute.xlu0 0
      %2614 = vperm.xlu0 %2613, %v2447
      %v2615 = vpop.permute.xlu0 %2614
      %2616 = vset.pattern.permute.xlu0 0
      %2617 = vperm.xlu0 %2616, %v2448
      %v2618 = vpop.permute.xlu0 %2617
      %2619 = vset.pattern.permute.xlu0 0
      %2620 = vperm.xlu0 %2619, %v2449
      %v2621 = vpop.permute.xlu0 %2620
      %2622 = vset.pattern.permute.xlu0 0
      %2623 = vperm.xlu0 %2622, %v2450
      %v2624 = vpop.permute.xlu0 %2623
      %2625 = vset.pattern.permute.xlu0 0
      %2626 = vperm.xlu0 %2625, %v2451
      %v2627 = vpop.permute.xlu0 %2626
      %2628 = vset.pattern.permute.xlu0 0
      %2629 = vperm.xlu0 %2628, %v2452
      %v2630 = vpop.permute.xlu0 %2629
      %2631 = vset.pattern.permute.xlu0 0
      %2632 = vperm.xlu0 %2631, %v2453
      %v2633 = vpop.permute.xlu0 %2632
      %2634 = vset.pattern.permute.xlu0 0
      %2635 = vperm.xlu0 %2634, %v2454
      %v2636 = vpop.permute.xlu0 %2635
      %2637 = vset.pattern.permute.xlu0 0
      %2638 = vperm.xlu0 %2637, %v2455
      %v2639 = vpop.permute.xlu0 %2638
      %2640 = vset.pattern.permute.xlu0 0
      %2641 = vperm.xlu0 %2640, %v2456
      %v2642 = vpop.permute.xlu0 %2641
      %2643 = vset.pattern.permute.xlu0 0
      %2644 = vperm.xlu0 %2643, %v2457
      %v2645 = vpop.permute.xlu0 %2644
      %2646 = vset.pattern.permute.xlu0 0
      %2647 = vperm.xlu0 %2646, %v2458
      %v2648 = vpop.permute.xlu0 %2647
      %2649 = vset.pattern.permute.xlu0 0
      %2650 = vperm.xlu0 %2649, %v2459
      %v2651 = vpop.permute.xlu0 %2650
      %vm2652 = vcmp.eq.s32.totalorder %v2462, %v1690
      %vm2653 = vcmp.eq.s32.totalorder %v2462, %v1691
      %vm2654 = vcmp.eq.s32.totalorder %v2465, %v1690
      %vm2655 = vcmp.eq.s32.totalorder %v2465, %v1691
      %vm2656 = vcmp.eq.s32.totalorder %v2468, %v1690
      %vm2657 = vcmp.eq.s32.totalorder %v2468, %v1691
      %vm2658 = vcmp.eq.s32.totalorder %v2471, %v1690
      %vm2659 = vcmp.eq.s32.totalorder %v2471, %v1691
      %vm2660 = vcmp.eq.s32.totalorder %v2474, %v1690
      %vm2661 = vcmp.eq.s32.totalorder %v2474, %v1691
      %vm2662 = vcmp.eq.s32.totalorder %v2477, %v1690
      %vm2663 = vcmp.eq.s32.totalorder %v2477, %v1691
      %vm2664 = vcmp.eq.s32.totalorder %v2480, %v1690
      %vm2665 = vcmp.eq.s32.totalorder %v2480, %v1691
      %vm2666 = vcmp.eq.s32.totalorder %v2483, %v1690
      %vm2667 = vcmp.eq.s32.totalorder %v2483, %v1691
      %vm2668 = vcmp.eq.s32.totalorder %v2486, %v1690
      %vm2669 = vcmp.eq.s32.totalorder %v2486, %v1691
      %vm2670 = vcmp.eq.s32.totalorder %v2489, %v1690
      %vm2671 = vcmp.eq.s32.totalorder %v2489, %v1691
      %vm2672 = vcmp.eq.s32.totalorder %v2492, %v1690
      %vm2673 = vcmp.eq.s32.totalorder %v2492, %v1691
      %vm2674 = vcmp.eq.s32.totalorder %v2495, %v1690
      %vm2675 = vcmp.eq.s32.totalorder %v2495, %v1691
      %vm2676 = vcmp.eq.s32.totalorder %v2498, %v1690
      %vm2677 = vcmp.eq.s32.totalorder %v2498, %v1691
      %vm2678 = vcmp.eq.s32.totalorder %v2501, %v1690
      %vm2679 = vcmp.eq.s32.totalorder %v2501, %v1691
      %vm2680 = vcmp.eq.s32.totalorder %v2504, %v1690
      %vm2681 = vcmp.eq.s32.totalorder %v2504, %v1691
      %vm2682 = vcmp.eq.s32.totalorder %v2507, %v1690
      %vm2683 = vcmp.eq.s32.totalorder %v2507, %v1691
      %vm2684 = vcmp.eq.s32.totalorder %v2510, %v1690
      %vm2685 = vcmp.eq.s32.totalorder %v2510, %v1691
      %vm2686 = vcmp.eq.s32.totalorder %v2513, %v1690
      %vm2687 = vcmp.eq.s32.totalorder %v2513, %v1691
      %vm2688 = vcmp.eq.s32.totalorder %v2516, %v1690
      %vm2689 = vcmp.eq.s32.totalorder %v2516, %v1691
      %vm2690 = vcmp.eq.s32.totalorder %v2519, %v1690
      %vm2691 = vcmp.eq.s32.totalorder %v2519, %v1691
      %vm2692 = vcmp.eq.s32.totalorder %v2522, %v1690
      %vm2693 = vcmp.eq.s32.totalorder %v2522, %v1691
      %vm2694 = vcmp.eq.s32.totalorder %v2525, %v1690
      %vm2695 = vcmp.eq.s32.totalorder %v2525, %v1691
      %vm2696 = vcmp.eq.s32.totalorder %v2528, %v1690
      %vm2697 = vcmp.eq.s32.totalorder %v2528, %v1691
      %vm2698 = vcmp.eq.s32.totalorder %v2531, %v1690
      %vm2699 = vcmp.eq.s32.totalorder %v2531, %v1691
      %vm2700 = vcmp.eq.s32.totalorder %v2534, %v1690
      %vm2701 = vcmp.eq.s32.totalorder %v2534, %v1691
      %vm2702 = vcmp.eq.s32.totalorder %v2537, %v1690
      %vm2703 = vcmp.eq.s32.totalorder %v2537, %v1691
      %vm2704 = vcmp.eq.s32.totalorder %v2540, %v1690
      %vm2705 = vcmp.eq.s32.totalorder %v2540, %v1691
      %vm2706 = vcmp.eq.s32.totalorder %v2543, %v1690
      %vm2707 = vcmp.eq.s32.totalorder %v2543, %v1691
      %vm2708 = vcmp.eq.s32.totalorder %v2546, %v1690
      %vm2709 = vcmp.eq.s32.totalorder %v2546, %v1691
      %vm2710 = vcmp.eq.s32.totalorder %v2549, %v1690
      %vm2711 = vcmp.eq.s32.totalorder %v2549, %v1691
      %vm2712 = vcmp.eq.s32.totalorder %v2552, %v1690
      %vm2713 = vcmp.eq.s32.totalorder %v2552, %v1691
      %vm2714 = vcmp.eq.s32.totalorder %v2555, %v1690
      %vm2715 = vcmp.eq.s32.totalorder %v2555, %v1691
      %vm2716 = vcmp.eq.s32.totalorder %v2558, %v1690
      %vm2717 = vcmp.eq.s32.totalorder %v2558, %v1691
      %vm2718 = vcmp.eq.s32.totalorder %v2561, %v1690
      %vm2719 = vcmp.eq.s32.totalorder %v2561, %v1691
      %vm2720 = vcmp.eq.s32.totalorder %v2564, %v1690
      %vm2721 = vcmp.eq.s32.totalorder %v2564, %v1691
      %vm2722 = vcmp.eq.s32.totalorder %v2567, %v1690
      %vm2723 = vcmp.eq.s32.totalorder %v2567, %v1691
      %vm2724 = vcmp.eq.s32.totalorder %v2570, %v1690
      %vm2725 = vcmp.eq.s32.totalorder %v2570, %v1691
      %vm2726 = vcmp.eq.s32.totalorder %v2573, %v1690
      %vm2727 = vcmp.eq.s32.totalorder %v2573, %v1691
      %vm2728 = vcmp.eq.s32.totalorder %v2576, %v1690
      %vm2729 = vcmp.eq.s32.totalorder %v2576, %v1691
      %vm2730 = vcmp.eq.s32.totalorder %v2579, %v1690
      %vm2731 = vcmp.eq.s32.totalorder %v2579, %v1691
      %vm2732 = vcmp.eq.s32.totalorder %v2582, %v1690
      %vm2733 = vcmp.eq.s32.totalorder %v2582, %v1691
      %vm2734 = vcmp.eq.s32.totalorder %v2585, %v1690
      %vm2735 = vcmp.eq.s32.totalorder %v2585, %v1691
      %vm2736 = vcmp.eq.s32.totalorder %v2588, %v1690
      %vm2737 = vcmp.eq.s32.totalorder %v2588, %v1691
      %vm2738 = vcmp.eq.s32.totalorder %v2591, %v1690
      %vm2739 = vcmp.eq.s32.totalorder %v2591, %v1691
      %vm2740 = vcmp.eq.s32.totalorder %v2594, %v1690
      %vm2741 = vcmp.eq.s32.totalorder %v2594, %v1691
      %vm2742 = vcmp.eq.s32.totalorder %v2597, %v1690
      %vm2743 = vcmp.eq.s32.totalorder %v2597, %v1691
      %vm2744 = vcmp.eq.s32.totalorder %v2600, %v1690
      %vm2745 = vcmp.eq.s32.totalorder %v2600, %v1691
      %vm2746 = vcmp.eq.s32.totalorder %v2603, %v1690
      %vm2747 = vcmp.eq.s32.totalorder %v2603, %v1691
      %vm2748 = vcmp.eq.s32.totalorder %v2606, %v1690
      %vm2749 = vcmp.eq.s32.totalorder %v2606, %v1691
      %vm2750 = vcmp.eq.s32.totalorder %v2609, %v1690
      %vm2751 = vcmp.eq.s32.totalorder %v2609, %v1691
      %vm2752 = vcmp.eq.s32.totalorder %v2612, %v1690
      %vm2753 = vcmp.eq.s32.totalorder %v2612, %v1691
      %vm2754 = vcmp.eq.s32.totalorder %v2615, %v1690
      %vm2755 = vcmp.eq.s32.totalorder %v2615, %v1691
      %vm2756 = vcmp.eq.s32.totalorder %v2618, %v1690
      %vm2757 = vcmp.eq.s32.totalorder %v2618, %v1691
      %vm2758 = vcmp.eq.s32.totalorder %v2621, %v1690
      %vm2759 = vcmp.eq.s32.totalorder %v2621, %v1691
      %vm2760 = vcmp.eq.s32.totalorder %v2624, %v1690
      %vm2761 = vcmp.eq.s32.totalorder %v2624, %v1691
      %vm2762 = vcmp.eq.s32.totalorder %v2627, %v1690
      %vm2763 = vcmp.eq.s32.totalorder %v2627, %v1691
      %vm2764 = vcmp.eq.s32.totalorder %v2630, %v1690
      %vm2765 = vcmp.eq.s32.totalorder %v2630, %v1691
      %vm2766 = vcmp.eq.s32.totalorder %v2633, %v1690
      %vm2767 = vcmp.eq.s32.totalorder %v2633, %v1691
      %vm2768 = vcmp.eq.s32.totalorder %v2636, %v1690
      %vm2769 = vcmp.eq.s32.totalorder %v2636, %v1691
      %vm2770 = vcmp.eq.s32.totalorder %v2639, %v1690
      %vm2771 = vcmp.eq.s32.totalorder %v2639, %v1691
      %vm2772 = vcmp.eq.s32.totalorder %v2642, %v1690
      %vm2773 = vcmp.eq.s32.totalorder %v2642, %v1691
      %vm2774 = vcmp.eq.s32.totalorder %v2645, %v1690
      %vm2775 = vcmp.eq.s32.totalorder %v2645, %v1691
      %vm2776 = vcmp.eq.s32.totalorder %v2648, %v1690
      %vm2777 = vcmp.eq.s32.totalorder %v2648, %v1691
      %vm2778 = vcmp.eq.s32.totalorder %v2651, %v1690
      %vm2779 = vcmp.eq.s32.totalorder %v2651, %v1691
      %v2780 = vsel %vm2652, 1, 0
      %v2781 = vsel %vm2653, 1, 0
      %v2782 = vsel %vm2654, 1, 0
      %v2783 = vsel %vm2655, 1, 0
      %v2784 = vsel %vm2656, 1, 0
      %v2785 = vsel %vm2657, 1, 0
      %v2786 = vsel %vm2658, 1, 0
      %v2787 = vsel %vm2659, 1, 0
      %v2788 = vsel %vm2660, 1, 0
      %v2789 = vsel %vm2661, 1, 0
      %v2790 = vsel %vm2662, 1, 0
      %v2791 = vsel %vm2663, 1, 0
      %v2792 = vsel %vm2664, 1, 0
      %v2793 = vsel %vm2665, 1, 0
      %v2794 = vsel %vm2666, 1, 0
      %v2795 = vsel %vm2667, 1, 0
      %v2796 = vsel %vm2668, 1, 0
      %v2797 = vsel %vm2669, 1, 0
      %v2798 = vsel %vm2670, 1, 0
      %v2799 = vsel %vm2671, 1, 0
      %v2800 = vsel %vm2672, 1, 0
      %v2801 = vsel %vm2673, 1, 0
      %v2802 = vsel %vm2674, 1, 0
      %v2803 = vsel %vm2675, 1, 0
      %v2804 = vsel %vm2676, 1, 0
      %v2805 = vsel %vm2677, 1, 0
      %v2806 = vsel %vm2678, 1, 0
      %v2807 = vsel %vm2679, 1, 0
      %v2808 = vsel %vm2680, 1, 0
      %v2809 = vsel %vm2681, 1, 0
      %v2810 = vsel %vm2682, 1, 0
      %v2811 = vsel %vm2683, 1, 0
      %v2812 = vsel %vm2684, 1, 0
      %v2813 = vsel %vm2685, 1, 0
      %v2814 = vsel %vm2686, 1, 0
      %v2815 = vsel %vm2687, 1, 0
      %v2816 = vsel %vm2688, 1, 0
      %v2817 = vsel %vm2689, 1, 0
      %v2818 = vsel %vm2690, 1, 0
      %v2819 = vsel %vm2691, 1, 0
      %v2820 = vsel %vm2692, 1, 0
      %v2821 = vsel %vm2693, 1, 0
      %v2822 = vsel %vm2694, 1, 0
      %v2823 = vsel %vm2695, 1, 0
      %v2824 = vsel %vm2696, 1, 0
      %v2825 = vsel %vm2697, 1, 0
      %v2826 = vsel %vm2698, 1, 0
      %v2827 = vsel %vm2699, 1, 0
      %v2828 = vsel %vm2700, 1, 0
      %v2829 = vsel %vm2701, 1, 0
      %v2830 = vsel %vm2702, 1, 0
      %v2831 = vsel %vm2703, 1, 0
      %v2832 = vsel %vm2704, 1, 0
      %v2833 = vsel %vm2705, 1, 0
      %v2834 = vsel %vm2706, 1, 0
      %v2835 = vsel %vm2707, 1, 0
      %v2836 = vsel %vm2708, 1, 0
      %v2837 = vsel %vm2709, 1, 0
      %v2838 = vsel %vm2710, 1, 0
      %v2839 = vsel %vm2711, 1, 0
      %v2840 = vsel %vm2712, 1, 0
      %v2841 = vsel %vm2713, 1, 0
      %v2842 = vsel %vm2714, 1, 0
      %v2843 = vsel %vm2715, 1, 0
      %v2844 = vsel %vm2716, 1, 0
      %v2845 = vsel %vm2717, 1, 0
      %v2846 = vsel %vm2718, 1, 0
      %v2847 = vsel %vm2719, 1, 0
      %v2848 = vsel %vm2720, 1, 0
      %v2849 = vsel %vm2721, 1, 0
      %v2850 = vsel %vm2722, 1, 0
      %v2851 = vsel %vm2723, 1, 0
      %v2852 = vsel %vm2724, 1, 0
      %v2853 = vsel %vm2725, 1, 0
      %v2854 = vsel %vm2726, 1, 0
      %v2855 = vsel %vm2727, 1, 0
      %v2856 = vsel %vm2728, 1, 0
      %v2857 = vsel %vm2729, 1, 0
      %v2858 = vsel %vm2730, 1, 0
      %v2859 = vsel %vm2731, 1, 0
      %v2860 = vsel %vm2732, 1, 0
      %v2861 = vsel %vm2733, 1, 0
      %v2862 = vsel %vm2734, 1, 0
      %v2863 = vsel %vm2735, 1, 0
      %v2864 = vsel %vm2736, 1, 0
      %v2865 = vsel %vm2737, 1, 0
      %v2866 = vsel %vm2738, 1, 0
      %v2867 = vsel %vm2739, 1, 0
      %v2868 = vsel %vm2740, 1, 0
      %v2869 = vsel %vm2741, 1, 0
      %v2870 = vsel %vm2742, 1, 0
      %v2871 = vsel %vm2743, 1, 0
      %v2872 = vsel %vm2744, 1, 0
      %v2873 = vsel %vm2745, 1, 0
      %v2874 = vsel %vm2746, 1, 0
      %v2875 = vsel %vm2747, 1, 0
      %v2876 = vsel %vm2748, 1, 0
      %v2877 = vsel %vm2749, 1, 0
      %v2878 = vsel %vm2750, 1, 0
      %v2879 = vsel %vm2751, 1, 0
      %v2880 = vsel %vm2752, 1, 0
      %v2881 = vsel %vm2753, 1, 0
      %v2882 = vsel %vm2754, 1, 0
      %v2883 = vsel %vm2755, 1, 0
      %v2884 = vsel %vm2756, 1, 0
      %v2885 = vsel %vm2757, 1, 0
      %v2886 = vsel %vm2758, 1, 0
      %v2887 = vsel %vm2759, 1, 0
      %v2888 = vsel %vm2760, 1, 0
      %v2889 = vsel %vm2761, 1, 0
      %v2890 = vsel %vm2762, 1, 0
      %v2891 = vsel %vm2763, 1, 0
      %v2892 = vsel %vm2764, 1, 0
      %v2893 = vsel %vm2765, 1, 0
      %v2894 = vsel %vm2766, 1, 0
      %v2895 = vsel %vm2767, 1, 0
      %v2896 = vsel %vm2768, 1, 0
      %v2897 = vsel %vm2769, 1, 0
      %v2898 = vsel %vm2770, 1, 0
      %v2899 = vsel %vm2771, 1, 0
      %v2900 = vsel %vm2772, 1, 0
      %v2901 = vsel %vm2773, 1, 0
      %v2902 = vsel %vm2774, 1, 0
      %v2903 = vsel %vm2775, 1, 0
      %v2904 = vsel %vm2776, 1, 0
      %v2905 = vsel %vm2777, 1, 0
      %v2906 = vsel %vm2778, 1, 0
      %v2907 = vsel %vm2779, 1, 0
      %v2908 = vcvt.s32.f32 %v2780
      %v2909 = vcvt.s32.f32 %v2781
      %v2910 = vcvt.s32.f32 %v2782
      %v2911 = vcvt.s32.f32 %v2783
      %v2912 = vcvt.s32.f32 %v2784
      %v2913 = vcvt.s32.f32 %v2785
      %v2914 = vcvt.s32.f32 %v2786
      %v2915 = vcvt.s32.f32 %v2787
      %v2916 = vcvt.s32.f32 %v2788
      %v2917 = vcvt.s32.f32 %v2789
      %v2918 = vcvt.s32.f32 %v2790
      %v2919 = vcvt.s32.f32 %v2791
      %v2920 = vcvt.s32.f32 %v2792
      %v2921 = vcvt.s32.f32 %v2793
      %v2922 = vcvt.s32.f32 %v2794
      %v2923 = vcvt.s32.f32 %v2795
      %v2924 = vcvt.s32.f32 %v2796
      %v2925 = vcvt.s32.f32 %v2797
      %v2926 = vcvt.s32.f32 %v2798
      %v2927 = vcvt.s32.f32 %v2799
      %v2928 = vcvt.s32.f32 %v2800
      %v2929 = vcvt.s32.f32 %v2801
      %v2930 = vcvt.s32.f32 %v2802
      %v2931 = vcvt.s32.f32 %v2803
      %v2932 = vcvt.s32.f32 %v2804
      %v2933 = vcvt.s32.f32 %v2805
      %v2934 = vcvt.s32.f32 %v2806
      %v2935 = vcvt.s32.f32 %v2807
      %v2936 = vcvt.s32.f32 %v2808
      %v2937 = vcvt.s32.f32 %v2809
      %v2938 = vcvt.s32.f32 %v2810
      %v2939 = vcvt.s32.f32 %v2811
      %v2940 = vcvt.s32.f32 %v2812
      %v2941 = vcvt.s32.f32 %v2813
      %v2942 = vcvt.s32.f32 %v2814
      %v2943 = vcvt.s32.f32 %v2815
      %v2944 = vcvt.s32.f32 %v2816
      %v2945 = vcvt.s32.f32 %v2817
      %v2946 = vcvt.s32.f32 %v2818
      %v2947 = vcvt.s32.f32 %v2819
      %v2948 = vcvt.s32.f32 %v2820
      %v2949 = vcvt.s32.f32 %v2821
      %v2950 = vcvt.s32.f32 %v2822
      %v2951 = vcvt.s32.f32 %v2823
      %v2952 = vcvt.s32.f32 %v2824
      %v2953 = vcvt.s32.f32 %v2825
      %v2954 = vcvt.s32.f32 %v2826
      %v2955 = vcvt.s32.f32 %v2827
      %v2956 = vcvt.s32.f32 %v2828
      %v2957 = vcvt.s32.f32 %v2829
      %v2958 = vcvt.s32.f32 %v2830
      %v2959 = vcvt.s32.f32 %v2831
      %v2960 = vcvt.s32.f32 %v2832
      %v2961 = vcvt.s32.f32 %v2833
      %v2962 = vcvt.s32.f32 %v2834
      %v2963 = vcvt.s32.f32 %v2835
      %v2964 = vcvt.s32.f32 %v2836
      %v2965 = vcvt.s32.f32 %v2837
      %v2966 = vcvt.s32.f32 %v2838
      %v2967 = vcvt.s32.f32 %v2839
      %v2968 = vcvt.s32.f32 %v2840
      %v2969 = vcvt.s32.f32 %v2841
      %v2970 = vcvt.s32.f32 %v2842
      %v2971 = vcvt.s32.f32 %v2843
      %v2972 = vcvt.s32.f32 %v2844
      %v2973 = vcvt.s32.f32 %v2845
      %v2974 = vcvt.s32.f32 %v2846
      %v2975 = vcvt.s32.f32 %v2847
      %v2976 = vcvt.s32.f32 %v2848
      %v2977 = vcvt.s32.f32 %v2849
      %v2978 = vcvt.s32.f32 %v2850
      %v2979 = vcvt.s32.f32 %v2851
      %v2980 = vcvt.s32.f32 %v2852
      %v2981 = vcvt.s32.f32 %v2853
      %v2982 = vcvt.s32.f32 %v2854
      %v2983 = vcvt.s32.f32 %v2855
      %v2984 = vcvt.s32.f32 %v2856
      %v2985 = vcvt.s32.f32 %v2857
      %v2986 = vcvt.s32.f32 %v2858
      %v2987 = vcvt.s32.f32 %v2859
      %v2988 = vcvt.s32.f32 %v2860
      %v2989 = vcvt.s32.f32 %v2861
      %v2990 = vcvt.s32.f32 %v2862
      %v2991 = vcvt.s32.f32 %v2863
      %v2992 = vcvt.s32.f32 %v2864
      %v2993 = vcvt.s32.f32 %v2865
      %v2994 = vcvt.s32.f32 %v2866
      %v2995 = vcvt.s32.f32 %v2867
      %v2996 = vcvt.s32.f32 %v2868
      %v2997 = vcvt.s32.f32 %v2869
      %v2998 = vcvt.s32.f32 %v2870
      %v2999 = vcvt.s32.f32 %v2871
      %v3000 = vcvt.s32.f32 %v2872
      %v3001 = vcvt.s32.f32 %v2873
      %v3002 = vcvt.s32.f32 %v2874
      %v3003 = vcvt.s32.f32 %v2875
      %v3004 = vcvt.s32.f32 %v2876
      %v3005 = vcvt.s32.f32 %v2877
      %v3006 = vcvt.s32.f32 %v2878
      %v3007 = vcvt.s32.f32 %v2879
      %v3008 = vcvt.s32.f32 %v2880
      %v3009 = vcvt.s32.f32 %v2881
      %v3010 = vcvt.s32.f32 %v2882
      %v3011 = vcvt.s32.f32 %v2883
      %v3012 = vcvt.s32.f32 %v2884
      %v3013 = vcvt.s32.f32 %v2885
      %v3014 = vcvt.s32.f32 %v2886
      %v3015 = vcvt.s32.f32 %v2887
      %v3016 = vcvt.s32.f32 %v2888
      %v3017 = vcvt.s32.f32 %v2889
      %v3018 = vcvt.s32.f32 %v2890
      %v3019 = vcvt.s32.f32 %v2891
      %v3020 = vcvt.s32.f32 %v2892
      %v3021 = vcvt.s32.f32 %v2893
      %v3022 = vcvt.s32.f32 %v2894
      %v3023 = vcvt.s32.f32 %v2895
      %v3024 = vcvt.s32.f32 %v2896
      %v3025 = vcvt.s32.f32 %v2897
      %v3026 = vcvt.s32.f32 %v2898
      %v3027 = vcvt.s32.f32 %v2899
      %v3028 = vcvt.s32.f32 %v2900
      %v3029 = vcvt.s32.f32 %v2901
      %v3030 = vcvt.s32.f32 %v2902
      %v3031 = vcvt.s32.f32 %v2903
      %v3032 = vcvt.s32.f32 %v2904
      %v3033 = vcvt.s32.f32 %v2905
      %v3034 = vcvt.s32.f32 %v2906
      %v3035 = vcvt.s32.f32 %v2907
      %v3036 = vpack.c.bf16 %v2910, %v2908
      %v3037 = vpack.c.bf16 %v2911, %v2909
      %v3038 = vpack.c.bf16 %v2914, %v2912
      %v3039 = vpack.c.bf16 %v2915, %v2913
      %v3040 = vpack.c.bf16 %v2918, %v2916
      %v3041 = vpack.c.bf16 %v2919, %v2917
      %v3042 = vpack.c.bf16 %v2922, %v2920
      %v3043 = vpack.c.bf16 %v2923, %v2921
      %v3044 = vpack.c.bf16 %v2926, %v2924
      %v3045 = vpack.c.bf16 %v2927, %v2925
      %v3046 = vpack.c.bf16 %v2930, %v2928
      %v3047 = vpack.c.bf16 %v2931, %v2929
      %v3048 = vpack.c.bf16 %v2934, %v2932
      %v3049 = vpack.c.bf16 %v2935, %v2933
      %v3050 = vpack.c.bf16 %v2938, %v2936
      %v3051 = vpack.c.bf16 %v2939, %v2937
      %v3052 = vpack.c.bf16 %v2942, %v2940
      %v3053 = vpack.c.bf16 %v2943, %v2941
      %v3054 = vpack.c.bf16 %v2946, %v2944
      %v3055 = vpack.c.bf16 %v2947, %v2945
      %v3056 = vpack.c.bf16 %v2950, %v2948
      %v3057 = vpack.c.bf16 %v2951, %v2949
      %v3058 = vpack.c.bf16 %v2954, %v2952
      %v3059 = vpack.c.bf16 %v2955, %v2953
      %v3060 = vpack.c.bf16 %v2958, %v2956
      %v3061 = vpack.c.bf16 %v2959, %v2957
      %v3062 = vpack.c.bf16 %v2962, %v2960
      %v3063 = vpack.c.bf16 %v2963, %v2961
      %v3064 = vpack.c.bf16 %v2966, %v2964
      %v3065 = vpack.c.bf16 %v2967, %v2965
      %v3066 = vpack.c.bf16 %v2970, %v2968
      %v3067 = vpack.c.bf16 %v2971, %v2969
      %v3068 = vpack.c.bf16 %v2974, %v2972
      %v3069 = vpack.c.bf16 %v2975, %v2973
      %v3070 = vpack.c.bf16 %v2978, %v2976
      %v3071 = vpack.c.bf16 %v2979, %v2977
      %v3072 = vpack.c.bf16 %v2982, %v2980
      %v3073 = vpack.c.bf16 %v2983, %v2981
      %v3074 = vpack.c.bf16 %v2986, %v2984
      %v3075 = vpack.c.bf16 %v2987, %v2985
      %v3076 = vpack.c.bf16 %v2990, %v2988
      %v3077 = vpack.c.bf16 %v2991, %v2989
      %v3078 = vpack.c.bf16 %v2994, %v2992
      %v3079 = vpack.c.bf16 %v2995, %v2993
      %v3080 = vpack.c.bf16 %v2998, %v2996
      %v3081 = vpack.c.bf16 %v2999, %v2997
      %v3082 = vpack.c.bf16 %v3002, %v3000
      %v3083 = vpack.c.bf16 %v3003, %v3001
      %v3084 = vpack.c.bf16 %v3006, %v3004
      %v3085 = vpack.c.bf16 %v3007, %v3005
      %v3086 = vpack.c.bf16 %v3010, %v3008
      %v3087 = vpack.c.bf16 %v3011, %v3009
      %v3088 = vpack.c.bf16 %v3014, %v3012
      %v3089 = vpack.c.bf16 %v3015, %v3013
      %v3090 = vpack.c.bf16 %v3018, %v3016
      %v3091 = vpack.c.bf16 %v3019, %v3017
      %v3092 = vpack.c.bf16 %v3022, %v3020
      %v3093 = vpack.c.bf16 %v3023, %v3021
      %v3094 = vpack.c.bf16 %v3026, %v3024
      %v3095 = vpack.c.bf16 %v3027, %v3025
      %v3096 = vpack.c.bf16 %v3030, %v3028
      %v3097 = vpack.c.bf16 %v3031, %v3029
      %v3098 = vpack.c.bf16 %v3034, %v3032
      %v3099 = vpack.c.bf16 %v3035, %v3033
      %v3100 = vld [vmem:[%s4] sm:$0xf]
      %v3101 = vld [vmem:[%s4 + $0x4] sm:$0xf]
      %v3102 = vld [vmem:[%s4 + $0x8] sm:$0xf]
      %v3103 = vld [vmem:[%s4 + $0xc] sm:$0xf]
      %v3104 = vld [vmem:[%s4 + $0x10] sm:$0xf]
      %v3105 = vld [vmem:[%s4 + $0x14] sm:$0xf]
      %v3106 = vld [vmem:[%s4 + $0x18] sm:$0xf]
      %v3107 = vld [vmem:[%s4 + $0x1c] sm:$0xf]
      %v3108 = vld [vmem:[%s4 + $0x20] sm:$0xf]
      %v3109 = vld [vmem:[%s4 + $0x24] sm:$0xf]
      %v3110 = vld [vmem:[%s4 + $0x28] sm:$0xf]
      %v3111 = vld [vmem:[%s4 + $0x2c] sm:$0xf]
      %v3112 = vld [vmem:[%s4 + $0x30] sm:$0xf]
      %v3113 = vld [vmem:[%s4 + $0x34] sm:$0xf]
      %v3114 = vld [vmem:[%s4 + $0x38] sm:$0xf]
      %v3115 = vld [vmem:[%s4 + $0x3c] sm:$0xf]
      %v3116 = vld [vmem:[%s4 + $0x40] sm:$0xf]
      %v3117 = vld [vmem:[%s4 + $0x44] sm:$0xf]
      %v3118 = vld [vmem:[%s4 + $0x48] sm:$0xf]
      %v3119 = vld [vmem:[%s4 + $0x4c] sm:$0xf]
      %v3120 = vld [vmem:[%s4 + $0x50] sm:$0xf]
      %v3121 = vld [vmem:[%s4 + $0x54] sm:$0xf]
      %v3122 = vld [vmem:[%s4 + $0x58] sm:$0xf]
      %v3123 = vld [vmem:[%s4 + $0x5c] sm:$0xf]
      %v3124 = vld [vmem:[%s4 + $0x60] sm:$0xf]
      %v3125 = vld [vmem:[%s4 + $0x64] sm:$0xf]
      %v3126 = vld [vmem:[%s4 + $0x68] sm:$0xf]
      %v3127 = vld [vmem:[%s4 + $0x6c] sm:$0xf]
      %v3128 = vld [vmem:[%s4 + $0x70] sm:$0xf]
      %v3129 = vld [vmem:[%s4 + $0x74] sm:$0xf]
      %v3130 = vld [vmem:[%s4 + $0x78] sm:$0xf]
      %v3131 = vld [vmem:[%s4 + $0x7c] sm:$0xf]
      %v3132 = vld [vmem:[%s5] sm:$0xf]
      %v3133 = vld [vmem:[%s5 + $0x4] sm:$0xf]
      %v3134 = vld [vmem:[%s5 + $0x8] sm:$0xf]
      %v3135 = vld [vmem:[%s5 + $0xc] sm:$0xf]
      %v3136 = vld [vmem:[%s5 + $0x10] sm:$0xf]
      %v3137 = vld [vmem:[%s5 + $0x14] sm:$0xf]
      %v3138 = vld [vmem:[%s5 + $0x18] sm:$0xf]
      %v3139 = vld [vmem:[%s5 + $0x1c] sm:$0xf]
      %v3140 = vld [vmem:[%s5 + $0x20] sm:$0xf]
      %v3141 = vld [vmem:[%s5 + $0x24] sm:$0xf]
      %v3142 = vld [vmem:[%s5 + $0x28] sm:$0xf]
      %v3143 = vld [vmem:[%s5 + $0x2c] sm:$0xf]
      %v3144 = vld [vmem:[%s5 + $0x30] sm:$0xf]
      %v3145 = vld [vmem:[%s5 + $0x34] sm:$0xf]
      %v3146 = vld [vmem:[%s5 + $0x38] sm:$0xf]
      %v3147 = vld [vmem:[%s5 + $0x3c] sm:$0xf]
      %v3148 = vld [vmem:[%s5 + $0x40] sm:$0xf]
      %v3149 = vld [vmem:[%s5 + $0x44] sm:$0xf]
      %v3150 = vld [vmem:[%s5 + $0x48] sm:$0xf]
      %v3151 = vld [vmem:[%s5 + $0x4c] sm:$0xf]
      %v3152 = vld [vmem:[%s5 + $0x50] sm:$0xf]
      %v3153 = vld [vmem:[%s5 + $0x54] sm:$0xf]
      %v3154 = vld [vmem:[%s5 + $0x58] sm:$0xf]
      %v3155 = vld [vmem:[%s5 + $0x5c] sm:$0xf]
      %v3156 = vld [vmem:[%s5 + $0x60] sm:$0xf]
      %v3157 = vld [vmem:[%s5 + $0x64] sm:$0xf]
      %v3158 = vld [vmem:[%s5 + $0x68] sm:$0xf]
      %v3159 = vld [vmem:[%s5 + $0x6c] sm:$0xf]
      %v3160 = vld [vmem:[%s5 + $0x70] sm:$0xf]
      %v3161 = vld [vmem:[%s5 + $0x74] sm:$0xf]
      %v3162 = vld [vmem:[%s5 + $0x78] sm:$0xf]
      %v3163 = vld [vmem:[%s5 + $0x7c] sm:$0xf]
      %v3196 = vunpack.c.l.b16 %v3132
      %v3197 = vunpack.c.l.b16 %v3133
      %v3198 = vunpack.c.l.b16 %v3134
      %v3199 = vunpack.c.l.b16 %v3135
      %v3200 = vunpack.c.l.b16 %v3136
      %v3201 = vunpack.c.l.b16 %v3137
      %v3202 = vunpack.c.l.b16 %v3138
      %v3203 = vunpack.c.l.b16 %v3139
      %v3204 = vunpack.c.l.b16 %v3140
      %v3205 = vunpack.c.l.b16 %v3141
      %v3206 = vunpack.c.l.b16 %v3142
      %v3207 = vunpack.c.l.b16 %v3143
      %v3208 = vunpack.c.l.b16 %v3144
      %v3209 = vunpack.c.l.b16 %v3145
      %v3210 = vunpack.c.l.b16 %v3146
      %v3211 = vunpack.c.l.b16 %v3147
      %v3212 = vunpack.c.l.b16 %v3148
      %v3213 = vunpack.c.l.b16 %v3149
      %v3214 = vunpack.c.l.b16 %v3150
      %v3215 = vunpack.c.l.b16 %v3151
      %v3216 = vunpack.c.l.b16 %v3152
      %v3217 = vunpack.c.l.b16 %v3153
      %v3218 = vunpack.c.l.b16 %v3154
      %v3219 = vunpack.c.l.b16 %v3155
      %v3220 = vunpack.c.l.b16 %v3156
      %v3221 = vunpack.c.l.b16 %v3157
      %v3222 = vunpack.c.l.b16 %v3158
      %v3223 = vunpack.c.l.b16 %v3159
      %v3224 = vunpack.c.l.b16 %v3160
      %v3225 = vunpack.c.l.b16 %v3161
      %v3226 = vunpack.c.l.b16 %v3162
      %v3227 = vunpack.c.l.b16 %v3163
      %v3228 = vpack.c.b16 %v3197, %v3196
      %v3229 = vpack.c.b16 %v3199, %v3198
      %v3230 = vpack.c.b16 %v3201, %v3200
      %v3231 = vpack.c.b16 %v3203, %v3202
      %v3232 = vpack.c.b16 %v3205, %v3204
      %v3233 = vpack.c.b16 %v3207, %v3206
      %v3234 = vpack.c.b16 %v3209, %v3208
      %v3235 = vpack.c.b16 %v3211, %v3210
      %v3236 = vpack.c.b16 %v3213, %v3212
      %v3237 = vpack.c.b16 %v3215, %v3214
      %v3238 = vpack.c.b16 %v3217, %v3216
      %v3239 = vpack.c.b16 %v3219, %v3218
      %v3240 = vpack.c.b16 %v3221, %v3220
      %v3241 = vpack.c.b16 %v3223, %v3222
      %v3242 = vpack.c.b16 %v3225, %v3224
      %v3243 = vpack.c.b16 %v3227, %v3226
      %3260 = vmatpush.bf16.msra.mxu0 %v3235
      %3261 = vmatpush.bf16.msra.mxu0 %v3234
      %3262 = vmatpush.bf16.msra.mxu0 %v3233
      %3263 = vmatpush.bf16.msra.mxu0 %v3232
      %3264 = vmatpush.bf16.msra.mxu0 %v3231
      %3265 = vmatpush.bf16.msra.mxu0 %v3230
      %3266 = vmatpush.bf16.msra.mxu0 %v3229
      %3267 = vmatpush.bf16.msra.mxu0 %v3228
      %3268 = vmatmul.bf16.gmra.mxu0 %v3036
      %v3269 = vpop.f32.mrf.mxu0
      %v3270 = vadd.f32 0.0, %v3269
      %v3271 = vpop.f32.mrf.mxu0
      %v3272 = vadd.f32 0.0, %v3271
      %3273 = vmatmul.bf16.gmra.mxu0 %v3038
      %v3274 = vpop.f32.mrf.mxu0
      %v3275 = vadd.f32 0.0, %v3274
      %v3276 = vpop.f32.mrf.mxu0
      %v3277 = vadd.f32 0.0, %v3276
      %3278 = vmatmul.bf16.gmra.mxu0 %v3040
      %v3279 = vpop.f32.mrf.mxu0
      %v3280 = vadd.f32 0.0, %v3279
      %v3281 = vpop.f32.mrf.mxu0
      %v3282 = vadd.f32 0.0, %v3281
      %3283 = vmatmul.bf16.gmra.mxu0 %v3042
      %v3284 = vpop.f32.mrf.mxu0
      %v3285 = vadd.f32 0.0, %v3284
      %v3286 = vpop.f32.mrf.mxu0
      %v3287 = vadd.f32 0.0, %v3286
      %3288 = vmatmul.bf16.gmra.mxu0 %v3044
      %v3289 = vpop.f32.mrf.mxu0
      %v3290 = vadd.f32 0.0, %v3289
      %v3291 = vpop.f32.mrf.mxu0
      %v3292 = vadd.f32 0.0, %v3291
      %3293 = vmatmul.bf16.gmra.mxu0 %v3046
      %v3294 = vpop.f32.mrf.mxu0
      %v3295 = vadd.f32 0.0, %v3294
      %v3296 = vpop.f32.mrf.mxu0
      %v3297 = vadd.f32 0.0, %v3296
      %3298 = vmatmul.bf16.gmra.mxu0 %v3048
      %v3299 = vpop.f32.mrf.mxu0
      %v3300 = vadd.f32 0.0, %v3299
      %v3301 = vpop.f32.mrf.mxu0
      %v3302 = vadd.f32 0.0, %v3301
      %3303 = vmatmul.bf16.gmra.mxu0 %v3050
      %v3304 = vpop.f32.mrf.mxu0
      %v3305 = vadd.f32 0.0, %v3304
      %v3306 = vpop.f32.mrf.mxu0
      %v3307 = vadd.f32 0.0, %v3306
      %3308 = vmatmul.bf16.gmra.mxu0 %v3052
      %v3309 = vpop.f32.mrf.mxu0
      %v3310 = vadd.f32 0.0, %v3309
      %v3311 = vpop.f32.mrf.mxu0
      %v3312 = vadd.f32 0.0, %v3311
      %3313 = vmatmul.bf16.gmra.mxu0 %v3054
      %v3314 = vpop.f32.mrf.mxu0
      %v3315 = vadd.f32 0.0, %v3314
      %v3316 = vpop.f32.mrf.mxu0
      %v3317 = vadd.f32 0.0, %v3316
      %3318 = vmatmul.bf16.gmra.mxu0 %v3056
      %v3319 = vpop.f32.mrf.mxu0
      %v3320 = vadd.f32 0.0, %v3319
      %v3321 = vpop.f32.mrf.mxu0
      %v3322 = vadd.f32 0.0, %v3321
      %3323 = vmatmul.bf16.gmra.mxu0 %v3058
      %v3324 = vpop.f32.mrf.mxu0
      %v3325 = vadd.f32 0.0, %v3324
      %v3326 = vpop.f32.mrf.mxu0
      %v3327 = vadd.f32 0.0, %v3326
      %3328 = vmatmul.bf16.gmra.mxu0 %v3060
      %v3329 = vpop.f32.mrf.mxu0
      %v3330 = vadd.f32 0.0, %v3329
      %v3331 = vpop.f32.mrf.mxu0
      %v3332 = vadd.f32 0.0, %v3331
      %3333 = vmatmul.bf16.gmra.mxu0 %v3062
      %v3334 = vpop.f32.mrf.mxu0
      %v3335 = vadd.f32 0.0, %v3334
      %v3336 = vpop.f32.mrf.mxu0
      %v3337 = vadd.f32 0.0, %v3336
      %3338 = vmatmul.bf16.gmra.mxu0 %v3064
      %v3339 = vpop.f32.mrf.mxu0
      %v3340 = vadd.f32 0.0, %v3339
      %v3341 = vpop.f32.mrf.mxu0
      %v3342 = vadd.f32 0.0, %v3341
      %3343 = vmatmul.bf16.gmra.mxu0 %v3066
      %v3344 = vpop.f32.mrf.mxu0
      %v3345 = vadd.f32 0.0, %v3344
      %v3346 = vpop.f32.mrf.mxu0
      %v3347 = vadd.f32 0.0, %v3346
      %3348 = vmatmul.bf16.gmra.mxu0 %v3068
      %v3349 = vpop.f32.mrf.mxu0
      %v3350 = vadd.f32 0.0, %v3349
      %v3351 = vpop.f32.mrf.mxu0
      %v3352 = vadd.f32 0.0, %v3351
      %3353 = vmatmul.bf16.gmra.mxu0 %v3070
      %v3354 = vpop.f32.mrf.mxu0
      %v3355 = vadd.f32 0.0, %v3354
      %v3356 = vpop.f32.mrf.mxu0
      %v3357 = vadd.f32 0.0, %v3356
      %3358 = vmatmul.bf16.gmra.mxu0 %v3072
      %v3359 = vpop.f32.mrf.mxu0
      %v3360 = vadd.f32 0.0, %v3359
      %v3361 = vpop.f32.mrf.mxu0
      %v3362 = vadd.f32 0.0, %v3361
      %3363 = vmatmul.bf16.gmra.mxu0 %v3074
      %v3364 = vpop.f32.mrf.mxu0
      %v3365 = vadd.f32 0.0, %v3364
      %v3366 = vpop.f32.mrf.mxu0
      %v3367 = vadd.f32 0.0, %v3366
      %3368 = vmatmul.bf16.gmra.mxu0 %v3076
      %v3369 = vpop.f32.mrf.mxu0
      %v3370 = vadd.f32 0.0, %v3369
      %v3371 = vpop.f32.mrf.mxu0
      %v3372 = vadd.f32 0.0, %v3371
      %3373 = vmatmul.bf16.gmra.mxu0 %v3078
      %v3374 = vpop.f32.mrf.mxu0
      %v3375 = vadd.f32 0.0, %v3374
      %v3376 = vpop.f32.mrf.mxu0
      %v3377 = vadd.f32 0.0, %v3376
      %3378 = vmatmul.bf16.gmra.mxu0 %v3080
      %v3379 = vpop.f32.mrf.mxu0
      %v3380 = vadd.f32 0.0, %v3379
      %v3381 = vpop.f32.mrf.mxu0
      %v3382 = vadd.f32 0.0, %v3381
      %3383 = vmatmul.bf16.gmra.mxu0 %v3082
      %v3384 = vpop.f32.mrf.mxu0
      %v3385 = vadd.f32 0.0, %v3384
      %v3386 = vpop.f32.mrf.mxu0
      %v3387 = vadd.f32 0.0, %v3386
      %3388 = vmatmul.bf16.gmra.mxu0 %v3084
      %v3389 = vpop.f32.mrf.mxu0
      %v3390 = vadd.f32 0.0, %v3389
      %v3391 = vpop.f32.mrf.mxu0
      %v3392 = vadd.f32 0.0, %v3391
      %3393 = vmatmul.bf16.gmra.mxu0 %v3086
      %v3394 = vpop.f32.mrf.mxu0
      %v3395 = vadd.f32 0.0, %v3394
      %v3396 = vpop.f32.mrf.mxu0
      %v3397 = vadd.f32 0.0, %v3396
      %3398 = vmatmul.bf16.gmra.mxu0 %v3088
      %v3399 = vpop.f32.mrf.mxu0
      %v3400 = vadd.f32 0.0, %v3399
      %v3401 = vpop.f32.mrf.mxu0
      %v3402 = vadd.f32 0.0, %v3401
      %3403 = vmatmul.bf16.gmra.mxu0 %v3090
      %v3404 = vpop.f32.mrf.mxu0
      %v3405 = vadd.f32 0.0, %v3404
      %v3406 = vpop.f32.mrf.mxu0
      %v3407 = vadd.f32 0.0, %v3406
      %3408 = vmatmul.bf16.gmra.mxu0 %v3092
      %v3409 = vpop.f32.mrf.mxu0
      %v3410 = vadd.f32 0.0, %v3409
      %v3411 = vpop.f32.mrf.mxu0
      %v3412 = vadd.f32 0.0, %v3411
      %3413 = vmatmul.bf16.gmra.mxu0 %v3094
      %v3414 = vpop.f32.mrf.mxu0
      %v3415 = vadd.f32 0.0, %v3414
      %v3416 = vpop.f32.mrf.mxu0
      %v3417 = vadd.f32 0.0, %v3416
      %3418 = vmatmul.bf16.gmra.mxu0 %v3096
      %v3419 = vpop.f32.mrf.mxu0
      %v3420 = vadd.f32 0.0, %v3419
      %v3421 = vpop.f32.mrf.mxu0
      %v3422 = vadd.f32 0.0, %v3421
      %3423 = vmatmul.bf16.gmra.mxu0 %v3098
      %v3424 = vpop.f32.mrf.mxu0
      %v3425 = vadd.f32 0.0, %v3424
      %v3426 = vpop.f32.mrf.mxu0
      %v3427 = vadd.f32 0.0, %v3426
      %3428 = vdwg.mxu0
      %3429 = vmatpush.bf16.msra.mxu0 %v3243
      %3430 = vmatpush.bf16.msra.mxu0 %v3242
      %3431 = vmatpush.bf16.msra.mxu0 %v3241
      %3432 = vmatpush.bf16.msra.mxu0 %v3240
      %3433 = vmatpush.bf16.msra.mxu0 %v3239
      %3434 = vmatpush.bf16.msra.mxu0 %v3238
      %3435 = vmatpush.bf16.msra.mxu0 %v3237
      %3436 = vmatpush.bf16.msra.mxu0 %v3236
      %3437 = vmatmul.bf16.gmra.mxu0 %v3037
      %v3438 = vpop.f32.mrf.mxu0
      %v3439 = vadd.f32 %v3270, %v3438
      %v3440 = vpop.f32.mrf.mxu0
      %v3441 = vadd.f32 %v3272, %v3440
      %3442 = vmatmul.bf16.gmra.mxu0 %v3039
      %v3443 = vpop.f32.mrf.mxu0
      %v3444 = vadd.f32 %v3275, %v3443
      %v3445 = vpop.f32.mrf.mxu0
      %v3446 = vadd.f32 %v3277, %v3445
      %3447 = vmatmul.bf16.gmra.mxu0 %v3041
      %v3448 = vpop.f32.mrf.mxu0
      %v3449 = vadd.f32 %v3280, %v3448
      %v3450 = vpop.f32.mrf.mxu0
      %v3451 = vadd.f32 %v3282, %v3450
      %3452 = vmatmul.bf16.gmra.mxu0 %v3043
      %v3453 = vpop.f32.mrf.mxu0
      %v3454 = vadd.f32 %v3285, %v3453
      %v3455 = vpop.f32.mrf.mxu0
      %v3456 = vadd.f32 %v3287, %v3455
      %3457 = vmatmul.bf16.gmra.mxu0 %v3045
      %v3458 = vpop.f32.mrf.mxu0
      %v3459 = vadd.f32 %v3290, %v3458
      %v3460 = vpop.f32.mrf.mxu0
      %v3461 = vadd.f32 %v3292, %v3460
      %3462 = vmatmul.bf16.gmra.mxu0 %v3047
      %v3463 = vpop.f32.mrf.mxu0
      %v3464 = vadd.f32 %v3295, %v3463
      %v3465 = vpop.f32.mrf.mxu0
      %v3466 = vadd.f32 %v3297, %v3465
      %3467 = vmatmul.bf16.gmra.mxu0 %v3049
      %v3468 = vpop.f32.mrf.mxu0
      %v3469 = vadd.f32 %v3300, %v3468
      %v3470 = vpop.f32.mrf.mxu0
      %v3471 = vadd.f32 %v3302, %v3470
      %3472 = vmatmul.bf16.gmra.mxu0 %v3051
      %v3473 = vpop.f32.mrf.mxu0
      %v3474 = vadd.f32 %v3305, %v3473
      %v3475 = vpop.f32.mrf.mxu0
      %v3476 = vadd.f32 %v3307, %v3475
      %3477 = vmatmul.bf16.gmra.mxu0 %v3053
      %v3478 = vpop.f32.mrf.mxu0
      %v3479 = vadd.f32 %v3310, %v3478
      %v3480 = vpop.f32.mrf.mxu0
      %v3481 = vadd.f32 %v3312, %v3480
      %3482 = vmatmul.bf16.gmra.mxu0 %v3055
      %v3483 = vpop.f32.mrf.mxu0
      %v3484 = vadd.f32 %v3315, %v3483
      %v3485 = vpop.f32.mrf.mxu0
      %v3486 = vadd.f32 %v3317, %v3485
      %3487 = vmatmul.bf16.gmra.mxu0 %v3057
      %v3488 = vpop.f32.mrf.mxu0
      %v3489 = vadd.f32 %v3320, %v3488
      %v3490 = vpop.f32.mrf.mxu0
      %v3491 = vadd.f32 %v3322, %v3490
      %3492 = vmatmul.bf16.gmra.mxu0 %v3059
      %v3493 = vpop.f32.mrf.mxu0
      %v3494 = vadd.f32 %v3325, %v3493
      %v3495 = vpop.f32.mrf.mxu0
      %v3496 = vadd.f32 %v3327, %v3495
      %3497 = vmatmul.bf16.gmra.mxu0 %v3061
      %v3498 = vpop.f32.mrf.mxu0
      %v3499 = vadd.f32 %v3330, %v3498
      %v3500 = vpop.f32.mrf.mxu0
      %v3501 = vadd.f32 %v3332, %v3500
      %3502 = vmatmul.bf16.gmra.mxu0 %v3063
      %v3503 = vpop.f32.mrf.mxu0
      %v3504 = vadd.f32 %v3335, %v3503
      %v3505 = vpop.f32.mrf.mxu0
      %v3506 = vadd.f32 %v3337, %v3505
      %3507 = vmatmul.bf16.gmra.mxu0 %v3065
      %v3508 = vpop.f32.mrf.mxu0
      %v3509 = vadd.f32 %v3340, %v3508
      %v3510 = vpop.f32.mrf.mxu0
      %v3511 = vadd.f32 %v3342, %v3510
      %3512 = vmatmul.bf16.gmra.mxu0 %v3067
      %v3513 = vpop.f32.mrf.mxu0
      %v3514 = vadd.f32 %v3345, %v3513
      %v3515 = vpop.f32.mrf.mxu0
      %v3516 = vadd.f32 %v3347, %v3515
      %3517 = vmatmul.bf16.gmra.mxu0 %v3069
      %v3518 = vpop.f32.mrf.mxu0
      %v3519 = vadd.f32 %v3350, %v3518
      %v3520 = vpop.f32.mrf.mxu0
      %v3521 = vadd.f32 %v3352, %v3520
      %3522 = vmatmul.bf16.gmra.mxu0 %v3071
      %v3523 = vpop.f32.mrf.mxu0
      %v3524 = vadd.f32 %v3355, %v3523
      %v3525 = vpop.f32.mrf.mxu0
      %v3526 = vadd.f32 %v3357, %v3525
      %3527 = vmatmul.bf16.gmra.mxu0 %v3073
      %v3528 = vpop.f32.mrf.mxu0
      %v3529 = vadd.f32 %v3360, %v3528
      %v3530 = vpop.f32.mrf.mxu0
      %v3531 = vadd.f32 %v3362, %v3530
      %3532 = vmatmul.bf16.gmra.mxu0 %v3075
      %v3533 = vpop.f32.mrf.mxu0
      %v3534 = vadd.f32 %v3365, %v3533
      %v3535 = vpop.f32.mrf.mxu0
      %v3536 = vadd.f32 %v3367, %v3535
      %3537 = vmatmul.bf16.gmra.mxu0 %v3077
      %v3538 = vpop.f32.mrf.mxu0
      %v3539 = vadd.f32 %v3370, %v3538
      %v3540 = vpop.f32.mrf.mxu0
      %v3541 = vadd.f32 %v3372, %v3540
      %3542 = vmatmul.bf16.gmra.mxu0 %v3079
      %v3543 = vpop.f32.mrf.mxu0
      %v3544 = vadd.f32 %v3375, %v3543
      %v3545 = vpop.f32.mrf.mxu0
      %v3546 = vadd.f32 %v3377, %v3545
      %3547 = vmatmul.bf16.gmra.mxu0 %v3081
      %v3548 = vpop.f32.mrf.mxu0
      %v3549 = vadd.f32 %v3380, %v3548
      %v3550 = vpop.f32.mrf.mxu0
      %v3551 = vadd.f32 %v3382, %v3550
      %3552 = vmatmul.bf16.gmra.mxu0 %v3083
      %v3553 = vpop.f32.mrf.mxu0
      %v3554 = vadd.f32 %v3385, %v3553
      %v3555 = vpop.f32.mrf.mxu0
      %v3556 = vadd.f32 %v3387, %v3555
      %3557 = vmatmul.bf16.gmra.mxu0 %v3085
      %v3558 = vpop.f32.mrf.mxu0
      %v3559 = vadd.f32 %v3390, %v3558
      %v3560 = vpop.f32.mrf.mxu0
      %v3561 = vadd.f32 %v3392, %v3560
      %3562 = vmatmul.bf16.gmra.mxu0 %v3087
      %v3563 = vpop.f32.mrf.mxu0
      %v3564 = vadd.f32 %v3395, %v3563
      %v3565 = vpop.f32.mrf.mxu0
      %v3566 = vadd.f32 %v3397, %v3565
      %3567 = vmatmul.bf16.gmra.mxu0 %v3089
      %v3568 = vpop.f32.mrf.mxu0
      %v3569 = vadd.f32 %v3400, %v3568
      %v3570 = vpop.f32.mrf.mxu0
      %v3571 = vadd.f32 %v3402, %v3570
      %3572 = vmatmul.bf16.gmra.mxu0 %v3091
      %v3573 = vpop.f32.mrf.mxu0
      %v3574 = vadd.f32 %v3405, %v3573
      %v3575 = vpop.f32.mrf.mxu0
      %v3576 = vadd.f32 %v3407, %v3575
      %3577 = vmatmul.bf16.gmra.mxu0 %v3093
      %v3578 = vpop.f32.mrf.mxu0
      %v3579 = vadd.f32 %v3410, %v3578
      %v3580 = vpop.f32.mrf.mxu0
      %v3581 = vadd.f32 %v3412, %v3580
      %3582 = vmatmul.bf16.gmra.mxu0 %v3095
      %v3583 = vpop.f32.mrf.mxu0
      %v3584 = vadd.f32 %v3415, %v3583
      %v3585 = vpop.f32.mrf.mxu0
      %v3586 = vadd.f32 %v3417, %v3585
      %3587 = vmatmul.bf16.gmra.mxu0 %v3097
      %v3588 = vpop.f32.mrf.mxu0
      %v3589 = vadd.f32 %v3420, %v3588
      %v3590 = vpop.f32.mrf.mxu0
      %v3591 = vadd.f32 %v3422, %v3590
      %3592 = vmatmul.bf16.gmra.mxu0 %v3099
      %v3593 = vpop.f32.mrf.mxu0
      %v3594 = vadd.f32 %v3425, %v3593
      %v3595 = vpop.f32.mrf.mxu0
      %v3596 = vadd.f32 %v3427, %v3595
      %3597 = vdwg.mxu0
      %v3630 = vunpack.c.l.b16 %v3100
      %v3631 = vunpack.c.l.b16 %v3101
      %v3632 = vunpack.c.l.b16 %v3102
      %v3633 = vunpack.c.l.b16 %v3103
      %v3634 = vunpack.c.l.b16 %v3104
      %v3635 = vunpack.c.l.b16 %v3105
      %v3636 = vunpack.c.l.b16 %v3106
      %v3637 = vunpack.c.l.b16 %v3107
      %v3638 = vunpack.c.l.b16 %v3108
      %v3639 = vunpack.c.l.b16 %v3109
      %v3640 = vunpack.c.l.b16 %v3110
      %v3641 = vunpack.c.l.b16 %v3111
      %v3642 = vunpack.c.l.b16 %v3112
      %v3643 = vunpack.c.l.b16 %v3113
      %v3644 = vunpack.c.l.b16 %v3114
      %v3645 = vunpack.c.l.b16 %v3115
      %v3646 = vunpack.c.l.b16 %v3116
      %v3647 = vunpack.c.l.b16 %v3117
      %v3648 = vunpack.c.l.b16 %v3118
      %v3649 = vunpack.c.l.b16 %v3119
      %v3650 = vunpack.c.l.b16 %v3120
      %v3651 = vunpack.c.l.b16 %v3121
      %v3652 = vunpack.c.l.b16 %v3122
      %v3653 = vunpack.c.l.b16 %v3123
      %v3654 = vunpack.c.l.b16 %v3124
      %v3655 = vunpack.c.l.b16 %v3125
      %v3656 = vunpack.c.l.b16 %v3126
      %v3657 = vunpack.c.l.b16 %v3127
      %v3658 = vunpack.c.l.b16 %v3128
      %v3659 = vunpack.c.l.b16 %v3129
      %v3660 = vunpack.c.l.b16 %v3130
      %v3661 = vunpack.c.l.b16 %v3131
      %v3662 = vpack.c.b16 %v3631, %v3630
      %v3663 = vpack.c.b16 %v3633, %v3632
      %v3664 = vpack.c.b16 %v3635, %v3634
      %v3665 = vpack.c.b16 %v3637, %v3636
      %v3666 = vpack.c.b16 %v3639, %v3638
      %v3667 = vpack.c.b16 %v3641, %v3640
      %v3668 = vpack.c.b16 %v3643, %v3642
      %v3669 = vpack.c.b16 %v3645, %v3644
      %v3670 = vpack.c.b16 %v3647, %v3646
      %v3671 = vpack.c.b16 %v3649, %v3648
      %v3672 = vpack.c.b16 %v3651, %v3650
      %v3673 = vpack.c.b16 %v3653, %v3652
      %v3674 = vpack.c.b16 %v3655, %v3654
      %v3675 = vpack.c.b16 %v3657, %v3656
      %v3676 = vpack.c.b16 %v3659, %v3658
      %v3677 = vpack.c.b16 %v3661, %v3660
      %3694 = vmatpush.bf16.msra.mxu0 %v3669
      %3695 = vmatpush.bf16.msra.mxu0 %v3668
      %3696 = vmatpush.bf16.msra.mxu0 %v3667
      %3697 = vmatpush.bf16.msra.mxu0 %v3666
      %3698 = vmatpush.bf16.msra.mxu0 %v3665
      %3699 = vmatpush.bf16.msra.mxu0 %v3664
      %3700 = vmatpush.bf16.msra.mxu0 %v3663
      %3701 = vmatpush.bf16.msra.mxu0 %v3662
      %3702 = vmatmul.bf16.gmra.mxu0 %v2332
      %v3703 = vpop.f32.mrf.mxu0
      %v3704 = vadd.f32 %v3439, %v3703
      %v3705 = vpop.f32.mrf.mxu0
      %v3706 = vadd.f32 %v3441, %v3705
      %3707 = vmatmul.bf16.gmra.mxu0 %v2334
      %v3708 = vpop.f32.mrf.mxu0
      %v3709 = vadd.f32 %v3444, %v3708
      %v3710 = vpop.f32.mrf.mxu0
      %v3711 = vadd.f32 %v3446, %v3710
      %3712 = vmatmul.bf16.gmra.mxu0 %v2336
      %v3713 = vpop.f32.mrf.mxu0
      %v3714 = vadd.f32 %v3449, %v3713
      %v3715 = vpop.f32.mrf.mxu0
      %v3716 = vadd.f32 %v3451, %v3715
      %3717 = vmatmul.bf16.gmra.mxu0 %v2338
      %v3718 = vpop.f32.mrf.mxu0
      %v3719 = vadd.f32 %v3454, %v3718
      %v3720 = vpop.f32.mrf.mxu0
      %v3721 = vadd.f32 %v3456, %v3720
      %3722 = vmatmul.bf16.gmra.mxu0 %v2340
      %v3723 = vpop.f32.mrf.mxu0
      %v3724 = vadd.f32 %v3459, %v3723
      %v3725 = vpop.f32.mrf.mxu0
      %v3726 = vadd.f32 %v3461, %v3725
      %3727 = vmatmul.bf16.gmra.mxu0 %v2342
      %v3728 = vpop.f32.mrf.mxu0
      %v3729 = vadd.f32 %v3464, %v3728
      %v3730 = vpop.f32.mrf.mxu0
      %v3731 = vadd.f32 %v3466, %v3730
      %3732 = vmatmul.bf16.gmra.mxu0 %v2344
      %v3733 = vpop.f32.mrf.mxu0
      %v3734 = vadd.f32 %v3469, %v3733
      %v3735 = vpop.f32.mrf.mxu0
      %v3736 = vadd.f32 %v3471, %v3735
      %3737 = vmatmul.bf16.gmra.mxu0 %v2346
      %v3738 = vpop.f32.mrf.mxu0
      %v3739 = vadd.f32 %v3474, %v3738
      %v3740 = vpop.f32.mrf.mxu0
      %v3741 = vadd.f32 %v3476, %v3740
      %3742 = vmatmul.bf16.gmra.mxu0 %v2348
      %v3743 = vpop.f32.mrf.mxu0
      %v3744 = vadd.f32 %v3479, %v3743
      %v3745 = vpop.f32.mrf.mxu0
      %v3746 = vadd.f32 %v3481, %v3745
      %3747 = vmatmul.bf16.gmra.mxu0 %v2350
      %v3748 = vpop.f32.mrf.mxu0
      %v3749 = vadd.f32 %v3484, %v3748
      %v3750 = vpop.f32.mrf.mxu0
      %v3751 = vadd.f32 %v3486, %v3750
      %3752 = vmatmul.bf16.gmra.mxu0 %v2352
      %v3753 = vpop.f32.mrf.mxu0
      %v3754 = vadd.f32 %v3489, %v3753
      %v3755 = vpop.f32.mrf.mxu0
      %v3756 = vadd.f32 %v3491, %v3755
      %3757 = vmatmul.bf16.gmra.mxu0 %v2354
      %v3758 = vpop.f32.mrf.mxu0
      %v3759 = vadd.f32 %v3494, %v3758
      %v3760 = vpop.f32.mrf.mxu0
      %v3761 = vadd.f32 %v3496, %v3760
      %3762 = vmatmul.bf16.gmra.mxu0 %v2356
      %v3763 = vpop.f32.mrf.mxu0
      %v3764 = vadd.f32 %v3499, %v3763
      %v3765 = vpop.f32.mrf.mxu0
      %v3766 = vadd.f32 %v3501, %v3765
      %3767 = vmatmul.bf16.gmra.mxu0 %v2358
      %v3768 = vpop.f32.mrf.mxu0
      %v3769 = vadd.f32 %v3504, %v3768
      %v3770 = vpop.f32.mrf.mxu0
      %v3771 = vadd.f32 %v3506, %v3770
      %3772 = vmatmul.bf16.gmra.mxu0 %v2360
      %v3773 = vpop.f32.mrf.mxu0
      %v3774 = vadd.f32 %v3509, %v3773
      %v3775 = vpop.f32.mrf.mxu0
      %v3776 = vadd.f32 %v3511, %v3775
      %3777 = vmatmul.bf16.gmra.mxu0 %v2362
      %v3778 = vpop.f32.mrf.mxu0
      %v3779 = vadd.f32 %v3514, %v3778
      %v3780 = vpop.f32.mrf.mxu0
      %v3781 = vadd.f32 %v3516, %v3780
      %3782 = vmatmul.bf16.gmra.mxu0 %v2364
      %v3783 = vpop.f32.mrf.mxu0
      %v3784 = vadd.f32 %v3519, %v3783
      %v3785 = vpop.f32.mrf.mxu0
      %v3786 = vadd.f32 %v3521, %v3785
      %3787 = vmatmul.bf16.gmra.mxu0 %v2366
      %v3788 = vpop.f32.mrf.mxu0
      %v3789 = vadd.f32 %v3524, %v3788
      %v3790 = vpop.f32.mrf.mxu0
      %v3791 = vadd.f32 %v3526, %v3790
      %3792 = vmatmul.bf16.gmra.mxu0 %v2368
      %v3793 = vpop.f32.mrf.mxu0
      %v3794 = vadd.f32 %v3529, %v3793
      %v3795 = vpop.f32.mrf.mxu0
      %v3796 = vadd.f32 %v3531, %v3795
      %3797 = vmatmul.bf16.gmra.mxu0 %v2370
      %v3798 = vpop.f32.mrf.mxu0
      %v3799 = vadd.f32 %v3534, %v3798
      %v3800 = vpop.f32.mrf.mxu0
      %v3801 = vadd.f32 %v3536, %v3800
      %3802 = vmatmul.bf16.gmra.mxu0 %v2372
      %v3803 = vpop.f32.mrf.mxu0
      %v3804 = vadd.f32 %v3539, %v3803
      %v3805 = vpop.f32.mrf.mxu0
      %v3806 = vadd.f32 %v3541, %v3805
      %3807 = vmatmul.bf16.gmra.mxu0 %v2374
      %v3808 = vpop.f32.mrf.mxu0
      %v3809 = vadd.f32 %v3544, %v3808
      %v3810 = vpop.f32.mrf.mxu0
      %v3811 = vadd.f32 %v3546, %v3810
      %3812 = vmatmul.bf16.gmra.mxu0 %v2376
      %v3813 = vpop.f32.mrf.mxu0
      %v3814 = vadd.f32 %v3549, %v3813
      %v3815 = vpop.f32.mrf.mxu0
      %v3816 = vadd.f32 %v3551, %v3815
      %3817 = vmatmul.bf16.gmra.mxu0 %v2378
      %v3818 = vpop.f32.mrf.mxu0
      %v3819 = vadd.f32 %v3554, %v3818
      %v3820 = vpop.f32.mrf.mxu0
      %v3821 = vadd.f32 %v3556, %v3820
      %3822 = vmatmul.bf16.gmra.mxu0 %v2380
      %v3823 = vpop.f32.mrf.mxu0
      %v3824 = vadd.f32 %v3559, %v3823
      %v3825 = vpop.f32.mrf.mxu0
      %v3826 = vadd.f32 %v3561, %v3825
      %3827 = vmatmul.bf16.gmra.mxu0 %v2382
      %v3828 = vpop.f32.mrf.mxu0
      %v3829 = vadd.f32 %v3564, %v3828
      %v3830 = vpop.f32.mrf.mxu0
      %v3831 = vadd.f32 %v3566, %v3830
      %3832 = vmatmul.bf16.gmra.mxu0 %v2384
      %v3833 = vpop.f32.mrf.mxu0
      %v3834 = vadd.f32 %v3569, %v3833
      %v3835 = vpop.f32.mrf.mxu0
      %v3836 = vadd.f32 %v3571, %v3835
      %3837 = vmatmul.bf16.gmra.mxu0 %v2386
      %v3838 = vpop.f32.mrf.mxu0
      %v3839 = vadd.f32 %v3574, %v3838
      %v3840 = vpop.f32.mrf.mxu0
      %v3841 = vadd.f32 %v3576, %v3840
      %3842 = vmatmul.bf16.gmra.mxu0 %v2388
      %v3843 = vpop.f32.mrf.mxu0
      %v3844 = vadd.f32 %v3579, %v3843
      %v3845 = vpop.f32.mrf.mxu0
      %v3846 = vadd.f32 %v3581, %v3845
      %3847 = vmatmul.bf16.gmra.mxu0 %v2390
      %v3848 = vpop.f32.mrf.mxu0
      %v3849 = vadd.f32 %v3584, %v3848
      %v3850 = vpop.f32.mrf.mxu0
      %v3851 = vadd.f32 %v3586, %v3850
      %3852 = vmatmul.bf16.gmra.mxu0 %v2392
      %v3853 = vpop.f32.mrf.mxu0
      %v3854 = vadd.f32 %v3589, %v3853
      %v3855 = vpop.f32.mrf.mxu0
      %v3856 = vadd.f32 %v3591, %v3855
      %3857 = vmatmul.bf16.gmra.mxu0 %v2394
      %v3858 = vpop.f32.mrf.mxu0
      %v3859 = vadd.f32 %v3594, %v3858
      %v3860 = vpop.f32.mrf.mxu0
      %v3861 = vadd.f32 %v3596, %v3860
      %3862 = vdwg.mxu0
      %3863 = vmatpush.bf16.msra.mxu0 %v3677
      %3864 = vmatpush.bf16.msra.mxu0 %v3676
      %3865 = vmatpush.bf16.msra.mxu0 %v3675
      %3866 = vmatpush.bf16.msra.mxu0 %v3674
      %3867 = vmatpush.bf16.msra.mxu0 %v3673
      %3868 = vmatpush.bf16.msra.mxu0 %v3672
      %3869 = vmatpush.bf16.msra.mxu0 %v3671
      %3870 = vmatpush.bf16.msra.mxu0 %v3670
      %3871 = vmatmul.bf16.gmra.mxu0 %v2333
      %v3872 = vpop.f32.mrf.mxu0
      %v3873 = vadd.f32 %v3704, %v3872
      %v3874 = vpop.f32.mrf.mxu0
      %v3875 = vadd.f32 %v3706, %v3874
      %3876 = vmatmul.bf16.gmra.mxu0 %v2335
      %v3877 = vpop.f32.mrf.mxu0
      %v3878 = vadd.f32 %v3709, %v3877
      %v3879 = vpop.f32.mrf.mxu0
      %v3880 = vadd.f32 %v3711, %v3879
      %3881 = vmatmul.bf16.gmra.mxu0 %v2337
      %v3882 = vpop.f32.mrf.mxu0
      %v3883 = vadd.f32 %v3714, %v3882
      %v3884 = vpop.f32.mrf.mxu0
      %v3885 = vadd.f32 %v3716, %v3884
      %3886 = vmatmul.bf16.gmra.mxu0 %v2339
      %v3887 = vpop.f32.mrf.mxu0
      %v3888 = vadd.f32 %v3719, %v3887
      %v3889 = vpop.f32.mrf.mxu0
      %v3890 = vadd.f32 %v3721, %v3889
      %3891 = vmatmul.bf16.gmra.mxu0 %v2341
      %v3892 = vpop.f32.mrf.mxu0
      %v3893 = vadd.f32 %v3724, %v3892
      %v3894 = vpop.f32.mrf.mxu0
      %v3895 = vadd.f32 %v3726, %v3894
      %3896 = vmatmul.bf16.gmra.mxu0 %v2343
      %v3897 = vpop.f32.mrf.mxu0
      %v3898 = vadd.f32 %v3729, %v3897
      %v3899 = vpop.f32.mrf.mxu0
      %v3900 = vadd.f32 %v3731, %v3899
      %3901 = vmatmul.bf16.gmra.mxu0 %v2345
      %v3902 = vpop.f32.mrf.mxu0
      %v3903 = vadd.f32 %v3734, %v3902
      %v3904 = vpop.f32.mrf.mxu0
      %v3905 = vadd.f32 %v3736, %v3904
      %3906 = vmatmul.bf16.gmra.mxu0 %v2347
      %v3907 = vpop.f32.mrf.mxu0
      %v3908 = vadd.f32 %v3739, %v3907
      %v3909 = vpop.f32.mrf.mxu0
      %v3910 = vadd.f32 %v3741, %v3909
      %3911 = vmatmul.bf16.gmra.mxu0 %v2349
      %v3912 = vpop.f32.mrf.mxu0
      %v3913 = vadd.f32 %v3744, %v3912
      %v3914 = vpop.f32.mrf.mxu0
      %v3915 = vadd.f32 %v3746, %v3914
      %3916 = vmatmul.bf16.gmra.mxu0 %v2351
      %v3917 = vpop.f32.mrf.mxu0
      %v3918 = vadd.f32 %v3749, %v3917
      %v3919 = vpop.f32.mrf.mxu0
      %v3920 = vadd.f32 %v3751, %v3919
      %3921 = vmatmul.bf16.gmra.mxu0 %v2353
      %v3922 = vpop.f32.mrf.mxu0
      %v3923 = vadd.f32 %v3754, %v3922
      %v3924 = vpop.f32.mrf.mxu0
      %v3925 = vadd.f32 %v3756, %v3924
      %3926 = vmatmul.bf16.gmra.mxu0 %v2355
      %v3927 = vpop.f32.mrf.mxu0
      %v3928 = vadd.f32 %v3759, %v3927
      %v3929 = vpop.f32.mrf.mxu0
      %v3930 = vadd.f32 %v3761, %v3929
      %3931 = vmatmul.bf16.gmra.mxu0 %v2357
      %v3932 = vpop.f32.mrf.mxu0
      %v3933 = vadd.f32 %v3764, %v3932
      %v3934 = vpop.f32.mrf.mxu0
      %v3935 = vadd.f32 %v3766, %v3934
      %3936 = vmatmul.bf16.gmra.mxu0 %v2359
      %v3937 = vpop.f32.mrf.mxu0
      %v3938 = vadd.f32 %v3769, %v3937
      %v3939 = vpop.f32.mrf.mxu0
      %v3940 = vadd.f32 %v3771, %v3939
      %3941 = vmatmul.bf16.gmra.mxu0 %v2361
      %v3942 = vpop.f32.mrf.mxu0
      %v3943 = vadd.f32 %v3774, %v3942
      %v3944 = vpop.f32.mrf.mxu0
      %v3945 = vadd.f32 %v3776, %v3944
      %3946 = vmatmul.bf16.gmra.mxu0 %v2363
      %v3947 = vpop.f32.mrf.mxu0
      %v3948 = vadd.f32 %v3779, %v3947
      %v3949 = vpop.f32.mrf.mxu0
      %v3950 = vadd.f32 %v3781, %v3949
      %3951 = vmatmul.bf16.gmra.mxu0 %v2365
      %v3952 = vpop.f32.mrf.mxu0
      %v3953 = vadd.f32 %v3784, %v3952
      %v3954 = vpop.f32.mrf.mxu0
      %v3955 = vadd.f32 %v3786, %v3954
      %3956 = vmatmul.bf16.gmra.mxu0 %v2367
      %v3957 = vpop.f32.mrf.mxu0
      %v3958 = vadd.f32 %v3789, %v3957
      %v3959 = vpop.f32.mrf.mxu0
      %v3960 = vadd.f32 %v3791, %v3959
      %3961 = vmatmul.bf16.gmra.mxu0 %v2369
      %v3962 = vpop.f32.mrf.mxu0
      %v3963 = vadd.f32 %v3794, %v3962
      %v3964 = vpop.f32.mrf.mxu0
      %v3965 = vadd.f32 %v3796, %v3964
      %3966 = vmatmul.bf16.gmra.mxu0 %v2371
      %v3967 = vpop.f32.mrf.mxu0
      %v3968 = vadd.f32 %v3799, %v3967
      %v3969 = vpop.f32.mrf.mxu0
      %v3970 = vadd.f32 %v3801, %v3969
      %3971 = vmatmul.bf16.gmra.mxu0 %v2373
      %v3972 = vpop.f32.mrf.mxu0
      %v3973 = vadd.f32 %v3804, %v3972
      %v3974 = vpop.f32.mrf.mxu0
      %v3975 = vadd.f32 %v3806, %v3974
      %3976 = vmatmul.bf16.gmra.mxu0 %v2375
      %v3977 = vpop.f32.mrf.mxu0
      %v3978 = vadd.f32 %v3809, %v3977
      %v3979 = vpop.f32.mrf.mxu0
      %v3980 = vadd.f32 %v3811, %v3979
      %3981 = vmatmul.bf16.gmra.mxu0 %v2377
      %v3982 = vpop.f32.mrf.mxu0
      %v3983 = vadd.f32 %v3814, %v3982
      %v3984 = vpop.f32.mrf.mxu0
      %v3985 = vadd.f32 %v3816, %v3984
      %3986 = vmatmul.bf16.gmra.mxu0 %v2379
      %v3987 = vpop.f32.mrf.mxu0
      %v3988 = vadd.f32 %v3819, %v3987
      %v3989 = vpop.f32.mrf.mxu0
      %v3990 = vadd.f32 %v3821, %v3989
      %3991 = vmatmul.bf16.gmra.mxu0 %v2381
      %v3992 = vpop.f32.mrf.mxu0
      %v3993 = vadd.f32 %v3824, %v3992
      %v3994 = vpop.f32.mrf.mxu0
      %v3995 = vadd.f32 %v3826, %v3994
      %3996 = vmatmul.bf16.gmra.mxu0 %v2383
      %v3997 = vpop.f32.mrf.mxu0
      %v3998 = vadd.f32 %v3829, %v3997
      %v3999 = vpop.f32.mrf.mxu0
      %v4000 = vadd.f32 %v3831, %v3999
      %4001 = vmatmul.bf16.gmra.mxu0 %v2385
      %v4002 = vpop.f32.mrf.mxu0
      %v4003 = vadd.f32 %v3834, %v4002
      %v4004 = vpop.f32.mrf.mxu0
      %v4005 = vadd.f32 %v3836, %v4004
      %4006 = vmatmul.bf16.gmra.mxu0 %v2387
      %v4007 = vpop.f32.mrf.mxu0
      %v4008 = vadd.f32 %v3839, %v4007
      %v4009 = vpop.f32.mrf.mxu0
      %v4010 = vadd.f32 %v3841, %v4009
      %4011 = vmatmul.bf16.gmra.mxu0 %v2389
      %v4012 = vpop.f32.mrf.mxu0
      %v4013 = vadd.f32 %v3844, %v4012
      %v4014 = vpop.f32.mrf.mxu0
      %v4015 = vadd.f32 %v3846, %v4014
      %4016 = vmatmul.bf16.gmra.mxu0 %v2391
      %v4017 = vpop.f32.mrf.mxu0
      %v4018 = vadd.f32 %v3849, %v4017
      %v4019 = vpop.f32.mrf.mxu0
      %v4020 = vadd.f32 %v3851, %v4019
      %4021 = vmatmul.bf16.gmra.mxu0 %v2393
      %v4022 = vpop.f32.mrf.mxu0
      %v4023 = vadd.f32 %v3854, %v4022
      %v4024 = vpop.f32.mrf.mxu0
      %v4025 = vadd.f32 %v3856, %v4024
      %4026 = vmatmul.bf16.gmra.mxu0 %v2395
      %v4027 = vpop.f32.mrf.mxu0
      %v4028 = vadd.f32 %v3859, %v4027
      %v4029 = vpop.f32.mrf.mxu0
      %v4030 = vadd.f32 %v3861, %v4029
      %4031 = vdwg.mxu0
      %v4032 = vld [vmem:[%s6] sm:$0xf]
      %v4033 = vld [vmem:[%s6 + $0x4] sm:$0xf]
      %v4034 = vld [vmem:[%s6 + $0x8] sm:$0xf]
      %v4035 = vld [vmem:[%s6 + $0xc] sm:$0xf]
      %v4036 = vld [vmem:[%s6 + $0x10] sm:$0xf]
      %v4037 = vld [vmem:[%s6 + $0x14] sm:$0xf]
      %v4038 = vld [vmem:[%s6 + $0x18] sm:$0xf]
      %v4039 = vld [vmem:[%s6 + $0x1c] sm:$0xf]
      %v4040 = vld [vmem:[%s6 + $0x20] sm:$0xf]
      %v4041 = vld [vmem:[%s6 + $0x24] sm:$0xf]
      %v4042 = vld [vmem:[%s6 + $0x28] sm:$0xf]
      %v4043 = vld [vmem:[%s6 + $0x2c] sm:$0xf]
      %v4044 = vld [vmem:[%s6 + $0x30] sm:$0xf]
      %v4045 = vld [vmem:[%s6 + $0x34] sm:$0xf]
      %v4046 = vld [vmem:[%s6 + $0x38] sm:$0xf]
      %v4047 = vld [vmem:[%s6 + $0x3c] sm:$0xf]
      %v4064 = vunpack.c.l.b16 %v4032
      %v4065 = vunpack.c.l.b16 %v4033
      %v4066 = vunpack.c.l.b16 %v4034
      %v4067 = vunpack.c.l.b16 %v4035
      %v4068 = vunpack.c.l.b16 %v4036
      %v4069 = vunpack.c.l.b16 %v4037
      %v4070 = vunpack.c.l.b16 %v4038
      %v4071 = vunpack.c.l.b16 %v4039
      %v4072 = vunpack.c.l.b16 %v4040
      %v4073 = vunpack.c.l.b16 %v4041
      %v4074 = vunpack.c.l.b16 %v4042
      %v4075 = vunpack.c.l.b16 %v4043
      %v4076 = vunpack.c.l.b16 %v4044
      %v4077 = vunpack.c.l.b16 %v4045
      %v4078 = vunpack.c.l.b16 %v4046
      %v4079 = vunpack.c.l.b16 %v4047
      %v4080 = vpack.c.b16 %v4065, %v4064
      %v4081 = vpack.c.b16 %v4067, %v4066
      %v4082 = vpack.c.b16 %v4069, %v4068
      %v4083 = vpack.c.b16 %v4071, %v4070
      %v4084 = vpack.c.b16 %v4073, %v4072
      %v4085 = vpack.c.b16 %v4075, %v4074
      %v4086 = vpack.c.b16 %v4077, %v4076
      %v4087 = vpack.c.b16 %v4079, %v4078
      %4096 = vmatpush.bf16.msra.mxu0 %v4087
      %4097 = vmatpush.bf16.msra.mxu0 %v4086
      %4098 = vmatpush.bf16.msra.mxu0 %v4085
      %4099 = vmatpush.bf16.msra.mxu0 %v4084
      %4100 = vmatpush.bf16.msra.mxu0 %v4083
      %4101 = vmatpush.bf16.msra.mxu0 %v4082
      %4102 = vmatpush.bf16.msra.mxu0 %v4081
      %4103 = vmatpush.bf16.msra.mxu0 %v4080
      %4104 = vmatmul.bf16.gmra.mxu0 %v683
      %v4105 = vpop.f32.mrf.mxu0
      %v4106 = vadd.f32 0.0, %v4105
      %v4107 = vpop.f32.mrf.mxu0
      %v4108 = vadd.f32 0.0, %v4107
      %4109 = vmatmul.bf16.gmra.mxu0 %v684
      %v4110 = vpop.f32.mrf.mxu0
      %v4111 = vadd.f32 0.0, %v4110
      %v4112 = vpop.f32.mrf.mxu0
      %v4113 = vadd.f32 0.0, %v4112
      %4114 = vmatmul.bf16.gmra.mxu0 %v685
      %v4115 = vpop.f32.mrf.mxu0
      %v4116 = vadd.f32 0.0, %v4115
      %v4117 = vpop.f32.mrf.mxu0
      %v4118 = vadd.f32 0.0, %v4117
      %4119 = vmatmul.bf16.gmra.mxu0 %v686
      %v4120 = vpop.f32.mrf.mxu0
      %v4121 = vadd.f32 0.0, %v4120
      %v4122 = vpop.f32.mrf.mxu0
      %v4123 = vadd.f32 0.0, %v4122
      %4124 = vmatmul.bf16.gmra.mxu0 %v687
      %v4125 = vpop.f32.mrf.mxu0
      %v4126 = vadd.f32 0.0, %v4125
      %v4127 = vpop.f32.mrf.mxu0
      %v4128 = vadd.f32 0.0, %v4127
      %4129 = vmatmul.bf16.gmra.mxu0 %v688
      %v4130 = vpop.f32.mrf.mxu0
      %v4131 = vadd.f32 0.0, %v4130
      %v4132 = vpop.f32.mrf.mxu0
      %v4133 = vadd.f32 0.0, %v4132
      %4134 = vmatmul.bf16.gmra.mxu0 %v689
      %v4135 = vpop.f32.mrf.mxu0
      %v4136 = vadd.f32 0.0, %v4135
      %v4137 = vpop.f32.mrf.mxu0
      %v4138 = vadd.f32 0.0, %v4137
      %4139 = vmatmul.bf16.gmra.mxu0 %v690
      %v4140 = vpop.f32.mrf.mxu0
      %v4141 = vadd.f32 0.0, %v4140
      %v4142 = vpop.f32.mrf.mxu0
      %v4143 = vadd.f32 0.0, %v4142
      %4144 = vmatmul.bf16.gmra.mxu0 %v691
      %v4145 = vpop.f32.mrf.mxu0
      %v4146 = vadd.f32 0.0, %v4145
      %v4147 = vpop.f32.mrf.mxu0
      %v4148 = vadd.f32 0.0, %v4147
      %4149 = vmatmul.bf16.gmra.mxu0 %v692
      %v4150 = vpop.f32.mrf.mxu0
      %v4151 = vadd.f32 0.0, %v4150
      %v4152 = vpop.f32.mrf.mxu0
      %v4153 = vadd.f32 0.0, %v4152
      %4154 = vmatmul.bf16.gmra.mxu0 %v693
      %v4155 = vpop.f32.mrf.mxu0
      %v4156 = vadd.f32 0.0, %v4155
      %v4157 = vpop.f32.mrf.mxu0
      %v4158 = vadd.f32 0.0, %v4157
      %4159 = vmatmul.bf16.gmra.mxu0 %v694
      %v4160 = vpop.f32.mrf.mxu0
      %v4161 = vadd.f32 0.0, %v4160
      %v4162 = vpop.f32.mrf.mxu0
      %v4163 = vadd.f32 0.0, %v4162
      %4164 = vmatmul.bf16.gmra.mxu0 %v695
      %v4165 = vpop.f32.mrf.mxu0
      %v4166 = vadd.f32 0.0, %v4165
      %v4167 = vpop.f32.mrf.mxu0
      %v4168 = vadd.f32 0.0, %v4167
      %4169 = vmatmul.bf16.gmra.mxu0 %v696
      %v4170 = vpop.f32.mrf.mxu0
      %v4171 = vadd.f32 0.0, %v4170
      %v4172 = vpop.f32.mrf.mxu0
      %v4173 = vadd.f32 0.0, %v4172
      %4174 = vmatmul.bf16.gmra.mxu0 %v697
      %v4175 = vpop.f32.mrf.mxu0
      %v4176 = vadd.f32 0.0, %v4175
      %v4177 = vpop.f32.mrf.mxu0
      %v4178 = vadd.f32 0.0, %v4177
      %4179 = vmatmul.bf16.gmra.mxu0 %v698
      %v4180 = vpop.f32.mrf.mxu0
      %v4181 = vadd.f32 0.0, %v4180
      %v4182 = vpop.f32.mrf.mxu0
      %v4183 = vadd.f32 0.0, %v4182
      %4184 = vmatmul.bf16.gmra.mxu0 %v699
      %v4185 = vpop.f32.mrf.mxu0
      %v4186 = vadd.f32 0.0, %v4185
      %v4187 = vpop.f32.mrf.mxu0
      %v4188 = vadd.f32 0.0, %v4187
      %4189 = vmatmul.bf16.gmra.mxu0 %v700
      %v4190 = vpop.f32.mrf.mxu0
      %v4191 = vadd.f32 0.0, %v4190
      %v4192 = vpop.f32.mrf.mxu0
      %v4193 = vadd.f32 0.0, %v4192
      %4194 = vmatmul.bf16.gmra.mxu0 %v701
      %v4195 = vpop.f32.mrf.mxu0
      %v4196 = vadd.f32 0.0, %v4195
      %v4197 = vpop.f32.mrf.mxu0
      %v4198 = vadd.f32 0.0, %v4197
      %4199 = vmatmul.bf16.gmra.mxu0 %v702
      %v4200 = vpop.f32.mrf.mxu0
      %v4201 = vadd.f32 0.0, %v4200
      %v4202 = vpop.f32.mrf.mxu0
      %v4203 = vadd.f32 0.0, %v4202
      %4204 = vmatmul.bf16.gmra.mxu0 %v703
      %v4205 = vpop.f32.mrf.mxu0
      %v4206 = vadd.f32 0.0, %v4205
      %v4207 = vpop.f32.mrf.mxu0
      %v4208 = vadd.f32 0.0, %v4207
      %4209 = vmatmul.bf16.gmra.mxu0 %v704
      %v4210 = vpop.f32.mrf.mxu0
      %v4211 = vadd.f32 0.0, %v4210
      %v4212 = vpop.f32.mrf.mxu0
      %v4213 = vadd.f32 0.0, %v4212
      %4214 = vmatmul.bf16.gmra.mxu0 %v705
      %v4215 = vpop.f32.mrf.mxu0
      %v4216 = vadd.f32 0.0, %v4215
      %v4217 = vpop.f32.mrf.mxu0
      %v4218 = vadd.f32 0.0, %v4217
      %4219 = vmatmul.bf16.gmra.mxu0 %v706
      %v4220 = vpop.f32.mrf.mxu0
      %v4221 = vadd.f32 0.0, %v4220
      %v4222 = vpop.f32.mrf.mxu0
      %v4223 = vadd.f32 0.0, %v4222
      %4224 = vmatmul.bf16.gmra.mxu0 %v707
      %v4225 = vpop.f32.mrf.mxu0
      %v4226 = vadd.f32 0.0, %v4225
      %v4227 = vpop.f32.mrf.mxu0
      %v4228 = vadd.f32 0.0, %v4227
      %4229 = vmatmul.bf16.gmra.mxu0 %v708
      %v4230 = vpop.f32.mrf.mxu0
      %v4231 = vadd.f32 0.0, %v4230
      %v4232 = vpop.f32.mrf.mxu0
      %v4233 = vadd.f32 0.0, %v4232
      %4234 = vmatmul.bf16.gmra.mxu0 %v709
      %v4235 = vpop.f32.mrf.mxu0
      %v4236 = vadd.f32 0.0, %v4235
      %v4237 = vpop.f32.mrf.mxu0
      %v4238 = vadd.f32 0.0, %v4237
      %4239 = vmatmul.bf16.gmra.mxu0 %v710
      %v4240 = vpop.f32.mrf.mxu0
      %v4241 = vadd.f32 0.0, %v4240
      %v4242 = vpop.f32.mrf.mxu0
      %v4243 = vadd.f32 0.0, %v4242
      %4244 = vmatmul.bf16.gmra.mxu0 %v711
      %v4245 = vpop.f32.mrf.mxu0
      %v4246 = vadd.f32 0.0, %v4245
      %v4247 = vpop.f32.mrf.mxu0
      %v4248 = vadd.f32 0.0, %v4247
      %4249 = vmatmul.bf16.gmra.mxu0 %v712
      %v4250 = vpop.f32.mrf.mxu0
      %v4251 = vadd.f32 0.0, %v4250
      %v4252 = vpop.f32.mrf.mxu0
      %v4253 = vadd.f32 0.0, %v4252
      %4254 = vmatmul.bf16.gmra.mxu0 %v713
      %v4255 = vpop.f32.mrf.mxu0
      %v4256 = vadd.f32 0.0, %v4255
      %v4257 = vpop.f32.mrf.mxu0
      %v4258 = vadd.f32 0.0, %v4257
      %4259 = vmatmul.bf16.gmra.mxu0 %v714
      %v4260 = vpop.f32.mrf.mxu0
      %v4261 = vadd.f32 0.0, %v4260
      %v4262 = vpop.f32.mrf.mxu0
      %v4263 = vadd.f32 0.0, %v4262
      %4264 = vdwg.mxu0
      %v4265 = vadd.f32 %v3873, %v4106
      %v4266 = vadd.f32 %v3875, %v4108
      %v4267 = vadd.f32 %v3878, %v4111
      %v4268 = vadd.f32 %v3880, %v4113
      %v4269 = vadd.f32 %v3883, %v4116
      %v4270 = vadd.f32 %v3885, %v4118
      %v4271 = vadd.f32 %v3888, %v4121
      %v4272 = vadd.f32 %v3890, %v4123
      %v4273 = vadd.f32 %v3893, %v4126
      %v4274 = vadd.f32 %v3895, %v4128
      %v4275 = vadd.f32 %v3898, %v4131
      %v4276 = vadd.f32 %v3900, %v4133
      %v4277 = vadd.f32 %v3903, %v4136
      %v4278 = vadd.f32 %v3905, %v4138
      %v4279 = vadd.f32 %v3908, %v4141
      %v4280 = vadd.f32 %v3910, %v4143
      %v4281 = vadd.f32 %v3913, %v4146
      %v4282 = vadd.f32 %v3915, %v4148
      %v4283 = vadd.f32 %v3918, %v4151
      %v4284 = vadd.f32 %v3920, %v4153
      %v4285 = vadd.f32 %v3923, %v4156
      %v4286 = vadd.f32 %v3925, %v4158
      %v4287 = vadd.f32 %v3928, %v4161
      %v4288 = vadd.f32 %v3930, %v4163
      %v4289 = vadd.f32 %v3933, %v4166
      %v4290 = vadd.f32 %v3935, %v4168
      %v4291 = vadd.f32 %v3938, %v4171
      %v4292 = vadd.f32 %v3940, %v4173
      %v4293 = vadd.f32 %v3943, %v4176
      %v4294 = vadd.f32 %v3945, %v4178
      %v4295 = vadd.f32 %v3948, %v4181
      %v4296 = vadd.f32 %v3950, %v4183
      %v4297 = vadd.f32 %v3953, %v4186
      %v4298 = vadd.f32 %v3955, %v4188
      %v4299 = vadd.f32 %v3958, %v4191
      %v4300 = vadd.f32 %v3960, %v4193
      %v4301 = vadd.f32 %v3963, %v4196
      %v4302 = vadd.f32 %v3965, %v4198
      %v4303 = vadd.f32 %v3968, %v4201
      %v4304 = vadd.f32 %v3970, %v4203
      %v4305 = vadd.f32 %v3973, %v4206
      %v4306 = vadd.f32 %v3975, %v4208
      %v4307 = vadd.f32 %v3978, %v4211
      %v4308 = vadd.f32 %v3980, %v4213
      %v4309 = vadd.f32 %v3983, %v4216
      %v4310 = vadd.f32 %v3985, %v4218
      %v4311 = vadd.f32 %v3988, %v4221
      %v4312 = vadd.f32 %v3990, %v4223
      %v4313 = vadd.f32 %v3993, %v4226
      %v4314 = vadd.f32 %v3995, %v4228
      %v4315 = vadd.f32 %v3998, %v4231
      %v4316 = vadd.f32 %v4000, %v4233
      %v4317 = vadd.f32 %v4003, %v4236
      %v4318 = vadd.f32 %v4005, %v4238
      %v4319 = vadd.f32 %v4008, %v4241
      %v4320 = vadd.f32 %v4010, %v4243
      %v4321 = vadd.f32 %v4013, %v4246
      %v4322 = vadd.f32 %v4015, %v4248
      %v4323 = vadd.f32 %v4018, %v4251
      %v4324 = vadd.f32 %v4020, %v4253
      %v4325 = vadd.f32 %v4023, %v4256
      %v4326 = vadd.f32 %v4025, %v4258
      %v4327 = vadd.f32 %v4028, %v4261
      %v4328 = vadd.f32 %v4030, %v4263
      %v4329 = vld [vmem:[%s7] sm:$0x1]
      %v4331 = vperm.slane %v4329, 0
      %v4333 = vadd.f32 %v4265, %v4331
      %v4334 = vadd.f32 %v4266, %v4331
      %v4335 = vadd.f32 %v4267, %v4331
      %v4336 = vadd.f32 %v4268, %v4331
      %v4337 = vadd.f32 %v4269, %v4331
      %v4338 = vadd.f32 %v4270, %v4331
      %v4339 = vadd.f32 %v4271, %v4331
      %v4340 = vadd.f32 %v4272, %v4331
      %v4341 = vadd.f32 %v4273, %v4331
      %v4342 = vadd.f32 %v4274, %v4331
      %v4343 = vadd.f32 %v4275, %v4331
      %v4344 = vadd.f32 %v4276, %v4331
      %v4345 = vadd.f32 %v4277, %v4331
      %v4346 = vadd.f32 %v4278, %v4331
      %v4347 = vadd.f32 %v4279, %v4331
      %v4348 = vadd.f32 %v4280, %v4331
      %v4349 = vadd.f32 %v4281, %v4331
      %v4350 = vadd.f32 %v4282, %v4331
      %v4351 = vadd.f32 %v4283, %v4331
      %v4352 = vadd.f32 %v4284, %v4331
      %v4353 = vadd.f32 %v4285, %v4331
      %v4354 = vadd.f32 %v4286, %v4331
      %v4355 = vadd.f32 %v4287, %v4331
      %v4356 = vadd.f32 %v4288, %v4331
      %v4357 = vadd.f32 %v4289, %v4331
      %v4358 = vadd.f32 %v4290, %v4331
      %v4359 = vadd.f32 %v4291, %v4331
      %v4360 = vadd.f32 %v4292, %v4331
      %v4361 = vadd.f32 %v4293, %v4331
      %v4362 = vadd.f32 %v4294, %v4331
      %v4363 = vadd.f32 %v4295, %v4331
      %v4364 = vadd.f32 %v4296, %v4331
      %v4365 = vadd.f32 %v4297, %v4331
      %v4366 = vadd.f32 %v4298, %v4331
      %v4367 = vadd.f32 %v4299, %v4331
      %v4368 = vadd.f32 %v4300, %v4331
      %v4369 = vadd.f32 %v4301, %v4331
      %v4370 = vadd.f32 %v4302, %v4331
      %v4371 = vadd.f32 %v4303, %v4331
      %v4372 = vadd.f32 %v4304, %v4331
      %v4373 = vadd.f32 %v4305, %v4331
      %v4374 = vadd.f32 %v4306, %v4331
      %v4375 = vadd.f32 %v4307, %v4331
      %v4376 = vadd.f32 %v4308, %v4331
      %v4377 = vadd.f32 %v4309, %v4331
      %v4378 = vadd.f32 %v4310, %v4331
      %v4379 = vadd.f32 %v4311, %v4331
      %v4380 = vadd.f32 %v4312, %v4331
      %v4381 = vadd.f32 %v4313, %v4331
      %v4382 = vadd.f32 %v4314, %v4331
      %v4383 = vadd.f32 %v4315, %v4331
      %v4384 = vadd.f32 %v4316, %v4331
      %v4385 = vadd.f32 %v4317, %v4331
      %v4386 = vadd.f32 %v4318, %v4331
      %v4387 = vadd.f32 %v4319, %v4331
      %v4388 = vadd.f32 %v4320, %v4331
      %v4389 = vadd.f32 %v4321, %v4331
      %v4390 = vadd.f32 %v4322, %v4331
      %v4391 = vadd.f32 %v4323, %v4331
      %v4392 = vadd.f32 %v4324, %v4331
      %v4393 = vadd.f32 %v4325, %v4331
      %v4394 = vadd.f32 %v4326, %v4331
      %v4395 = vadd.f32 %v4327, %v4331
      %v4396 = vadd.f32 %v4328, %v4331
      %v4397 = vmax.f32 %v4333, 0.0
      %v4398 = vmax.f32 %v4334, 0.0
      %v4399 = vmax.f32 %v4335, 0.0
      %v4400 = vmax.f32 %v4336, 0.0
      %v4401 = vmax.f32 %v4337, 0.0
      %v4402 = vmax.f32 %v4338, 0.0
      %v4403 = vmax.f32 %v4339, 0.0
      %v4404 = vmax.f32 %v4340, 0.0
      %v4405 = vmax.f32 %v4341, 0.0
      %v4406 = vmax.f32 %v4342, 0.0
      %v4407 = vmax.f32 %v4343, 0.0
      %v4408 = vmax.f32 %v4344, 0.0
      %v4409 = vmax.f32 %v4345, 0.0
      %v4410 = vmax.f32 %v4346, 0.0
      %v4411 = vmax.f32 %v4347, 0.0
      %v4412 = vmax.f32 %v4348, 0.0
      %v4413 = vmax.f32 %v4349, 0.0
      %v4414 = vmax.f32 %v4350, 0.0
      %v4415 = vmax.f32 %v4351, 0.0
      %v4416 = vmax.f32 %v4352, 0.0
      %v4417 = vmax.f32 %v4353, 0.0
      %v4418 = vmax.f32 %v4354, 0.0
      %v4419 = vmax.f32 %v4355, 0.0
      %v4420 = vmax.f32 %v4356, 0.0
      %v4421 = vmax.f32 %v4357, 0.0
      %v4422 = vmax.f32 %v4358, 0.0
      %v4423 = vmax.f32 %v4359, 0.0
      %v4424 = vmax.f32 %v4360, 0.0
      %v4425 = vmax.f32 %v4361, 0.0
      %v4426 = vmax.f32 %v4362, 0.0
      %v4427 = vmax.f32 %v4363, 0.0
      %v4428 = vmax.f32 %v4364, 0.0
      %v4429 = vmax.f32 %v4365, 0.0
      %v4430 = vmax.f32 %v4366, 0.0
      %v4431 = vmax.f32 %v4367, 0.0
      %v4432 = vmax.f32 %v4368, 0.0
      %v4433 = vmax.f32 %v4369, 0.0
      %v4434 = vmax.f32 %v4370, 0.0
      %v4435 = vmax.f32 %v4371, 0.0
      %v4436 = vmax.f32 %v4372, 0.0
      %v4437 = vmax.f32 %v4373, 0.0
      %v4438 = vmax.f32 %v4374, 0.0
      %v4439 = vmax.f32 %v4375, 0.0
      %v4440 = vmax.f32 %v4376, 0.0
      %v4441 = vmax.f32 %v4377, 0.0
      %v4442 = vmax.f32 %v4378, 0.0
      %v4443 = vmax.f32 %v4379, 0.0
      %v4444 = vmax.f32 %v4380, 0.0
      %v4445 = vmax.f32 %v4381, 0.0
      %v4446 = vmax.f32 %v4382, 0.0
      %v4447 = vmax.f32 %v4383, 0.0
      %v4448 = vmax.f32 %v4384, 0.0
      %v4449 = vmax.f32 %v4385, 0.0
      %v4450 = vmax.f32 %v4386, 0.0
      %v4451 = vmax.f32 %v4387, 0.0
      %v4452 = vmax.f32 %v4388, 0.0
      %v4453 = vmax.f32 %v4389, 0.0
      %v4454 = vmax.f32 %v4390, 0.0
      %v4455 = vmax.f32 %v4391, 0.0
      %v4456 = vmax.f32 %v4392, 0.0
      %v4457 = vmax.f32 %v4393, 0.0
      %v4458 = vmax.f32 %v4394, 0.0
      %v4459 = vmax.f32 %v4395, 0.0
      %v4460 = vmax.f32 %v4396, 0.0
      %v4461 = vpack.c.bf16 %v4398, %v4397
      %v4462 = vpack.c.bf16 %v4400, %v4399
      %v4463 = vpack.c.bf16 %v4402, %v4401
      %v4464 = vpack.c.bf16 %v4404, %v4403
      %v4465 = vpack.c.bf16 %v4406, %v4405
      %v4466 = vpack.c.bf16 %v4408, %v4407
      %v4467 = vpack.c.bf16 %v4410, %v4409
      %v4468 = vpack.c.bf16 %v4412, %v4411
      %v4469 = vpack.c.bf16 %v4414, %v4413
      %v4470 = vpack.c.bf16 %v4416, %v4415
      %v4471 = vpack.c.bf16 %v4418, %v4417
      %v4472 = vpack.c.bf16 %v4420, %v4419
      %v4473 = vpack.c.bf16 %v4422, %v4421
      %v4474 = vpack.c.bf16 %v4424, %v4423
      %v4475 = vpack.c.bf16 %v4426, %v4425
      %v4476 = vpack.c.bf16 %v4428, %v4427
      %v4477 = vpack.c.bf16 %v4430, %v4429
      %v4478 = vpack.c.bf16 %v4432, %v4431
      %v4479 = vpack.c.bf16 %v4434, %v4433
      %v4480 = vpack.c.bf16 %v4436, %v4435
      %v4481 = vpack.c.bf16 %v4438, %v4437
      %v4482 = vpack.c.bf16 %v4440, %v4439
      %v4483 = vpack.c.bf16 %v4442, %v4441
      %v4484 = vpack.c.bf16 %v4444, %v4443
      %v4485 = vpack.c.bf16 %v4446, %v4445
      %v4486 = vpack.c.bf16 %v4448, %v4447
      %v4487 = vpack.c.bf16 %v4450, %v4449
      %v4488 = vpack.c.bf16 %v4452, %v4451
      %v4489 = vpack.c.bf16 %v4454, %v4453
      %v4490 = vpack.c.bf16 %v4456, %v4455
      %v4491 = vpack.c.bf16 %v4458, %v4457
      %v4492 = vpack.c.bf16 %v4460, %v4459
      %v4493 = vld [vmem:[%s8] sm:$0xf]
      %v4494 = vld [vmem:[%s8 + $0x4] sm:$0xf]
      %v4495 = vld [vmem:[%s8 + $0x8] sm:$0xf]
      %v4496 = vld [vmem:[%s8 + $0xc] sm:$0xf]
      %v4497 = vld [vmem:[%s8 + $0x10] sm:$0xf]
      %v4498 = vld [vmem:[%s8 + $0x14] sm:$0xf]
      %v4499 = vld [vmem:[%s8 + $0x18] sm:$0xf]
      %v4500 = vld [vmem:[%s8 + $0x1c] sm:$0xf]
      %v4501 = vld [vmem:[%s8 + $0x20] sm:$0xf]
      %v4502 = vld [vmem:[%s8 + $0x24] sm:$0xf]
      %v4503 = vld [vmem:[%s8 + $0x28] sm:$0xf]
      %v4504 = vld [vmem:[%s8 + $0x2c] sm:$0xf]
      %v4505 = vld [vmem:[%s8 + $0x30] sm:$0xf]
      %v4506 = vld [vmem:[%s8 + $0x34] sm:$0xf]
      %v4507 = vld [vmem:[%s8 + $0x38] sm:$0xf]
      %v4508 = vld [vmem:[%s8 + $0x3c] sm:$0xf]
      %v4509 = vld [vmem:[%s9] sm:$0x1]
      %v4511 = vperm.slane %v4509, 0
      %v4529 = vunpack.c.l.b16 %v4493
      %v4530 = vunpack.c.l.b16 %v4494
      %v4531 = vunpack.c.l.b16 %v4495
      %v4532 = vunpack.c.l.b16 %v4496
      %v4533 = vunpack.c.l.b16 %v4497
      %v4534 = vunpack.c.l.b16 %v4498
      %v4535 = vunpack.c.l.b16 %v4499
      %v4536 = vunpack.c.l.b16 %v4500
      %v4537 = vunpack.c.l.b16 %v4501
      %v4538 = vunpack.c.l.b16 %v4502
      %v4539 = vunpack.c.l.b16 %v4503
      %v4540 = vunpack.c.l.b16 %v4504
      %v4541 = vunpack.c.l.b16 %v4505
      %v4542 = vunpack.c.l.b16 %v4506
      %v4543 = vunpack.c.l.b16 %v4507
      %v4544 = vunpack.c.l.b16 %v4508
      %v4545 = vpack.c.b16 %v4530, %v4529
      %v4546 = vpack.c.b16 %v4532, %v4531
      %v4547 = vpack.c.b16 %v4534, %v4533
      %v4548 = vpack.c.b16 %v4536, %v4535
      %v4549 = vpack.c.b16 %v4538, %v4537
      %v4550 = vpack.c.b16 %v4540, %v4539
      %v4551 = vpack.c.b16 %v4542, %v4541
      %v4552 = vpack.c.b16 %v4544, %v4543
      %4561 = vmatpush.bf16.msra.mxu0 %v4552
      %4562 = vmatpush.bf16.msra.mxu0 %v4551
      %4563 = vmatpush.bf16.msra.mxu0 %v4550
      %4564 = vmatpush.bf16.msra.mxu0 %v4549
      %4565 = vmatpush.bf16.msra.mxu0 %v4548
      %4566 = vmatpush.bf16.msra.mxu0 %v4547
      %4567 = vmatpush.bf16.msra.mxu0 %v4546
      %4568 = vmatpush.bf16.msra.mxu0 %v4545
      %4569 = vmatmul.bf16.gmra.mxu0 %v4461
      %v4570 = vpop.f32.mrf.mxu0
      %v4571 = vadd.f32 %v4511, %v4570
      %v4572 = vpop.f32.mrf.mxu0
      %v4573 = vadd.f32 %v4511, %v4572
      %4574 = vmatmul.bf16.gmra.mxu0 %v4462
      %v4575 = vpop.f32.mrf.mxu0
      %v4576 = vadd.f32 %v4511, %v4575
      %v4577 = vpop.f32.mrf.mxu0
      %v4578 = vadd.f32 %v4511, %v4577
      %4579 = vmatmul.bf16.gmra.mxu0 %v4463
      %v4580 = vpop.f32.mrf.mxu0
      %v4581 = vadd.f32 %v4511, %v4580
      %v4582 = vpop.f32.mrf.mxu0
      %v4583 = vadd.f32 %v4511, %v4582
      %4584 = vmatmul.bf16.gmra.mxu0 %v4464
      %v4585 = vpop.f32.mrf.mxu0
      %v4586 = vadd.f32 %v4511, %v4585
      %v4587 = vpop.f32.mrf.mxu0
      %v4588 = vadd.f32 %v4511, %v4587
      %4589 = vmatmul.bf16.gmra.mxu0 %v4465
      %v4590 = vpop.f32.mrf.mxu0
      %v4591 = vadd.f32 %v4511, %v4590
      %v4592 = vpop.f32.mrf.mxu0
      %v4593 = vadd.f32 %v4511, %v4592
      %4594 = vmatmul.bf16.gmra.mxu0 %v4466
      %v4595 = vpop.f32.mrf.mxu0
      %v4596 = vadd.f32 %v4511, %v4595
      %v4597 = vpop.f32.mrf.mxu0
      %v4598 = vadd.f32 %v4511, %v4597
      %4599 = vmatmul.bf16.gmra.mxu0 %v4467
      %v4600 = vpop.f32.mrf.mxu0
      %v4601 = vadd.f32 %v4511, %v4600
      %v4602 = vpop.f32.mrf.mxu0
      %v4603 = vadd.f32 %v4511, %v4602
      %4604 = vmatmul.bf16.gmra.mxu0 %v4468
      %v4605 = vpop.f32.mrf.mxu0
      %v4606 = vadd.f32 %v4511, %v4605
      %v4607 = vpop.f32.mrf.mxu0
      %v4608 = vadd.f32 %v4511, %v4607
      %4609 = vmatmul.bf16.gmra.mxu0 %v4469
      %v4610 = vpop.f32.mrf.mxu0
      %v4611 = vadd.f32 %v4511, %v4610
      %v4612 = vpop.f32.mrf.mxu0
      %v4613 = vadd.f32 %v4511, %v4612
      %4614 = vmatmul.bf16.gmra.mxu0 %v4470
      %v4615 = vpop.f32.mrf.mxu0
      %v4616 = vadd.f32 %v4511, %v4615
      %v4617 = vpop.f32.mrf.mxu0
      %v4618 = vadd.f32 %v4511, %v4617
      %4619 = vmatmul.bf16.gmra.mxu0 %v4471
      %v4620 = vpop.f32.mrf.mxu0
      %v4621 = vadd.f32 %v4511, %v4620
      %v4622 = vpop.f32.mrf.mxu0
      %v4623 = vadd.f32 %v4511, %v4622
      %4624 = vmatmul.bf16.gmra.mxu0 %v4472
      %v4625 = vpop.f32.mrf.mxu0
      %v4626 = vadd.f32 %v4511, %v4625
      %v4627 = vpop.f32.mrf.mxu0
      %v4628 = vadd.f32 %v4511, %v4627
      %4629 = vmatmul.bf16.gmra.mxu0 %v4473
      %v4630 = vpop.f32.mrf.mxu0
      %v4631 = vadd.f32 %v4511, %v4630
      %v4632 = vpop.f32.mrf.mxu0
      %v4633 = vadd.f32 %v4511, %v4632
      %4634 = vmatmul.bf16.gmra.mxu0 %v4474
      %v4635 = vpop.f32.mrf.mxu0
      %v4636 = vadd.f32 %v4511, %v4635
      %v4637 = vpop.f32.mrf.mxu0
      %v4638 = vadd.f32 %v4511, %v4637
      %4639 = vmatmul.bf16.gmra.mxu0 %v4475
      %v4640 = vpop.f32.mrf.mxu0
      %v4641 = vadd.f32 %v4511, %v4640
      %v4642 = vpop.f32.mrf.mxu0
      %v4643 = vadd.f32 %v4511, %v4642
      %4644 = vmatmul.bf16.gmra.mxu0 %v4476
      %v4645 = vpop.f32.mrf.mxu0
      %v4646 = vadd.f32 %v4511, %v4645
      %v4647 = vpop.f32.mrf.mxu0
      %v4648 = vadd.f32 %v4511, %v4647
      %4649 = vmatmul.bf16.gmra.mxu0 %v4477
      %v4650 = vpop.f32.mrf.mxu0
      %v4651 = vadd.f32 %v4511, %v4650
      %v4652 = vpop.f32.mrf.mxu0
      %v4653 = vadd.f32 %v4511, %v4652
      %4654 = vmatmul.bf16.gmra.mxu0 %v4478
      %v4655 = vpop.f32.mrf.mxu0
      %v4656 = vadd.f32 %v4511, %v4655
      %v4657 = vpop.f32.mrf.mxu0
      %v4658 = vadd.f32 %v4511, %v4657
      %4659 = vmatmul.bf16.gmra.mxu0 %v4479
      %v4660 = vpop.f32.mrf.mxu0
      %v4661 = vadd.f32 %v4511, %v4660
      %v4662 = vpop.f32.mrf.mxu0
      %v4663 = vadd.f32 %v4511, %v4662
      %4664 = vmatmul.bf16.gmra.mxu0 %v4480
      %v4665 = vpop.f32.mrf.mxu0
      %v4666 = vadd.f32 %v4511, %v4665
      %v4667 = vpop.f32.mrf.mxu0
      %v4668 = vadd.f32 %v4511, %v4667
      %4669 = vmatmul.bf16.gmra.mxu0 %v4481
      %v4670 = vpop.f32.mrf.mxu0
      %v4671 = vadd.f32 %v4511, %v4670
      %v4672 = vpop.f32.mrf.mxu0
      %v4673 = vadd.f32 %v4511, %v4672
      %4674 = vmatmul.bf16.gmra.mxu0 %v4482
      %v4675 = vpop.f32.mrf.mxu0
      %v4676 = vadd.f32 %v4511, %v4675
      %v4677 = vpop.f32.mrf.mxu0
      %v4678 = vadd.f32 %v4511, %v4677
      %4679 = vmatmul.bf16.gmra.mxu0 %v4483
      %v4680 = vpop.f32.mrf.mxu0
      %v4681 = vadd.f32 %v4511, %v4680
      %v4682 = vpop.f32.mrf.mxu0
      %v4683 = vadd.f32 %v4511, %v4682
      %4684 = vmatmul.bf16.gmra.mxu0 %v4484
      %v4685 = vpop.f32.mrf.mxu0
      %v4686 = vadd.f32 %v4511, %v4685
      %v4687 = vpop.f32.mrf.mxu0
      %v4688 = vadd.f32 %v4511, %v4687
      %4689 = vmatmul.bf16.gmra.mxu0 %v4485
      %v4690 = vpop.f32.mrf.mxu0
      %v4691 = vadd.f32 %v4511, %v4690
      %v4692 = vpop.f32.mrf.mxu0
      %v4693 = vadd.f32 %v4511, %v4692
      %4694 = vmatmul.bf16.gmra.mxu0 %v4486
      %v4695 = vpop.f32.mrf.mxu0
      %v4696 = vadd.f32 %v4511, %v4695
      %v4697 = vpop.f32.mrf.mxu0
      %v4698 = vadd.f32 %v4511, %v4697
      %4699 = vmatmul.bf16.gmra.mxu0 %v4487
      %v4700 = vpop.f32.mrf.mxu0
      %v4701 = vadd.f32 %v4511, %v4700
      %v4702 = vpop.f32.mrf.mxu0
      %v4703 = vadd.f32 %v4511, %v4702
      %4704 = vmatmul.bf16.gmra.mxu0 %v4488
      %v4705 = vpop.f32.mrf.mxu0
      %v4706 = vadd.f32 %v4511, %v4705
      %v4707 = vpop.f32.mrf.mxu0
      %v4708 = vadd.f32 %v4511, %v4707
      %4709 = vmatmul.bf16.gmra.mxu0 %v4489
      %v4710 = vpop.f32.mrf.mxu0
      %v4711 = vadd.f32 %v4511, %v4710
      %v4712 = vpop.f32.mrf.mxu0
      %v4713 = vadd.f32 %v4511, %v4712
      %4714 = vmatmul.bf16.gmra.mxu0 %v4490
      %v4715 = vpop.f32.mrf.mxu0
      %v4716 = vadd.f32 %v4511, %v4715
      %v4717 = vpop.f32.mrf.mxu0
      %v4718 = vadd.f32 %v4511, %v4717
      %4719 = vmatmul.bf16.gmra.mxu0 %v4491
      %v4720 = vpop.f32.mrf.mxu0
      %v4721 = vadd.f32 %v4511, %v4720
      %v4722 = vpop.f32.mrf.mxu0
      %v4723 = vadd.f32 %v4511, %v4722
      %4724 = vmatmul.bf16.gmra.mxu0 %v4492
      %v4725 = vpop.f32.mrf.mxu0
      %v4726 = vadd.f32 %v4511, %v4725
      %v4727 = vpop.f32.mrf.mxu0
      %v4728 = vadd.f32 %v4511, %v4727
      %4729 = vdwg.mxu0
      %v4730 = vmax.f32 %v4571, 0.0
      %v4731 = vmax.f32 %v4573, 0.0
      %v4732 = vmax.f32 %v4576, 0.0
      %v4733 = vmax.f32 %v4578, 0.0
      %v4734 = vmax.f32 %v4581, 0.0
      %v4735 = vmax.f32 %v4583, 0.0
      %v4736 = vmax.f32 %v4586, 0.0
      %v4737 = vmax.f32 %v4588, 0.0
      %v4738 = vmax.f32 %v4591, 0.0
      %v4739 = vmax.f32 %v4593, 0.0
      %v4740 = vmax.f32 %v4596, 0.0
      %v4741 = vmax.f32 %v4598, 0.0
      %v4742 = vmax.f32 %v4601, 0.0
      %v4743 = vmax.f32 %v4603, 0.0
      %v4744 = vmax.f32 %v4606, 0.0
      %v4745 = vmax.f32 %v4608, 0.0
      %v4746 = vmax.f32 %v4611, 0.0
      %v4747 = vmax.f32 %v4613, 0.0
      %v4748 = vmax.f32 %v4616, 0.0
      %v4749 = vmax.f32 %v4618, 0.0
      %v4750 = vmax.f32 %v4621, 0.0
      %v4751 = vmax.f32 %v4623, 0.0
      %v4752 = vmax.f32 %v4626, 0.0
      %v4753 = vmax.f32 %v4628, 0.0
      %v4754 = vmax.f32 %v4631, 0.0
      %v4755 = vmax.f32 %v4633, 0.0
      %v4756 = vmax.f32 %v4636, 0.0
      %v4757 = vmax.f32 %v4638, 0.0
      %v4758 = vmax.f32 %v4641, 0.0
      %v4759 = vmax.f32 %v4643, 0.0
      %v4760 = vmax.f32 %v4646, 0.0
      %v4761 = vmax.f32 %v4648, 0.0
      %v4762 = vmax.f32 %v4651, 0.0
      %v4763 = vmax.f32 %v4653, 0.0
      %v4764 = vmax.f32 %v4656, 0.0
      %v4765 = vmax.f32 %v4658, 0.0
      %v4766 = vmax.f32 %v4661, 0.0
      %v4767 = vmax.f32 %v4663, 0.0
      %v4768 = vmax.f32 %v4666, 0.0
      %v4769 = vmax.f32 %v4668, 0.0
      %v4770 = vmax.f32 %v4671, 0.0
      %v4771 = vmax.f32 %v4673, 0.0
      %v4772 = vmax.f32 %v4676, 0.0
      %v4773 = vmax.f32 %v4678, 0.0
      %v4774 = vmax.f32 %v4681, 0.0
      %v4775 = vmax.f32 %v4683, 0.0
      %v4776 = vmax.f32 %v4686, 0.0
      %v4777 = vmax.f32 %v4688, 0.0
      %v4778 = vmax.f32 %v4691, 0.0
      %v4779 = vmax.f32 %v4693, 0.0
      %v4780 = vmax.f32 %v4696, 0.0
      %v4781 = vmax.f32 %v4698, 0.0
      %v4782 = vmax.f32 %v4701, 0.0
      %v4783 = vmax.f32 %v4703, 0.0
      %v4784 = vmax.f32 %v4706, 0.0
      %v4785 = vmax.f32 %v4708, 0.0
      %v4786 = vmax.f32 %v4711, 0.0
      %v4787 = vmax.f32 %v4713, 0.0
      %v4788 = vmax.f32 %v4716, 0.0
      %v4789 = vmax.f32 %v4718, 0.0
      %v4790 = vmax.f32 %v4721, 0.0
      %v4791 = vmax.f32 %v4723, 0.0
      %v4792 = vmax.f32 %v4726, 0.0
      %v4793 = vmax.f32 %v4728, 0.0
      %v4794 = vpack.c.bf16 %v4731, %v4730
      %v4795 = vpack.c.bf16 %v4733, %v4732
      %v4796 = vpack.c.bf16 %v4735, %v4734
      %v4797 = vpack.c.bf16 %v4737, %v4736
      %v4798 = vpack.c.bf16 %v4739, %v4738
      %v4799 = vpack.c.bf16 %v4741, %v4740
      %v4800 = vpack.c.bf16 %v4743, %v4742
      %v4801 = vpack.c.bf16 %v4745, %v4744
      %v4802 = vpack.c.bf16 %v4747, %v4746
      %v4803 = vpack.c.bf16 %v4749, %v4748
      %v4804 = vpack.c.bf16 %v4751, %v4750
      %v4805 = vpack.c.bf16 %v4753, %v4752
      %v4806 = vpack.c.bf16 %v4755, %v4754
      %v4807 = vpack.c.bf16 %v4757, %v4756
      %v4808 = vpack.c.bf16 %v4759, %v4758
      %v4809 = vpack.c.bf16 %v4761, %v4760
      %v4810 = vpack.c.bf16 %v4763, %v4762
      %v4811 = vpack.c.bf16 %v4765, %v4764
      %v4812 = vpack.c.bf16 %v4767, %v4766
      %v4813 = vpack.c.bf16 %v4769, %v4768
      %v4814 = vpack.c.bf16 %v4771, %v4770
      %v4815 = vpack.c.bf16 %v4773, %v4772
      %v4816 = vpack.c.bf16 %v4775, %v4774
      %v4817 = vpack.c.bf16 %v4777, %v4776
      %v4818 = vpack.c.bf16 %v4779, %v4778
      %v4819 = vpack.c.bf16 %v4781, %v4780
      %v4820 = vpack.c.bf16 %v4783, %v4782
      %v4821 = vpack.c.bf16 %v4785, %v4784
      %v4822 = vpack.c.bf16 %v4787, %v4786
      %v4823 = vpack.c.bf16 %v4789, %v4788
      %v4824 = vpack.c.bf16 %v4791, %v4790
      %v4825 = vpack.c.bf16 %v4793, %v4792
      %v4826 = vld [vmem:[%s10] sm:$0xf]
      %v4827 = vld [vmem:[%s10 + $0x4] sm:$0xf]
      %v4828 = vld [vmem:[%s10 + $0x8] sm:$0xf]
      %v4829 = vld [vmem:[%s10 + $0xc] sm:$0xf]
      %v4830 = vld [vmem:[%s10 + $0x10] sm:$0xf]
      %v4831 = vld [vmem:[%s10 + $0x14] sm:$0xf]
      %v4832 = vld [vmem:[%s10 + $0x18] sm:$0xf]
      %v4833 = vld [vmem:[%s10 + $0x1c] sm:$0xf]
      %v4834 = vld [vmem:[%s10 + $0x20] sm:$0xf]
      %v4835 = vld [vmem:[%s10 + $0x24] sm:$0xf]
      %v4836 = vld [vmem:[%s10 + $0x28] sm:$0xf]
      %v4837 = vld [vmem:[%s10 + $0x2c] sm:$0xf]
      %v4838 = vld [vmem:[%s10 + $0x30] sm:$0xf]
      %v4839 = vld [vmem:[%s10 + $0x34] sm:$0xf]
      %v4840 = vld [vmem:[%s10 + $0x38] sm:$0xf]
      %v4841 = vld [vmem:[%s10 + $0x3c] sm:$0xf]
      %v4842 = vld [vmem:[%s11] sm:$0x1]
      %v4844 = vperm.slane %v4842, 0
      %v4862 = vunpack.c.l.b16 %v4826
      %v4863 = vunpack.c.l.b16 %v4827
      %v4864 = vunpack.c.l.b16 %v4828
      %v4865 = vunpack.c.l.b16 %v4829
      %v4866 = vunpack.c.l.b16 %v4830
      %v4867 = vunpack.c.l.b16 %v4831
      %v4868 = vunpack.c.l.b16 %v4832
      %v4869 = vunpack.c.l.b16 %v4833
      %v4870 = vunpack.c.l.b16 %v4834
      %v4871 = vunpack.c.l.b16 %v4835
      %v4872 = vunpack.c.l.b16 %v4836
      %v4873 = vunpack.c.l.b16 %v4837
      %v4874 = vunpack.c.l.b16 %v4838
      %v4875 = vunpack.c.l.b16 %v4839
      %v4876 = vunpack.c.l.b16 %v4840
      %v4877 = vunpack.c.l.b16 %v4841
      %v4878 = vpack.c.b16 %v4863, %v4862
      %v4879 = vpack.c.b16 %v4865, %v4864
      %v4880 = vpack.c.b16 %v4867, %v4866
      %v4881 = vpack.c.b16 %v4869, %v4868
      %v4882 = vpack.c.b16 %v4871, %v4870
      %v4883 = vpack.c.b16 %v4873, %v4872
      %v4884 = vpack.c.b16 %v4875, %v4874
      %v4885 = vpack.c.b16 %v4877, %v4876
      %4894 = vmatpush.bf16.msra.mxu0 %v4885
      %4895 = vmatpush.bf16.msra.mxu0 %v4884
      %4896 = vmatpush.bf16.msra.mxu0 %v4883
      %4897 = vmatpush.bf16.msra.mxu0 %v4882
      %4898 = vmatpush.bf16.msra.mxu0 %v4881
      %4899 = vmatpush.bf16.msra.mxu0 %v4880
      %4900 = vmatpush.bf16.msra.mxu0 %v4879
      %4901 = vmatpush.bf16.msra.mxu0 %v4878
      %4902 = vmatmul.bf16.gmra.mxu0 %v4794
      %v4903 = vpop.f32.mrf.mxu0
      %v4904 = vadd.f32 %v4844, %v4903
      %v4905 = vpop.f32.mrf.mxu0
      %v4906 = vadd.f32 %v4844, %v4905
      %4907 = vmatmul.bf16.gmra.mxu0 %v4795
      %v4908 = vpop.f32.mrf.mxu0
      %v4909 = vadd.f32 %v4844, %v4908
      %v4910 = vpop.f32.mrf.mxu0
      %v4911 = vadd.f32 %v4844, %v4910
      %4912 = vmatmul.bf16.gmra.mxu0 %v4796
      %v4913 = vpop.f32.mrf.mxu0
      %v4914 = vadd.f32 %v4844, %v4913
      %v4915 = vpop.f32.mrf.mxu0
      %v4916 = vadd.f32 %v4844, %v4915
      %4917 = vmatmul.bf16.gmra.mxu0 %v4797
      %v4918 = vpop.f32.mrf.mxu0
      %v4919 = vadd.f32 %v4844, %v4918
      %v4920 = vpop.f32.mrf.mxu0
      %v4921 = vadd.f32 %v4844, %v4920
      %4922 = vmatmul.bf16.gmra.mxu0 %v4798
      %v4923 = vpop.f32.mrf.mxu0
      %v4924 = vadd.f32 %v4844, %v4923
      %v4925 = vpop.f32.mrf.mxu0
      %v4926 = vadd.f32 %v4844, %v4925
      %4927 = vmatmul.bf16.gmra.mxu0 %v4799
      %v4928 = vpop.f32.mrf.mxu0
      %v4929 = vadd.f32 %v4844, %v4928
      %v4930 = vpop.f32.mrf.mxu0
      %v4931 = vadd.f32 %v4844, %v4930
      %4932 = vmatmul.bf16.gmra.mxu0 %v4800
      %v4933 = vpop.f32.mrf.mxu0
      %v4934 = vadd.f32 %v4844, %v4933
      %v4935 = vpop.f32.mrf.mxu0
      %v4936 = vadd.f32 %v4844, %v4935
      %4937 = vmatmul.bf16.gmra.mxu0 %v4801
      %v4938 = vpop.f32.mrf.mxu0
      %v4939 = vadd.f32 %v4844, %v4938
      %v4940 = vpop.f32.mrf.mxu0
      %v4941 = vadd.f32 %v4844, %v4940
      %4942 = vmatmul.bf16.gmra.mxu0 %v4802
      %v4943 = vpop.f32.mrf.mxu0
      %v4944 = vadd.f32 %v4844, %v4943
      %v4945 = vpop.f32.mrf.mxu0
      %v4946 = vadd.f32 %v4844, %v4945
      %4947 = vmatmul.bf16.gmra.mxu0 %v4803
      %v4948 = vpop.f32.mrf.mxu0
      %v4949 = vadd.f32 %v4844, %v4948
      %v4950 = vpop.f32.mrf.mxu0
      %v4951 = vadd.f32 %v4844, %v4950
      %4952 = vmatmul.bf16.gmra.mxu0 %v4804
      %v4953 = vpop.f32.mrf.mxu0
      %v4954 = vadd.f32 %v4844, %v4953
      %v4955 = vpop.f32.mrf.mxu0
      %v4956 = vadd.f32 %v4844, %v4955
      %4957 = vmatmul.bf16.gmra.mxu0 %v4805
      %v4958 = vpop.f32.mrf.mxu0
      %v4959 = vadd.f32 %v4844, %v4958
      %v4960 = vpop.f32.mrf.mxu0
      %v4961 = vadd.f32 %v4844, %v4960
      %4962 = vmatmul.bf16.gmra.mxu0 %v4806
      %v4963 = vpop.f32.mrf.mxu0
      %v4964 = vadd.f32 %v4844, %v4963
      %v4965 = vpop.f32.mrf.mxu0
      %v4966 = vadd.f32 %v4844, %v4965
      %4967 = vmatmul.bf16.gmra.mxu0 %v4807
      %v4968 = vpop.f32.mrf.mxu0
      %v4969 = vadd.f32 %v4844, %v4968
      %v4970 = vpop.f32.mrf.mxu0
      %v4971 = vadd.f32 %v4844, %v4970
      %4972 = vmatmul.bf16.gmra.mxu0 %v4808
      %v4973 = vpop.f32.mrf.mxu0
      %v4974 = vadd.f32 %v4844, %v4973
      %v4975 = vpop.f32.mrf.mxu0
      %v4976 = vadd.f32 %v4844, %v4975
      %4977 = vmatmul.bf16.gmra.mxu0 %v4809
      %v4978 = vpop.f32.mrf.mxu0
      %v4979 = vadd.f32 %v4844, %v4978
      %v4980 = vpop.f32.mrf.mxu0
      %v4981 = vadd.f32 %v4844, %v4980
      %4982 = vmatmul.bf16.gmra.mxu0 %v4810
      %v4983 = vpop.f32.mrf.mxu0
      %v4984 = vadd.f32 %v4844, %v4983
      %v4985 = vpop.f32.mrf.mxu0
      %v4986 = vadd.f32 %v4844, %v4985
      %4987 = vmatmul.bf16.gmra.mxu0 %v4811
      %v4988 = vpop.f32.mrf.mxu0
      %v4989 = vadd.f32 %v4844, %v4988
      %v4990 = vpop.f32.mrf.mxu0
      %v4991 = vadd.f32 %v4844, %v4990
      %4992 = vmatmul.bf16.gmra.mxu0 %v4812
      %v4993 = vpop.f32.mrf.mxu0
      %v4994 = vadd.f32 %v4844, %v4993
      %v4995 = vpop.f32.mrf.mxu0
      %v4996 = vadd.f32 %v4844, %v4995
      %4997 = vmatmul.bf16.gmra.mxu0 %v4813
      %v4998 = vpop.f32.mrf.mxu0
      %v4999 = vadd.f32 %v4844, %v4998
      %v5000 = vpop.f32.mrf.mxu0
      %v5001 = vadd.f32 %v4844, %v5000
      %5002 = vmatmul.bf16.gmra.mxu0 %v4814
      %v5003 = vpop.f32.mrf.mxu0
      %v5004 = vadd.f32 %v4844, %v5003
      %v5005 = vpop.f32.mrf.mxu0
      %v5006 = vadd.f32 %v4844, %v5005
      %5007 = vmatmul.bf16.gmra.mxu0 %v4815
      %v5008 = vpop.f32.mrf.mxu0
      %v5009 = vadd.f32 %v4844, %v5008
      %v5010 = vpop.f32.mrf.mxu0
      %v5011 = vadd.f32 %v4844, %v5010
      %5012 = vmatmul.bf16.gmra.mxu0 %v4816
      %v5013 = vpop.f32.mrf.mxu0
      %v5014 = vadd.f32 %v4844, %v5013
      %v5015 = vpop.f32.mrf.mxu0
      %v5016 = vadd.f32 %v4844, %v5015
      %5017 = vmatmul.bf16.gmra.mxu0 %v4817
      %v5018 = vpop.f32.mrf.mxu0
      %v5019 = vadd.f32 %v4844, %v5018
      %v5020 = vpop.f32.mrf.mxu0
      %v5021 = vadd.f32 %v4844, %v5020
      %5022 = vmatmul.bf16.gmra.mxu0 %v4818
      %v5023 = vpop.f32.mrf.mxu0
      %v5024 = vadd.f32 %v4844, %v5023
      %v5025 = vpop.f32.mrf.mxu0
      %v5026 = vadd.f32 %v4844, %v5025
      %5027 = vmatmul.bf16.gmra.mxu0 %v4819
      %v5028 = vpop.f32.mrf.mxu0
      %v5029 = vadd.f32 %v4844, %v5028
      %v5030 = vpop.f32.mrf.mxu0
      %v5031 = vadd.f32 %v4844, %v5030
      %5032 = vmatmul.bf16.gmra.mxu0 %v4820
      %v5033 = vpop.f32.mrf.mxu0
      %v5034 = vadd.f32 %v4844, %v5033
      %v5035 = vpop.f32.mrf.mxu0
      %v5036 = vadd.f32 %v4844, %v5035
      %5037 = vmatmul.bf16.gmra.mxu0 %v4821
      %v5038 = vpop.f32.mrf.mxu0
      %v5039 = vadd.f32 %v4844, %v5038
      %v5040 = vpop.f32.mrf.mxu0
      %v5041 = vadd.f32 %v4844, %v5040
      %5042 = vmatmul.bf16.gmra.mxu0 %v4822
      %v5043 = vpop.f32.mrf.mxu0
      %v5044 = vadd.f32 %v4844, %v5043
      %v5045 = vpop.f32.mrf.mxu0
      %v5046 = vadd.f32 %v4844, %v5045
      %5047 = vmatmul.bf16.gmra.mxu0 %v4823
      %v5048 = vpop.f32.mrf.mxu0
      %v5049 = vadd.f32 %v4844, %v5048
      %v5050 = vpop.f32.mrf.mxu0
      %v5051 = vadd.f32 %v4844, %v5050
      %5052 = vmatmul.bf16.gmra.mxu0 %v4824
      %v5053 = vpop.f32.mrf.mxu0
      %v5054 = vadd.f32 %v4844, %v5053
      %v5055 = vpop.f32.mrf.mxu0
      %v5056 = vadd.f32 %v4844, %v5055
      %5057 = vmatmul.bf16.gmra.mxu0 %v4825
      %v5058 = vpop.f32.mrf.mxu0
      %v5059 = vadd.f32 %v4844, %v5058
      %v5060 = vpop.f32.mrf.mxu0
      %v5061 = vadd.f32 %v4844, %v5060
      %5062 = vdwg.mxu0
      %v5063 = vld [vmem:[%s12] sm:$0x1]
      %v5064 = vld [vmem:[%s13] sm:$0x1]
      %vm5065 = vcmp.lt.s32.totalorder %v1690, 32
      %5066 = vadd.xlane.f32.xlu0 %v4904
      %v5067 = vpop.xlane.xlu0 %5066
      %5068 = vadd.xlane.f32.xlu0 %v4906
      %v5069 = vpop.xlane.xlu0 %5068
      %5070 = vadd.xlane.f32.xlu0 %v4909
      %v5071 = vpop.xlane.xlu0 %5070
      %5072 = vadd.xlane.f32.xlu0 %v4911
      %v5073 = vpop.xlane.xlu0 %5072
      %5074 = vadd.xlane.f32.xlu0 %v4914
      %v5075 = vpop.xlane.xlu0 %5074
      %5076 = vadd.xlane.f32.xlu0 %v4916
      %v5077 = vpop.xlane.xlu0 %5076
      %5078 = vadd.xlane.f32.xlu0 %v4919
      %v5079 = vpop.xlane.xlu0 %5078
      %5080 = vadd.xlane.f32.xlu0 %v4921
      %v5081 = vpop.xlane.xlu0 %5080
      %5082 = vadd.xlane.f32.xlu0 %v4924
      %v5083 = vpop.xlane.xlu0 %5082
      %5084 = vadd.xlane.f32.xlu0 %v4926
      %v5085 = vpop.xlane.xlu0 %5084
      %5086 = vadd.xlane.f32.xlu0 %v4929
      %v5087 = vpop.xlane.xlu0 %5086
      %5088 = vadd.xlane.f32.xlu0 %v4931
      %v5089 = vpop.xlane.xlu0 %5088
      %5090 = vadd.xlane.f32.xlu0 %v4934
      %v5091 = vpop.xlane.xlu0 %5090
      %5092 = vadd.xlane.f32.xlu0 %v4936
      %v5093 = vpop.xlane.xlu0 %5092
      %5094 = vadd.xlane.f32.xlu0 %v4939
      %v5095 = vpop.xlane.xlu0 %5094
      %5096 = vadd.xlane.f32.xlu0 %v4941
      %v5097 = vpop.xlane.xlu0 %5096
      %5098 = vadd.xlane.f32.xlu0 %v4944
      %v5099 = vpop.xlane.xlu0 %5098
      %5100 = vadd.xlane.f32.xlu0 %v4946
      %v5101 = vpop.xlane.xlu0 %5100
      %5102 = vadd.xlane.f32.xlu0 %v4949
      %v5103 = vpop.xlane.xlu0 %5102
      %5104 = vadd.xlane.f32.xlu0 %v4951
      %v5105 = vpop.xlane.xlu0 %5104
      %5106 = vadd.xlane.f32.xlu0 %v4954
      %v5107 = vpop.xlane.xlu0 %5106
      %5108 = vadd.xlane.f32.xlu0 %v4956
      %v5109 = vpop.xlane.xlu0 %5108
      %5110 = vadd.xlane.f32.xlu0 %v4959
      %v5111 = vpop.xlane.xlu0 %5110
      %5112 = vadd.xlane.f32.xlu0 %v4961
      %v5113 = vpop.xlane.xlu0 %5112
      %5114 = vadd.xlane.f32.xlu0 %v4964
      %v5115 = vpop.xlane.xlu0 %5114
      %5116 = vadd.xlane.f32.xlu0 %v4966
      %v5117 = vpop.xlane.xlu0 %5116
      %5118 = vadd.xlane.f32.xlu0 %v4969
      %v5119 = vpop.xlane.xlu0 %5118
      %5120 = vadd.xlane.f32.xlu0 %v4971
      %v5121 = vpop.xlane.xlu0 %5120
      %5122 = vadd.xlane.f32.xlu0 %v4974
      %v5123 = vpop.xlane.xlu0 %5122
      %5124 = vadd.xlane.f32.xlu0 %v4976
      %v5125 = vpop.xlane.xlu0 %5124
      %5126 = vadd.xlane.f32.xlu0 %v4979
      %v5127 = vpop.xlane.xlu0 %5126
      %5128 = vadd.xlane.f32.xlu0 %v4981
      %v5129 = vpop.xlane.xlu0 %5128
      %5130 = vadd.xlane.f32.xlu0 %v4984
      %v5131 = vpop.xlane.xlu0 %5130
      %5132 = vadd.xlane.f32.xlu0 %v4986
      %v5133 = vpop.xlane.xlu0 %5132
      %5134 = vadd.xlane.f32.xlu0 %v4989
      %v5135 = vpop.xlane.xlu0 %5134
      %5136 = vadd.xlane.f32.xlu0 %v4991
      %v5137 = vpop.xlane.xlu0 %5136
      %5138 = vadd.xlane.f32.xlu0 %v4994
      %v5139 = vpop.xlane.xlu0 %5138
      %5140 = vadd.xlane.f32.xlu0 %v4996
      %v5141 = vpop.xlane.xlu0 %5140
      %5142 = vadd.xlane.f32.xlu0 %v4999
      %v5143 = vpop.xlane.xlu0 %5142
      %5144 = vadd.xlane.f32.xlu0 %v5001
      %v5145 = vpop.xlane.xlu0 %5144
      %5146 = vadd.xlane.f32.xlu0 %v5004
      %v5147 = vpop.xlane.xlu0 %5146
      %5148 = vadd.xlane.f32.xlu0 %v5006
      %v5149 = vpop.xlane.xlu0 %5148
      %5150 = vadd.xlane.f32.xlu0 %v5009
      %v5151 = vpop.xlane.xlu0 %5150
      %5152 = vadd.xlane.f32.xlu0 %v5011
      %v5153 = vpop.xlane.xlu0 %5152
      %5154 = vadd.xlane.f32.xlu0 %v5014
      %v5155 = vpop.xlane.xlu0 %5154
      %5156 = vadd.xlane.f32.xlu0 %v5016
      %v5157 = vpop.xlane.xlu0 %5156
      %5158 = vadd.xlane.f32.xlu0 %v5019
      %v5159 = vpop.xlane.xlu0 %5158
      %5160 = vadd.xlane.f32.xlu0 %v5021
      %v5161 = vpop.xlane.xlu0 %5160
      %5162 = vadd.xlane.f32.xlu0 %v5024
      %v5163 = vpop.xlane.xlu0 %5162
      %5164 = vadd.xlane.f32.xlu0 %v5026
      %v5165 = vpop.xlane.xlu0 %5164
      %5166 = vadd.xlane.f32.xlu0 %v5029
      %v5167 = vpop.xlane.xlu0 %5166
      %5168 = vadd.xlane.f32.xlu0 %v5031
      %v5169 = vpop.xlane.xlu0 %5168
      %5170 = vadd.xlane.f32.xlu0 %v5034
      %v5171 = vpop.xlane.xlu0 %5170
      %5172 = vadd.xlane.f32.xlu0 %v5036
      %v5173 = vpop.xlane.xlu0 %5172
      %5174 = vadd.xlane.f32.xlu0 %v5039
      %v5175 = vpop.xlane.xlu0 %5174
      %5176 = vadd.xlane.f32.xlu0 %v5041
      %v5177 = vpop.xlane.xlu0 %5176
      %5178 = vadd.xlane.f32.xlu0 %v5044
      %v5179 = vpop.xlane.xlu0 %5178
      %5180 = vadd.xlane.f32.xlu0 %v5046
      %v5181 = vpop.xlane.xlu0 %5180
      %5182 = vadd.xlane.f32.xlu0 %v5049
      %v5183 = vpop.xlane.xlu0 %5182
      %5184 = vadd.xlane.f32.xlu0 %v5051
      %v5185 = vpop.xlane.xlu0 %5184
      %5186 = vadd.xlane.f32.xlu0 %v5054
      %v5187 = vpop.xlane.xlu0 %5186
      %5188 = vadd.xlane.f32.xlu0 %v5056
      %v5189 = vpop.xlane.xlu0 %5188
      %5190 = vadd.xlane.f32.xlu0 %v5059
      %v5191 = vpop.xlane.xlu0 %5190
      %5192 = vadd.xlane.f32.xlu0 %v5061
      %v5193 = vpop.xlane.xlu0 %5192
      %v5194 = vmul.f32 %v5067, 0.03125
      %v5195 = vmul.f32 %v5069, 0.03125
      %v5196 = vmul.f32 %v5071, 0.03125
      %v5197 = vmul.f32 %v5073, 0.03125
      %v5198 = vmul.f32 %v5075, 0.03125
      %v5199 = vmul.f32 %v5077, 0.03125
      %v5200 = vmul.f32 %v5079, 0.03125
      %v5201 = vmul.f32 %v5081, 0.03125
      %v5202 = vmul.f32 %v5083, 0.03125
      %v5203 = vmul.f32 %v5085, 0.03125
      %v5204 = vmul.f32 %v5087, 0.03125
      %v5205 = vmul.f32 %v5089, 0.03125
      %v5206 = vmul.f32 %v5091, 0.03125
      %v5207 = vmul.f32 %v5093, 0.03125
      %v5208 = vmul.f32 %v5095, 0.03125
      %v5209 = vmul.f32 %v5097, 0.03125
      %v5210 = vmul.f32 %v5099, 0.03125
      %v5211 = vmul.f32 %v5101, 0.03125
      %v5212 = vmul.f32 %v5103, 0.03125
      %v5213 = vmul.f32 %v5105, 0.03125
      %v5214 = vmul.f32 %v5107, 0.03125
      %v5215 = vmul.f32 %v5109, 0.03125
      %v5216 = vmul.f32 %v5111, 0.03125
      %v5217 = vmul.f32 %v5113, 0.03125
      %v5218 = vmul.f32 %v5115, 0.03125
      %v5219 = vmul.f32 %v5117, 0.03125
      %v5220 = vmul.f32 %v5119, 0.03125
      %v5221 = vmul.f32 %v5121, 0.03125
      %v5222 = vmul.f32 %v5123, 0.03125
      %v5223 = vmul.f32 %v5125, 0.03125
      %v5224 = vmul.f32 %v5127, 0.03125
      %v5225 = vmul.f32 %v5129, 0.03125
      %v5226 = vmul.f32 %v5131, 0.03125
      %v5227 = vmul.f32 %v5133, 0.03125
      %v5228 = vmul.f32 %v5135, 0.03125
      %v5229 = vmul.f32 %v5137, 0.03125
      %v5230 = vmul.f32 %v5139, 0.03125
      %v5231 = vmul.f32 %v5141, 0.03125
      %v5232 = vmul.f32 %v5143, 0.03125
      %v5233 = vmul.f32 %v5145, 0.03125
      %v5234 = vmul.f32 %v5147, 0.03125
      %v5235 = vmul.f32 %v5149, 0.03125
      %v5236 = vmul.f32 %v5151, 0.03125
      %v5237 = vmul.f32 %v5153, 0.03125
      %v5238 = vmul.f32 %v5155, 0.03125
      %v5239 = vmul.f32 %v5157, 0.03125
      %v5240 = vmul.f32 %v5159, 0.03125
      %v5241 = vmul.f32 %v5161, 0.03125
      %v5242 = vmul.f32 %v5163, 0.03125
      %v5243 = vmul.f32 %v5165, 0.03125
      %v5244 = vmul.f32 %v5167, 0.03125
      %v5245 = vmul.f32 %v5169, 0.03125
      %v5246 = vmul.f32 %v5171, 0.03125
      %v5247 = vmul.f32 %v5173, 0.03125
      %v5248 = vmul.f32 %v5175, 0.03125
      %v5249 = vmul.f32 %v5177, 0.03125
      %v5250 = vmul.f32 %v5179, 0.03125
      %v5251 = vmul.f32 %v5181, 0.03125
      %v5252 = vmul.f32 %v5183, 0.03125
      %v5253 = vmul.f32 %v5185, 0.03125
      %v5254 = vmul.f32 %v5187, 0.03125
      %v5255 = vmul.f32 %v5189, 0.03125
      %v5256 = vmul.f32 %v5191, 0.03125
      %v5257 = vmul.f32 %v5193, 0.03125
      %v5258 = vsub.f32 %v4904, %v5194
      %v5259 = vsub.f32 %v4906, %v5195
      %v5260 = vsub.f32 %v4909, %v5196
      %v5261 = vsub.f32 %v4911, %v5197
      %v5262 = vsub.f32 %v4914, %v5198
      %v5263 = vsub.f32 %v4916, %v5199
      %v5264 = vsub.f32 %v4919, %v5200
      %v5265 = vsub.f32 %v4921, %v5201
      %v5266 = vsub.f32 %v4924, %v5202
      %v5267 = vsub.f32 %v4926, %v5203
      %v5268 = vsub.f32 %v4929, %v5204
      %v5269 = vsub.f32 %v4931, %v5205
      %v5270 = vsub.f32 %v4934, %v5206
      %v5271 = vsub.f32 %v4936, %v5207
      %v5272 = vsub.f32 %v4939, %v5208
      %v5273 = vsub.f32 %v4941, %v5209
      %v5274 = vsub.f32 %v4944, %v5210
      %v5275 = vsub.f32 %v4946, %v5211
      %v5276 = vsub.f32 %v4949, %v5212
      %v5277 = vsub.f32 %v4951, %v5213
      %v5278 = vsub.f32 %v4954, %v5214
      %v5279 = vsub.f32 %v4956, %v5215
      %v5280 = vsub.f32 %v4959, %v5216
      %v5281 = vsub.f32 %v4961, %v5217
      %v5282 = vsub.f32 %v4964, %v5218
      %v5283 = vsub.f32 %v4966, %v5219
      %v5284 = vsub.f32 %v4969, %v5220
      %v5285 = vsub.f32 %v4971, %v5221
      %v5286 = vsub.f32 %v4974, %v5222
      %v5287 = vsub.f32 %v4976, %v5223
      %v5288 = vsub.f32 %v4979, %v5224
      %v5289 = vsub.f32 %v4981, %v5225
      %v5290 = vsub.f32 %v4984, %v5226
      %v5291 = vsub.f32 %v4986, %v5227
      %v5292 = vsub.f32 %v4989, %v5228
      %v5293 = vsub.f32 %v4991, %v5229
      %v5294 = vsub.f32 %v4994, %v5230
      %v5295 = vsub.f32 %v4996, %v5231
      %v5296 = vsub.f32 %v4999, %v5232
      %v5297 = vsub.f32 %v5001, %v5233
      %v5298 = vsub.f32 %v5004, %v5234
      %v5299 = vsub.f32 %v5006, %v5235
      %v5300 = vsub.f32 %v5009, %v5236
      %v5301 = vsub.f32 %v5011, %v5237
      %v5302 = vsub.f32 %v5014, %v5238
      %v5303 = vsub.f32 %v5016, %v5239
      %v5304 = vsub.f32 %v5019, %v5240
      %v5305 = vsub.f32 %v5021, %v5241
      %v5306 = vsub.f32 %v5024, %v5242
      %v5307 = vsub.f32 %v5026, %v5243
      %v5308 = vsub.f32 %v5029, %v5244
      %v5309 = vsub.f32 %v5031, %v5245
      %v5310 = vsub.f32 %v5034, %v5246
      %v5311 = vsub.f32 %v5036, %v5247
      %v5312 = vsub.f32 %v5039, %v5248
      %v5313 = vsub.f32 %v5041, %v5249
      %v5314 = vsub.f32 %v5044, %v5250
      %v5315 = vsub.f32 %v5046, %v5251
      %v5316 = vsub.f32 %v5049, %v5252
      %v5317 = vsub.f32 %v5051, %v5253
      %v5318 = vsub.f32 %v5054, %v5254
      %v5319 = vsub.f32 %v5056, %v5255
      %v5320 = vsub.f32 %v5059, %v5256
      %v5321 = vsub.f32 %v5061, %v5257
      %v5322 = vsel %vm5065, 1, 0
      %vm5323 = vcmp.eq.s32.totalorder %v5322, 1
      %v5324 = vsel %vm5323, %v5258, 0.0
      %v5325 = vsel %vm5323, %v5259, 0.0
      %v5326 = vsel %vm5323, %v5260, 0.0
      %v5327 = vsel %vm5323, %v5261, 0.0
      %v5328 = vsel %vm5323, %v5262, 0.0
      %v5329 = vsel %vm5323, %v5263, 0.0
      %v5330 = vsel %vm5323, %v5264, 0.0
      %v5331 = vsel %vm5323, %v5265, 0.0
      %v5332 = vsel %vm5323, %v5266, 0.0
      %v5333 = vsel %vm5323, %v5267, 0.0
      %v5334 = vsel %vm5323, %v5268, 0.0
      %v5335 = vsel %vm5323, %v5269, 0.0
      %v5336 = vsel %vm5323, %v5270, 0.0
      %v5337 = vsel %vm5323, %v5271, 0.0
      %v5338 = vsel %vm5323, %v5272, 0.0
      %v5339 = vsel %vm5323, %v5273, 0.0
      %v5340 = vsel %vm5323, %v5274, 0.0
      %v5341 = vsel %vm5323, %v5275, 0.0
      %v5342 = vsel %vm5323, %v5276, 0.0
      %v5343 = vsel %vm5323, %v5277, 0.0
      %v5344 = vsel %vm5323, %v5278, 0.0
      %v5345 = vsel %vm5323, %v5279, 0.0
      %v5346 = vsel %vm5323, %v5280, 0.0
      %v5347 = vsel %vm5323, %v5281, 0.0
      %v5348 = vsel %vm5323, %v5282, 0.0
      %v5349 = vsel %vm5323, %v5283, 0.0
      %v5350 = vsel %vm5323, %v5284, 0.0
      %v5351 = vsel %vm5323, %v5285, 0.0
      %v5352 = vsel %vm5323, %v5286, 0.0
      %v5353 = vsel %vm5323, %v5287, 0.0
      %v5354 = vsel %vm5323, %v5288, 0.0
      %v5355 = vsel %vm5323, %v5289, 0.0
      %v5356 = vsel %vm5323, %v5290, 0.0
      %v5357 = vsel %vm5323, %v5291, 0.0
      %v5358 = vsel %vm5323, %v5292, 0.0
      %v5359 = vsel %vm5323, %v5293, 0.0
      %v5360 = vsel %vm5323, %v5294, 0.0
      %v5361 = vsel %vm5323, %v5295, 0.0
      %v5362 = vsel %vm5323, %v5296, 0.0
      %v5363 = vsel %vm5323, %v5297, 0.0
      %v5364 = vsel %vm5323, %v5298, 0.0
      %v5365 = vsel %vm5323, %v5299, 0.0
      %v5366 = vsel %vm5323, %v5300, 0.0
      %v5367 = vsel %vm5323, %v5301, 0.0
      %v5368 = vsel %vm5323, %v5302, 0.0
      %v5369 = vsel %vm5323, %v5303, 0.0
      %v5370 = vsel %vm5323, %v5304, 0.0
      %v5371 = vsel %vm5323, %v5305, 0.0
      %v5372 = vsel %vm5323, %v5306, 0.0
      %v5373 = vsel %vm5323, %v5307, 0.0
      %v5374 = vsel %vm5323, %v5308, 0.0
      %v5375 = vsel %vm5323, %v5309, 0.0
      %v5376 = vsel %vm5323, %v5310, 0.0
      %v5377 = vsel %vm5323, %v5311, 0.0
      %v5378 = vsel %vm5323, %v5312, 0.0
      %v5379 = vsel %vm5323, %v5313, 0.0
      %v5380 = vsel %vm5323, %v5314, 0.0
      %v5381 = vsel %vm5323, %v5315, 0.0
      %v5382 = vsel %vm5323, %v5316, 0.0
      %v5383 = vsel %vm5323, %v5317, 0.0
      %v5384 = vsel %vm5323, %v5318, 0.0
      %v5385 = vsel %vm5323, %v5319, 0.0
      %v5386 = vsel %vm5323, %v5320, 0.0
      %v5387 = vsel %vm5323, %v5321, 0.0
      %v5388 = vmul.f32 %v5324, %v5324
      %v5389 = vmul.f32 %v5325, %v5325
      %v5390 = vmul.f32 %v5326, %v5326
      %v5391 = vmul.f32 %v5327, %v5327
      %v5392 = vmul.f32 %v5328, %v5328
      %v5393 = vmul.f32 %v5329, %v5329
      %v5394 = vmul.f32 %v5330, %v5330
      %v5395 = vmul.f32 %v5331, %v5331
      %v5396 = vmul.f32 %v5332, %v5332
      %v5397 = vmul.f32 %v5333, %v5333
      %v5398 = vmul.f32 %v5334, %v5334
      %v5399 = vmul.f32 %v5335, %v5335
      %v5400 = vmul.f32 %v5336, %v5336
      %v5401 = vmul.f32 %v5337, %v5337
      %v5402 = vmul.f32 %v5338, %v5338
      %v5403 = vmul.f32 %v5339, %v5339
      %v5404 = vmul.f32 %v5340, %v5340
      %v5405 = vmul.f32 %v5341, %v5341
      %v5406 = vmul.f32 %v5342, %v5342
      %v5407 = vmul.f32 %v5343, %v5343
      %v5408 = vmul.f32 %v5344, %v5344
      %v5409 = vmul.f32 %v5345, %v5345
      %v5410 = vmul.f32 %v5346, %v5346
      %v5411 = vmul.f32 %v5347, %v5347
      %v5412 = vmul.f32 %v5348, %v5348
      %v5413 = vmul.f32 %v5349, %v5349
      %v5414 = vmul.f32 %v5350, %v5350
      %v5415 = vmul.f32 %v5351, %v5351
      %v5416 = vmul.f32 %v5352, %v5352
      %v5417 = vmul.f32 %v5353, %v5353
      %v5418 = vmul.f32 %v5354, %v5354
      %v5419 = vmul.f32 %v5355, %v5355
      %v5420 = vmul.f32 %v5356, %v5356
      %v5421 = vmul.f32 %v5357, %v5357
      %v5422 = vmul.f32 %v5358, %v5358
      %v5423 = vmul.f32 %v5359, %v5359
      %v5424 = vmul.f32 %v5360, %v5360
      %v5425 = vmul.f32 %v5361, %v5361
      %v5426 = vmul.f32 %v5362, %v5362
      %v5427 = vmul.f32 %v5363, %v5363
      %v5428 = vmul.f32 %v5364, %v5364
      %v5429 = vmul.f32 %v5365, %v5365
      %v5430 = vmul.f32 %v5366, %v5366
      %v5431 = vmul.f32 %v5367, %v5367
      %v5432 = vmul.f32 %v5368, %v5368
      %v5433 = vmul.f32 %v5369, %v5369
      %v5434 = vmul.f32 %v5370, %v5370
      %v5435 = vmul.f32 %v5371, %v5371
      %v5436 = vmul.f32 %v5372, %v5372
      %v5437 = vmul.f32 %v5373, %v5373
      %v5438 = vmul.f32 %v5374, %v5374
      %v5439 = vmul.f32 %v5375, %v5375
      %v5440 = vmul.f32 %v5376, %v5376
      %v5441 = vmul.f32 %v5377, %v5377
      %v5442 = vmul.f32 %v5378, %v5378
      %v5443 = vmul.f32 %v5379, %v5379
      %v5444 = vmul.f32 %v5380, %v5380
      %v5445 = vmul.f32 %v5381, %v5381
      %v5446 = vmul.f32 %v5382, %v5382
      %v5447 = vmul.f32 %v5383, %v5383
      %v5448 = vmul.f32 %v5384, %v5384
      %v5449 = vmul.f32 %v5385, %v5385
      %v5450 = vmul.f32 %v5386, %v5386
      %v5451 = vmul.f32 %v5387, %v5387
      %5452 = vadd.xlane.f32.xlu0 %v5388
      %v5453 = vpop.xlane.xlu0 %5452
      %5454 = vadd.xlane.f32.xlu0 %v5389
      %v5455 = vpop.xlane.xlu0 %5454
      %5456 = vadd.xlane.f32.xlu0 %v5390
      %v5457 = vpop.xlane.xlu0 %5456
      %5458 = vadd.xlane.f32.xlu0 %v5391
      %v5459 = vpop.xlane.xlu0 %5458
      %5460 = vadd.xlane.f32.xlu0 %v5392
      %v5461 = vpop.xlane.xlu0 %5460
      %5462 = vadd.xlane.f32.xlu0 %v5393
      %v5463 = vpop.xlane.xlu0 %5462
      %5464 = vadd.xlane.f32.xlu0 %v5394
      %v5465 = vpop.xlane.xlu0 %5464
      %5466 = vadd.xlane.f32.xlu0 %v5395
      %v5467 = vpop.xlane.xlu0 %5466
      %5468 = vadd.xlane.f32.xlu0 %v5396
      %v5469 = vpop.xlane.xlu0 %5468
      %5470 = vadd.xlane.f32.xlu0 %v5397
      %v5471 = vpop.xlane.xlu0 %5470
      %5472 = vadd.xlane.f32.xlu0 %v5398
      %v5473 = vpop.xlane.xlu0 %5472
      %5474 = vadd.xlane.f32.xlu0 %v5399
      %v5475 = vpop.xlane.xlu0 %5474
      %5476 = vadd.xlane.f32.xlu0 %v5400
      %v5477 = vpop.xlane.xlu0 %5476
      %5478 = vadd.xlane.f32.xlu0 %v5401
      %v5479 = vpop.xlane.xlu0 %5478
      %5480 = vadd.xlane.f32.xlu0 %v5402
      %v5481 = vpop.xlane.xlu0 %5480
      %5482 = vadd.xlane.f32.xlu0 %v5403
      %v5483 = vpop.xlane.xlu0 %5482
      %5484 = vadd.xlane.f32.xlu0 %v5404
      %v5485 = vpop.xlane.xlu0 %5484
      %5486 = vadd.xlane.f32.xlu0 %v5405
      %v5487 = vpop.xlane.xlu0 %5486
      %5488 = vadd.xlane.f32.xlu0 %v5406
      %v5489 = vpop.xlane.xlu0 %5488
      %5490 = vadd.xlane.f32.xlu0 %v5407
      %v5491 = vpop.xlane.xlu0 %5490
      %5492 = vadd.xlane.f32.xlu0 %v5408
      %v5493 = vpop.xlane.xlu0 %5492
      %5494 = vadd.xlane.f32.xlu0 %v5409
      %v5495 = vpop.xlane.xlu0 %5494
      %5496 = vadd.xlane.f32.xlu0 %v5410
      %v5497 = vpop.xlane.xlu0 %5496
      %5498 = vadd.xlane.f32.xlu0 %v5411
      %v5499 = vpop.xlane.xlu0 %5498
      %5500 = vadd.xlane.f32.xlu0 %v5412
      %v5501 = vpop.xlane.xlu0 %5500
      %5502 = vadd.xlane.f32.xlu0 %v5413
      %v5503 = vpop.xlane.xlu0 %5502
      %5504 = vadd.xlane.f32.xlu0 %v5414
      %v5505 = vpop.xlane.xlu0 %5504
      %5506 = vadd.xlane.f32.xlu0 %v5415
      %v5507 = vpop.xlane.xlu0 %5506
      %5508 = vadd.xlane.f32.xlu0 %v5416
      %v5509 = vpop.xlane.xlu0 %5508
      %5510 = vadd.xlane.f32.xlu0 %v5417
      %v5511 = vpop.xlane.xlu0 %5510
      %5512 = vadd.xlane.f32.xlu0 %v5418
      %v5513 = vpop.xlane.xlu0 %5512
      %5514 = vadd.xlane.f32.xlu0 %v5419
      %v5515 = vpop.xlane.xlu0 %5514
      %5516 = vadd.xlane.f32.xlu0 %v5420
      %v5517 = vpop.xlane.xlu0 %5516
      %5518 = vadd.xlane.f32.xlu0 %v5421
      %v5519 = vpop.xlane.xlu0 %5518
      %5520 = vadd.xlane.f32.xlu0 %v5422
      %v5521 = vpop.xlane.xlu0 %5520
      %5522 = vadd.xlane.f32.xlu0 %v5423
      %v5523 = vpop.xlane.xlu0 %5522
      %5524 = vadd.xlane.f32.xlu0 %v5424
      %v5525 = vpop.xlane.xlu0 %5524
      %5526 = vadd.xlane.f32.xlu0 %v5425
      %v5527 = vpop.xlane.xlu0 %5526
      %5528 = vadd.xlane.f32.xlu0 %v5426
      %v5529 = vpop.xlane.xlu0 %5528
      %5530 = vadd.xlane.f32.xlu0 %v5427
      %v5531 = vpop.xlane.xlu0 %5530
      %5532 = vadd.xlane.f32.xlu0 %v5428
      %v5533 = vpop.xlane.xlu0 %5532
      %5534 = vadd.xlane.f32.xlu0 %v5429
      %v5535 = vpop.xlane.xlu0 %5534
      %5536 = vadd.xlane.f32.xlu0 %v5430
      %v5537 = vpop.xlane.xlu0 %5536
      %5538 = vadd.xlane.f32.xlu0 %v5431
      %v5539 = vpop.xlane.xlu0 %5538
      %5540 = vadd.xlane.f32.xlu0 %v5432
      %v5541 = vpop.xlane.xlu0 %5540
      %5542 = vadd.xlane.f32.xlu0 %v5433
      %v5543 = vpop.xlane.xlu0 %5542
      %5544 = vadd.xlane.f32.xlu0 %v5434
      %v5545 = vpop.xlane.xlu0 %5544
      %5546 = vadd.xlane.f32.xlu0 %v5435
      %v5547 = vpop.xlane.xlu0 %5546
      %5548 = vadd.xlane.f32.xlu0 %v5436
      %v5549 = vpop.xlane.xlu0 %5548
      %5550 = vadd.xlane.f32.xlu0 %v5437
      %v5551 = vpop.xlane.xlu0 %5550
      %5552 = vadd.xlane.f32.xlu0 %v5438
      %v5553 = vpop.xlane.xlu0 %5552
      %5554 = vadd.xlane.f32.xlu0 %v5439
      %v5555 = vpop.xlane.xlu0 %5554
      %5556 = vadd.xlane.f32.xlu0 %v5440
      %v5557 = vpop.xlane.xlu0 %5556
      %5558 = vadd.xlane.f32.xlu0 %v5441
      %v5559 = vpop.xlane.xlu0 %5558
      %5560 = vadd.xlane.f32.xlu0 %v5442
      %v5561 = vpop.xlane.xlu0 %5560
      %5562 = vadd.xlane.f32.xlu0 %v5443
      %v5563 = vpop.xlane.xlu0 %5562
      %5564 = vadd.xlane.f32.xlu0 %v5444
      %v5565 = vpop.xlane.xlu0 %5564
      %5566 = vadd.xlane.f32.xlu0 %v5445
      %v5567 = vpop.xlane.xlu0 %5566
      %5568 = vadd.xlane.f32.xlu0 %v5446
      %v5569 = vpop.xlane.xlu0 %5568
      %5570 = vadd.xlane.f32.xlu0 %v5447
      %v5571 = vpop.xlane.xlu0 %5570
      %5572 = vadd.xlane.f32.xlu0 %v5448
      %v5573 = vpop.xlane.xlu0 %5572
      %5574 = vadd.xlane.f32.xlu0 %v5449
      %v5575 = vpop.xlane.xlu0 %5574
      %5576 = vadd.xlane.f32.xlu0 %v5450
      %v5577 = vpop.xlane.xlu0 %5576
      %5578 = vadd.xlane.f32.xlu0 %v5451
      %v5579 = vpop.xlane.xlu0 %5578
      %v5580 = vmul.f32 %v5453, 0.03125
      %v5581 = vmul.f32 %v5455, 0.03125
      %v5582 = vmul.f32 %v5457, 0.03125
      %v5583 = vmul.f32 %v5459, 0.03125
      %v5584 = vmul.f32 %v5461, 0.03125
      %v5585 = vmul.f32 %v5463, 0.03125
      %v5586 = vmul.f32 %v5465, 0.03125
      %v5587 = vmul.f32 %v5467, 0.03125
      %v5588 = vmul.f32 %v5469, 0.03125
      %v5589 = vmul.f32 %v5471, 0.03125
      %v5590 = vmul.f32 %v5473, 0.03125
      %v5591 = vmul.f32 %v5475, 0.03125
      %v5592 = vmul.f32 %v5477, 0.03125
      %v5593 = vmul.f32 %v5479, 0.03125
      %v5594 = vmul.f32 %v5481, 0.03125
      %v5595 = vmul.f32 %v5483, 0.03125
      %v5596 = vmul.f32 %v5485, 0.03125
      %v5597 = vmul.f32 %v5487, 0.03125
      %v5598 = vmul.f32 %v5489, 0.03125
      %v5599 = vmul.f32 %v5491, 0.03125
      %v5600 = vmul.f32 %v5493, 0.03125
      %v5601 = vmul.f32 %v5495, 0.03125
      %v5602 = vmul.f32 %v5497, 0.03125
      %v5603 = vmul.f32 %v5499, 0.03125
      %v5604 = vmul.f32 %v5501, 0.03125
      %v5605 = vmul.f32 %v5503, 0.03125
      %v5606 = vmul.f32 %v5505, 0.03125
      %v5607 = vmul.f32 %v5507, 0.03125
      %v5608 = vmul.f32 %v5509, 0.03125
      %v5609 = vmul.f32 %v5511, 0.03125
      %v5610 = vmul.f32 %v5513, 0.03125
      %v5611 = vmul.f32 %v5515, 0.03125
      %v5612 = vmul.f32 %v5517, 0.03125
      %v5613 = vmul.f32 %v5519, 0.03125
      %v5614 = vmul.f32 %v5521, 0.03125
      %v5615 = vmul.f32 %v5523, 0.03125
      %v5616 = vmul.f32 %v5525, 0.03125
      %v5617 = vmul.f32 %v5527, 0.03125
      %v5618 = vmul.f32 %v5529, 0.03125
      %v5619 = vmul.f32 %v5531, 0.03125
      %v5620 = vmul.f32 %v5533, 0.03125
      %v5621 = vmul.f32 %v5535, 0.03125
      %v5622 = vmul.f32 %v5537, 0.03125
      %v5623 = vmul.f32 %v5539, 0.03125
      %v5624 = vmul.f32 %v5541, 0.03125
      %v5625 = vmul.f32 %v5543, 0.03125
      %v5626 = vmul.f32 %v5545, 0.03125
      %v5627 = vmul.f32 %v5547, 0.03125
      %v5628 = vmul.f32 %v5549, 0.03125
      %v5629 = vmul.f32 %v5551, 0.03125
      %v5630 = vmul.f32 %v5553, 0.03125
      %v5631 = vmul.f32 %v5555, 0.03125
      %v5632 = vmul.f32 %v5557, 0.03125
      %v5633 = vmul.f32 %v5559, 0.03125
      %v5634 = vmul.f32 %v5561, 0.03125
      %v5635 = vmul.f32 %v5563, 0.03125
      %v5636 = vmul.f32 %v5565, 0.03125
      %v5637 = vmul.f32 %v5567, 0.03125
      %v5638 = vmul.f32 %v5569, 0.03125
      %v5639 = vmul.f32 %v5571, 0.03125
      %v5640 = vmul.f32 %v5573, 0.03125
      %v5641 = vmul.f32 %v5575, 0.03125
      %v5642 = vmul.f32 %v5577, 0.03125
      %v5643 = vmul.f32 %v5579, 0.03125
      %v5644 = vadd.f32 %v5580, 1e-05
      %v5645 = vadd.f32 %v5581, 1e-05
      %v5646 = vadd.f32 %v5582, 1e-05
      %v5647 = vadd.f32 %v5583, 1e-05
      %v5648 = vadd.f32 %v5584, 1e-05
      %v5649 = vadd.f32 %v5585, 1e-05
      %v5650 = vadd.f32 %v5586, 1e-05
      %v5651 = vadd.f32 %v5587, 1e-05
      %v5652 = vadd.f32 %v5588, 1e-05
      %v5653 = vadd.f32 %v5589, 1e-05
      %v5654 = vadd.f32 %v5590, 1e-05
      %v5655 = vadd.f32 %v5591, 1e-05
      %v5656 = vadd.f32 %v5592, 1e-05
      %v5657 = vadd.f32 %v5593, 1e-05
      %v5658 = vadd.f32 %v5594, 1e-05
      %v5659 = vadd.f32 %v5595, 1e-05
      %v5660 = vadd.f32 %v5596, 1e-05
      %v5661 = vadd.f32 %v5597, 1e-05
      %v5662 = vadd.f32 %v5598, 1e-05
      %v5663 = vadd.f32 %v5599, 1e-05
      %v5664 = vadd.f32 %v5600, 1e-05
      %v5665 = vadd.f32 %v5601, 1e-05
      %v5666 = vadd.f32 %v5602, 1e-05
      %v5667 = vadd.f32 %v5603, 1e-05
      %v5668 = vadd.f32 %v5604, 1e-05
      %v5669 = vadd.f32 %v5605, 1e-05
      %v5670 = vadd.f32 %v5606, 1e-05
      %v5671 = vadd.f32 %v5607, 1e-05
      %v5672 = vadd.f32 %v5608, 1e-05
      %v5673 = vadd.f32 %v5609, 1e-05
      %v5674 = vadd.f32 %v5610, 1e-05
      %v5675 = vadd.f32 %v5611, 1e-05
      %v5676 = vadd.f32 %v5612, 1e-05
      %v5677 = vadd.f32 %v5613, 1e-05
      %v5678 = vadd.f32 %v5614, 1e-05
      %v5679 = vadd.f32 %v5615, 1e-05
      %v5680 = vadd.f32 %v5616, 1e-05
      %v5681 = vadd.f32 %v5617, 1e-05
      %v5682 = vadd.f32 %v5618, 1e-05
      %v5683 = vadd.f32 %v5619, 1e-05
      %v5684 = vadd.f32 %v5620, 1e-05
      %v5685 = vadd.f32 %v5621, 1e-05
      %v5686 = vadd.f32 %v5622, 1e-05
      %v5687 = vadd.f32 %v5623, 1e-05
      %v5688 = vadd.f32 %v5624, 1e-05
      %v5689 = vadd.f32 %v5625, 1e-05
      %v5690 = vadd.f32 %v5626, 1e-05
      %v5691 = vadd.f32 %v5627, 1e-05
      %v5692 = vadd.f32 %v5628, 1e-05
      %v5693 = vadd.f32 %v5629, 1e-05
      %v5694 = vadd.f32 %v5630, 1e-05
      %v5695 = vadd.f32 %v5631, 1e-05
      %v5696 = vadd.f32 %v5632, 1e-05
      %v5697 = vadd.f32 %v5633, 1e-05
      %v5698 = vadd.f32 %v5634, 1e-05
      %v5699 = vadd.f32 %v5635, 1e-05
      %v5700 = vadd.f32 %v5636, 1e-05
      %v5701 = vadd.f32 %v5637, 1e-05
      %v5702 = vadd.f32 %v5638, 1e-05
      %v5703 = vadd.f32 %v5639, 1e-05
      %v5704 = vadd.f32 %v5640, 1e-05
      %v5705 = vadd.f32 %v5641, 1e-05
      %v5706 = vadd.f32 %v5642, 1e-05
      %v5707 = vadd.f32 %v5643, 1e-05
      %v5708 = vrsqrt.pop %v5644
      %v5709 = vmul.f32 %v5708, %v5644
      %v5710 = vmul.f32 %v5709, %v5708
      %v5711 = vmul.f32 0.5, %v5710
      %v5712 = vsub.f32 1.5, %v5711
      %v5713 = vmul.f32 %v5708, %v5712
      %vm5714 = vweird.f32 %v5644
      %vm5715 = vweird.f32 %v5708
      %vm5716 = vmor %vm5714, %vm5715
      %v5717 = vsel %vm5716, %v5708, %v5713
      %v5718 = vrsqrt.pop %v5645
      %v5719 = vmul.f32 %v5718, %v5645
      %v5720 = vmul.f32 %v5719, %v5718
      %v5721 = vmul.f32 0.5, %v5720
      %v5722 = vsub.f32 1.5, %v5721
      %v5723 = vmul.f32 %v5718, %v5722
      %vm5724 = vweird.f32 %v5645
      %vm5725 = vweird.f32 %v5718
      %vm5726 = vmor %vm5724, %vm5725
      %v5727 = vsel %vm5726, %v5718, %v5723
      %v5728 = vrsqrt.pop %v5646
      %v5729 = vmul.f32 %v5728, %v5646
      %v5730 = vmul.f32 %v5729, %v5728
      %v5731 = vmul.f32 0.5, %v5730
      %v5732 = vsub.f32 1.5, %v5731
      %v5733 = vmul.f32 %v5728, %v5732
      %vm5734 = vweird.f32 %v5646
      %vm5735 = vweird.f32 %v5728
      %vm5736 = vmor %vm5734, %vm5735
      %v5737 = vsel %vm5736, %v5728, %v5733
      %v5738 = vrsqrt.pop %v5647
      %v5739 = vmul.f32 %v5738, %v5647
      %v5740 = vmul.f32 %v5739, %v5738
      %v5741 = vmul.f32 0.5, %v5740
      %v5742 = vsub.f32 1.5, %v5741
      %v5743 = vmul.f32 %v5738, %v5742
      %vm5744 = vweird.f32 %v5647
      %vm5745 = vweird.f32 %v5738
      %vm5746 = vmor %vm5744, %vm5745
      %v5747 = vsel %vm5746, %v5738, %v5743
      %v5748 = vrsqrt.pop %v5648
      %v5749 = vmul.f32 %v5748, %v5648
      %v5750 = vmul.f32 %v5749, %v5748
      %v5751 = vmul.f32 0.5, %v5750
      %v5752 = vsub.f32 1.5, %v5751
      %v5753 = vmul.f32 %v5748, %v5752
      %vm5754 = vweird.f32 %v5648
      %vm5755 = vweird.f32 %v5748
      %vm5756 = vmor %vm5754, %vm5755
      %v5757 = vsel %vm5756, %v5748, %v5753
      %v5758 = vrsqrt.pop %v5649
      %v5759 = vmul.f32 %v5758, %v5649
      %v5760 = vmul.f32 %v5759, %v5758
      %v5761 = vmul.f32 0.5, %v5760
      %v5762 = vsub.f32 1.5, %v5761
      %v5763 = vmul.f32 %v5758, %v5762
      %vm5764 = vweird.f32 %v5649
      %vm5765 = vweird.f32 %v5758
      %vm5766 = vmor %vm5764, %vm5765
      %v5767 = vsel %vm5766, %v5758, %v5763
      %v5768 = vrsqrt.pop %v5650
      %v5769 = vmul.f32 %v5768, %v5650
      %v5770 = vmul.f32 %v5769, %v5768
      %v5771 = vmul.f32 0.5, %v5770
      %v5772 = vsub.f32 1.5, %v5771
      %v5773 = vmul.f32 %v5768, %v5772
      %vm5774 = vweird.f32 %v5650
      %vm5775 = vweird.f32 %v5768
      %vm5776 = vmor %vm5774, %vm5775
      %v5777 = vsel %vm5776, %v5768, %v5773
      %v5778 = vrsqrt.pop %v5651
      %v5779 = vmul.f32 %v5778, %v5651
      %v5780 = vmul.f32 %v5779, %v5778
      %v5781 = vmul.f32 0.5, %v5780
      %v5782 = vsub.f32 1.5, %v5781
      %v5783 = vmul.f32 %v5778, %v5782
      %vm5784 = vweird.f32 %v5651
      %vm5785 = vweird.f32 %v5778
      %vm5786 = vmor %vm5784, %vm5785
      %v5787 = vsel %vm5786, %v5778, %v5783
      %v5788 = vrsqrt.pop %v5652
      %v5789 = vmul.f32 %v5788, %v5652
      %v5790 = vmul.f32 %v5789, %v5788
      %v5791 = vmul.f32 0.5, %v5790
      %v5792 = vsub.f32 1.5, %v5791
      %v5793 = vmul.f32 %v5788, %v5792
      %vm5794 = vweird.f32 %v5652
      %vm5795 = vweird.f32 %v5788
      %vm5796 = vmor %vm5794, %vm5795
      %v5797 = vsel %vm5796, %v5788, %v5793
      %v5798 = vrsqrt.pop %v5653
      %v5799 = vmul.f32 %v5798, %v5653
      %v5800 = vmul.f32 %v5799, %v5798
      %v5801 = vmul.f32 0.5, %v5800
      %v5802 = vsub.f32 1.5, %v5801
      %v5803 = vmul.f32 %v5798, %v5802
      %vm5804 = vweird.f32 %v5653
      %vm5805 = vweird.f32 %v5798
      %vm5806 = vmor %vm5804, %vm5805
      %v5807 = vsel %vm5806, %v5798, %v5803
      %v5808 = vrsqrt.pop %v5654
      %v5809 = vmul.f32 %v5808, %v5654
      %v5810 = vmul.f32 %v5809, %v5808
      %v5811 = vmul.f32 0.5, %v5810
      %v5812 = vsub.f32 1.5, %v5811
      %v5813 = vmul.f32 %v5808, %v5812
      %vm5814 = vweird.f32 %v5654
      %vm5815 = vweird.f32 %v5808
      %vm5816 = vmor %vm5814, %vm5815
      %v5817 = vsel %vm5816, %v5808, %v5813
      %v5818 = vrsqrt.pop %v5655
      %v5819 = vmul.f32 %v5818, %v5655
      %v5820 = vmul.f32 %v5819, %v5818
      %v5821 = vmul.f32 0.5, %v5820
      %v5822 = vsub.f32 1.5, %v5821
      %v5823 = vmul.f32 %v5818, %v5822
      %vm5824 = vweird.f32 %v5655
      %vm5825 = vweird.f32 %v5818
      %vm5826 = vmor %vm5824, %vm5825
      %v5827 = vsel %vm5826, %v5818, %v5823
      %v5828 = vrsqrt.pop %v5656
      %v5829 = vmul.f32 %v5828, %v5656
      %v5830 = vmul.f32 %v5829, %v5828
      %v5831 = vmul.f32 0.5, %v5830
      %v5832 = vsub.f32 1.5, %v5831
      %v5833 = vmul.f32 %v5828, %v5832
      %vm5834 = vweird.f32 %v5656
      %vm5835 = vweird.f32 %v5828
      %vm5836 = vmor %vm5834, %vm5835
      %v5837 = vsel %vm5836, %v5828, %v5833
      %v5838 = vrsqrt.pop %v5657
      %v5839 = vmul.f32 %v5838, %v5657
      %v5840 = vmul.f32 %v5839, %v5838
      %v5841 = vmul.f32 0.5, %v5840
      %v5842 = vsub.f32 1.5, %v5841
      %v5843 = vmul.f32 %v5838, %v5842
      %vm5844 = vweird.f32 %v5657
      %vm5845 = vweird.f32 %v5838
      %vm5846 = vmor %vm5844, %vm5845
      %v5847 = vsel %vm5846, %v5838, %v5843
      %v5848 = vrsqrt.pop %v5658
      %v5849 = vmul.f32 %v5848, %v5658
      %v5850 = vmul.f32 %v5849, %v5848
      %v5851 = vmul.f32 0.5, %v5850
      %v5852 = vsub.f32 1.5, %v5851
      %v5853 = vmul.f32 %v5848, %v5852
      %vm5854 = vweird.f32 %v5658
      %vm5855 = vweird.f32 %v5848
      %vm5856 = vmor %vm5854, %vm5855
      %v5857 = vsel %vm5856, %v5848, %v5853
      %v5858 = vrsqrt.pop %v5659
      %v5859 = vmul.f32 %v5858, %v5659
      %v5860 = vmul.f32 %v5859, %v5858
      %v5861 = vmul.f32 0.5, %v5860
      %v5862 = vsub.f32 1.5, %v5861
      %v5863 = vmul.f32 %v5858, %v5862
      %vm5864 = vweird.f32 %v5659
      %vm5865 = vweird.f32 %v5858
      %vm5866 = vmor %vm5864, %vm5865
      %v5867 = vsel %vm5866, %v5858, %v5863
      %v5868 = vrsqrt.pop %v5660
      %v5869 = vmul.f32 %v5868, %v5660
      %v5870 = vmul.f32 %v5869, %v5868
      %v5871 = vmul.f32 0.5, %v5870
      %v5872 = vsub.f32 1.5, %v5871
      %v5873 = vmul.f32 %v5868, %v5872
      %vm5874 = vweird.f32 %v5660
      %vm5875 = vweird.f32 %v5868
      %vm5876 = vmor %vm5874, %vm5875
      %v5877 = vsel %vm5876, %v5868, %v5873
      %v5878 = vrsqrt.pop %v5661
      %v5879 = vmul.f32 %v5878, %v5661
      %v5880 = vmul.f32 %v5879, %v5878
      %v5881 = vmul.f32 0.5, %v5880
      %v5882 = vsub.f32 1.5, %v5881
      %v5883 = vmul.f32 %v5878, %v5882
      %vm5884 = vweird.f32 %v5661
      %vm5885 = vweird.f32 %v5878
      %vm5886 = vmor %vm5884, %vm5885
      %v5887 = vsel %vm5886, %v5878, %v5883
      %v5888 = vrsqrt.pop %v5662
      %v5889 = vmul.f32 %v5888, %v5662
      %v5890 = vmul.f32 %v5889, %v5888
      %v5891 = vmul.f32 0.5, %v5890
      %v5892 = vsub.f32 1.5, %v5891
      %v5893 = vmul.f32 %v5888, %v5892
      %vm5894 = vweird.f32 %v5662
      %vm5895 = vweird.f32 %v5888
      %vm5896 = vmor %vm5894, %vm5895
      %v5897 = vsel %vm5896, %v5888, %v5893
      %v5898 = vrsqrt.pop %v5663
      %v5899 = vmul.f32 %v5898, %v5663
      %v5900 = vmul.f32 %v5899, %v5898
      %v5901 = vmul.f32 0.5, %v5900
      %v5902 = vsub.f32 1.5, %v5901
      %v5903 = vmul.f32 %v5898, %v5902
      %vm5904 = vweird.f32 %v5663
      %vm5905 = vweird.f32 %v5898
      %vm5906 = vmor %vm5904, %vm5905
      %v5907 = vsel %vm5906, %v5898, %v5903
      %v5908 = vrsqrt.pop %v5664
      %v5909 = vmul.f32 %v5908, %v5664
      %v5910 = vmul.f32 %v5909, %v5908
      %v5911 = vmul.f32 0.5, %v5910
      %v5912 = vsub.f32 1.5, %v5911
      %v5913 = vmul.f32 %v5908, %v5912
      %vm5914 = vweird.f32 %v5664
      %vm5915 = vweird.f32 %v5908
      %vm5916 = vmor %vm5914, %vm5915
      %v5917 = vsel %vm5916, %v5908, %v5913
      %v5918 = vrsqrt.pop %v5665
      %v5919 = vmul.f32 %v5918, %v5665
      %v5920 = vmul.f32 %v5919, %v5918
      %v5921 = vmul.f32 0.5, %v5920
      %v5922 = vsub.f32 1.5, %v5921
      %v5923 = vmul.f32 %v5918, %v5922
      %vm5924 = vweird.f32 %v5665
      %vm5925 = vweird.f32 %v5918
      %vm5926 = vmor %vm5924, %vm5925
      %v5927 = vsel %vm5926, %v5918, %v5923
      %v5928 = vrsqrt.pop %v5666
      %v5929 = vmul.f32 %v5928, %v5666
      %v5930 = vmul.f32 %v5929, %v5928
      %v5931 = vmul.f32 0.5, %v5930
      %v5932 = vsub.f32 1.5, %v5931
      %v5933 = vmul.f32 %v5928, %v5932
      %vm5934 = vweird.f32 %v5666
      %vm5935 = vweird.f32 %v5928
      %vm5936 = vmor %vm5934, %vm5935
      %v5937 = vsel %vm5936, %v5928, %v5933
      %v5938 = vrsqrt.pop %v5667
      %v5939 = vmul.f32 %v5938, %v5667
      %v5940 = vmul.f32 %v5939, %v5938
      %v5941 = vmul.f32 0.5, %v5940
      %v5942 = vsub.f32 1.5, %v5941
      %v5943 = vmul.f32 %v5938, %v5942
      %vm5944 = vweird.f32 %v5667
      %vm5945 = vweird.f32 %v5938
      %vm5946 = vmor %vm5944, %vm5945
      %v5947 = vsel %vm5946, %v5938, %v5943
      %v5948 = vrsqrt.pop %v5668
      %v5949 = vmul.f32 %v5948, %v5668
      %v5950 = vmul.f32 %v5949, %v5948
      %v5951 = vmul.f32 0.5, %v5950
      %v5952 = vsub.f32 1.5, %v5951
      %v5953 = vmul.f32 %v5948, %v5952
      %vm5954 = vweird.f32 %v5668
      %vm5955 = vweird.f32 %v5948
      %vm5956 = vmor %vm5954, %vm5955
      %v5957 = vsel %vm5956, %v5948, %v5953
      %v5958 = vrsqrt.pop %v5669
      %v5959 = vmul.f32 %v5958, %v5669
      %v5960 = vmul.f32 %v5959, %v5958
      %v5961 = vmul.f32 0.5, %v5960
      %v5962 = vsub.f32 1.5, %v5961
      %v5963 = vmul.f32 %v5958, %v5962
      %vm5964 = vweird.f32 %v5669
      %vm5965 = vweird.f32 %v5958
      %vm5966 = vmor %vm5964, %vm5965
      %v5967 = vsel %vm5966, %v5958, %v5963
      %v5968 = vrsqrt.pop %v5670
      %v5969 = vmul.f32 %v5968, %v5670
      %v5970 = vmul.f32 %v5969, %v5968
      %v5971 = vmul.f32 0.5, %v5970
      %v5972 = vsub.f32 1.5, %v5971
      %v5973 = vmul.f32 %v5968, %v5972
      %vm5974 = vweird.f32 %v5670
      %vm5975 = vweird.f32 %v5968
      %vm5976 = vmor %vm5974, %vm5975
      %v5977 = vsel %vm5976, %v5968, %v5973
      %v5978 = vrsqrt.pop %v5671
      %v5979 = vmul.f32 %v5978, %v5671
      %v5980 = vmul.f32 %v5979, %v5978
      %v5981 = vmul.f32 0.5, %v5980
      %v5982 = vsub.f32 1.5, %v5981
      %v5983 = vmul.f32 %v5978, %v5982
      %vm5984 = vweird.f32 %v5671
      %vm5985 = vweird.f32 %v5978
      %vm5986 = vmor %vm5984, %vm5985
      %v5987 = vsel %vm5986, %v5978, %v5983
      %v5988 = vrsqrt.pop %v5672
      %v5989 = vmul.f32 %v5988, %v5672
      %v5990 = vmul.f32 %v5989, %v5988
      %v5991 = vmul.f32 0.5, %v5990
      %v5992 = vsub.f32 1.5, %v5991
      %v5993 = vmul.f32 %v5988, %v5992
      %vm5994 = vweird.f32 %v5672
      %vm5995 = vweird.f32 %v5988
      %vm5996 = vmor %vm5994, %vm5995
      %v5997 = vsel %vm5996, %v5988, %v5993
      %v5998 = vrsqrt.pop %v5673
      %v5999 = vmul.f32 %v5998, %v5673
      %v6000 = vmul.f32 %v5999, %v5998
      %v6001 = vmul.f32 0.5, %v6000
      %v6002 = vsub.f32 1.5, %v6001
      %v6003 = vmul.f32 %v5998, %v6002
      %vm6004 = vweird.f32 %v5673
      %vm6005 = vweird.f32 %v5998
      %vm6006 = vmor %vm6004, %vm6005
      %v6007 = vsel %vm6006, %v5998, %v6003
      %v6008 = vrsqrt.pop %v5674
      %v6009 = vmul.f32 %v6008, %v5674
      %v6010 = vmul.f32 %v6009, %v6008
      %v6011 = vmul.f32 0.5, %v6010
      %v6012 = vsub.f32 1.5, %v6011
      %v6013 = vmul.f32 %v6008, %v6012
      %vm6014 = vweird.f32 %v5674
      %vm6015 = vweird.f32 %v6008
      %vm6016 = vmor %vm6014, %vm6015
      %v6017 = vsel %vm6016, %v6008, %v6013
      %v6018 = vrsqrt.pop %v5675
      %v6019 = vmul.f32 %v6018, %v5675
      %v6020 = vmul.f32 %v6019, %v6018
      %v6021 = vmul.f32 0.5, %v6020
      %v6022 = vsub.f32 1.5, %v6021
      %v6023 = vmul.f32 %v6018, %v6022
      %vm6024 = vweird.f32 %v5675
      %vm6025 = vweird.f32 %v6018
      %vm6026 = vmor %vm6024, %vm6025
      %v6027 = vsel %vm6026, %v6018, %v6023
      %v6028 = vrsqrt.pop %v5676
      %v6029 = vmul.f32 %v6028, %v5676
      %v6030 = vmul.f32 %v6029, %v6028
      %v6031 = vmul.f32 0.5, %v6030
      %v6032 = vsub.f32 1.5, %v6031
      %v6033 = vmul.f32 %v6028, %v6032
      %vm6034 = vweird.f32 %v5676
      %vm6035 = vweird.f32 %v6028
      %vm6036 = vmor %vm6034, %vm6035
      %v6037 = vsel %vm6036, %v6028, %v6033
      %v6038 = vrsqrt.pop %v5677
      %v6039 = vmul.f32 %v6038, %v5677
      %v6040 = vmul.f32 %v6039, %v6038
      %v6041 = vmul.f32 0.5, %v6040
      %v6042 = vsub.f32 1.5, %v6041
      %v6043 = vmul.f32 %v6038, %v6042
      %vm6044 = vweird.f32 %v5677
      %vm6045 = vweird.f32 %v6038
      %vm6046 = vmor %vm6044, %vm6045
      %v6047 = vsel %vm6046, %v6038, %v6043
      %v6048 = vrsqrt.pop %v5678
      %v6049 = vmul.f32 %v6048, %v5678
      %v6050 = vmul.f32 %v6049, %v6048
      %v6051 = vmul.f32 0.5, %v6050
      %v6052 = vsub.f32 1.5, %v6051
      %v6053 = vmul.f32 %v6048, %v6052
      %vm6054 = vweird.f32 %v5678
      %vm6055 = vweird.f32 %v6048
      %vm6056 = vmor %vm6054, %vm6055
      %v6057 = vsel %vm6056, %v6048, %v6053
      %v6058 = vrsqrt.pop %v5679
      %v6059 = vmul.f32 %v6058, %v5679
      %v6060 = vmul.f32 %v6059, %v6058
      %v6061 = vmul.f32 0.5, %v6060
      %v6062 = vsub.f32 1.5, %v6061
      %v6063 = vmul.f32 %v6058, %v6062
      %vm6064 = vweird.f32 %v5679
      %vm6065 = vweird.f32 %v6058
      %vm6066 = vmor %vm6064, %vm6065
      %v6067 = vsel %vm6066, %v6058, %v6063
      %v6068 = vrsqrt.pop %v5680
      %v6069 = vmul.f32 %v6068, %v5680
      %v6070 = vmul.f32 %v6069, %v6068
      %v6071 = vmul.f32 0.5, %v6070
      %v6072 = vsub.f32 1.5, %v6071
      %v6073 = vmul.f32 %v6068, %v6072
      %vm6074 = vweird.f32 %v5680
      %vm6075 = vweird.f32 %v6068
      %vm6076 = vmor %vm6074, %vm6075
      %v6077 = vsel %vm6076, %v6068, %v6073
      %v6078 = vrsqrt.pop %v5681
      %v6079 = vmul.f32 %v6078, %v5681
      %v6080 = vmul.f32 %v6079, %v6078
      %v6081 = vmul.f32 0.5, %v6080
      %v6082 = vsub.f32 1.5, %v6081
      %v6083 = vmul.f32 %v6078, %v6082
      %vm6084 = vweird.f32 %v5681
      %vm6085 = vweird.f32 %v6078
      %vm6086 = vmor %vm6084, %vm6085
      %v6087 = vsel %vm6086, %v6078, %v6083
      %v6088 = vrsqrt.pop %v5682
      %v6089 = vmul.f32 %v6088, %v5682
      %v6090 = vmul.f32 %v6089, %v6088
      %v6091 = vmul.f32 0.5, %v6090
      %v6092 = vsub.f32 1.5, %v6091
      %v6093 = vmul.f32 %v6088, %v6092
      %vm6094 = vweird.f32 %v5682
      %vm6095 = vweird.f32 %v6088
      %vm6096 = vmor %vm6094, %vm6095
      %v6097 = vsel %vm6096, %v6088, %v6093
      %v6098 = vrsqrt.pop %v5683
      %v6099 = vmul.f32 %v6098, %v5683
      %v6100 = vmul.f32 %v6099, %v6098
      %v6101 = vmul.f32 0.5, %v6100
      %v6102 = vsub.f32 1.5, %v6101
      %v6103 = vmul.f32 %v6098, %v6102
      %vm6104 = vweird.f32 %v5683
      %vm6105 = vweird.f32 %v6098
      %vm6106 = vmor %vm6104, %vm6105
      %v6107 = vsel %vm6106, %v6098, %v6103
      %v6108 = vrsqrt.pop %v5684
      %v6109 = vmul.f32 %v6108, %v5684
      %v6110 = vmul.f32 %v6109, %v6108
      %v6111 = vmul.f32 0.5, %v6110
      %v6112 = vsub.f32 1.5, %v6111
      %v6113 = vmul.f32 %v6108, %v6112
      %vm6114 = vweird.f32 %v5684
      %vm6115 = vweird.f32 %v6108
      %vm6116 = vmor %vm6114, %vm6115
      %v6117 = vsel %vm6116, %v6108, %v6113
      %v6118 = vrsqrt.pop %v5685
      %v6119 = vmul.f32 %v6118, %v5685
      %v6120 = vmul.f32 %v6119, %v6118
      %v6121 = vmul.f32 0.5, %v6120
      %v6122 = vsub.f32 1.5, %v6121
      %v6123 = vmul.f32 %v6118, %v6122
      %vm6124 = vweird.f32 %v5685
      %vm6125 = vweird.f32 %v6118
      %vm6126 = vmor %vm6124, %vm6125
      %v6127 = vsel %vm6126, %v6118, %v6123
      %v6128 = vrsqrt.pop %v5686
      %v6129 = vmul.f32 %v6128, %v5686
      %v6130 = vmul.f32 %v6129, %v6128
      %v6131 = vmul.f32 0.5, %v6130
      %v6132 = vsub.f32 1.5, %v6131
      %v6133 = vmul.f32 %v6128, %v6132
      %vm6134 = vweird.f32 %v5686
      %vm6135 = vweird.f32 %v6128
      %vm6136 = vmor %vm6134, %vm6135
      %v6137 = vsel %vm6136, %v6128, %v6133
      %v6138 = vrsqrt.pop %v5687
      %v6139 = vmul.f32 %v6138, %v5687
      %v6140 = vmul.f32 %v6139, %v6138
      %v6141 = vmul.f32 0.5, %v6140
      %v6142 = vsub.f32 1.5, %v6141
      %v6143 = vmul.f32 %v6138, %v6142
      %vm6144 = vweird.f32 %v5687
      %vm6145 = vweird.f32 %v6138
      %vm6146 = vmor %vm6144, %vm6145
      %v6147 = vsel %vm6146, %v6138, %v6143
      %v6148 = vrsqrt.pop %v5688
      %v6149 = vmul.f32 %v6148, %v5688
      %v6150 = vmul.f32 %v6149, %v6148
      %v6151 = vmul.f32 0.5, %v6150
      %v6152 = vsub.f32 1.5, %v6151
      %v6153 = vmul.f32 %v6148, %v6152
      %vm6154 = vweird.f32 %v5688
      %vm6155 = vweird.f32 %v6148
      %vm6156 = vmor %vm6154, %vm6155
      %v6157 = vsel %vm6156, %v6148, %v6153
      %v6158 = vrsqrt.pop %v5689
      %v6159 = vmul.f32 %v6158, %v5689
      %v6160 = vmul.f32 %v6159, %v6158
      %v6161 = vmul.f32 0.5, %v6160
      %v6162 = vsub.f32 1.5, %v6161
      %v6163 = vmul.f32 %v6158, %v6162
      %vm6164 = vweird.f32 %v5689
      %vm6165 = vweird.f32 %v6158
      %vm6166 = vmor %vm6164, %vm6165
      %v6167 = vsel %vm6166, %v6158, %v6163
      %v6168 = vrsqrt.pop %v5690
      %v6169 = vmul.f32 %v6168, %v5690
      %v6170 = vmul.f32 %v6169, %v6168
      %v6171 = vmul.f32 0.5, %v6170
      %v6172 = vsub.f32 1.5, %v6171
      %v6173 = vmul.f32 %v6168, %v6172
      %vm6174 = vweird.f32 %v5690
      %vm6175 = vweird.f32 %v6168
      %vm6176 = vmor %vm6174, %vm6175
      %v6177 = vsel %vm6176, %v6168, %v6173
      %v6178 = vrsqrt.pop %v5691
      %v6179 = vmul.f32 %v6178, %v5691
      %v6180 = vmul.f32 %v6179, %v6178
      %v6181 = vmul.f32 0.5, %v6180
      %v6182 = vsub.f32 1.5, %v6181
      %v6183 = vmul.f32 %v6178, %v6182
      %vm6184 = vweird.f32 %v5691
      %vm6185 = vweird.f32 %v6178
      %vm6186 = vmor %vm6184, %vm6185
      %v6187 = vsel %vm6186, %v6178, %v6183
      %v6188 = vrsqrt.pop %v5692
      %v6189 = vmul.f32 %v6188, %v5692
      %v6190 = vmul.f32 %v6189, %v6188
      %v6191 = vmul.f32 0.5, %v6190
      %v6192 = vsub.f32 1.5, %v6191
      %v6193 = vmul.f32 %v6188, %v6192
      %vm6194 = vweird.f32 %v5692
      %vm6195 = vweird.f32 %v6188
      %vm6196 = vmor %vm6194, %vm6195
      %v6197 = vsel %vm6196, %v6188, %v6193
      %v6198 = vrsqrt.pop %v5693
      %v6199 = vmul.f32 %v6198, %v5693
      %v6200 = vmul.f32 %v6199, %v6198
      %v6201 = vmul.f32 0.5, %v6200
      %v6202 = vsub.f32 1.5, %v6201
      %v6203 = vmul.f32 %v6198, %v6202
      %vm6204 = vweird.f32 %v5693
      %vm6205 = vweird.f32 %v6198
      %vm6206 = vmor %vm6204, %vm6205
      %v6207 = vsel %vm6206, %v6198, %v6203
      %v6208 = vrsqrt.pop %v5694
      %v6209 = vmul.f32 %v6208, %v5694
      %v6210 = vmul.f32 %v6209, %v6208
      %v6211 = vmul.f32 0.5, %v6210
      %v6212 = vsub.f32 1.5, %v6211
      %v6213 = vmul.f32 %v6208, %v6212
      %vm6214 = vweird.f32 %v5694
      %vm6215 = vweird.f32 %v6208
      %vm6216 = vmor %vm6214, %vm6215
      %v6217 = vsel %vm6216, %v6208, %v6213
      %v6218 = vrsqrt.pop %v5695
      %v6219 = vmul.f32 %v6218, %v5695
      %v6220 = vmul.f32 %v6219, %v6218
      %v6221 = vmul.f32 0.5, %v6220
      %v6222 = vsub.f32 1.5, %v6221
      %v6223 = vmul.f32 %v6218, %v6222
      %vm6224 = vweird.f32 %v5695
      %vm6225 = vweird.f32 %v6218
      %vm6226 = vmor %vm6224, %vm6225
      %v6227 = vsel %vm6226, %v6218, %v6223
      %v6228 = vrsqrt.pop %v5696
      %v6229 = vmul.f32 %v6228, %v5696
      %v6230 = vmul.f32 %v6229, %v6228
      %v6231 = vmul.f32 0.5, %v6230
      %v6232 = vsub.f32 1.5, %v6231
      %v6233 = vmul.f32 %v6228, %v6232
      %vm6234 = vweird.f32 %v5696
      %vm6235 = vweird.f32 %v6228
      %vm6236 = vmor %vm6234, %vm6235
      %v6237 = vsel %vm6236, %v6228, %v6233
      %v6238 = vrsqrt.pop %v5697
      %v6239 = vmul.f32 %v6238, %v5697
      %v6240 = vmul.f32 %v6239, %v6238
      %v6241 = vmul.f32 0.5, %v6240
      %v6242 = vsub.f32 1.5, %v6241
      %v6243 = vmul.f32 %v6238, %v6242
      %vm6244 = vweird.f32 %v5697
      %vm6245 = vweird.f32 %v6238
      %vm6246 = vmor %vm6244, %vm6245
      %v6247 = vsel %vm6246, %v6238, %v6243
      %v6248 = vrsqrt.pop %v5698
      %v6249 = vmul.f32 %v6248, %v5698
      %v6250 = vmul.f32 %v6249, %v6248
      %v6251 = vmul.f32 0.5, %v6250
      %v6252 = vsub.f32 1.5, %v6251
      %v6253 = vmul.f32 %v6248, %v6252
      %vm6254 = vweird.f32 %v5698
      %vm6255 = vweird.f32 %v6248
      %vm6256 = vmor %vm6254, %vm6255
      %v6257 = vsel %vm6256, %v6248, %v6253
      %v6258 = vrsqrt.pop %v5699
      %v6259 = vmul.f32 %v6258, %v5699
      %v6260 = vmul.f32 %v6259, %v6258
      %v6261 = vmul.f32 0.5, %v6260
      %v6262 = vsub.f32 1.5, %v6261
      %v6263 = vmul.f32 %v6258, %v6262
      %vm6264 = vweird.f32 %v5699
      %vm6265 = vweird.f32 %v6258
      %vm6266 = vmor %vm6264, %vm6265
      %v6267 = vsel %vm6266, %v6258, %v6263
      %v6268 = vrsqrt.pop %v5700
      %v6269 = vmul.f32 %v6268, %v5700
      %v6270 = vmul.f32 %v6269, %v6268
      %v6271 = vmul.f32 0.5, %v6270
      %v6272 = vsub.f32 1.5, %v6271
      %v6273 = vmul.f32 %v6268, %v6272
      %vm6274 = vweird.f32 %v5700
      %vm6275 = vweird.f32 %v6268
      %vm6276 = vmor %vm6274, %vm6275
      %v6277 = vsel %vm6276, %v6268, %v6273
      %v6278 = vrsqrt.pop %v5701
      %v6279 = vmul.f32 %v6278, %v5701
      %v6280 = vmul.f32 %v6279, %v6278
      %v6281 = vmul.f32 0.5, %v6280
      %v6282 = vsub.f32 1.5, %v6281
      %v6283 = vmul.f32 %v6278, %v6282
      %vm6284 = vweird.f32 %v5701
      %vm6285 = vweird.f32 %v6278
      %vm6286 = vmor %vm6284, %vm6285
      %v6287 = vsel %vm6286, %v6278, %v6283
      %v6288 = vrsqrt.pop %v5702
      %v6289 = vmul.f32 %v6288, %v5702
      %v6290 = vmul.f32 %v6289, %v6288
      %v6291 = vmul.f32 0.5, %v6290
      %v6292 = vsub.f32 1.5, %v6291
      %v6293 = vmul.f32 %v6288, %v6292
      %vm6294 = vweird.f32 %v5702
      %vm6295 = vweird.f32 %v6288
      %vm6296 = vmor %vm6294, %vm6295
      %v6297 = vsel %vm6296, %v6288, %v6293
      %v6298 = vrsqrt.pop %v5703
      %v6299 = vmul.f32 %v6298, %v5703
      %v6300 = vmul.f32 %v6299, %v6298
      %v6301 = vmul.f32 0.5, %v6300
      %v6302 = vsub.f32 1.5, %v6301
      %v6303 = vmul.f32 %v6298, %v6302
      %vm6304 = vweird.f32 %v5703
      %vm6305 = vweird.f32 %v6298
      %vm6306 = vmor %vm6304, %vm6305
      %v6307 = vsel %vm6306, %v6298, %v6303
      %v6308 = vrsqrt.pop %v5704
      %v6309 = vmul.f32 %v6308, %v5704
      %v6310 = vmul.f32 %v6309, %v6308
      %v6311 = vmul.f32 0.5, %v6310
      %v6312 = vsub.f32 1.5, %v6311
      %v6313 = vmul.f32 %v6308, %v6312
      %vm6314 = vweird.f32 %v5704
      %vm6315 = vweird.f32 %v6308
      %vm6316 = vmor %vm6314, %vm6315
      %v6317 = vsel %vm6316, %v6308, %v6313
      %v6318 = vrsqrt.pop %v5705
      %v6319 = vmul.f32 %v6318, %v5705
      %v6320 = vmul.f32 %v6319, %v6318
      %v6321 = vmul.f32 0.5, %v6320
      %v6322 = vsub.f32 1.5, %v6321
      %v6323 = vmul.f32 %v6318, %v6322
      %vm6324 = vweird.f32 %v5705
      %vm6325 = vweird.f32 %v6318
      %vm6326 = vmor %vm6324, %vm6325
      %v6327 = vsel %vm6326, %v6318, %v6323
      %v6328 = vrsqrt.pop %v5706
      %v6329 = vmul.f32 %v6328, %v5706
      %v6330 = vmul.f32 %v6329, %v6328
      %v6331 = vmul.f32 0.5, %v6330
      %v6332 = vsub.f32 1.5, %v6331
      %v6333 = vmul.f32 %v6328, %v6332
      %vm6334 = vweird.f32 %v5706
      %vm6335 = vweird.f32 %v6328
      %vm6336 = vmor %vm6334, %vm6335
      %v6337 = vsel %vm6336, %v6328, %v6333
      %v6338 = vrsqrt.pop %v5707
      %v6339 = vmul.f32 %v6338, %v5707
      %v6340 = vmul.f32 %v6339, %v6338
      %v6341 = vmul.f32 0.5, %v6340
      %v6342 = vsub.f32 1.5, %v6341
      %v6343 = vmul.f32 %v6338, %v6342
      %vm6344 = vweird.f32 %v5707
      %vm6345 = vweird.f32 %v6338
      %vm6346 = vmor %vm6344, %vm6345
      %v6347 = vsel %vm6346, %v6338, %v6343
      %v6348 = vmul.f32 %v5324, %v5717
      %v6349 = vmul.f32 %v5325, %v5727
      %v6350 = vmul.f32 %v5326, %v5737
      %v6351 = vmul.f32 %v5327, %v5747
      %v6352 = vmul.f32 %v5328, %v5757
      %v6353 = vmul.f32 %v5329, %v5767
      %v6354 = vmul.f32 %v5330, %v5777
      %v6355 = vmul.f32 %v5331, %v5787
      %v6356 = vmul.f32 %v5332, %v5797
      %v6357 = vmul.f32 %v5333, %v5807
      %v6358 = vmul.f32 %v5334, %v5817
      %v6359 = vmul.f32 %v5335, %v5827
      %v6360 = vmul.f32 %v5336, %v5837
      %v6361 = vmul.f32 %v5337, %v5847
      %v6362 = vmul.f32 %v5338, %v5857
      %v6363 = vmul.f32 %v5339, %v5867
      %v6364 = vmul.f32 %v5340, %v5877
      %v6365 = vmul.f32 %v5341, %v5887
      %v6366 = vmul.f32 %v5342, %v5897
      %v6367 = vmul.f32 %v5343, %v5907
      %v6368 = vmul.f32 %v5344, %v5917
      %v6369 = vmul.f32 %v5345, %v5927
      %v6370 = vmul.f32 %v5346, %v5937
      %v6371 = vmul.f32 %v5347, %v5947
      %v6372 = vmul.f32 %v5348, %v5957
      %v6373 = vmul.f32 %v5349, %v5967
      %v6374 = vmul.f32 %v5350, %v5977
      %v6375 = vmul.f32 %v5351, %v5987
      %v6376 = vmul.f32 %v5352, %v5997
      %v6377 = vmul.f32 %v5353, %v6007
      %v6378 = vmul.f32 %v5354, %v6017
      %v6379 = vmul.f32 %v5355, %v6027
      %v6380 = vmul.f32 %v5356, %v6037
      %v6381 = vmul.f32 %v5357, %v6047
      %v6382 = vmul.f32 %v5358, %v6057
      %v6383 = vmul.f32 %v5359, %v6067
      %v6384 = vmul.f32 %v5360, %v6077
      %v6385 = vmul.f32 %v5361, %v6087
      %v6386 = vmul.f32 %v5362, %v6097
      %v6387 = vmul.f32 %v5363, %v6107
      %v6388 = vmul.f32 %v5364, %v6117
      %v6389 = vmul.f32 %v5365, %v6127
      %v6390 = vmul.f32 %v5366, %v6137
      %v6391 = vmul.f32 %v5367, %v6147
      %v6392 = vmul.f32 %v5368, %v6157
      %v6393 = vmul.f32 %v5369, %v6167
      %v6394 = vmul.f32 %v5370, %v6177
      %v6395 = vmul.f32 %v5371, %v6187
      %v6396 = vmul.f32 %v5372, %v6197
      %v6397 = vmul.f32 %v5373, %v6207
      %v6398 = vmul.f32 %v5374, %v6217
      %v6399 = vmul.f32 %v5375, %v6227
      %v6400 = vmul.f32 %v5376, %v6237
      %v6401 = vmul.f32 %v5377, %v6247
      %v6402 = vmul.f32 %v5378, %v6257
      %v6403 = vmul.f32 %v5379, %v6267
      %v6404 = vmul.f32 %v5380, %v6277
      %v6405 = vmul.f32 %v5381, %v6287
      %v6406 = vmul.f32 %v5382, %v6297
      %v6407 = vmul.f32 %v5383, %v6307
      %v6408 = vmul.f32 %v5384, %v6317
      %v6409 = vmul.f32 %v5385, %v6327
      %v6410 = vmul.f32 %v5386, %v6337
      %v6411 = vmul.f32 %v5387, %v6347
      %v6413 = vperm.slane %v5063, 0
      %v6415 = vmul.f32 %v6348, %v6413
      %v6416 = vmul.f32 %v6349, %v6413
      %v6417 = vmul.f32 %v6350, %v6413
      %v6418 = vmul.f32 %v6351, %v6413
      %v6419 = vmul.f32 %v6352, %v6413
      %v6420 = vmul.f32 %v6353, %v6413
      %v6421 = vmul.f32 %v6354, %v6413
      %v6422 = vmul.f32 %v6355, %v6413
      %v6423 = vmul.f32 %v6356, %v6413
      %v6424 = vmul.f32 %v6357, %v6413
      %v6425 = vmul.f32 %v6358, %v6413
      %v6426 = vmul.f32 %v6359, %v6413
      %v6427 = vmul.f32 %v6360, %v6413
      %v6428 = vmul.f32 %v6361, %v6413
      %v6429 = vmul.f32 %v6362, %v6413
      %v6430 = vmul.f32 %v6363, %v6413
      %v6431 = vmul.f32 %v6364, %v6413
      %v6432 = vmul.f32 %v6365, %v6413
      %v6433 = vmul.f32 %v6366, %v6413
      %v6434 = vmul.f32 %v6367, %v6413
      %v6435 = vmul.f32 %v6368, %v6413
      %v6436 = vmul.f32 %v6369, %v6413
      %v6437 = vmul.f32 %v6370, %v6413
      %v6438 = vmul.f32 %v6371, %v6413
      %v6439 = vmul.f32 %v6372, %v6413
      %v6440 = vmul.f32 %v6373, %v6413
      %v6441 = vmul.f32 %v6374, %v6413
      %v6442 = vmul.f32 %v6375, %v6413
      %v6443 = vmul.f32 %v6376, %v6413
      %v6444 = vmul.f32 %v6377, %v6413
      %v6445 = vmul.f32 %v6378, %v6413
      %v6446 = vmul.f32 %v6379, %v6413
      %v6447 = vmul.f32 %v6380, %v6413
      %v6448 = vmul.f32 %v6381, %v6413
      %v6449 = vmul.f32 %v6382, %v6413
      %v6450 = vmul.f32 %v6383, %v6413
      %v6451 = vmul.f32 %v6384, %v6413
      %v6452 = vmul.f32 %v6385, %v6413
      %v6453 = vmul.f32 %v6386, %v6413
      %v6454 = vmul.f32 %v6387, %v6413
      %v6455 = vmul.f32 %v6388, %v6413
      %v6456 = vmul.f32 %v6389, %v6413
      %v6457 = vmul.f32 %v6390, %v6413
      %v6458 = vmul.f32 %v6391, %v6413
      %v6459 = vmul.f32 %v6392, %v6413
      %v6460 = vmul.f32 %v6393, %v6413
      %v6461 = vmul.f32 %v6394, %v6413
      %v6462 = vmul.f32 %v6395, %v6413
      %v6463 = vmul.f32 %v6396, %v6413
      %v6464 = vmul.f32 %v6397, %v6413
      %v6465 = vmul.f32 %v6398, %v6413
      %v6466 = vmul.f32 %v6399, %v6413
      %v6467 = vmul.f32 %v6400, %v6413
      %v6468 = vmul.f32 %v6401, %v6413
      %v6469 = vmul.f32 %v6402, %v6413
      %v6470 = vmul.f32 %v6403, %v6413
      %v6471 = vmul.f32 %v6404, %v6413
      %v6472 = vmul.f32 %v6405, %v6413
      %v6473 = vmul.f32 %v6406, %v6413
      %v6474 = vmul.f32 %v6407, %v6413
      %v6475 = vmul.f32 %v6408, %v6413
      %v6476 = vmul.f32 %v6409, %v6413
      %v6477 = vmul.f32 %v6410, %v6413
      %v6478 = vmul.f32 %v6411, %v6413
      %v6480 = vperm.slane %v5064, 0
      %v6482 = vadd.f32 %v6415, %v6480
      %v6483 = vadd.f32 %v6416, %v6480
      %v6484 = vadd.f32 %v6417, %v6480
      %v6485 = vadd.f32 %v6418, %v6480
      %v6486 = vadd.f32 %v6419, %v6480
      %v6487 = vadd.f32 %v6420, %v6480
      %v6488 = vadd.f32 %v6421, %v6480
      %v6489 = vadd.f32 %v6422, %v6480
      %v6490 = vadd.f32 %v6423, %v6480
      %v6491 = vadd.f32 %v6424, %v6480
      %v6492 = vadd.f32 %v6425, %v6480
      %v6493 = vadd.f32 %v6426, %v6480
      %v6494 = vadd.f32 %v6427, %v6480
      %v6495 = vadd.f32 %v6428, %v6480
      %v6496 = vadd.f32 %v6429, %v6480
      %v6497 = vadd.f32 %v6430, %v6480
      %v6498 = vadd.f32 %v6431, %v6480
      %v6499 = vadd.f32 %v6432, %v6480
      %v6500 = vadd.f32 %v6433, %v6480
      %v6501 = vadd.f32 %v6434, %v6480
      %v6502 = vadd.f32 %v6435, %v6480
      %v6503 = vadd.f32 %v6436, %v6480
      %v6504 = vadd.f32 %v6437, %v6480
      %v6505 = vadd.f32 %v6438, %v6480
      %v6506 = vadd.f32 %v6439, %v6480
      %v6507 = vadd.f32 %v6440, %v6480
      %v6508 = vadd.f32 %v6441, %v6480
      %v6509 = vadd.f32 %v6442, %v6480
      %v6510 = vadd.f32 %v6443, %v6480
      %v6511 = vadd.f32 %v6444, %v6480
      %v6512 = vadd.f32 %v6445, %v6480
      %v6513 = vadd.f32 %v6446, %v6480
      %v6514 = vadd.f32 %v6447, %v6480
      %v6515 = vadd.f32 %v6448, %v6480
      %v6516 = vadd.f32 %v6449, %v6480
      %v6517 = vadd.f32 %v6450, %v6480
      %v6518 = vadd.f32 %v6451, %v6480
      %v6519 = vadd.f32 %v6452, %v6480
      %v6520 = vadd.f32 %v6453, %v6480
      %v6521 = vadd.f32 %v6454, %v6480
      %v6522 = vadd.f32 %v6455, %v6480
      %v6523 = vadd.f32 %v6456, %v6480
      %v6524 = vadd.f32 %v6457, %v6480
      %v6525 = vadd.f32 %v6458, %v6480
      %v6526 = vadd.f32 %v6459, %v6480
      %v6527 = vadd.f32 %v6460, %v6480
      %v6528 = vadd.f32 %v6461, %v6480
      %v6529 = vadd.f32 %v6462, %v6480
      %v6530 = vadd.f32 %v6463, %v6480
      %v6531 = vadd.f32 %v6464, %v6480
      %v6532 = vadd.f32 %v6465, %v6480
      %v6533 = vadd.f32 %v6466, %v6480
      %v6534 = vadd.f32 %v6467, %v6480
      %v6535 = vadd.f32 %v6468, %v6480
      %v6536 = vadd.f32 %v6469, %v6480
      %v6537 = vadd.f32 %v6470, %v6480
      %v6538 = vadd.f32 %v6471, %v6480
      %v6539 = vadd.f32 %v6472, %v6480
      %v6540 = vadd.f32 %v6473, %v6480
      %v6541 = vadd.f32 %v6474, %v6480
      %v6542 = vadd.f32 %v6475, %v6480
      %v6543 = vadd.f32 %v6476, %v6480
      %v6544 = vadd.f32 %v6477, %v6480
      %v6545 = vadd.f32 %v6478, %v6480
      %v6546 = vadd.f32 %v6482, %v619
      %v6547 = vadd.f32 %v6483, %v620
      %v6548 = vadd.f32 %v6484, %v621
      %v6549 = vadd.f32 %v6485, %v622
      %v6550 = vadd.f32 %v6486, %v623
      %v6551 = vadd.f32 %v6487, %v624
      %v6552 = vadd.f32 %v6488, %v625
      %v6553 = vadd.f32 %v6489, %v626
      %v6554 = vadd.f32 %v6490, %v627
      %v6555 = vadd.f32 %v6491, %v628
      %v6556 = vadd.f32 %v6492, %v629
      %v6557 = vadd.f32 %v6493, %v630
      %v6558 = vadd.f32 %v6494, %v631
      %v6559 = vadd.f32 %v6495, %v632
      %v6560 = vadd.f32 %v6496, %v633
      %v6561 = vadd.f32 %v6497, %v634
      %v6562 = vadd.f32 %v6498, %v635
      %v6563 = vadd.f32 %v6499, %v636
      %v6564 = vadd.f32 %v6500, %v637
      %v6565 = vadd.f32 %v6501, %v638
      %v6566 = vadd.f32 %v6502, %v639
      %v6567 = vadd.f32 %v6503, %v640
      %v6568 = vadd.f32 %v6504, %v641
      %v6569 = vadd.f32 %v6505, %v642
      %v6570 = vadd.f32 %v6506, %v643
      %v6571 = vadd.f32 %v6507, %v644
      %v6572 = vadd.f32 %v6508, %v645
      %v6573 = vadd.f32 %v6509, %v646
      %v6574 = vadd.f32 %v6510, %v647
      %v6575 = vadd.f32 %v6511, %v648
      %v6576 = vadd.f32 %v6512, %v649
      %v6577 = vadd.f32 %v6513, %v650
      %v6578 = vadd.f32 %v6514, %v651
      %v6579 = vadd.f32 %v6515, %v652
      %v6580 = vadd.f32 %v6516, %v653
      %v6581 = vadd.f32 %v6517, %v654
      %v6582 = vadd.f32 %v6518, %v655
      %v6583 = vadd.f32 %v6519, %v656
      %v6584 = vadd.f32 %v6520, %v657
      %v6585 = vadd.f32 %v6521, %v658
      %v6586 = vadd.f32 %v6522, %v659
      %v6587 = vadd.f32 %v6523, %v660
      %v6588 = vadd.f32 %v6524, %v661
      %v6589 = vadd.f32 %v6525, %v662
      %v6590 = vadd.f32 %v6526, %v663
      %v6591 = vadd.f32 %v6527, %v664
      %v6592 = vadd.f32 %v6528, %v665
      %v6593 = vadd.f32 %v6529, %v666
      %v6594 = vadd.f32 %v6530, %v667
      %v6595 = vadd.f32 %v6531, %v668
      %v6596 = vadd.f32 %v6532, %v669
      %v6597 = vadd.f32 %v6533, %v670
      %v6598 = vadd.f32 %v6534, %v671
      %v6599 = vadd.f32 %v6535, %v672
      %v6600 = vadd.f32 %v6536, %v673
      %v6601 = vadd.f32 %v6537, %v674
      %v6602 = vadd.f32 %v6538, %v675
      %v6603 = vadd.f32 %v6539, %v676
      %v6604 = vadd.f32 %v6540, %v677
      %v6605 = vadd.f32 %v6541, %v678
      %v6606 = vadd.f32 %v6542, %v679
      %v6607 = vadd.f32 %v6543, %v680
      %v6608 = vadd.f32 %v6544, %v681
      %v6609 = vadd.f32 %v6545, %v682
      %6610 = vst [vmem:[%s611] sm:$0xff] %v6546
      %6611 = vst [vmem:[%s611 + $0x8] sm:$0xff] %v6547
      %6612 = vst [vmem:[%s611 + $0x10] sm:$0xff] %v6548
      %6613 = vst [vmem:[%s611 + $0x18] sm:$0xff] %v6549
      %6614 = vst [vmem:[%s611 + $0x20] sm:$0xff] %v6550
      %6615 = vst [vmem:[%s611 + $0x28] sm:$0xff] %v6551
      %6616 = vst [vmem:[%s611 + $0x30] sm:$0xff] %v6552
      %6617 = vst [vmem:[%s611 + $0x38] sm:$0xff] %v6553
      %6618 = vst [vmem:[%s611 + $0x40] sm:$0xff] %v6554
      %6619 = vst [vmem:[%s611 + $0x48] sm:$0xff] %v6555
      %6620 = vst [vmem:[%s611 + $0x50] sm:$0xff] %v6556
      %6621 = vst [vmem:[%s611 + $0x58] sm:$0xff] %v6557
      %6622 = vst [vmem:[%s611 + $0x60] sm:$0xff] %v6558
      %6623 = vst [vmem:[%s611 + $0x68] sm:$0xff] %v6559
      %6624 = vst [vmem:[%s611 + $0x70] sm:$0xff] %v6560
      %6625 = vst [vmem:[%s611 + $0x78] sm:$0xff] %v6561
      %6626 = vst [vmem:[%s611 + $0x80] sm:$0xff] %v6562
      %6627 = vst [vmem:[%s611 + $0x88] sm:$0xff] %v6563
      %6628 = vst [vmem:[%s611 + $0x90] sm:$0xff] %v6564
      %6629 = vst [vmem:[%s611 + $0x98] sm:$0xff] %v6565
      %6630 = vst [vmem:[%s611 + $0xa0] sm:$0xff] %v6566
      %6631 = vst [vmem:[%s611 + $0xa8] sm:$0xff] %v6567
      %6632 = vst [vmem:[%s611 + $0xb0] sm:$0xff] %v6568
      %6633 = vst [vmem:[%s611 + $0xb8] sm:$0xff] %v6569
      %6634 = vst [vmem:[%s611 + $0xc0] sm:$0xff] %v6570
      %6635 = vst [vmem:[%s611 + $0xc8] sm:$0xff] %v6571
      %6636 = vst [vmem:[%s611 + $0xd0] sm:$0xff] %v6572
      %6637 = vst [vmem:[%s611 + $0xd8] sm:$0xff] %v6573
      %6638 = vst [vmem:[%s611 + $0xe0] sm:$0xff] %v6574
      %6639 = vst [vmem:[%s611 + $0xe8] sm:$0xff] %v6575
      %6640 = vst [vmem:[%s611 + $0xf0] sm:$0xff] %v6576
      %6641 = vst [vmem:[%s611 + $0xf8] sm:$0xff] %v6577
      %6642 = vst [vmem:[%s611 + $0x100] sm:$0xff] %v6578
      %6643 = vst [vmem:[%s611 + $0x108] sm:$0xff] %v6579
      %6644 = vst [vmem:[%s611 + $0x110] sm:$0xff] %v6580
      %6645 = vst [vmem:[%s611 + $0x118] sm:$0xff] %v6581
      %6646 = vst [vmem:[%s611 + $0x120] sm:$0xff] %v6582
      %6647 = vst [vmem:[%s611 + $0x128] sm:$0xff] %v6583
      %6648 = vst [vmem:[%s611 + $0x130] sm:$0xff] %v6584
      %6649 = vst [vmem:[%s611 + $0x138] sm:$0xff] %v6585
      %6650 = vst [vmem:[%s611 + $0x140] sm:$0xff] %v6586
      %6651 = vst [vmem:[%s611 + $0x148] sm:$0xff] %v6587
      %6652 = vst [vmem:[%s611 + $0x150] sm:$0xff] %v6588
      %6653 = vst [vmem:[%s611 + $0x158] sm:$0xff] %v6589
      %6654 = vst [vmem:[%s611 + $0x160] sm:$0xff] %v6590
      %6655 = vst [vmem:[%s611 + $0x168] sm:$0xff] %v6591
      %6656 = vst [vmem:[%s611 + $0x170] sm:$0xff] %v6592
      %6657 = vst [vmem:[%s611 + $0x178] sm:$0xff] %v6593
      %6658 = vst [vmem:[%s611 + $0x180] sm:$0xff] %v6594
      %6659 = vst [vmem:[%s611 + $0x188] sm:$0xff] %v6595
      %6660 = vst [vmem:[%s611 + $0x190] sm:$0xff] %v6596
      %6661 = vst [vmem:[%s611 + $0x198] sm:$0xff] %v6597
      %6662 = vst [vmem:[%s611 + $0x1a0] sm:$0xff] %v6598
      %6663 = vst [vmem:[%s611 + $0x1a8] sm:$0xff] %v6599
      %6664 = vst [vmem:[%s611 + $0x1b0] sm:$0xff] %v6600
      %6665 = vst [vmem:[%s611 + $0x1b8] sm:$0xff] %v6601
      %6666 = vst [vmem:[%s611 + $0x1c0] sm:$0xff] %v6602
      %6667 = vst [vmem:[%s611 + $0x1c8] sm:$0xff] %v6603
      %6668 = vst [vmem:[%s611 + $0x1d0] sm:$0xff] %v6604
      %6669 = vst [vmem:[%s611 + $0x1d8] sm:$0xff] %v6605
      %6670 = vst [vmem:[%s611 + $0x1e0] sm:$0xff] %v6606
      %6671 = vst [vmem:[%s611 + $0x1e8] sm:$0xff] %v6607
      %6672 = vst [vmem:[%s611 + $0x1f0] sm:$0xff] %v6608
      %6673 = vst [vmem:[%s611 + $0x1f8] sm:$0xff] %v6609
      %s6674 = sadd.s32 %s31, %s32
      %s6675 = smul.u32 64, %s6674
      %p6676 = scmp.lt.s32.totalorder %s6675, 127
      %s6677 = scalar_select %p6676, %s6675, 127
      %s6678 = smul.addr %s6677, 8
      %s6679 = scalar_lea.vmem %s14, %s6678
      %p6680 = scmp.lt.s32.totalorder %s31, 1
      %s6681 = scalar_select %p6680, %s31, 1
      %s6682 = smul.addr %s6681, 32
      %s6683 = smul.addr %s6682, 8
      %s6684 = scalar_lea.vmem %s15, %s6683
      // Predicated region
      $region81: #{graph_net_block.2} parent=75 // pred_check
        %p6685 = pneg %p381
      $region82: #{graph_net_block.2} parent=75 // pred_check_branch
        %6687 = sbr.rel (%p6685) target = $region84
      $region83: #{graph_net_block.2} parent=75 // pred_region
        %s6688 = sadd.s32 %s31, %s32
        %s6689 = smul.u32 64, %s6688
      $region84: #{graph_net_block.2} parent=75 // pred_fallthru
        _
      // Predicated region
      $region85: #{graph_net_block.2} parent=75 // pred_check
        %p6690 = pneg %p407
      $region86: #{graph_net_block.2} parent=75 // pred_check_branch
        %6692 = sbr.rel (%p6690) target = $region88
      $region87: #{graph_net_block.2} parent=75 // pred_region
        _
      $region88: #{graph_net_block.2} parent=75 // pred_fallthru
        _
    $region76: #{graph_net_block.2} parent=5 // pred_fallthru
      _
    %p6693 = scmp.le.s32.totalorder 2, %s22
    // Predicated region
    $region89: #{graph_net_block.2} parent=5 // pred_check
      %p6694 = pneg %p6693
    $region90: #{graph_net_block.2} parent=5 // pred_check_branch
      %6696 = sbr.rel (%p6694) target = $region92
    $region91: #{graph_net_block.2} parent=5 // pred_region
      %s6697 = ssub.s32 %s22, 2
      // Predicated region
      $region93: #{graph_net_block.2} parent=91 // pred_check
        %p6698 = pneg %p387
      $region94: #{graph_net_block.2} parent=91 // pred_check_branch
        %6700 = sbr.rel (%p6698) target = $region96
      $region95: #{graph_net_block.2} parent=91 // pred_region
        %s6701 = sadd.s32 %s33, %s34
        %s6702 = smul.u32 64, %s6701
        %p6703 = scmp.lt.s32.totalorder %s6702, 127
        %s6704 = scalar_select %p6703, %s6702, 127
        %s6705 = smul.addr %s6704, 8
        %s6706 = scalar_lea.vmem %s14, %s6705
      $region96: #{graph_net_block.2} parent=91 // pred_fallthru
        _
      // Predicated region
      $region97: #{graph_net_block.2} parent=91 // pred_check
        %p6707 = pneg %p413
      $region98: #{graph_net_block.2} parent=91 // pred_check_branch
        %6709 = sbr.rel (%p6707) target = $region100
      $region99: #{graph_net_block.2} parent=91 // pred_region
        %p6710 = scmp.lt.s32.totalorder %s33, 1
        %s6711 = scalar_select %p6710, %s33, 1
        %s6712 = smul.addr %s6711, 32
        %s6713 = smul.addr %s6712, 8
        %s6714 = scalar_lea.vmem %s15, %s6713
      $region100: #{graph_net_block.2} parent=91 // pred_fallthru
        _
    $region92: #{graph_net_block.2} parent=5 // pred_fallthru
      _
  $region6: #{graph_net_block.2} parent=0 // loop_footer
    %s26 = sadd.s32 1, %s22
  $region7: #{graph_net_block.2} parent=0 // loop_footer_branch
    %21 = sbr.rel target = $region3
  $region8: #{graph_net_block.2} parent=0 // loop_exit
    _

</llo_original>
